<compile_context>
chip_gen: v7x
topology: tpu7x:2x2x1
jax: 0.10.0
libtpu: 0.0.40
codegen_flags: <defaults>
</compile_context>

<pallas_src>
import functools
import math

import numpy as np

import jax
import jax.numpy as jnp
from jax.experimental import pallas as pl
from jax.experimental.pallas import tpu as pltpu  # noqa: F401  (TPU backend)

# ----------------------------- configuration -----------------------------
ENC_IN   = 4           # enc_in
D_MODEL  = 32          # d_model (scaled down from 512)
N_HEADS  = 4
D_FF     = 4 * D_MODEL  # 128 -> exactly one lane tile
E_LAYERS = 2
D_LAYERS = 1           # decoder norm/projection fusion below assumes 1
FACTOR   = 5
MA_KERNEL = 25         # series_decomp kernel size
PRED_LEN = 8
SEQ_LEN  = 16
BATCH    = 2
LN_EPS   = 1e-5
LANE     = 128         # padded channel width of every activation slab


# ----------------------------- in-kernel helpers -----------------------------
def _mm(a, b):
    return jnp.dot(a, b, preferred_element_type=jnp.float32)


def _gelu_exact(x):
    """Exact (erf-based) GELU, matching F.gelu default.

    TODO(synk): lax.erf has no guaranteed Mosaic lowering, so erf is evaluated
    with the Abramowitz & Stegun 7.1.26 polynomial (|abs err| < 1.5e-7).
    """
    a1, a2, a3 = 0.254829592, -0.284496736, 1.421413741
    a4, a5, p = -1.453152027, 1.061405429, 0.3275911
    z = x * 0.7071067811865476
    az = jnp.abs(z)
    t = 1.0 / (1.0 + p * az)
    poly = ((((a5 * t + a4) * t + a3) * t + a2) * t + a1) * t
    erf_az = 1.0 - poly * jnp.exp(-az * az)
    erf_z = jnp.where(z >= 0.0, erf_az, -erf_az)
    return 0.5 * x * (1.0 + erf_z)


def _layernorm_padded(x, g, b, d_real):
    """LayerNorm over the first `d_real` lanes of a zero-padded (M, 128) slab.

    Padded lanes of x are zero; padded lanes of g/b are zero, so the result
    stays zero-padded.
    """
    scale = x.shape[-1] / float(d_real)
    mu = jnp.mean(x, axis=-1, keepdims=True) * scale
    diff = x - mu
    var = jnp.mean(diff * diff, axis=-1, keepdims=True) * scale - (scale - 1.0) * mu * mu
    return diff * jax.lax.rsqrt(var + LN_EPS) * g + b


# ----------------------------- Pallas kernels -----------------------------
def _mm_bias_kernel(a_ref, w_ref, b_ref, o_ref):
    # single full-height MXU matmul + bias (used for fused QKV / KV projections)
    o_ref[...] = _mm(a_ref[...], w_ref[...]) + b_ref[...]


def _decomp_kernel(x_ref, ma_ref, res_ref, mean_ref):
    # series_decomp: moving average expressed as one matmul with a constant
    # block-diagonal (B*L, B*L) averaging matrix (replicate padding folded in).
    x = x_ref[...]
    mean = _mm(ma_ref[...], x)
    res_ref[...] = x - mean
    mean_ref[...] = mean


def _embed_kernel(x_ref, t_ref, sp_ref, sn_ref, wp_ref, wc_ref, wn_ref, wt_ref, o_ref):
    # TokenEmbedding (Conv1d k=3 circular, no bias) + time Linear(1, d_model)
    x = x_ref[...]
    x_m1 = _mm(sp_ref[...], x)      # x[l-1] (circular, per batch block)
    x_p1 = _mm(sn_ref[...], x)      # x[l+1]
    o_ref[...] = (_mm(x_m1, wp_ref[...]) + _mm(x, wc_ref[...]) + _mm(x_p1, wn_ref[...])
                  + _mm(t_ref[...], wt_ref[...]))


def _enc_layer_kernel(x_ref, qkv_ref, g_ref, ma_ref, wo_ref, bo_ref, w1_ref, w2_ref, o_ref):
    # encoder layer (everything after the QKV projection + FFT glue):
    # delay aggregation, out projection, residual, decomp, FFN, decomp.
    x = x_ref[...]
    agg = _mm(g_ref[...], qkv_ref[...])                 # aggregation over time rows
    attn = _mm(agg, wo_ref[...]) + bo_ref[...]          # out proj reads only V columns
    x1 = x + attn
    s1 = x1 - _mm(ma_ref[...], x1)                      # series_decomp -> seasonal
    y = _mm(_gelu_exact(_mm(s1, w1_ref[...])), w2_ref[...])
    x2 = s1 + y
    o_ref[...] = x2 - _mm(ma_ref[...], x2)


def _lnseq_kernel(x_ref, g_ref, b_ref, pseq_ref, o_ref, *, d_real):
    # my_Layernorm: LayerNorm then subtract the per-batch mean over the seq axis
    xh = _layernorm_padded(x_ref[...], g_ref[...], b_ref[...], d_real)
    o_ref[...] = _mm(pseq_ref[...], xh)


def _dec_self_kernel(x_ref, qkv_ref, g_ref, ma_ref, wo_ref, bo_ref, wq_ref, bq_ref,
                     s_ref, t_ref, q_ref):
    # decoder self-attention tail: aggregation, out proj, residual, decomp,
    # plus the cross-attention query projection (so it needs no extra launch).
    x = x_ref[...]
    agg = _mm(g_ref[...], qkv_ref[...])
    attn = _mm(agg, wo_ref[...]) + bo_ref[...]
    x1 = x + attn
    t1 = _mm(ma_ref[...], x1)
    s1 = x1 - t1
    s_ref[...] = s1
    t_ref[...] = t1
    q_ref[...] = _mm(s1, wq_ref[...]) + bq_ref[...]


def _dec_cross_kernel(s1_ref, t1_ref, kv_ref, g_ref, ma_ref,
                      wo_ref, bo_ref, w1_ref, w2_ref,
                      sp_ref, sn_ref, wtp_ref, wtc_ref, wtn_ref,
                      ng_ref, nb_ref, pseq_ref, wsea_ref, bsea_ref,
                      bcast_ref, trend0_ref, o_ref, *, d_real):
    # decoder cross-attention tail + FFN + decomps + trend Conv1d(d_model->1)
    # + decoder my_Layernorm + Linear(d_model->1) + final trend/seasonal sum.
    s1 = s1_ref[...]
    agg = _mm(g_ref[...], kv_ref[...])
    attn = _mm(agg, wo_ref[...]) + bo_ref[...]
    x2 = s1 + attn
    t2 = _mm(ma_ref[...], x2)
    s2 = x2 - t2
    y = _mm(_gelu_exact(_mm(s2, w1_ref[...])), w2_ref[...])
    x3 = s2 + y
    t3 = _mm(ma_ref[...], x3)
    s3 = x3 - t3
    # residual trend projection (circular conv k=3, d_model -> 1, no bias)
    rt = t1_ref[...] + t2 + t3
    rt_col = (_mm(_mm(sp_ref[...], rt), wtp_ref[...])
              + _mm(rt, wtc_ref[...])
              + _mm(_mm(sn_ref[...], rt), wtn_ref[...]))           # only column 0
    # decoder norm + seasonal projection Linear(d_model, 1)
    xh = _layernorm_padded(s3, ng_ref[...], nb_ref[...], d_real)
    xh = _mm(pseq_ref[...], xh)
    sea_col = _mm(xh, wsea_ref[...]) + bsea_ref[...]               # only column 0
    # output = trend_init + broadcast(residual_trend + seasonal) over enc_in cols
    o_ref[...] = trend0_ref[...] + _mm(rt_col + sea_col, bcast_ref[...])


# ----------------------------- pallas_call wrappers -----------------------------
# All calls are single-block (grid=(), default whole-array VMEM BlockSpecs) per
# the perf review: every tensor fits VMEM trivially, so one full MXU pass each.
def mm_bias(a, w, b):
    return pl.pallas_call(
        _mm_bias_kernel,
        out_shape=jax.ShapeDtypeStruct((a.shape[0], w.shape[1]), jnp.float32),
    )(a, w, b)


def decomp_slab(x_slab, ma_bd):
    shp = jax.ShapeDtypeStruct(x_slab.shape, jnp.float32)
    return pl.pallas_call(_decomp_kernel, out_shape=(shp, shp))(x_slab, ma_bd)


def embed_slab(x_slab, t_slab, sp, sn, emb, wt):
    return pl.pallas_call(
        _embed_kernel,
        out_shape=jax.ShapeDtypeStruct(x_slab.shape, jnp.float32),
    )(x_slab, t_slab, sp, sn, emb["wp"], emb["wc"], emb["wn"], wt)


def enc_layer_post(x, qkv, g_bd, ma_bd, lp):
    return pl.pallas_call(
        _enc_layer_kernel,
        out_shape=jax.ShapeDtypeStruct(x.shape, jnp.float32),
    )(x, qkv, g_bd, ma_bd, lp["wo"], lp["bo"], lp["w1"], lp["w2"])


def layernorm_seq(x, g, b, pseq_bd):
    return pl.pallas_call(
        functools.partial(_lnseq_kernel, d_real=D_MODEL),
        out_shape=jax.ShapeDtypeStruct(x.shape, jnp.float32),
    )(x, g, b, pseq_bd)


def dec_self_post(x, qkv, g_bd, ma_bd, wo, bo, wq, bq):
    shp = jax.ShapeDtypeStruct(x.shape, jnp.float32)
    return pl.pallas_call(
        _dec_self_kernel, out_shape=(shp, shp, shp),
    )(x, qkv, g_bd, ma_bd, wo, bo, wq, bq)


def dec_cross_post(s1, t1, kv_pad, g_bd, ma_bd, wo, bo, w1, w2,
                   sp, sn, wtp, wtc, wtn, ng, nb, pseq_bd, wsea, bsea, bcast, trend0):
    return pl.pallas_call(
        functools.partial(_dec_cross_kernel, d_real=D_MODEL),
        out_shape=jax.ShapeDtypeStruct(s1.shape, jnp.float32),
    )(s1, t1, kv_pad, g_bd, ma_bd, wo, bo, w1, w2,
      sp, sn, wtp, wtc, wtn, ng, nb, pseq_bd, wsea, bsea, bcast, trend0)


# ----------------------------- slab / constant helpers -----------------------------
def to_slab(x):
    """(B, L, C) -> lane-dense zero-padded (B*L, 128) f32 slab."""
    B, L, C = x.shape
    flat = x.reshape(B * L, C).astype(jnp.float32)
    return jnp.pad(flat, ((0, 0), (0, LANE - C)))


def from_slab(s, B, L, C):
    return s[:, :C].reshape(B, L, C)


def _ma_matrix(L, k):
    """(L, L) matrix M s.t. M @ x == AvgPool1d(k, stride=1) over replicate-padded x."""
    pad = (k - 1) // 2
    M = np.zeros((L, L), np.float32)
    for l in range(L):
        for t in range(l, l + k):
            j = min(max(t - pad, 0), L - 1)
            M[l, j] += 1.0 / k
    return M


def _seq_mean_remove_matrix(L):
    return np.eye(L, dtype=np.float32) - np.full((L, L), 1.0 / L, dtype=np.float32)


def _shift_matrix(L, shift):
    """(S @ x)[l] = x[(l + shift) mod L] (circular)."""
    M = np.zeros((L, L), np.float32)
    for l in range(L):
        M[l, (l + shift) % L] = 1.0
    return M


def _block_diag(M, B):
    L = M.shape[0]
    out = np.zeros((B * L, B * L), np.float32)
    for b in range(B):
        out[b * L:(b + 1) * L, b * L:(b + 1) * L] = M
    return out


def build_delay_agg_matrix(q2d, k2d, B, L):
    """AutoCorrelation.time_delay_agg_inference as a (B*L, B*L) block-diagonal
    aggregation matrix G so that (G @ v_slab) reproduces the reference output."""
    H, E = N_HEADS, D_MODEL // N_HEADS
    q = jnp.transpose(q2d.reshape(B, L, H, E), (0, 2, 3, 1))   # (B,H,E,L)
    k = jnp.transpose(k2d.reshape(B, L, H, E), (0, 2, 3, 1))
    # TODO(synk): rfft/irfft and top_k have no Pallas TPU equivalent; stay in XLA.
    qf = jnp.fft.rfft(q, axis=-1)
    kf = jnp.fft.rfft(k, axis=-1)
    corr = jnp.fft.irfft(qf * jnp.conj(kf), n=L, axis=-1)       # (B,H,E,L)
    top_k = int(FACTOR * math.log(L))
    mean_value = jnp.mean(corr, axis=(1, 2))                    # (B, L)
    weights, delay = jax.lax.top_k(mean_value, top_k)           # (B, top_k)
    w = jax.nn.softmax(weights, axis=-1)
    idx = (jnp.arange(L, dtype=jnp.int32)[None, :, None] + delay[:, None, :]) % L
    onehot = jax.nn.one_hot(idx, L, dtype=jnp.float32)          # (B, L, top_k, L)
    G = jnp.einsum("bk,blkj->blj", w, onehot)                   # (B, L, L)
    Gbd = jnp.einsum("blj,bc->blcj", G, jnp.eye(B, dtype=jnp.float32))
    return Gbd.reshape(B * L, B * L)


# ----------------------------- model forward -----------------------------
def model_forward(pp, x_enc, x_dec, time, target_time):
    B, L_enc, C = x_enc.shape
    pred_len = target_time.shape[1]
    L_dec = L_enc + pred_len

    # -------- initial decomposition of the encoder input --------
    x_enc_slab = to_slab(x_enc)
    seasonal_slab, trend_slab = decomp_slab(x_enc_slab, pp["ma_enc"])
    seasonal_enc = from_slab(seasonal_slab, B, L_enc, C)
    trend_enc = from_slab(trend_slab, B, L_enc, C)
    mean = jnp.repeat(jnp.mean(x_enc, axis=1, keepdims=True), pred_len, axis=1)
    trend_init = jnp.concatenate([trend_enc, mean], axis=1)                       # (B,L_dec,C)
    seasonal_init = jnp.concatenate(
        [seasonal_enc, jnp.zeros((B, pred_len, C), jnp.float32)], axis=1)

    # -------- encoder --------
    enc_x = embed_slab(x_enc_slab, to_slab(time),
                       pp["sp_enc"], pp["sn_enc"], pp["emb_enc"], pp["wt"])
    for lp in pp["enc_layers"]:
        qkv = mm_bias(enc_x, lp["wqkv"], lp["bqkv"])                              # fused Q|K|V
        g_bd = build_delay_agg_matrix(qkv[:, :D_MODEL], qkv[:, D_MODEL:2 * D_MODEL],
                                      B, L_enc)
        enc_x = enc_layer_post(enc_x, qkv, g_bd, pp["ma_enc"], lp)
    enc_out = layernorm_seq(enc_x, pp["enc_norm_g"], pp["enc_norm_b"], pp["pseq_enc"])

    # -------- decoder (D_LAYERS == 1; norm/projection fused into the last kernel) ----
    time_dec = jnp.concatenate([time, target_time], axis=1)
    dec_x = embed_slab(to_slab(seasonal_init), to_slab(time_dec),
                       pp["sp_dec"], pp["sn_dec"], pp["emb_dec"], pp["wt"])

    dl = pp["dec_layer"]
    qkv_s = mm_bias(dec_x, dl["self"]["wqkv"], dl["self"]["bqkv"])
    g_self = build_delay_agg_matrix(qkv_s[:, :D_MODEL], qkv_s[:, D_MODEL:2 * D_MODEL],
                                    B, L_dec)
    s1, trend1, q_cross = dec_self_post(
        dec_x, qkv_s, g_self, pp["ma_dec"],
        dl["self"]["wo"], dl["self"]["bo"], dl["cross"]["wq"], dl["cross"]["bq"])

    kv = mm_bias(enc_out, dl["cross"]["wkv"], dl["cross"]["bkv"])                 # fused K|V
    # AutoCorrelation with L > S: zero-pad keys/values along time to L_dec
    kv_pad = jnp.concatenate(
        [kv.reshape(B, L_enc, LANE),
         jnp.zeros((B, L_dec - L_enc, LANE), jnp.float32)], axis=1).reshape(B * L_dec, LANE)
    g_cross = build_delay_agg_matrix(q_cross[:, :D_MODEL], kv_pad[:, :D_MODEL], B, L_dec)

    out_slab = dec_cross_post(
        s1, trend1, kv_pad, g_cross, pp["ma_dec"],
        dl["cross"]["wo"], dl["cross"]["bo"], dl["w1"], dl["w2"],
        pp["sp_dec"], pp["sn_dec"], dl["wtp"], dl["wtc"], dl["wtn"],
        pp["dec_norm_g"], pp["dec_norm_b"], pp["pseq_dec"],
        pp["wsea"], pp["bsea"], pp["bcast"], to_slab(trend_init))

    out = from_slab(out_slab, B, L_dec, C)
    return out[:, -pred_len:, :]


# ----------------------------- parameter init / packing -----------------------------
def init_params(key):
    keys = iter(jax.random.split(key, 64))

    def nrm(shape, scale=0.02):
        return scale * jax.random.normal(next(keys), shape, dtype=jnp.float32)

    def attn_params():
        return dict(
            wq=nrm((D_MODEL, D_MODEL)), bq=nrm((D_MODEL,)),
            wk=nrm((D_MODEL, D_MODEL)), bk=nrm((D_MODEL,)),
            wv=nrm((D_MODEL, D_MODEL)), bv=nrm((D_MODEL,)),
            wo=nrm((D_MODEL, D_MODEL)), bo=nrm((D_MODEL,)),
        )

    enc_layers = [
        dict(attn=attn_params(), w1=nrm((D_MODEL, D_FF)), w2=nrm((D_FF, D_MODEL)))
        for _ in range(E_LAYERS)
    ]
    dec_layers = [
        dict(self_attn=attn_params(), cross_attn=attn_params(),
             w1=nrm((D_MODEL, D_FF)), w2=nrm((D_FF, D_MODEL)),
             proj_w=nrm((1, D_MODEL, 3)))          # Conv1d(d_model, 1, k=3, circular)
        for _ in range(D_LAYERS)
    ]
    ones = jnp.ones((1, 1, D_MODEL), jnp.float32)
    zeros = jnp.zeros((1, 1, D_MODEL), jnp.float32)
    return dict(
        enc_emb=nrm((D_MODEL, ENC_IN, 3)),         # TokenEmbedding conv weight (Cout,Cin,3)
        dec_emb=nrm((D_MODEL, ENC_IN, 3)),
        time_w=nrm((1, D_MODEL)),                  # Linear(1, d_model, bias=False)
        encoder=dict(layers=enc_layers, norm_g=ones, norm_b=zeros),
        decoder=dict(layers=dec_layers, norm_g=ones, norm_b=zeros,
                     proj_w=nrm((D_MODEL, 1)), proj_b=nrm((1,))),
    )


def pack_params(p):
    """Pre-pad / fuse all weights once (outside jit) into 128-lane slabs."""
    f32 = jnp.float32

    def padw(w, ro=0, co=0):
        w = jnp.asarray(w, f32)
        out = jnp.zeros((LANE, LANE), f32)
        return out.at[ro:ro + w.shape[0], co:co + w.shape[1]].set(w)

    def padb(b, co=0):
        b = jnp.asarray(b, f32).reshape(-1)
        out = jnp.zeros((1, LANE), f32)
        return out.at[0, co:co + b.shape[0]].set(b)

    def pack_self_attn(a):
        return dict(
            wqkv=padw(jnp.concatenate([a["wq"], a["wk"], a["wv"]], axis=1)),
            bqkv=padb(jnp.concatenate([a["bq"], a["bk"], a["bv"]])),
            wo=padw(a["wo"], ro=2 * D_MODEL),        # reads V columns of the qkv slab
            bo=padb(a["bo"]),
        )

    def pack_cross_attn(a):
        return dict(
            wq=padw(a["wq"]), bq=padb(a["bq"]),
            wkv=padw(jnp.concatenate([a["wk"], a["wv"]], axis=1)),
            bkv=padb(jnp.concatenate([a["bk"], a["bv"]])),
            wo=padw(a["wo"], ro=D_MODEL),            # reads V columns of the kv slab
            bo=padb(a["bo"]),
        )

    def pack_conv_emb(w):                            # (D_MODEL, ENC_IN, 3)
        return dict(wp=padw(w[:, :, 0].T), wc=padw(w[:, :, 1].T), wn=padw(w[:, :, 2].T))

    enc_layers = [dict(**pack_self_attn(lp["attn"]),
                       w1=padw(lp["w1"]), w2=padw(lp["w2"]))
                  for lp in p["encoder"]["layers"]]

    dl = p["decoder"]["layers"][0]
    dec_layer = dict(
        self=pack_self_attn(dl["self_attn"]),
        cross=pack_cross_attn(dl["cross_attn"]),
        w1=padw(dl["w1"]), w2=padw(dl["w2"]),
        wtp=padw(dl["proj_w"][:, :, 0].T),           # trend Conv1d taps -> column 0
        wtc=padw(dl["proj_w"][:, :, 1].T),
        wtn=padw(dl["proj_w"][:, :, 2].T),
    )

    L_dec = SEQ_LEN + PRED_LEN
    return dict(
        emb_enc=pack_conv_emb(p["enc_emb"]),
        emb_dec=pack_conv_emb(p["dec_emb"]),
        wt=padw(p["time_w"]),
        enc_layers=enc_layers,
        enc_norm_g=padb(p["encoder"]["norm_g"].reshape(-1)),
        enc_norm_b=padb(p["encoder"]["norm_b"].reshape(-1)),
        dec_layer=dec_layer,
        dec_norm_g=padb(p["decoder"]["norm_g"].reshape(-1)),
        dec_norm_b=padb(p["decoder"]["norm_b"].reshape(-1)),
        wsea=padw(p["decoder"]["proj_w"]), bsea=padb(p["decoder"]["proj_b"]),
        bcast=jnp.zeros((LANE, LANE), f32).at[0, :ENC_IN].set(1.0),
        # constant block-diagonal sequence-mixing matrices
        ma_enc=jnp.asarray(_block_diag(_ma_matrix(SEQ_LEN, MA_KERNEL), BATCH)),
        ma_dec=jnp.asarray(_block_diag(_ma_matrix(L_dec, MA_KERNEL), BATCH)),
        pseq_enc=jnp.asarray(_block_diag(_seq_mean_remove_matrix(SEQ_LEN), BATCH)),
        pseq_dec=jnp.asarray(_block_diag(_seq_mean_remove_matrix(L_dec), BATCH)),
        sp_enc=jnp.asarray(_block_diag(_shift_matrix(SEQ_LEN, -1), BATCH)),
        sn_enc=jnp.asarray(_block_diag(_shift_matrix(SEQ_LEN, +1), BATCH)),
        sp_dec=jnp.asarray(_block_diag(_shift_matrix(L_dec, -1), BATCH)),
        sn_dec=jnp.asarray(_block_diag(_shift_matrix(L_dec, +1), BATCH)),
    )


# ----------------------------- main -----------------------------
if __name__ == "__main__":
    key = jax.random.PRNGKey(0)
    kp, k1, k2, k3, k4 = jax.random.split(key, 5)
    params = init_params(kp)
    packed = pack_params(params)          # weights pre-padded / fused once, outside jit

    x_enc = jax.random.normal(k1, (BATCH, SEQ_LEN, ENC_IN), jnp.float32)
    x_dec = jax.random.normal(k2, (BATCH, SEQ_LEN, ENC_IN), jnp.float32)
    time = jax.random.normal(k3, (BATCH, SEQ_LEN, 1), jnp.float32)
    target_time = jax.random.normal(k4, (BATCH, PRED_LEN, 1), jnp.float32)

    out = jax.jit(model_forward)(packed, x_enc, x_dec, time, target_time)
    out = jax.block_until_ready(out)
    assert out.shape == (BATCH, PRED_LEN, ENC_IN), out.shape
    assert bool(jnp.all(jnp.isfinite(out)))
    print("KERNEL_OK")
</pallas_src>

<mosaic_0001>
module attributes {stable_mosaic.version = 11 : i64} {
  func.func @_embed_kernel(%arg0: memref<32x128xf32, #tpu.memory_space<vmem>>, %arg1: memref<32x128xf32, #tpu.memory_space<vmem>>, %arg2: memref<32x32xf32, #tpu.memory_space<vmem>>, %arg3: memref<32x32xf32, #tpu.memory_space<vmem>>, %arg4: memref<128x128xf32, #tpu.memory_space<vmem>>, %arg5: memref<128x128xf32, #tpu.memory_space<vmem>>, %arg6: memref<128x128xf32, #tpu.memory_space<vmem>>, %arg7: memref<128x128xf32, #tpu.memory_space<vmem>>, %arg8: memref<32x128xf32, #tpu.memory_space<vmem>>) attributes {dimension_semantics = [], scalar_prefetch = 0 : i64, scratch_operands = 0 : i64, tpu.core_type = #tpu.core_type<tc>} {
    %c0 = arith.constant 0 : index
    %c0_0 = arith.constant 0 : index
    %0 = vector.load %arg0[%c0, %c0_0] : memref<32x128xf32, #tpu.memory_space<vmem>>, vector<32x128xf32>
    %c0_1 = arith.constant 0 : index
    %c0_2 = arith.constant 0 : index
    %1 = vector.load %arg2[%c0_1, %c0_2] : memref<32x32xf32, #tpu.memory_space<vmem>>, vector<32x32xf32>
    %cst = arith.constant dense<0.000000e+00> : vector<32x128xf32>
    %2 = tpu.matmul %1, %0, %cst {dimension_numbers = #tpu.dot_dimension_numbers<[1], [0], [0], [1], [0, 0, 1, 1], [], []>} : vector<32x32xf32>, vector<32x128xf32>, vector<32x128xf32> -> vector<32x128xf32>
    %c0_3 = arith.constant 0 : index
    %c0_4 = arith.constant 0 : index
    %3 = vector.load %arg3[%c0_3, %c0_4] : memref<32x32xf32, #tpu.memory_space<vmem>>, vector<32x32xf32>
    %cst_5 = arith.constant dense<0.000000e+00> : vector<32x128xf32>
    %4 = tpu.matmul %3, %0, %cst_5 {dimension_numbers = #tpu.dot_dimension_numbers<[1], [0], [0], [1], [0, 0, 1, 1], [], []>} : vector<32x32xf32>, vector<32x128xf32>, vector<32x128xf32> -> vector<32x128xf32>
    %c0_6 = arith.constant 0 : index
    %c0_7 = arith.constant 0 : index
    %5 = vector.load %arg4[%c0_6, %c0_7] : memref<128x128xf32, #tpu.memory_space<vmem>>, vector<128x128xf32>
    %cst_8 = arith.constant dense<0.000000e+00> : vector<32x128xf32>
    %6 = tpu.matmul %2, %5, %cst_8 {dimension_numbers = #tpu.dot_dimension_numbers<[1], [0], [0], [1], [0, 0, 1, 1], [], []>} : vector<32x128xf32>, vector<128x128xf32>, vector<32x128xf32> -> vector<32x128xf32>
    %c0_9 = arith.constant 0 : index
    %c0_10 = arith.constant 0 : index
    %7 = vector.load %arg5[%c0_9, %c0_10] : memref<128x128xf32, #tpu.memory_space<vmem>>, vector<128x128xf32>
    %cst_11 = arith.constant dense<0.000000e+00> : vector<32x128xf32>
    %8 = tpu.matmul %0, %7, %cst_11 {dimension_numbers = #tpu.dot_dimension_numbers<[1], [0], [0], [1], [0, 0, 1, 1], [], []>} : vector<32x128xf32>, vector<128x128xf32>, vector<32x128xf32> -> vector<32x128xf32>
    %9 = arith.addf %6, %8 : vector<32x128xf32>
    %c0_12 = arith.constant 0 : index
    %c0_13 = arith.constant 0 : index
    %10 = vector.load %arg6[%c0_12, %c0_13] : memref<128x128xf32, #tpu.memory_space<vmem>>, vector<128x128xf32>
    %cst_14 = arith.constant dense<0.000000e+00> : vector<32x128xf32>
    %11 = tpu.matmul %4, %10, %cst_14 {dimension_numbers = #tpu.dot_dimension_numbers<[1], [0], [0], [1], [0, 0, 1, 1], [], []>} : vector<32x128xf32>, vector<128x128xf32>, vector<32x128xf32> -> vector<32x128xf32>
    %12 = arith.addf %9, %11 : vector<32x128xf32>
    %c0_15 = arith.constant 0 : index
    %c0_16 = arith.constant 0 : index
    %13 = vector.load %arg1[%c0_15, %c0_16] : memref<32x128xf32, #tpu.memory_space<vmem>>, vector<32x128xf32>
    %c0_17 = arith.constant 0 : index
    %c0_18 = arith.constant 0 : index
    %14 = vector.load %arg7[%c0_17, %c0_18] : memref<128x128xf32, #tpu.memory_space<vmem>>, vector<128x128xf32>
    %cst_19 = arith.constant dense<0.000000e+00> : vector<32x128xf32>
    %15 = tpu.matmul %13, %14, %cst_19 {dimension_numbers = #tpu.dot_dimension_numbers<[1], [0], [0], [1], [0, 0, 1, 1], [], []>} : vector<32x128xf32>, vector<128x128xf32>, vector<32x128xf32> -> vector<32x128xf32>
    %16 = arith.addf %12, %15 : vector<32x128xf32>
    %c0_20 = arith.constant 0 : index
    %c0_21 = arith.constant 0 : index
    %17 = vector.load %arg8[%c0_20, %c0_21] : memref<32x128xf32, #tpu.memory_space<vmem>>, vector<32x128xf32>
    tpu.vector_store %arg8[%c0_20, %c0_21], %16 {strides = array<i32>} : memref<32x128xf32, #tpu.memory_space<vmem>>, vector<32x128xf32>,
    return
  }
}

module attributes {stable_mosaic.version = 11 : i64} {
  func.func @_mm_bias_kernel(%arg0: memref<32x128xf32, #tpu.memory_space<vmem>>, %arg1: memref<128x128xf32, #tpu.memory_space<vmem>>, %arg2: memref<1x128xf32, #tpu.memory_space<vmem>>, %arg3: memref<32x128xf32, #tpu.memory_space<vmem>>) attributes {dimension_semantics = [], scalar_prefetch = 0 : i64, scratch_operands = 0 : i64, tpu.core_type = #tpu.core_type<tc>} {
    %c0 = arith.constant 0 : index
    %c0_0 = arith.constant 0 : index
    %0 = vector.load %arg0[%c0, %c0_0] : memref<32x128xf32, #tpu.memory_space<vmem>>, vector<32x128xf32>
    %c0_1 = arith.constant 0 : index
    %c0_2 = arith.constant 0 : index
    %1 = vector.load %arg1[%c0_1, %c0_2] : memref<128x128xf32, #tpu.memory_space<vmem>>, vector<128x128xf32>
    %cst = arith.constant dense<0.000000e+00> : vector<32x128xf32>
    %2 = tpu.matmul %0, %1, %cst {dimension_numbers = #tpu.dot_dimension_numbers<[1], [0], [0], [1], [0, 0, 1, 1], [], []>} : vector<32x128xf32>, vector<128x128xf32>, vector<32x128xf32> -> vector<32x128xf32>
    %c0_3 = arith.constant 0 : index
    %c0_4 = arith.constant 0 : index
    %3 = vector.load %arg2[%c0_3, %c0_4] : memref<1x128xf32, #tpu.memory_space<vmem>>, vector<1x128xf32>
    %4 = vector.broadcast %3 : vector<1x128xf32> to vector<32x128xf32>
    %5 = arith.addf %2, %4 : vector<32x128xf32>
    %c0_5 = arith.constant 0 : index
    %c0_6 = arith.constant 0 : index
    %6 = vector.load %arg3[%c0_5, %c0_6] : memref<32x128xf32, #tpu.memory_space<vmem>>, vector<32x128xf32>
    tpu.vector_store %arg3[%c0_5, %c0_6], %5 {strides = array<i32>} : memref<32x128xf32, #tpu.memory_space<vmem>>, vector<32x128xf32>,
    return
  }
}

module attributes {stable_mosaic.version = 11 : i64} {
  func.func @_enc_layer_kernel(%arg0: memref<32x128xf32, #tpu.memory_space<vmem>>, %arg1: memref<32x128xf32, #tpu.memory_space<vmem>>, %arg2: memref<32x32xf32, #tpu.memory_space<vmem>>, %arg3: memref<32x32xf32, #tpu.memory_space<vmem>>, %arg4: memref<128x128xf32, #tpu.memory_space<vmem>>, %arg5: memref<1x128xf32, #tpu.memory_space<vmem>>, %arg6: memref<128x128xf32, #tpu.memory_space<vmem>>, %arg7: memref<128x128xf32, #tpu.memory_space<vmem>>, %arg8: memref<32x128xf32, #tpu.memory_space<vmem>>) attributes {dimension_semantics = [], scalar_prefetch = 0 : i64, scratch_operands = 0 : i64, tpu.core_type = #tpu.core_type<tc>} {
    %c0 = arith.constant 0 : index
    %c0_0 = arith.constant 0 : index
    %0 = vector.load %arg0[%c0, %c0_0] : memref<32x128xf32, #tpu.memory_space<vmem>>, vector<32x128xf32>
    %c0_1 = arith.constant 0 : index
    %c0_2 = arith.constant 0 : index
    %1 = vector.load %arg2[%c0_1, %c0_2] : memref<32x32xf32, #tpu.memory_space<vmem>>, vector<32x32xf32>
    %c0_3 = arith.constant 0 : index
    %c0_4 = arith.constant 0 : index
    %2 = vector.load %arg1[%c0_3, %c0_4] : memref<32x128xf32, #tpu.memory_space<vmem>>, vector<32x128xf32>
    %cst = arith.constant dense<0.000000e+00> : vector<32x128xf32>
    %3 = tpu.matmul %1, %2, %cst {dimension_numbers = #tpu.dot_dimension_numbers<[1], [0], [0], [1], [0, 0, 1, 1], [], []>} : vector<32x32xf32>, vector<32x128xf32>, vector<32x128xf32> -> vector<32x128xf32>
    %c0_5 = arith.constant 0 : index
    %c0_6 = arith.constant 0 : index
    %4 = vector.load %arg4[%c0_5, %c0_6] : memref<128x128xf32, #tpu.memory_space<vmem>>, vector<128x128xf32>
    %cst_7 = arith.constant dense<0.000000e+00> : vector<32x128xf32>
    %5 = tpu.matmul %3, %4, %cst_7 {dimension_numbers = #tpu.dot_dimension_numbers<[1], [0], [0], [1], [0, 0, 1, 1], [], []>} : vector<32x128xf32>, vector<128x128xf32>, vector<32x128xf32> -> vector<32x128xf32>
    %c0_8 = arith.constant 0 : index
    %c0_9 = arith.constant 0 : index
    %6 = vector.load %arg5[%c0_8, %c0_9] : memref<1x128xf32, #tpu.memory_space<vmem>>, vector<1x128xf32>
    %7 = vector.broadcast %6 : vector<1x128xf32> to vector<32x128xf32>
    %8 = arith.addf %5, %7 : vector<32x128xf32>
    %9 = arith.addf %0, %8 : vector<32x128xf32>
    %c0_10 = arith.constant 0 : index
    %c0_11 = arith.constant 0 : index
    %10 = vector.load %arg3[%c0_10, %c0_11] : memref<32x32xf32, #tpu.memory_space<vmem>>, vector<32x32xf32>
    %cst_12 = arith.constant dense<0.000000e+00> : vector<32x128xf32>
    %11 = tpu.matmul %10, %9, %cst_12 {dimension_numbers = #tpu.dot_dimension_numbers<[1], [0], [0], [1], [0, 0, 1, 1], [], []>} : vector<32x32xf32>, vector<32x128xf32>, vector<32x128xf32> -> vector<32x128xf32>
    %12 = arith.subf %9, %11 : vector<32x128xf32>
    %c0_13 = arith.constant 0 : index
    %c0_14 = arith.constant 0 : index
    %13 = vector.load %arg6[%c0_13, %c0_14] : memref<128x128xf32, #tpu.memory_space<vmem>>, vector<128x128xf32>
    %cst_15 = arith.constant dense<0.000000e+00> : vector<32x128xf32>
    %14 = tpu.matmul %12, %13, %cst_15 {dimension_numbers = #tpu.dot_dimension_numbers<[1], [0], [0], [1], [0, 0, 1, 1], [], []>} : vector<32x128xf32>, vector<128x128xf32>, vector<32x128xf32> -> vector<32x128xf32>
    %cst_16 = arith.constant 0.707106769 : f32
    %15 = vector.broadcast %cst_16 : f32 to vector<32x128xf32>
    %16 = arith.mulf %14, %15 : vector<32x128xf32>
    %17 = math.absf %16 : vector<32x128xf32>
    %cst_17 = arith.constant 0.327591091 : f32
    %18 = vector.broadcast %cst_17 : f32 to vector<32x128xf32>
    %19 = arith.mulf %18, %17 : vector<32x128xf32>
    %cst_18 = arith.constant 1.000000e+00 : f32
    %20 = vector.broadcast %cst_18 : f32 to vector<32x128xf32>
    %21 = arith.addf %20, %19 : vector<32x128xf32>
    %cst_19 = arith.constant 1.000000e+00 : f32
    %22 = vector.broadcast %cst_19 : f32 to vector<32x128xf32>
    %23 = arith.divf %22, %21 : vector<32x128xf32>
    %cst_20 = arith.constant 1.06140542 : f32
    %24 = vector.broadcast %cst_20 : f32 to vector<32x128xf32>
    %25 = arith.mulf %24, %23 : vector<32x128xf32>
    %cst_21 = arith.constant -1.45315206 : f32
    %26 = vector.broadcast %cst_21 : f32 to vector<32x128xf32>
    %27 = arith.addf %25, %26 : vector<32x128xf32>
    %28 = arith.mulf %27, %23 : vector<32x128xf32>
    %cst_22 = arith.constant 1.42141378 : f32
    %29 = vector.broadcast %cst_22 : f32 to vector<32x128xf32>
    %30 = arith.addf %28, %29 : vector<32x128xf32>
    %31 = arith.mulf %30, %23 : vector<32x128xf32>
    %cst_23 = arith.constant -0.284496725 : f32
    %32 = vector.broadcast %cst_23 : f32 to vector<32x128xf32>
    %33 = arith.addf %31, %32 : vector<32x128xf32>
    %34 = arith.mulf %33, %23 : vector<32x128xf32>
    %cst_24 = arith.constant 0.254829586 : f32
    %35 = vector.broadcast %cst_24 : f32 to vector<32x128xf32>
    %36 = arith.addf %34, %35 : vector<32x128xf32>
    %37 = arith.mulf %36, %23 : vector<32x128xf32>
    %cst_25 = arith.constant 0.000000e+00 : f32
    %38 = vector.broadcast %cst_25 : f32 to vector<32x128xf32>
    %39 = arith.subf %38, %17 : vector<32x128xf32>
    %40 = arith.mulf %39, %17 : vector<32x128xf32>
    %41 = math.exp %40 : vector<32x128xf32>
    %42 = arith.mulf %37, %41 : vector<32x128xf32>
    %cst_26 = arith.constant 1.000000e+00 : f32
    %43 = vector.broadcast %cst_26 : f32 to vector<32x128xf32>
    %44 = arith.subf %43, %42 : vector<32x128xf32>
    %cst_27 = arith.constant 0.000000e+00 : f32
    %45 = vector.broadcast %cst_27 : f32 to vector<32x128xf32>
    %46 = arith.cmpf oge, %16, %45 : vector<32x128xf32>
    %cst_28 = arith.constant 0.000000e+00 : f32
    %47 = vector.broadcast %cst_28 : f32 to vector<32x128xf32>
    %48 = arith.subf %47, %44 : vector<32x128xf32>
    %49 = arith.select %46, %44, %48 : vector<32x128xi1>, vector<32x128xf32>
    %cst_29 = arith.constant 5.000000e-01 : f32
    %50 = vector.broadcast %cst_29 : f32 to vector<32x128xf32>
    %51 = arith.mulf %50, %14 : vector<32x128xf32>
    %cst_30 = arith.constant 1.000000e+00 : f32
    %52 = vector.broadcast %cst_30 : f32 to vector<32x128xf32>
    %53 = arith.addf %52, %49 : vector<32x128xf32>
    %54 = arith.mulf %51, %53 : vector<32x128xf32>
    %c0_31 = arith.constant 0 : index
    %c0_32 = arith.constant 0 : index
    %55 = vector.load %arg7[%c0_31, %c0_32] : memref<128x128xf32, #tpu.memory_space<vmem>>, vector<128x128xf32>
    %cst_33 = arith.constant dense<0.000000e+00> : vector<32x128xf32>
    %56 = tpu.matmul %54, %55, %cst_33 {dimension_numbers = #tpu.dot_dimension_numbers<[1], [0], [0], [1], [0, 0, 1, 1], [], []>} : vector<32x128xf32>, vector<128x128xf32>, vector<32x128xf32> -> vector<32x128xf32>
    %57 = arith.addf %12, %56 : vector<32x128xf32>
    %c0_34 = arith.constant 0 : index
    %c0_35 = arith.constant 0 : index
    %58 = vector.load %arg3[%c0_34, %c0_35] : memref<32x32xf32, #tpu.memory_space<vmem>>, vector<32x32xf32>
    %cst_36 = arith.constant dense<0.000000e+00> : vector<32x128xf32>
    %59 = tpu.matmul %58, %57, %cst_36 {dimension_numbers = #tpu.dot_dimension_numbers<[1], [0], [0], [1], [0, 0, 1, 1], [], []>} : vector<32x32xf32>, vector<32x128xf32>, vector<32x128xf32> -> vector<32x128xf32>
    %60 = arith.subf %57, %59 : vector<32x128xf32>
    %c0_37 = arith.constant 0 : index
    %c0_38 = arith.constant 0 : index
    %61 = vector.load %arg8[%c0_37, %c0_38] : memref<32x128xf32, #tpu.memory_space<vmem>>, vector<32x128xf32>
    tpu.vector_store %arg8[%c0_37, %c0_38], %60 {strides = array<i32>} : memref<32x128xf32, #tpu.memory_space<vmem>>, vector<32x128xf32>,
    return
  }
}

module attributes {stable_mosaic.version = 11 : i64} {
  func.func @_lnseq_kernel(%arg0: memref<32x128xf32, #tpu.memory_space<vmem>>, %arg1: memref<1x128xf32, #tpu.memory_space<vmem>>, %arg2: memref<1x128xf32, #tpu.memory_space<vmem>>, %arg3: memref<32x32xf32, #tpu.memory_space<vmem>>, %arg4: memref<32x128xf32, #tpu.memory_space<vmem>>) attributes {dimension_semantics = [], scalar_prefetch = 0 : i64, scratch_operands = 0 : i64, tpu.core_type = #tpu.core_type<tc>} {
    %c0 = arith.constant 0 : index
    %c0_0 = arith.constant 0 : index
    %0 = vector.load %arg0[%c0, %c0_0] : memref<32x128xf32, #tpu.memory_space<vmem>>, vector<32x128xf32>
    %c0_1 = arith.constant 0 : index
    %c0_2 = arith.constant 0 : index
    %1 = vector.load %arg1[%c0_1, %c0_2] : memref<1x128xf32, #tpu.memory_space<vmem>>, vector<1x128xf32>
    %c0_3 = arith.constant 0 : index
    %c0_4 = arith.constant 0 : index
    %2 = vector.load %arg2[%c0_3, %c0_4] : memref<1x128xf32, #tpu.memory_space<vmem>>, vector<1x128xf32>
    %cst = arith.constant dense<0.000000e+00> : vector<32xf32>
    %3 = vector.multi_reduction <add>, %0, %cst [1] : vector<32x128xf32> to vector<32xf32>
    %4 = vector.shape_cast %3 : vector<32xf32> to vector<32x1xf32>
    %cst_5 = arith.constant 1.280000e+02 : f32
    %5 = vector.broadcast %cst_5 : f32 to vector<32x1xf32>
    %6 = arith.divf %4, %5 : vector<32x1xf32>
    %cst_6 = arith.constant 4.000000e+00 : f32
    %7 = vector.broadcast %cst_6 : f32 to vector<32x1xf32>
    %8 = arith.mulf %6, %7 : vector<32x1xf32>
    %9 = vector.broadcast %8 : vector<32x1xf32> to vector<32x128xf32>
    %10 = arith.subf %0, %9 : vector<32x128xf32>
    %11 = arith.mulf %10, %10 : vector<32x128xf32>
    %cst_7 = arith.constant dense<0.000000e+00> : vector<32xf32>
    %12 = vector.multi_reduction <add>, %11, %cst_7 [1] : vector<32x128xf32> to vector<32xf32>
    %13 = vector.shape_cast %12 : vector<32xf32> to vector<32x1xf32>
    %cst_8 = arith.constant 1.280000e+02 : f32
    %14 = vector.broadcast %cst_8 : f32 to vector<32x1xf32>
    %15 = arith.divf %13, %14 : vector<32x1xf32>
    %cst_9 = arith.constant 4.000000e+00 : f32
    %16 = vector.broadcast %cst_9 : f32 to vector<32x1xf32>
    %17 = arith.mulf %15, %16 : vector<32x1xf32>
    %cst_10 = arith.constant 3.000000e+00 : f32
    %18 = vector.broadcast %cst_10 : f32 to vector<32x1xf32>
    %19 = arith.mulf %18, %8 : vector<32x1xf32>
    %20 = arith.mulf %19, %8 : vector<32x1xf32>
    %21 = arith.subf %17, %20 : vector<32x1xf32>
    %cst_11 = arith.constant 9.99999974E-6 : f32
    %22 = vector.broadcast %cst_11 : f32 to vector<32x1xf32>
    %23 = arith.addf %21, %22 : vector<32x1xf32>
    %24 = math.rsqrt %23 : vector<32x1xf32>
    %25 = vector.broadcast %24 : vector<32x1xf32> to vector<32x128xf32>
    %26 = arith.mulf %10, %25 : vector<32x128xf32>
    %27 = vector.broadcast %1 : vector<1x128xf32> to vector<32x128xf32>
    %28 = arith.mulf %26, %27 : vector<32x128xf32>
    %29 = vector.broadcast %2 : vector<1x128xf32> to vector<32x128xf32>
    %30 = arith.addf %28, %29 : vector<32x128xf32>
    %c0_12 = arith.constant 0 : index
    %c0_13 = arith.constant 0 : index
    %31 = vector.load %arg3[%c0_12, %c0_13] : memref<32x32xf32, #tpu.memory_space<vmem>>, vector<32x32xf32>
    %cst_14 = arith.constant dense<0.000000e+00> : vector<32x128xf32>
    %32 = tpu.matmul %31, %30, %cst_14 {dimension_numbers = #tpu.dot_dimension_numbers<[1], [0], [0], [1], [0, 0, 1, 1], [], []>} : vector<32x32xf32>, vector<32x128xf32>, vector<32x128xf32> -> vector<32x128xf32>
    %c0_15 = arith.constant 0 : index
    %c0_16 = arith.constant 0 : index
    %33 = vector.load %arg4[%c0_15, %c0_16] : memref<32x128xf32, #tpu.memory_space<vmem>>, vector<32x128xf32>
    tpu.vector_store %arg4[%c0_15, %c0_16], %32 {strides = array<i32>} : memref<32x128xf32, #tpu.memory_space<vmem>>, vector<32x128xf32>,
    return
  }
}

module attributes {stable_mosaic.version = 11 : i64} {
  func.func @_decomp_kernel(%arg0: memref<32x128xf32, #tpu.memory_space<vmem>>, %arg1: memref<32x32xf32, #tpu.memory_space<vmem>>, %arg2: memref<32x128xf32, #tpu.memory_space<vmem>>, %arg3: memref<32x128xf32, #tpu.memory_space<vmem>>) attributes {dimension_semantics = [], scalar_prefetch = 0 : i64, scratch_operands = 0 : i64, tpu.core_type = #tpu.core_type<tc>} {
    %c0 = arith.constant 0 : index
    %c0_0 = arith.constant 0 : index
    %0 = vector.load %arg0[%c0, %c0_0] : memref<32x128xf32, #tpu.memory_space<vmem>>, vector<32x128xf32>
    %c0_1 = arith.constant 0 : index
    %c0_2 = arith.constant 0 : index
    %1 = vector.load %arg1[%c0_1, %c0_2] : memref<32x32xf32, #tpu.memory_space<vmem>>, vector<32x32xf32>
    %cst = arith.constant dense<0.000000e+00> : vector<32x128xf32>
    %2 = tpu.matmul %1, %0, %cst {dimension_numbers = #tpu.dot_dimension_numbers<[1], [0], [0], [1], [0, 0, 1, 1], [], []>} : vector<32x32xf32>, vector<32x128xf32>, vector<32x128xf32> -> vector<32x128xf32>
    %3 = arith.subf %0, %2 : vector<32x128xf32>
    %c0_3 = arith.constant 0 : index
    %c0_4 = arith.constant 0 : index
    %4 = vector.load %arg2[%c0_3, %c0_4] : memref<32x128xf32, #tpu.memory_space<vmem>>, vector<32x128xf32>
    tpu.vector_store %arg2[%c0_3, %c0_4], %3 {strides = array<i32>} : memref<32x128xf32, #tpu.memory_space<vmem>>, vector<32x128xf32>,
    %c0_5 = arith.constant 0 : index
    %c0_6 = arith.constant 0 : index
    %5 = vector.load %arg3[%c0_5, %c0_6] : memref<32x128xf32, #tpu.memory_space<vmem>>, vector<32x128xf32>
    tpu.vector_store %arg3[%c0_5, %c0_6], %2 {strides = array<i32>} : memref<32x128xf32, #tpu.memory_space<vmem>>, vector<32x128xf32>,
    return
  }
}

module attributes {stable_mosaic.version = 11 : i64} {
  func.func @_embed_kernel(%arg0: memref<48x128xf32, #tpu.memory_space<vmem>>, %arg1: memref<48x128xf32, #tpu.memory_space<vmem>>, %arg2: memref<48x48xf32, #tpu.memory_space<vmem>>, %arg3: memref<48x48xf32, #tpu.memory_space<vmem>>, %arg4: memref<128x128xf32, #tpu.memory_space<vmem>>, %arg5: memref<128x128xf32, #tpu.memory_space<vmem>>, %arg6: memref<128x128xf32, #tpu.memory_space<vmem>>, %arg7: memref<128x128xf32, #tpu.memory_space<vmem>>, %arg8: memref<48x128xf32, #tpu.memory_space<vmem>>) attributes {dimension_semantics = [], scalar_prefetch = 0 : i64, scratch_operands = 0 : i64, tpu.core_type = #tpu.core_type<tc>} {
    %c0 = arith.constant 0 : index
    %c0_0 = arith.constant 0 : index
    %0 = vector.load %arg0[%c0, %c0_0] : memref<48x128xf32, #tpu.memory_space<vmem>>, vector<48x128xf32>
    %c0_1 = arith.constant 0 : index
    %c0_2 = arith.constant 0 : index
    %1 = vector.load %arg2[%c0_1, %c0_2] : memref<48x48xf32, #tpu.memory_space<vmem>>, vector<48x48xf32>
    %cst = arith.constant dense<0.000000e+00> : vector<48x128xf32>
    %2 = tpu.matmul %1, %0, %cst {dimension_numbers = #tpu.dot_dimension_numbers<[1], [0], [0], [1], [0, 0, 1, 1], [], []>} : vector<48x48xf32>, vector<48x128xf32>, vector<48x128xf32> -> vector<48x128xf32>
    %c0_3 = arith.constant 0 : index
    %c0_4 = arith.constant 0 : index
    %3 = vector.load %arg3[%c0_3, %c0_4] : memref<48x48xf32, #tpu.memory_space<vmem>>, vector<48x48xf32>
    %cst_5 = arith.constant dense<0.000000e+00> : vector<48x128xf32>
    %4 = tpu.matmul %3, %0, %cst_5 {dimension_numbers = #tpu.dot_dimension_numbers<[1], [0], [0], [1], [0, 0, 1, 1], [], []>} : vector<48x48xf32>, vector<48x128xf32>, vector<48x128xf32> -> vector<48x128xf32>
    %c0_6 = arith.constant 0 : index
    %c0_7 = arith.constant 0 : index
    %5 = vector.load %arg4[%c0_6, %c0_7] : memref<128x128xf32, #tpu.memory_space<vmem>>, vector<128x128xf32>
    %cst_8 = arith.constant dense<0.000000e+00> : vector<48x128xf32>
    %6 = tpu.matmul %2, %5, %cst_8 {dimension_numbers = #tpu.dot_dimension_numbers<[1], [0], [0], [1], [0, 0, 1, 1], [], []>} : vector<48x128xf32>, vector<128x128xf32>, vector<48x128xf32> -> vector<48x128xf32>
    %c0_9 = arith.constant 0 : index
    %c0_10 = arith.constant 0 : index
    %7 = vector.load %arg5[%c0_9, %c0_10] : memref<128x128xf32, #tpu.memory_space<vmem>>, vector<128x128xf32>
    %cst_11 = arith.constant dense<0.000000e+00> : vector<48x128xf32>
    %8 = tpu.matmul %0, %7, %cst_11 {dimension_numbers = #tpu.dot_dimension_numbers<[1], [0], [0], [1], [0, 0, 1, 1], [], []>} : vector<48x128xf32>, vector<128x128xf32>, vector<48x128xf32> -> vector<48x128xf32>
    %9 = arith.addf %6, %8 : vector<48x128xf32>
    %c0_12 = arith.constant 0 : index
    %c0_13 = arith.constant 0 : index
    %10 = vector.load %arg6[%c0_12, %c0_13] : memref<128x128xf32, #tpu.memory_space<vmem>>, vector<128x128xf32>
    %cst_14 = arith.constant dense<0.000000e+00> : vector<48x128xf32>
    %11 = tpu.matmul %4, %10, %cst_14 {dimension_numbers = #tpu.dot_dimension_numbers<[1], [0], [0], [1], [0, 0, 1, 1], [], []>} : vector<48x128xf32>, vector<128x128xf32>, vector<48x128xf32> -> vector<48x128xf32>
    %12 = arith.addf %9, %11 : vector<48x128xf32>
    %c0_15 = arith.constant 0 : index
    %c0_16 = arith.constant 0 : index
    %13 = vector.load %arg1[%c0_15, %c0_16] : memref<48x128xf32, #tpu.memory_space<vmem>>, vector<48x128xf32>
    %c0_17 = arith.constant 0 : index
    %c0_18 = arith.constant 0 : index
    %14 = vector.load %arg7[%c0_17, %c0_18] : memref<128x128xf32, #tpu.memory_space<vmem>>, vector<128x128xf32>
    %cst_19 = arith.constant dense<0.000000e+00> : vector<48x128xf32>
    %15 = tpu.matmul %13, %14, %cst_19 {dimension_numbers = #tpu.dot_dimension_numbers<[1], [0], [0], [1], [0, 0, 1, 1], [], []>} : vector<48x128xf32>, vector<128x128xf32>, vector<48x128xf32> -> vector<48x128xf32>
    %16 = arith.addf %12, %15 : vector<48x128xf32>
    %c0_20 = arith.constant 0 : index
    %c0_21 = arith.constant 0 : index
    %17 = vector.load %arg8[%c0_20, %c0_21] : memref<48x128xf32, #tpu.memory_space<vmem>>, vector<48x128xf32>
    tpu.vector_store %arg8[%c0_20, %c0_21], %16 {strides = array<i32>} : memref<48x128xf32, #tpu.memory_space<vmem>>, vector<48x128xf32>,
    return
  }
}

module attributes {stable_mosaic.version = 11 : i64} {
  func.func @_mm_bias_kernel(%arg0: memref<48x128xf32, #tpu.memory_space<vmem>>, %arg1: memref<128x128xf32, #tpu.memory_space<vmem>>, %arg2: memref<1x128xf32, #tpu.memory_space<vmem>>, %arg3: memref<48x128xf32, #tpu.memory_space<vmem>>) attributes {dimension_semantics = [], scalar_prefetch = 0 : i64, scratch_operands = 0 : i64, tpu.core_type = #tpu.core_type<tc>} {
    %c0 = arith.constant 0 : index
    %c0_0 = arith.constant 0 : index
    %0 = vector.load %arg0[%c0, %c0_0] : memref<48x128xf32, #tpu.memory_space<vmem>>, vector<48x128xf32>
    %c0_1 = arith.constant 0 : index
    %c0_2 = arith.constant 0 : index
    %1 = vector.load %arg1[%c0_1, %c0_2] : memref<128x128xf32, #tpu.memory_space<vmem>>, vector<128x128xf32>
    %cst = arith.constant dense<0.000000e+00> : vector<48x128xf32>
    %2 = tpu.matmul %0, %1, %cst {dimension_numbers = #tpu.dot_dimension_numbers<[1], [0], [0], [1], [0, 0, 1, 1], [], []>} : vector<48x128xf32>, vector<128x128xf32>, vector<48x128xf32> -> vector<48x128xf32>
    %c0_3 = arith.constant 0 : index
    %c0_4 = arith.constant 0 : index
    %3 = vector.load %arg2[%c0_3, %c0_4] : memref<1x128xf32, #tpu.memory_space<vmem>>, vector<1x128xf32>
    %4 = vector.broadcast %3 : vector<1x128xf32> to vector<48x128xf32>
    %5 = arith.addf %2, %4 : vector<48x128xf32>
    %c0_5 = arith.constant 0 : index
    %c0_6 = arith.constant 0 : index
    %6 = vector.load %arg3[%c0_5, %c0_6] : memref<48x128xf32, #tpu.memory_space<vmem>>, vector<48x128xf32>
    tpu.vector_store %arg3[%c0_5, %c0_6], %5 {strides = array<i32>} : memref<48x128xf32, #tpu.memory_space<vmem>>, vector<48x128xf32>,
    return
  }
}

module attributes {stable_mosaic.version = 11 : i64} {
  func.func @_dec_self_kernel(%arg0: memref<48x128xf32, #tpu.memory_space<vmem>>, %arg1: memref<48x128xf32, #tpu.memory_space<vmem>>, %arg2: memref<48x48xf32, #tpu.memory_space<vmem>>, %arg3: memref<48x48xf32, #tpu.memory_space<vmem>>, %arg4: memref<128x128xf32, #tpu.memory_space<vmem>>, %arg5: memref<1x128xf32, #tpu.memory_space<vmem>>, %arg6: memref<128x128xf32, #tpu.memory_space<vmem>>, %arg7: memref<1x128xf32, #tpu.memory_space<vmem>>, %arg8: memref<48x128xf32, #tpu.memory_space<vmem>>, %arg9: memref<48x128xf32, #tpu.memory_space<vmem>>, %arg10: memref<48x128xf32, #tpu.memory_space<vmem>>) attributes {dimension_semantics = [], scalar_prefetch = 0 : i64, scratch_operands = 0 : i64, tpu.core_type = #tpu.core_type<tc>} {
    %c0 = arith.constant 0 : index
    %c0_0 = arith.constant 0 : index
    %0 = vector.load %arg0[%c0, %c0_0] : memref<48x128xf32, #tpu.memory_space<vmem>>, vector<48x128xf32>
    %c0_1 = arith.constant 0 : index
    %c0_2 = arith.constant 0 : index
    %1 = vector.load %arg2[%c0_1, %c0_2] : memref<48x48xf32, #tpu.memory_space<vmem>>, vector<48x48xf32>
    %c0_3 = arith.constant 0 : index
    %c0_4 = arith.constant 0 : index
    %2 = vector.load %arg1[%c0_3, %c0_4] : memref<48x128xf32, #tpu.memory_space<vmem>>, vector<48x128xf32>
    %cst = arith.constant dense<0.000000e+00> : vector<48x128xf32>
    %3 = tpu.matmul %1, %2, %cst {dimension_numbers = #tpu.dot_dimension_numbers<[1], [0], [0], [1], [0, 0, 1, 1], [], []>} : vector<48x48xf32>, vector<48x128xf32>, vector<48x128xf32> -> vector<48x128xf32>
    %c0_5 = arith.constant 0 : index
    %c0_6 = arith.constant 0 : index
    %4 = vector.load %arg4[%c0_5, %c0_6] : memref<128x128xf32, #tpu.memory_space<vmem>>, vector<128x128xf32>
    %cst_7 = arith.constant dense<0.000000e+00> : vector<48x128xf32>
    %5 = tpu.matmul %3, %4, %cst_7 {dimension_numbers = #tpu.dot_dimension_numbers<[1], [0], [0], [1], [0, 0, 1, 1], [], []>} : vector<48x128xf32>, vector<128x128xf32>, vector<48x128xf32> -> vector<48x128xf32>
    %c0_8 = arith.constant 0 : index
    %c0_9 = arith.constant 0 : index
    %6 = vector.load %arg5[%c0_8, %c0_9] : memref<1x128xf32, #tpu.memory_space<vmem>>, vector<1x128xf32>
    %7 = vector.broadcast %6 : vector<1x128xf32> to vector<48x128xf32>
    %8 = arith.addf %5, %7 : vector<48x128xf32>
    %9 = arith.addf %0, %8 : vector<48x128xf32>
    %c0_10 = arith.constant 0 : index
    %c0_11 = arith.constant 0 : index
    %10 = vector.load %arg3[%c0_10, %c0_11] : memref<48x48xf32, #tpu.memory_space<vmem>>, vector<48x48xf32>
    %cst_12 = arith.constant dense<0.000000e+00> : vector<48x128xf32>
    %11 = tpu.matmul %10, %9, %cst_12 {dimension_numbers = #tpu.dot_dimension_numbers<[1], [0], [0], [1], [0, 0, 1, 1], [], []>} : vector<48x48xf32>, vector<48x128xf32>, vector<48x128xf32> -> vector<48x128xf32>
    %12 = arith.subf %9, %11 : vector<48x128xf32>
    %c0_13 = arith.constant 0 : index
    %c0_14 = arith.constant 0 : index
    %13 = vector.load %arg8[%c0_13, %c0_14] : memref<48x128xf32, #tpu.memory_space<vmem>>, vector<48x128xf32>
    tpu.vector_store %arg8[%c0_13, %c0_14], %12 {strides = array<i32>} : memref<48x128xf32, #tpu.memory_space<vmem>>, vector<48x128xf32>,
    %c0_15 = arith.constant 0 : index
    %c0_16 = arith.constant 0 : index
    %14 = vector.load %arg9[%c0_15, %c0_16] : memref<48x128xf32, #tpu.memory_space<vmem>>, vector<48x128xf32>
    tpu.vector_store %arg9[%c0_15, %c0_16], %11 {strides = array<i32>} : memref<48x128xf32, #tpu.memory_space<vmem>>, vector<48x128xf32>,
    %c0_17 = arith.constant 0 : index
    %c0_18 = arith.constant 0 : index
    %15 = vector.load %arg6[%c0_17, %c0_18] : memref<128x128xf32, #tpu.memory_space<vmem>>, vector<128x128xf32>
    %cst_19 = arith.constant dense<0.000000e+00> : vector<48x128xf32>
    %16 = tpu.matmul %12, %15, %cst_19 {dimension_numbers = #tpu.dot_dimension_numbers<[1], [0], [0], [1], [0, 0, 1, 1], [], []>} : vector<48x128xf32>, vector<128x128xf32>, vector<48x128xf32> -> vector<48x128xf32>
    %c0_20 = arith.constant 0 : index
    %c0_21 = arith.constant 0 : index
    %17 = vector.load %arg7[%c0_20, %c0_21] : memref<1x128xf32, #tpu.memory_space<vmem>>, vector<1x128xf32>
    %18 = vector.broadcast %17 : vector<1x128xf32> to vector<48x128xf32>
    %19 = arith.addf %16, %18 : vector<48x128xf32>
    %c0_22 = arith.constant 0 : index
    %c0_23 = arith.constant 0 : index
    %20 = vector.load %arg10[%c0_22, %c0_23] : memref<48x128xf32, #tpu.memory_space<vmem>>, vector<48x128xf32>
    tpu.vector_store %arg10[%c0_22, %c0_23], %19 {strides = array<i32>} : memref<48x128xf32, #tpu.memory_space<vmem>>, vector<48x128xf32>,
    return
  }
}

module attributes {stable_mosaic.version = 11 : i64} {
  func.func @_dec_cross_kernel(%arg0: memref<48x128xf32, #tpu.memory_space<vmem>>, %arg1: memref<48x128xf32, #tpu.memory_space<vmem>>, %arg2: memref<48x128xf32, #tpu.memory_space<vmem>>, %arg3: memref<48x48xf32, #tpu.memory_space<vmem>>, %arg4: memref<48x48xf32, #tpu.memory_space<vmem>>, %arg5: memref<128x128xf32, #tpu.memory_space<vmem>>, %arg6: memref<1x128xf32, #tpu.memory_space<vmem>>, %arg7: memref<128x128xf32, #tpu.memory_space<vmem>>, %arg8: memref<128x128xf32, #tpu.memory_space<vmem>>, %arg9: memref<48x48xf32, #tpu.memory_space<vmem>>, %arg10: memref<48x48xf32, #tpu.memory_space<vmem>>, %arg11: memref<128x128xf32, #tpu.memory_space<vmem>>, %arg12: memref<128x128xf32, #tpu.memory_space<vmem>>, %arg13: memref<128x128xf32, #tpu.memory_space<vmem>>, %arg14: memref<1x128xf32, #tpu.memory_space<vmem>>, %arg15: memref<1x128xf32, #tpu.memory_space<vmem>>, %arg16: memref<48x48xf32, #tpu.memory_space<vmem>>, %arg17: memref<128x128xf32, #tpu.memory_space<vmem>>, %arg18: memref<1x128xf32, #tpu.memory_space<vmem>>, %arg19: memref<128x128xf32, #tpu.memory_space<vmem>>, %arg20: memref<48x128xf32, #tpu.memory_space<vmem>>, %arg21: memref<48x128xf32, #tpu.memory_space<vmem>>) attributes {dimension_semantics = [], scalar_prefetch = 0 : i64, scratch_operands = 0 : i64, tpu.core_type = #tpu.core_type<tc>} {
    %c0 = arith.constant 0 : index
    %c0_0 = arith.constant 0 : index
    %0 = vector.load %arg0[%c0, %c0_0] : memref<48x128xf32, #tpu.memory_space<vmem>>, vector<48x128xf32>
    %c0_1 = arith.constant 0 : index
    %c0_2 = arith.constant 0 : index
    %1 = vector.load %arg3[%c0_1, %c0_2] : memref<48x48xf32, #tpu.memory_space<vmem>>, vector<48x48xf32>
    %c0_3 = arith.constant 0 : index
    %c0_4 = arith.constant 0 : index
    %2 = vector.load %arg2[%c0_3, %c0_4] : memref<48x128xf32, #tpu.memory_space<vmem>>, vector<48x128xf32>
    %cst = arith.constant dense<0.000000e+00> : vector<48x128xf32>
    %3 = tpu.matmul %1, %2, %cst {dimension_numbers = #tpu.dot_dimension_numbers<[1], [0], [0], [1], [0, 0, 1, 1], [], []>} : vector<48x48xf32>, vector<48x128xf32>, vector<48x128xf32> -> vector<48x128xf32>
    %c0_5 = arith.constant 0 : index
    %c0_6 = arith.constant 0 : index
    %4 = vector.load %arg5[%c0_5, %c0_6] : memref<128x128xf32, #tpu.memory_space<vmem>>, vector<128x128xf32>
    %cst_7 = arith.constant dense<0.000000e+00> : vector<48x128xf32>
    %5 = tpu.matmul %3, %4, %cst_7 {dimension_numbers = #tpu.dot_dimension_numbers<[1], [0], [0], [1], [0, 0, 1, 1], [], []>} : vector<48x128xf32>, vector<128x128xf32>, vector<48x128xf32> -> vector<48x128xf32>
    %c0_8 = arith.constant 0 : index
    %c0_9 = arith.constant 0 : index
    %6 = vector.load %arg6[%c0_8, %c0_9] : memref<1x128xf32, #tpu.memory_space<vmem>>, vector<1x128xf32>
    %7 = vector.broadcast %6 : vector<1x128xf32> to vector<48x128xf32>
    %8 = arith.addf %5, %7 : vector<48x128xf32>
    %9 = arith.addf %0, %8 : vector<48x128xf32>
    %c0_10 = arith.constant 0 : index
    %c0_11 = arith.constant 0 : index
    %10 = vector.load %arg4[%c0_10, %c0_11] : memref<48x48xf32, #tpu.memory_space<vmem>>, vector<48x48xf32>
    %cst_12 = arith.constant dense<0.000000e+00> : vector<48x128xf32>
    %11 = tpu.matmul %10, %9, %cst_12 {dimension_numbers = #tpu.dot_dimension_numbers<[1], [0], [0], [1], [0, 0, 1, 1], [], []>} : vector<48x48xf32>, vector<48x128xf32>, vector<48x128xf32> -> vector<48x128xf32>
    %12 = arith.subf %9, %11 : vector<48x128xf32>
    %c0_13 = arith.constant 0 : index
    %c0_14 = arith.constant 0 : index
    %13 = vector.load %arg7[%c0_13, %c0_14] : memref<128x128xf32, #tpu.memory_space<vmem>>, vector<128x128xf32>
    %cst_15 = arith.constant dense<0.000000e+00> : vector<48x128xf32>
    %14 = tpu.matmul %12, %13, %cst_15 {dimension_numbers = #tpu.dot_dimension_numbers<[1], [0], [0], [1], [0, 0, 1, 1], [], []>} : vector<48x128xf32>, vector<128x128xf32>, vector<48x128xf32> -> vector<48x128xf32>
    %cst_16 = arith.constant 0.707106769 : f32
    %15 = vector.broadcast %cst_16 : f32 to vector<48x128xf32>
    %16 = arith.mulf %14, %15 : vector<48x128xf32>
    %17 = math.absf %16 : vector<48x128xf32>
    %cst_17 = arith.constant 0.327591091 : f32
    %18 = vector.broadcast %cst_17 : f32 to vector<48x128xf32>
    %19 = arith.mulf %18, %17 : vector<48x128xf32>
    %cst_18 = arith.constant 1.000000e+00 : f32
    %20 = vector.broadcast %cst_18 : f32 to vector<48x128xf32>
    %21 = arith.addf %20, %19 : vector<48x128xf32>
    %cst_19 = arith.constant 1.000000e+00 : f32
    %22 = vector.broadcast %cst_19 : f32 to vector<48x128xf32>
    %23 = arith.divf %22, %21 : vector<48x128xf32>
    %cst_20 = arith.constant 1.06140542 : f32
    %24 = vector.broadcast %cst_20 : f32 to vector<48x128xf32>
    %25 = arith.mulf %24, %23 : vector<48x128xf32>
    %cst_21 = arith.constant -1.45315206 : f32
    %26 = vector.broadcast %cst_21 : f32 to vector<48x128xf32>
    %27 = arith.addf %25, %26 : vector<48x128xf32>
    %28 = arith.mulf %27, %23 : vector<48x128xf32>
    %cst_22 = arith.constant 1.42141378 : f32
    %29 = vector.broadcast %cst_22 : f32 to vector<48x128xf32>
    %30 = arith.addf %28, %29 : vector<48x128xf32>
    %31 = arith.mulf %30, %23 : vector<48x128xf32>
    %cst_23 = arith.constant -0.284496725 : f32
    %32 = vector.broadcast %cst_23 : f32 to vector<48x128xf32>
    %33 = arith.addf %31, %32 : vector<48x128xf32>
    %34 = arith.mulf %33, %23 : vector<48x128xf32>
    %cst_24 = arith.constant 0.254829586 : f32
    %35 = vector.broadcast %cst_24 : f32 to vector<48x128xf32>
    %36 = arith.addf %34, %35 : vector<48x128xf32>
    %37 = arith.mulf %36, %23 : vector<48x128xf32>
    %cst_25 = arith.constant 0.000000e+00 : f32
    %38 = vector.broadcast %cst_25 : f32 to vector<48x128xf32>
    %39 = arith.subf %38, %17 : vector<48x128xf32>
    %40 = arith.mulf %39, %17 : vector<48x128xf32>
    %41 = math.exp %40 : vector<48x128xf32>
    %42 = arith.mulf %37, %41 : vector<48x128xf32>
    %cst_26 = arith.constant 1.000000e+00 : f32
    %43 = vector.broadcast %cst_26 : f32 to vector<48x128xf32>
    %44 = arith.subf %43, %42 : vector<48x128xf32>
    %cst_27 = arith.constant 0.000000e+00 : f32
    %45 = vector.broadcast %cst_27 : f32 to vector<48x128xf32>
    %46 = arith.cmpf oge, %16, %45 : vector<48x128xf32>
    %cst_28 = arith.constant 0.000000e+00 : f32
    %47 = vector.broadcast %cst_28 : f32 to vector<48x128xf32>
    %48 = arith.subf %47, %44 : vector<48x128xf32>
    %49 = arith.select %46, %44, %48 : vector<48x128xi1>, vector<48x128xf32>
    %cst_29 = arith.constant 5.000000e-01 : f32
    %50 = vector.broadcast %cst_29 : f32 to vector<48x128xf32>
    %51 = arith.mulf %50, %14 : vector<48x128xf32>
    %cst_30 = arith.constant 1.000000e+00 : f32
    %52 = vector.broadcast %cst_30 : f32 to vector<48x128xf32>
    %53 = arith.addf %52, %49 : vector<48x128xf32>
    %54 = arith.mulf %51, %53 : vector<48x128xf32>
    %c0_31 = arith.constant 0 : index
    %c0_32 = arith.constant 0 : index
    %55 = vector.load %arg8[%c0_31, %c0_32] : memref<128x128xf32, #tpu.memory_space<vmem>>, vector<128x128xf32>
    %cst_33 = arith.constant dense<0.000000e+00> : vector<48x128xf32>
    %56 = tpu.matmul %54, %55, %cst_33 {dimension_numbers = #tpu.dot_dimension_numbers<[1], [0], [0], [1], [0, 0, 1, 1], [], []>} : vector<48x128xf32>, vector<128x128xf32>, vector<48x128xf32> -> vector<48x128xf32>
    %57 = arith.addf %12, %56 : vector<48x128xf32>
    %c0_34 = arith.constant 0 : index
    %c0_35 = arith.constant 0 : index
    %58 = vector.load %arg4[%c0_34, %c0_35] : memref<48x48xf32, #tpu.memory_space<vmem>>, vector<48x48xf32>
    %cst_36 = arith.constant dense<0.000000e+00> : vector<48x128xf32>
    %59 = tpu.matmul %58, %57, %cst_36 {dimension_numbers = #tpu.dot_dimension_numbers<[1], [0], [0], [1], [0, 0, 1, 1], [], []>} : vector<48x48xf32>, vector<48x128xf32>, vector<48x128xf32> -> vector<48x128xf32>
    %60 = arith.subf %57, %59 : vector<48x128xf32>
    %c0_37 = arith.constant 0 : index
    %c0_38 = arith.constant 0 : index
    %61 = vector.load %arg1[%c0_37, %c0_38] : memref<48x128xf32, #tpu.memory_space<vmem>>, vector<48x128xf32>
    %62 = arith.addf %61, %11 : vector<48x128xf32>
    %63 = arith.addf %62, %59 : vector<48x128xf32>
    %c0_39 = arith.constant 0 : index
    %c0_40 = arith.constant 0 : index
    %64 = vector.load %arg9[%c0_39, %c0_40] : memref<48x48xf32, #tpu.memory_space<vmem>>, vector<48x48xf32>
    %cst_41 = arith.constant dense<0.000000e+00> : vector<48x128xf32>
    %65 = tpu.matmul %64, %63, %cst_41 {dimension_numbers = #tpu.dot_dimension_numbers<[1], [0], [0], [1], [0, 0, 1, 1], [], []>} : vector<48x48xf32>, vector<48x128xf32>, vector<48x128xf32> -> vector<48x128xf32>
    %c0_42 = arith.constant 0 : index
    %c0_43 = arith.constant 0 : index
    %66 = vector.load %arg11[%c0_42, %c0_43] : memref<128x128xf32, #tpu.memory_space<vmem>>, vector<128x128xf32>
    %cst_44 = arith.constant dense<0.000000e+00> : vector<48x128xf32>
    %67 = tpu.matmul %65, %66, %cst_44 {dimension_numbers = #tpu.dot_dimension_numbers<[1], [0], [0], [1], [0, 0, 1, 1], [], []>} : vector<48x128xf32>, vector<128x128xf32>, vector<48x128xf32> -> vector<48x128xf32>
    %c0_45 = arith.constant 0 : index
    %c0_46 = arith.constant 0 : index
    %68 = vector.load %arg12[%c0_45, %c0_46] : memref<128x128xf32, #tpu.memory_space<vmem>>, vector<128x128xf32>
    %cst_47 = arith.constant dense<0.000000e+00> : vector<48x128xf32>
    %69 = tpu.matmul %63, %68, %cst_47 {dimension_numbers = #tpu.dot_dimension_numbers<[1], [0], [0], [1], [0, 0, 1, 1], [], []>} : vector<48x128xf32>, vector<128x128xf32>, vector<48x128xf32> -> vector<48x128xf32>
    %70 = arith.addf %67, %69 : vector<48x128xf32>
    %c0_48 = arith.constant 0 : index
    %c0_49 = arith.constant 0 : index
    %71 = vector.load %arg10[%c0_48, %c0_49] : memref<48x48xf32, #tpu.memory_space<vmem>>, vector<48x48xf32>
    %cst_50 = arith.constant dense<0.000000e+00> : vector<48x128xf32>
    %72 = tpu.matmul %71, %63, %cst_50 {dimension_numbers = #tpu.dot_dimension_numbers<[1], [0], [0], [1], [0, 0, 1, 1], [], []>} : vector<48x48xf32>, vector<48x128xf32>, vector<48x128xf32> -> vector<48x128xf32>
    %c0_51 = arith.constant 0 : index
    %c0_52 = arith.constant 0 : index
    %73 = vector.load %arg13[%c0_51, %c0_52] : memref<128x128xf32, #tpu.memory_space<vmem>>, vector<128x128xf32>
    %cst_53 = arith.constant dense<0.000000e+00> : vector<48x128xf32>
    %74 = tpu.matmul %72, %73, %cst_53 {dimension_numbers = #tpu.dot_dimension_numbers<[1], [0], [0], [1], [0, 0, 1, 1], [], []>} : vector<48x128xf32>, vector<128x128xf32>, vector<48x128xf32> -> vector<48x128xf32>
    %75 = arith.addf %70, %74 : vector<48x128xf32>
    %c0_54 = arith.constant 0 : index
    %c0_55 = arith.constant 0 : index
    %76 = vector.load %arg14[%c0_54, %c0_55] : memref<1x128xf32, #tpu.memory_space<vmem>>, vector<1x128xf32>
    %c0_56 = arith.constant 0 : index
    %c0_57 = arith.constant 0 : index
    %77 = vector.load %arg15[%c0_56, %c0_57] : memref<1x128xf32, #tpu.memory_space<vmem>>, vector<1x128xf32>
    %cst_58 = arith.constant dense<0.000000e+00> : vector<48xf32>
    %78 = vector.multi_reduction <add>, %60, %cst_58 [1] : vector<48x128xf32> to vector<48xf32>
    %79 = vector.shape_cast %78 : vector<48xf32> to vector<48x1xf32>
    %cst_59 = arith.constant 1.280000e+02 : f32
    %80 = vector.broadcast %cst_59 : f32 to vector<48x1xf32>
    %81 = arith.divf %79, %80 : vector<48x1xf32>
    %cst_60 = arith.constant 4.000000e+00 : f32
    %82 = vector.broadcast %cst_60 : f32 to vector<48x1xf32>
    %83 = arith.mulf %81, %82 : vector<48x1xf32>
    %84 = vector.broadcast %83 : vector<48x1xf32> to vector<48x128xf32>
    %85 = arith.subf %60, %84 : vector<48x128xf32>
    %86 = arith.mulf %85, %85 : vector<48x128xf32>
    %cst_61 = arith.constant dense<0.000000e+00> : vector<48xf32>
    %87 = vector.multi_reduction <add>, %86, %cst_61 [1] : vector<48x128xf32> to vector<48xf32>
    %88 = vector.shape_cast %87 : vector<48xf32> to vector<48x1xf32>
    %cst_62 = arith.constant 1.280000e+02 : f32
    %89 = vector.broadcast %cst_62 : f32 to vector<48x1xf32>
    %90 = arith.divf %88, %89 : vector<48x1xf32>
    %cst_63 = arith.constant 4.000000e+00 : f32
    %91 = vector.broadcast %cst_63 : f32 to vector<48x1xf32>
    %92 = arith.mulf %90, %91 : vector<48x1xf32>
    %cst_64 = arith.constant 3.000000e+00 : f32
    %93 = vector.broadcast %cst_64 : f32 to vector<48x1xf32>
    %94 = arith.mulf %93, %83 : vector<48x1xf32>
    %95 = arith.mulf %94, %83 : vector<48x1xf32>
    %96 = arith.subf %92, %95 : vector<48x1xf32>
    %cst_65 = arith.constant 9.99999974E-6 : f32
    %97 = vector.broadcast %cst_65 : f32 to vector<48x1xf32>
    %98 = arith.addf %96, %97 : vector<48x1xf32>
    %99 = math.rsqrt %98 : vector<48x1xf32>
    %100 = vector.broadcast %99 : vector<48x1xf32> to vector<48x128xf32>
    %101 = arith.mulf %85, %100 : vector<48x128xf32>
    %102 = vector.broadcast %76 : vector<1x128xf32> to vector<48x128xf32>
    %103 = arith.mulf %101, %102 : vector<48x128xf32>
    %104 = vector.broadcast %77 : vector<1x128xf32> to vector<48x128xf32>
    %105 = arith.addf %103, %104 : vector<48x128xf32>
    %c0_66 = arith.constant 0 : index
    %c0_67 = arith.constant 0 : index
    %106 = vector.load %arg16[%c0_66, %c0_67] : memref<48x48xf32, #tpu.memory_space<vmem>>, vector<48x48xf32>
    %cst_68 = arith.constant dense<0.000000e+00> : vector<48x128xf32>
    %107 = tpu.matmul %106, %105, %cst_68 {dimension_numbers = #tpu.dot_dimension_numbers<[1], [0], [0], [1], [0, 0, 1, 1], [], []>} : vector<48x48xf32>, vector<48x128xf32>, vector<48x128xf32> -> vector<48x128xf32>
    %c0_69 = arith.constant 0 : index
    %c0_70 = arith.constant 0 : index
    %108 = vector.load %arg17[%c0_69, %c0_70] : memref<128x128xf32, #tpu.memory_space<vmem>>, vector<128x128xf32>
    %cst_71 = arith.constant dense<0.000000e+00> : vector<48x128xf32>
    %109 = tpu.matmul %107, %108, %cst_71 {dimension_numbers = #tpu.dot_dimension_numbers<[1], [0], [0], [1], [0, 0, 1, 1], [], []>} : vector<48x128xf32>, vector<128x128xf32>, vector<48x128xf32> -> vector<48x128xf32>
    %c0_72 = arith.constant 0 : index
    %c0_73 = arith.constant 0 : index
    %110 = vector.load %arg18[%c0_72, %c0_73] : memref<1x128xf32, #tpu.memory_space<vmem>>, vector<1x128xf32>
    %111 = vector.broadcast %110 : vector<1x128xf32> to vector<48x128xf32>
    %112 = arith.addf %109, %111 : vector<48x128xf32>
    %c0_74 = arith.constant 0 : index
    %c0_75 = arith.constant 0 : index
    %113 = vector.load %arg20[%c0_74, %c0_75] : memref<48x128xf32, #tpu.memory_space<vmem>>, vector<48x128xf32>
    %114 = arith.addf %75, %112 : vector<48x128xf32>
    %c0_76 = arith.constant 0 : index
    %c0_77 = arith.constant 0 : index
    %115 = vector.load %arg19[%c0_76, %c0_77] : memref<128x128xf32, #tpu.memory_space<vmem>>, vector<128x128xf32>
    %cst_78 = arith.constant dense<0.000000e+00> : vector<48x128xf32>
    %116 = tpu.matmul %114, %115, %cst_78 {dimension_numbers = #tpu.dot_dimension_numbers<[1], [0], [0], [1], [0, 0, 1, 1], [], []>} : vector<48x128xf32>, vector<128x128xf32>, vector<48x128xf32> -> vector<48x128xf32>
    %117 = arith.addf %113, %116 : vector<48x128xf32>
    %c0_79 = arith.constant 0 : index
    %c0_80 = arith.constant 0 : index
    %118 = vector.load %arg21[%c0_79, %c0_80] : memref<48x128xf32, #tpu.memory_space<vmem>>, vector<48x128xf32>
    tpu.vector_store %arg21[%c0_79, %c0_80], %117 {strides = array<i32>} : memref<48x128xf32, #tpu.memory_space<vmem>>, vector<48x128xf32>,
    return
  }
}

</mosaic_0001>

<llo_original>
// kernel: reverse.11
$region0: #{reverse.11}
  %s0 = inlined_call_operand.vmem [shape: f32[2,4,8,7], index: 0, kind: input, shape index: {}]
  %s1 = inlined_call_operand.vmem [shape: f32[2,4,8,7], index: 1, kind: output, shape index: {}]
  %v2 = vlaneseq
  %v3 = vsub.s32 6, %v2
  %4 = vset.pattern.permute.xlu0 %v3
  $region1: #{reverse.11} parent=0
    #allocation0 [shape = 'u8[32768]{0}', space=vmem, size = 0x8000, scoped, tag = 'operand span for operand 0']
    #allocation1 [shape = 'u8[32768]{0}', space=vmem, size = 0x8000, scoped, tag = 'operand span for operand 1']
    // Predicated region
    $region2: #{reverse.11} parent=1 // pred_check
      _
    $region3: #{reverse.11} parent=1 // pred_check_branch
      %6 = sbr.rel (0) target = $region5
    $region4: #{reverse.11} parent=1 // pred_region
      // Predicated region
      $region6: #{reverse.11} parent=4 // pred_check
        _
      $region7: #{reverse.11} parent=4 // pred_check_branch
        %8 = sbr.rel (0) target = $region9
      $region8: #{reverse.11} parent=4 // pred_region
        // Predicated region
        $region21: #{reverse.11} parent=8 // pred_check
          _
        $region22: #{reverse.11} parent=8 // pred_check_branch
          %37 = sbr.rel (0) target = $region24
        $region23: #{reverse.11} parent=8 // pred_region
          loop: start=0, step=1, limit=1
          $region25: #{reverse.11} parent=23 // loop_pre_header
            _
          $region26: #{reverse.11} parent=23 // loop_header
            %s39 = sphi 0, %s43
            %p40 = scmp.ge.s32.totalorder %s39, 1
            %s44 = sphi %s0, %s0
            %s45 = sphi [#allocation0], [#allocation0]
          $region27: #{reverse.11} parent=23 // loop_header_branch
            %42 = sbr.rel (%p40) target = $region31
          $region28: #{reverse.11} parent=23 // loop_body
            %v46 = vld [vmem:[%s44] sm:$0xff]
            %47 = vst [vmem:[%s45] sm:$0xff] %v46
            %v48 = vld [vmem:[%s44 + $0x8] sm:$0xff]
            %49 = vst [vmem:[%s45 + $0x8] sm:$0xff] %v48
            %v50 = vld [vmem:[%s44 + $0x10] sm:$0xff]
            %51 = vst [vmem:[%s45 + $0x10] sm:$0xff] %v50
            %v52 = vld [vmem:[%s44 + $0x18] sm:$0xff]
            %53 = vst [vmem:[%s45 + $0x18] sm:$0xff] %v52
            %v54 = vld [vmem:[%s44 + $0x20] sm:$0xff]
            %55 = vst [vmem:[%s45 + $0x20] sm:$0xff] %v54
            %v56 = vld [vmem:[%s44 + $0x28] sm:$0xff]
            %57 = vst [vmem:[%s45 + $0x28] sm:$0xff] %v56
            %v58 = vld [vmem:[%s44 + $0x30] sm:$0xff]
            %59 = vst [vmem:[%s45 + $0x30] sm:$0xff] %v58
            %v60 = vld [vmem:[%s44 + $0x38] sm:$0xff]
            %61 = vst [vmem:[%s45 + $0x38] sm:$0xff] %v60
          $region29: #{reverse.11} parent=23 // loop_footer
            %s43 = sadd.s32 1, %s39
          $region30: #{reverse.11} parent=23 // loop_footer_branch
            %38 = sbr.rel target = $region26
          $region31: #{reverse.11} parent=23 // loop_exit
            _
        $region24: #{reverse.11} parent=8 // pred_fallthru
          _
        // Predicated region
        $region32: #{reverse.11} parent=8 // pred_check
          _
        $region33: #{reverse.11} parent=8 // pred_check_branch
          %63 = sbr.rel target = $region35
        $region34: #{reverse.11} parent=8 // pred_region
          _
        $region35: #{reverse.11} parent=8 // pred_fallthru
          _
      $region9: #{reverse.11} parent=4 // pred_fallthru
        _
      // Predicated region
      $region10: #{reverse.11} parent=4 // pred_check
        _
      $region11: #{reverse.11} parent=4 // pred_check_branch
        %10 = sbr.rel target = $region13
      $region12: #{reverse.11} parent=4 // pred_region
        loop: start=0, step=1, limit=1
        $region14: #{reverse.11} parent=12 // loop_pre_header
          _
        $region15: #{reverse.11} parent=12 // loop_header
          %s13 = sphi 0, %s17
          %p14 = scmp.ge.s32.totalorder %s13, 1
          %s18 = sphi %s0, %s0
          %s19 = sphi [#allocation0], [#allocation0]
        $region16: #{reverse.11} parent=12 // loop_header_branch
          %16 = sbr.rel (%p14) target = $region20
        $region17: #{reverse.11} parent=12 // loop_body
          %v20 = vld [vmem:[%s18] sm:$0xff]
          %21 = vst [vmem:[%s19] sm:$0xff] %v20
          %v22 = vld [vmem:[%s18 + $0x8] sm:$0xff]
          %23 = vst [vmem:[%s19 + $0x8] sm:$0xff] %v22
          %v24 = vld [vmem:[%s18 + $0x10] sm:$0xff]
          %25 = vst [vmem:[%s19 + $0x10] sm:$0xff] %v24
          %v26 = vld [vmem:[%s18 + $0x18] sm:$0xff]
          %27 = vst [vmem:[%s19 + $0x18] sm:$0xff] %v26
          %v28 = vld [vmem:[%s18 + $0x20] sm:$0xff]
          %29 = vst [vmem:[%s19 + $0x20] sm:$0xff] %v28
          %v30 = vld [vmem:[%s18 + $0x28] sm:$0xff]
          %31 = vst [vmem:[%s19 + $0x28] sm:$0xff] %v30
          %v32 = vld [vmem:[%s18 + $0x30] sm:$0xff]
          %33 = vst [vmem:[%s19 + $0x30] sm:$0xff] %v32
          %v34 = vld [vmem:[%s18 + $0x38] sm:$0xff]
          %35 = vst [vmem:[%s19 + $0x38] sm:$0xff] %v34
        $region18: #{reverse.11} parent=12 // loop_footer
          %s17 = sadd.s32 1, %s13
        $region19: #{reverse.11} parent=12 // loop_footer_branch
          %12 = sbr.rel target = $region15
        $region20: #{reverse.11} parent=12 // loop_exit
          _
      $region13: #{reverse.11} parent=4 // pred_fallthru
        _
    $region5: #{reverse.11} parent=1 // pred_fallthru
      _
    %64 = vnop
    %v65 = vld [vmem:[#allocation0] sm:$0xff]
    %66 = vperm.xlu0 %4, %v65
    %v67 = vpop.permute.xlu0 %66
    %68 = vst [vmem:[#allocation1] sm:$0xff] %v67
    %s69 = scalar_lea.vmem [#allocation1], 8
    %s70 = scalar_lea.vmem [#allocation0], 8
    %v71 = vld [vmem:[%s70] sm:$0xff]
    %72 = vperm.xlu0 %4, %v71
    %v73 = vpop.permute.xlu0 %72
    %74 = vst [vmem:[%s69] sm:$0xff] %v73
    %s75 = scalar_lea.vmem [#allocation1], 16
    %s76 = scalar_lea.vmem [#allocation0], 16
    %v77 = vld [vmem:[%s76] sm:$0xff]
    %78 = vperm.xlu0 %4, %v77
    %v79 = vpop.permute.xlu0 %78
    %80 = vst [vmem:[%s75] sm:$0xff] %v79
    %s81 = scalar_lea.vmem [#allocation1], 24
    %s82 = scalar_lea.vmem [#allocation0], 24
    %v83 = vld [vmem:[%s82] sm:$0xff]
    %84 = vperm.xlu0 %4, %v83
    %v85 = vpop.permute.xlu0 %84
    %86 = vst [vmem:[%s81] sm:$0xff] %v85
    %s87 = scalar_lea.vmem [#allocation1], 32
    %s88 = scalar_lea.vmem [#allocation0], 32
    %v89 = vld [vmem:[%s88] sm:$0xff]
    %90 = vperm.xlu0 %4, %v89
    %v91 = vpop.permute.xlu0 %90
    %92 = vst [vmem:[%s87] sm:$0xff] %v91
    %s93 = scalar_lea.vmem [#allocation1], 40
    %s94 = scalar_lea.vmem [#allocation0], 40
    %v95 = vld [vmem:[%s94] sm:$0xff]
    %96 = vperm.xlu0 %4, %v95
    %v97 = vpop.permute.xlu0 %96
    %98 = vst [vmem:[%s93] sm:$0xff] %v97
    %s99 = scalar_lea.vmem [#allocation1], 48
    %s100 = scalar_lea.vmem [#allocation0], 48
    %v101 = vld [vmem:[%s100] sm:$0xff]
    %102 = vperm.xlu0 %4, %v101
    %v103 = vpop.permute.xlu0 %102
    %104 = vst [vmem:[%s99] sm:$0xff] %v103
    %s105 = scalar_lea.vmem [#allocation1], 56
    %s106 = scalar_lea.vmem [#allocation0], 56
    %v107 = vld [vmem:[%s106] sm:$0xff]
    %108 = vperm.xlu0 %4, %v107
    %v109 = vpop.permute.xlu0 %108
    %110 = vst [vmem:[%s105] sm:$0xff] %v109
    // Predicated region
    $region36: #{reverse.11} parent=1 // pred_check
      _
    $region37: #{reverse.11} parent=1 // pred_check_branch
      %112 = sbr.rel (0) target = $region39
    $region38: #{reverse.11} parent=1 // pred_region
      // Predicated region
      $region40: #{reverse.11} parent=38 // pred_check
        _
      $region41: #{reverse.11} parent=38 // pred_check_branch
        %114 = sbr.rel (0) target = $region43
      $region42: #{reverse.11} parent=38 // pred_region
        // Predicated region
        $region55: #{reverse.11} parent=42 // pred_check
          _
        $region56: #{reverse.11} parent=42 // pred_check_branch
          %143 = sbr.rel (0) target = $region58
        $region57: #{reverse.11} parent=42 // pred_region
          loop: start=0, step=1, limit=1
          $region59: #{reverse.11} parent=57 // loop_pre_header
            _
          $region60: #{reverse.11} parent=57 // loop_header
            %s145 = sphi 0, %s149
            %p146 = scmp.ge.s32.totalorder %s145, 1
            %s150 = sphi [#allocation1], [#allocation1]
            %s151 = sphi %s1, %s1
          $region61: #{reverse.11} parent=57 // loop_header_branch
            %148 = sbr.rel (%p146) target = $region65
          $region62: #{reverse.11} parent=57 // loop_body
            %v152 = vld [vmem:[%s150] sm:$0xff]
            %153 = vst [vmem:[%s151] sm:$0xff] %v152
            %v154 = vld [vmem:[%s150 + $0x8] sm:$0xff]
            %155 = vst [vmem:[%s151 + $0x8] sm:$0xff] %v154
            %v156 = vld [vmem:[%s150 + $0x10] sm:$0xff]
            %157 = vst [vmem:[%s151 + $0x10] sm:$0xff] %v156
            %v158 = vld [vmem:[%s150 + $0x18] sm:$0xff]
            %159 = vst [vmem:[%s151 + $0x18] sm:$0xff] %v158
            %v160 = vld [vmem:[%s150 + $0x20] sm:$0xff]
            %161 = vst [vmem:[%s151 + $0x20] sm:$0xff] %v160
            %v162 = vld [vmem:[%s150 + $0x28] sm:$0xff]
            %163 = vst [vmem:[%s151 + $0x28] sm:$0xff] %v162
            %v164 = vld [vmem:[%s150 + $0x30] sm:$0xff]
            %165 = vst [vmem:[%s151 + $0x30] sm:$0xff] %v164
            %v166 = vld [vmem:[%s150 + $0x38] sm:$0xff]
            %167 = vst [vmem:[%s151 + $0x38] sm:$0xff] %v166
          $region63: #{reverse.11} parent=57 // loop_footer
            %s149 = sadd.s32 1, %s145
          $region64: #{reverse.11} parent=57 // loop_footer_branch
            %144 = sbr.rel target = $region60
          $region65: #{reverse.11} parent=57 // loop_exit
            _
        $region58: #{reverse.11} parent=42 // pred_fallthru
          _
        // Predicated region
        $region66: #{reverse.11} parent=42 // pred_check
          _
        $region67: #{reverse.11} parent=42 // pred_check_branch
          %169 = sbr.rel target = $region69
        $region68: #{reverse.11} parent=42 // pred_region
          _
        $region69: #{reverse.11} parent=42 // pred_fallthru
          _
      $region43: #{reverse.11} parent=38 // pred_fallthru
        _
      // Predicated region
      $region44: #{reverse.11} parent=38 // pred_check
        _
      $region45: #{reverse.11} parent=38 // pred_check_branch
        %116 = sbr.rel target = $region47
      $region46: #{reverse.11} parent=38 // pred_region
        loop: start=0, step=1, limit=1
        $region48: #{reverse.11} parent=46 // loop_pre_header
          _
        $region49: #{reverse.11} parent=46 // loop_header
          %s119 = sphi 0, %s123
          %p120 = scmp.ge.s32.totalorder %s119, 1
          %s124 = sphi [#allocation1], [#allocation1]
          %s125 = sphi %s1, %s1
        $region50: #{reverse.11} parent=46 // loop_header_branch
          %122 = sbr.rel (%p120) target = $region54
        $region51: #{reverse.11} parent=46 // loop_body
          %v126 = vld [vmem:[%s124] sm:$0xff]
          %127 = vst [vmem:[%s125] sm:$0xff] %v126
          %v128 = vld [vmem:[%s124 + $0x8] sm:$0xff]
          %129 = vst [vmem:[%s125 + $0x8] sm:$0xff] %v128
          %v130 = vld [vmem:[%s124 + $0x10] sm:$0xff]
          %131 = vst [vmem:[%s125 + $0x10] sm:$0xff] %v130
          %v132 = vld [vmem:[%s124 + $0x18] sm:$0xff]
          %133 = vst [vmem:[%s125 + $0x18] sm:$0xff] %v132
          %v134 = vld [vmem:[%s124 + $0x20] sm:$0xff]
          %135 = vst [vmem:[%s125 + $0x20] sm:$0xff] %v134
          %v136 = vld [vmem:[%s124 + $0x28] sm:$0xff]
          %137 = vst [vmem:[%s125 + $0x28] sm:$0xff] %v136
          %v138 = vld [vmem:[%s124 + $0x30] sm:$0xff]
          %139 = vst [vmem:[%s125 + $0x30] sm:$0xff] %v138
          %v140 = vld [vmem:[%s124 + $0x38] sm:$0xff]
          %141 = vst [vmem:[%s125 + $0x38] sm:$0xff] %v140
        $region52: #{reverse.11} parent=46 // loop_footer
          %s123 = sadd.s32 1, %s119
        $region53: #{reverse.11} parent=46 // loop_footer_branch
          %118 = sbr.rel target = $region49
        $region54: #{reverse.11} parent=46 // loop_exit
          _
      $region47: #{reverse.11} parent=38 // pred_fallthru
        _
    $region39: #{reverse.11} parent=1 // pred_fallthru
      _
    %170 = vnop

// kernel: model_forward.17
$region0: #{model_forward.17}
  #allocation0 [shape = 'u32[]', space=smem, size = 0x4, offset = 0x4, fixed_abs, tag = 'smem constant byte address 0x4 - core index']
  #allocation1 [shape = 'u32[144,128]{1,0:T(1,128)}', space=vmem, size = 0x12000, scoped, tag = 'internal scratch']
  %s0 = inlined_call_operand.vmem [shape: f32[32,128], index: 0, kind: input, shape index: {}]
  %s1 = inlined_call_operand.vmem [shape: f32[128,128], index: 1, kind: input, shape index: {}]
  %s2 = inlined_call_operand.vmem [shape: f32[1,128], index: 2, kind: input, shape index: {}]
  %s3 = inlined_call_operand.vmem [shape: f32[32,128], index: 3, kind: output, shape index: {}]
  %s4 = sld [smem:[#allocation0]]
  $region22: #{model_forward.17} parent=0
    _
  %s6 = ssub.s32 1, %s4
  %s7 = scalar_select 0, %s6, %s4
  // Predicated region
  $region2: #{model_forward.17} parent=0 // pred_check
    _
  $region3: #{model_forward.17} parent=0 // pred_check_branch
    %9 = sbr.rel (0) target = $region5
  $region4: #{model_forward.17} parent=0 // pred_region
    _
  $region5: #{model_forward.17} parent=0 // pred_fallthru
    _
  // Predicated region
  $region6: #{model_forward.17} parent=0 // pred_check
    _
  $region7: #{model_forward.17} parent=0 // pred_check_branch
    %11 = sbr.rel (0) target = $region9
  $region8: #{model_forward.17} parent=0 // pred_region
    _
  $region9: #{model_forward.17} parent=0 // pred_fallthru
    _
  // Predicated region
  $region10: #{model_forward.17} parent=0 // pred_check
    _
  $region11: #{model_forward.17} parent=0 // pred_check_branch
    %13 = sbr.rel (0) target = $region13
  $region12: #{model_forward.17} parent=0 // pred_region
    _
  $region13: #{model_forward.17} parent=0 // pred_fallthru
    _
  %v14 = vld [vmem:[%s0] sm:$0xff]
  %v15 = vld [vmem:[%s0 + $0x8] sm:$0xff]
  %v16 = vld [vmem:[%s0 + $0x10] sm:$0xff]
  %v17 = vld [vmem:[%s0 + $0x18] sm:$0xff]
  %v18 = vld [vmem:[%s1] sm:$0xff]
  %v19 = vld [vmem:[%s1 + $0x8] sm:$0xff]
  %v20 = vld [vmem:[%s1 + $0x10] sm:$0xff]
  %v21 = vld [vmem:[%s1 + $0x18] sm:$0xff]
  %v22 = vld [vmem:[%s1 + $0x20] sm:$0xff]
  %v23 = vld [vmem:[%s1 + $0x28] sm:$0xff]
  %v24 = vld [vmem:[%s1 + $0x30] sm:$0xff]
  %v25 = vld [vmem:[%s1 + $0x38] sm:$0xff]
  %v26 = vld [vmem:[%s1 + $0x40] sm:$0xff]
  %v27 = vld [vmem:[%s1 + $0x48] sm:$0xff]
  %v28 = vld [vmem:[%s1 + $0x50] sm:$0xff]
  %v29 = vld [vmem:[%s1 + $0x58] sm:$0xff]
  %v30 = vld [vmem:[%s1 + $0x60] sm:$0xff]
  %v31 = vld [vmem:[%s1 + $0x68] sm:$0xff]
  %v32 = vld [vmem:[%s1 + $0x70] sm:$0xff]
  %v33 = vld [vmem:[%s1 + $0x78] sm:$0xff]
  %v34 = vld [vmem:[%s2] sm:$0x1]
  %v36 = vlaneseq
  %v37 = vshrl.u32 %v36, 7
  %v38 = vsub.s32 0, %v37
  %v39 = vrot.slane %v34, %v38
  %41 = vmatprep.subr.mxu0 0.0
  %42 = vmatpush1.msra.mxu0 %v18
  %43 = vmatprep.subr.mxu0 0.0
  %44 = vmatpush1.msra.mxu0 %v19
  %45 = vmatprep.subr.mxu0 0.0
  %46 = vmatpush1.msra.mxu0 %v20
  %47 = vmatprep.subr.mxu0 0.0
  %48 = vmatpush1.msra.mxu0 %v21
  %49 = vmatprep.subr.mxu0 0.0
  %50 = vmatpush1.msra.mxu0 %v22
  %51 = vmatprep.subr.mxu0 0.0
  %52 = vmatpush1.msra.mxu0 %v23
  %53 = vmatprep.subr.mxu0 0.0
  %54 = vmatpush1.msra.mxu0 %v24
  %55 = vmatprep.subr.mxu0 0.0
  %56 = vmatpush1.msra.mxu0 %v25
  %57 = vmatprep.subr.mxu0 0.0
  %58 = vmatpush1.msra.mxu0 %v26
  %59 = vmatprep.subr.mxu0 0.0
  %60 = vmatpush1.msra.mxu0 %v27
  %61 = vmatprep.subr.mxu0 0.0
  %62 = vmatpush1.msra.mxu0 %v28
  %63 = vmatprep.subr.mxu0 0.0
  %64 = vmatpush1.msra.mxu0 %v29
  %65 = vmatprep.subr.mxu0 0.0
  %66 = vmatpush1.msra.mxu0 %v30
  %67 = vmatprep.subr.mxu0 0.0
  %68 = vmatpush1.msra.mxu0 %v31
  %69 = vmatprep.subr.mxu0 0.0
  %70 = vmatpush1.msra.mxu0 %v32
  %71 = vmatprep.subr.mxu0 0.0
  %72 = vmatpush1.msra.mxu0 %v33
  %73 = vmatprep.subr.mxu0 0.0
  %74 = vmatpush1.msra.mxu0 0.0
  %75 = vmatprep.subr.mxu0 0.0
  %76 = vmatpush1.msra.mxu0 0.0
  %77 = vmatprep.subr.mxu0 0.0
  %78 = vmatpush1.msra.mxu0 0.0
  %79 = vmatprep.subr.mxu0 0.0
  %80 = vmatpush1.msra.mxu0 0.0
  %81 = vmatprep.subr.mxu0 0.0
  %82 = vmatpush1.msra.mxu0 0.0
  %83 = vmatprep.subr.mxu0 0.0
  %84 = vmatpush1.msra.mxu0 0.0
  %85 = vmatprep.subr.mxu0 0.0
  %86 = vmatpush1.msra.mxu0 0.0
  %87 = vmatprep.subr.mxu0 0.0
  %88 = vmatpush1.msra.mxu0 0.0
  %89 = vmatprep.subr.mxu0 0.0
  %90 = vmatpush1.msra.mxu0 0.0
  %91 = vmatprep.subr.mxu0 0.0
  %92 = vmatpush1.msra.mxu0 0.0
  %93 = vmatprep.subr.mxu0 0.0
  %94 = vmatpush1.msra.mxu0 0.0
  %95 = vmatprep.subr.mxu0 0.0
  %96 = vmatpush1.msra.mxu0 0.0
  %97 = vmatprep.subr.mxu0 0.0
  %98 = vmatpush1.msra.mxu0 0.0
  %99 = vmatprep.subr.mxu0 0.0
  %100 = vmatpush1.msra.mxu0 0.0
  %101 = vmatprep.subr.mxu0 0.0
  %102 = vmatpush1.msra.mxu0 0.0
  %103 = vmatprep.subr.mxu0 0.0
  %104 = vmatpush1.msra.mxu0 0.0
  %105 = vmatprep.mubr.f32.mxu0 0.0
  %106 = vmatmul.mubr.f32.gmra.mrb[0].mxu0 %v14
  %v107 = vpop.f32.mrb[0].mxu0
  %v108 = vadd.f32 %v39, %v107
  %v109 = vpop.f32.mrb[0].mxu0
  %110 = vmatprep.mubr.f32.mxu0 0.0
  %111 = vmatmul.mubr.f32.gmra.mrb[0].mxu0 %v15
  %v112 = vpop.f32.mrb[0].mxu0
  %v113 = vadd.f32 %v39, %v112
  %v114 = vpop.f32.mrb[0].mxu0
  %115 = vmatprep.mubr.f32.mxu0 0.0
  %116 = vmatmul.mubr.f32.gmra.mrb[0].mxu0 %v16
  %v117 = vpop.f32.mrb[0].mxu0
  %v118 = vadd.f32 %v39, %v117
  %v119 = vpop.f32.mrb[0].mxu0
  %120 = vmatprep.mubr.f32.mxu0 0.0
  %121 = vmatmul.mubr.f32.gmra.mrb[0].mxu0 %v17
  %v122 = vpop.f32.mrb[0].mxu0
  %v123 = vadd.f32 %v39, %v122
  %v124 = vpop.f32.mrb[0].mxu0
  %125 = vdwg.mxu0
  %126 = vst [vmem:[%s3] sm:$0xff] %v108
  %127 = vst [vmem:[%s3 + $0x8] sm:$0xff] %v113
  %128 = vst [vmem:[%s3 + $0x10] sm:$0xff] %v118
  %129 = vst [vmem:[%s3 + $0x18] sm:$0xff] %v123
  // Predicated region
  $region14: #{model_forward.17} parent=0 // pred_check
    _
  $region15: #{model_forward.17} parent=0 // pred_check_branch
    %131 = sbr.rel (0) target = $region17
  $region16: #{model_forward.17} parent=0 // pred_region
    _
  $region17: #{model_forward.17} parent=0 // pred_fallthru
    _
  // Predicated region
  $region18: #{model_forward.17} parent=0 // pred_check
    _
  $region19: #{model_forward.17} parent=0 // pred_check_branch
    %133 = sbr.rel (0) target = $region21
  $region20: #{model_forward.17} parent=0 // pred_region
    _
  $region21: #{model_forward.17} parent=0 // pred_fallthru
    _

// kernel: model_forward.16
$region0: #{model_forward.16}
  #allocation0 [shape = 'u32[]', space=smem, size = 0x4, offset = 0x4, fixed_abs, tag = 'smem constant byte address 0x4 - core index']
  #allocation1 [shape = 'u32[144,128]{1,0:T(1,128)}', space=vmem, size = 0x12000, scoped, tag = 'internal scratch']
  %s0 = inlined_call_operand.vmem [shape: f32[32,128], index: 0, kind: input, shape index: {}]
  %s1 = inlined_call_operand.vmem [shape: f32[32,128], index: 1, kind: input, shape index: {}]
  %s2 = inlined_call_operand.hbm [shape: f32[32,32], index: 2, kind: input, shape index: {}]
  %s3 = inlined_call_operand.hbm [shape: f32[32,32], index: 3, kind: input, shape index: {}]
  %s4 = inlined_call_operand.vmem [shape: f32[128,128], index: 4, kind: input, shape index: {}]
  %s5 = inlined_call_operand.vmem [shape: f32[128,128], index: 5, kind: input, shape index: {}]
  %s6 = inlined_call_operand.hbm [shape: f32[128,128], index: 6, kind: input, shape index: {}]
  %s7 = inlined_call_operand.vmem [shape: f32[128,128], index: 7, kind: input, shape index: {}]
  %s8 = inlined_call_operand.vmem [shape: f32[32,128], index: 8, kind: output, shape index: {}]
  %s9 = sld [smem:[#allocation0]]
  $region54: #{model_forward.16} parent=0
    _
  %s11 = ssub.s32 1, %s9
  %s12 = scalar_select 0, %s11, %s9
  $region1: #{model_forward.16} parent=0
    #allocation2 [shape = 'u8[16384]{0}', space=vmem, size = 0x4000, scoped, tag = 'input window, operand 2, single buffered']
    #allocation3 [shape = 's32[1]{0}', space=sflag, size = 0x4, scoped, tag = 'scoped memory for model_forward.16']
    #allocation4 [shape = 'u8[16384]{0}', space=vmem, size = 0x4000, scoped, tag = 'input window, operand 3, single buffered']
    #allocation5 [shape = 's32[1]{0}', space=sflag, size = 0x4, scoped, tag = 'scoped memory for model_forward.16']
    #allocation6 [shape = 'u8[65536]{0}', space=vmem, size = 0x10000, scoped, tag = 'input window, operand 6, single buffered']
    %13 = vsyncpa [#allocation3], 0
    %14 = vsyncpa [#allocation5], 0
    // Predicated region
    $region2: #{model_forward.16} parent=1 // pred_check
      _
    $region3: #{model_forward.16} parent=1 // pred_check_branch
      %16 = sbr.rel (0) target = $region5
    $region4: #{model_forward.16} parent=1 // pred_region
      _
    $region5: #{model_forward.16} parent=1 // pred_fallthru
      _
    // Predicated region
    $region6: #{model_forward.16} parent=1 // pred_check
      _
    $region7: #{model_forward.16} parent=1 // pred_check_branch
      %18 = sbr.rel (0) target = $region9
    $region8: #{model_forward.16} parent=1 // pred_region
      _
    $region9: #{model_forward.16} parent=1 // pred_fallthru
      _
    // Predicated region
    $region10: #{model_forward.16} parent=1 // pred_check
      _
    $region11: #{model_forward.16} parent=1 // pred_check_branch
      %20 = sbr.rel (0) target = $region13
    $region12: #{model_forward.16} parent=1 // pred_region
      %s22 = ssub.s32 512, 512
      %23 = vsyncadd [#allocation3], %s22
      %s24 = sshll.u32 [#allocation2], 4
      %s25 = int_to_ptr.vmem [resolvable:$true] %s24
      %30 = dma.hbm_to_vmem [thread:$0]  %s2, 512, %s25, [#allocation3], 128, 128, 8
    $region13: #{model_forward.16} parent=1 // pred_fallthru
      _
    // Predicated region
    $region14: #{model_forward.16} parent=1 // pred_check
      _
    $region15: #{model_forward.16} parent=1 // pred_check_branch
      %32 = sbr.rel (0) target = $region17
    $region16: #{model_forward.16} parent=1 // pred_region
      %s34 = ssub.s32 512, 512
      %35 = vsyncadd [#allocation5], %s34
      %s36 = sshll.u32 [#allocation4], 4
      %s37 = int_to_ptr.vmem [resolvable:$true] %s36
      %42 = dma.hbm_to_vmem [thread:$0]  %s3, 512, %s37, [#allocation5], 128, 128, 8
    $region17: #{model_forward.16} parent=1 // pred_fallthru
      _
    // Predicated region
    $region18: #{model_forward.16} parent=1 // pred_check
      _
    $region19: #{model_forward.16} parent=1 // pred_check_branch
      %44 = sbr.rel (0) target = $region21
    $region20: #{model_forward.16} parent=1 // pred_region
      _
    $region21: #{model_forward.16} parent=1 // pred_fallthru
      _
    // Predicated region
    $region22: #{model_forward.16} parent=1 // pred_check
      _
    $region23: #{model_forward.16} parent=1 // pred_check_branch
      %46 = sbr.rel (0) target = $region25
    $region24: #{model_forward.16} parent=1 // pred_region
      _
    $region25: #{model_forward.16} parent=1 // pred_fallthru
      _
    // Predicated region
    $region26: #{model_forward.16} parent=1 // pred_check
      _
    $region27: #{model_forward.16} parent=1 // pred_check_branch
      %48 = sbr.rel (0) target = $region29
    $region28: #{model_forward.16} parent=1 // pred_region
      %s50 = ssub.s32 2048, 2048
      %51 = vsyncadd [#allocation5], %s50
      %s52 = sshll.u32 [#allocation6], 4
      %s53 = int_to_ptr.vmem [resolvable:$true] %s52
      %58 = dma.hbm_to_vmem [thread:$0]  %s6, 2048, %s53, [#allocation5], 128, 128, 8
    $region29: #{model_forward.16} parent=1 // pred_fallthru
      _
    // Predicated region
    $region30: #{model_forward.16} parent=1 // pred_check
      _
    $region31: #{model_forward.16} parent=1 // pred_check_branch
      %60 = sbr.rel (0) target = $region33
    $region32: #{model_forward.16} parent=1 // pred_region
      _
    $region33: #{model_forward.16} parent=1 // pred_fallthru
      _
    // Predicated region
    $region34: #{model_forward.16} parent=1 // pred_check
      _
    $region35: #{model_forward.16} parent=1 // pred_check_branch
      %62 = sbr.rel (0) target = $region37
    $region36: #{model_forward.16} parent=1 // pred_region
      %63 = dma.done [#allocation3], 512
    $region37: #{model_forward.16} parent=1 // pred_fallthru
      _
    // Predicated region
    $region38: #{model_forward.16} parent=1 // pred_check
      _
    $region39: #{model_forward.16} parent=1 // pred_check_branch
      %65 = sbr.rel (0) target = $region41
    $region40: #{model_forward.16} parent=1 // pred_region
      %66 = dma.done [#allocation5], 512
    $region41: #{model_forward.16} parent=1 // pred_fallthru
      _
    // Predicated region
    $region42: #{model_forward.16} parent=1 // pred_check
      _
    $region43: #{model_forward.16} parent=1 // pred_check_branch
      %68 = sbr.rel (0) target = $region45
    $region44: #{model_forward.16} parent=1 // pred_region
      %69 = dma.done [#allocation5], 2048
    $region45: #{model_forward.16} parent=1 // pred_fallthru
      _
    %v70 = vld [vmem:[%s0] sm:$0xff]
    %v71 = vld [vmem:[%s0 + $0x8] sm:$0xff]
    %v72 = vld [vmem:[%s0 + $0x10] sm:$0xff]
    %v73 = vld [vmem:[%s0 + $0x18] sm:$0xff]
    %v74 = vld [vmem:[#allocation2] sm:$0xff]
    %v75 = vld [vmem:[#allocation2 + $0x8] sm:$0xff]
    %v76 = vld [vmem:[#allocation2 + $0x10] sm:$0xff]
    %v77 = vld [vmem:[#allocation2 + $0x18] sm:$0xff]
    %vm78 = vcmask 261120
    %v80 = vsel %vm78, %v74, 0
    %v83 = vsel %vm78, %v75, 0
    %v86 = vsel %vm78, %v76, 0
    %v89 = vsel %vm78, %v77, 0
    %91 = vmatprep.subr.mxu0 0.0
    %92 = vmatpush1.msra.mxu0 %v70
    %93 = vmatprep.subr.mxu0 0.0
    %94 = vmatpush1.msra.mxu0 %v71
    %95 = vmatprep.subr.mxu0 0.0
    %96 = vmatpush1.msra.mxu0 %v72
    %97 = vmatprep.subr.mxu0 0.0
    %98 = vmatpush1.msra.mxu0 %v73
    %99 = vmatprep.subr.mxu0 0.0
    %100 = vmatpush1.msra.mxu0 0.0
    %101 = vmatprep.subr.mxu0 0.0
    %102 = vmatpush1.msra.mxu0 0.0
    %103 = vmatprep.subr.mxu0 0.0
    %104 = vmatpush1.msra.mxu0 0.0
    %105 = vmatprep.subr.mxu0 0.0
    %106 = vmatpush1.msra.mxu0 0.0
    %107 = vmatprep.subr.mxu0 0.0
    %108 = vmatpush1.msra.mxu0 0.0
    %109 = vmatprep.subr.mxu0 0.0
    %110 = vmatpush1.msra.mxu0 0.0
    %111 = vmatprep.subr.mxu0 0.0
    %112 = vmatpush1.msra.mxu0 0.0
    %113 = vmatprep.subr.mxu0 0.0
    %114 = vmatpush1.msra.mxu0 0.0
    %115 = vmatprep.subr.mxu0 0.0
    %116 = vmatpush1.msra.mxu0 0.0
    %117 = vmatprep.subr.mxu0 0.0
    %118 = vmatpush1.msra.mxu0 0.0
    %119 = vmatprep.subr.mxu0 0.0
    %120 = vmatpush1.msra.mxu0 0.0
    %121 = vmatprep.subr.mxu0 0.0
    %122 = vmatpush1.msra.mxu0 0.0
    %123 = vmatprep.subr.mxu0 0.0
    %124 = vmatpush1.msra.mxu0 0.0
    %125 = vmatprep.subr.mxu0 0.0
    %126 = vmatpush1.msra.mxu0 0.0
    %127 = vmatprep.subr.mxu0 0.0
    %128 = vmatpush1.msra.mxu0 0.0
    %129 = vmatprep.subr.mxu0 0.0
    %130 = vmatpush1.msra.mxu0 0.0
    %131 = vmatprep.subr.mxu0 0.0
    %132 = vmatpush1.msra.mxu0 0.0
    %133 = vmatprep.subr.mxu0 0.0
    %134 = vmatpush1.msra.mxu0 0.0
    %135 = vmatprep.subr.mxu0 0.0
    %136 = vmatpush1.msra.mxu0 0.0
    %137 = vmatprep.subr.mxu0 0.0
    %138 = vmatpush1.msra.mxu0 0.0
    %139 = vmatprep.subr.mxu0 0.0
    %140 = vmatpush1.msra.mxu0 0.0
    %141 = vmatprep.subr.mxu0 0.0
    %142 = vmatpush1.msra.mxu0 0.0
    %143 = vmatprep.subr.mxu0 0.0
    %144 = vmatpush1.msra.mxu0 0.0
    %145 = vmatprep.subr.mxu0 0.0
    %146 = vmatpush1.msra.mxu0 0.0
    %147 = vmatprep.subr.mxu0 0.0
    %148 = vmatpush1.msra.mxu0 0.0
    %149 = vmatprep.subr.mxu0 0.0
    %150 = vmatpush1.msra.mxu0 0.0
    %151 = vmatprep.subr.mxu0 0.0
    %152 = vmatpush1.msra.mxu0 0.0
    %153 = vmatprep.subr.mxu0 0.0
    %154 = vmatpush1.msra.mxu0 0.0
    %155 = vmatprep.mubr.f32.mxu0 0.0
    %156 = vmatmul.mubr.f32.gmra.mrb[0].mxu0 %v80
    %v157 = vpop.f32.mrb[0].mxu0
    %v158 = vadd.f32 0.0, %v157
    %v159 = vpop.f32.mrb[0].mxu0
    %160 = vmatprep.mubr.f32.mxu0 0.0
    %161 = vmatmul.mubr.f32.gmra.mrb[0].mxu0 %v83
    %v162 = vpop.f32.mrb[0].mxu0
    %v163 = vadd.f32 0.0, %v162
    %v164 = vpop.f32.mrb[0].mxu0
    %165 = vmatprep.mubr.f32.mxu0 0.0
    %166 = vmatmul.mubr.f32.gmra.mrb[0].mxu0 %v86
    %v167 = vpop.f32.mrb[0].mxu0
    %v168 = vadd.f32 0.0, %v167
    %v169 = vpop.f32.mrb[0].mxu0
    %170 = vmatprep.mubr.f32.mxu0 0.0
    %171 = vmatmul.mubr.f32.gmra.mrb[0].mxu0 %v89
    %v172 = vpop.f32.mrb[0].mxu0
    %v173 = vadd.f32 0.0, %v172
    %v174 = vpop.f32.mrb[0].mxu0
    %175 = vdwg.mxu0
    %v176 = vld [vmem:[#allocation4] sm:$0xff]
    %v177 = vld [vmem:[#allocation4 + $0x8] sm:$0xff]
    %v178 = vld [vmem:[#allocation4 + $0x10] sm:$0xff]
    %v179 = vld [vmem:[#allocation4 + $0x18] sm:$0xff]
    %v181 = vsel %vm78, %v176, 0
    %v184 = vsel %vm78, %v177, 0
    %v187 = vsel %vm78, %v178, 0
    %v190 = vsel %vm78, %v179, 0
    %192 = vmatprep.subr.mxu0 0.0
    %193 = vmatpush1.msra.mxu0 %v70
    %194 = vmatprep.subr.mxu0 0.0
    %195 = vmatpush1.msra.mxu0 %v71
    %196 = vmatprep.subr.mxu0 0.0
    %197 = vmatpush1.msra.mxu0 %v72
    %198 = vmatprep.subr.mxu0 0.0
    %199 = vmatpush1.msra.mxu0 %v73
    %200 = vmatprep.subr.mxu0 0.0
    %201 = vmatpush1.msra.mxu0 0.0
    %202 = vmatprep.subr.mxu0 0.0
    %203 = vmatpush1.msra.mxu0 0.0
    %204 = vmatprep.subr.mxu0 0.0
    %205 = vmatpush1.msra.mxu0 0.0
    %206 = vmatprep.subr.mxu0 0.0
    %207 = vmatpush1.msra.mxu0 0.0
    %208 = vmatprep.subr.mxu0 0.0
    %209 = vmatpush1.msra.mxu0 0.0
    %210 = vmatprep.subr.mxu0 0.0
    %211 = vmatpush1.msra.mxu0 0.0
    %212 = vmatprep.subr.mxu0 0.0
    %213 = vmatpush1.msra.mxu0 0.0
    %214 = vmatprep.subr.mxu0 0.0
    %215 = vmatpush1.msra.mxu0 0.0
    %216 = vmatprep.subr.mxu0 0.0
    %217 = vmatpush1.msra.mxu0 0.0
    %218 = vmatprep.subr.mxu0 0.0
    %219 = vmatpush1.msra.mxu0 0.0
    %220 = vmatprep.subr.mxu0 0.0
    %221 = vmatpush1.msra.mxu0 0.0
    %222 = vmatprep.subr.mxu0 0.0
    %223 = vmatpush1.msra.mxu0 0.0
    %224 = vmatprep.subr.mxu0 0.0
    %225 = vmatpush1.msra.mxu0 0.0
    %226 = vmatprep.subr.mxu0 0.0
    %227 = vmatpush1.msra.mxu0 0.0
    %228 = vmatprep.subr.mxu0 0.0
    %229 = vmatpush1.msra.mxu0 0.0
    %230 = vmatprep.subr.mxu0 0.0
    %231 = vmatpush1.msra.mxu0 0.0
    %232 = vmatprep.subr.mxu0 0.0
    %233 = vmatpush1.msra.mxu0 0.0
    %234 = vmatprep.subr.mxu0 0.0
    %235 = vmatpush1.msra.mxu0 0.0
    %236 = vmatprep.subr.mxu0 0.0
    %237 = vmatpush1.msra.mxu0 0.0
    %238 = vmatprep.subr.mxu0 0.0
    %239 = vmatpush1.msra.mxu0 0.0
    %240 = vmatprep.subr.mxu0 0.0
    %241 = vmatpush1.msra.mxu0 0.0
    %242 = vmatprep.subr.mxu0 0.0
    %243 = vmatpush1.msra.mxu0 0.0
    %244 = vmatprep.subr.mxu0 0.0
    %245 = vmatpush1.msra.mxu0 0.0
    %246 = vmatprep.subr.mxu0 0.0
    %247 = vmatpush1.msra.mxu0 0.0
    %248 = vmatprep.subr.mxu0 0.0
    %249 = vmatpush1.msra.mxu0 0.0
    %250 = vmatprep.subr.mxu0 0.0
    %251 = vmatpush1.msra.mxu0 0.0
    %252 = vmatprep.subr.mxu0 0.0
    %253 = vmatpush1.msra.mxu0 0.0
    %254 = vmatprep.subr.mxu0 0.0
    %255 = vmatpush1.msra.mxu0 0.0
    %256 = vmatprep.mubr.f32.mxu0 0.0
    %257 = vmatmul.mubr.f32.gmra.mrb[0].mxu0 %v181
    %v258 = vpop.f32.mrb[0].mxu0
    %v259 = vadd.f32 0.0, %v258
    %v260 = vpop.f32.mrb[0].mxu0
    %261 = vmatprep.mubr.f32.mxu0 0.0
    %262 = vmatmul.mubr.f32.gmra.mrb[0].mxu0 %v184
    %v263 = vpop.f32.mrb[0].mxu0
    %v264 = vadd.f32 0.0, %v263
    %v265 = vpop.f32.mrb[0].mxu0
    %266 = vmatprep.mubr.f32.mxu0 0.0
    %267 = vmatmul.mubr.f32.gmra.mrb[0].mxu0 %v187
    %v268 = vpop.f32.mrb[0].mxu0
    %v269 = vadd.f32 0.0, %v268
    %v270 = vpop.f32.mrb[0].mxu0
    %271 = vmatprep.mubr.f32.mxu0 0.0
    %272 = vmatmul.mubr.f32.gmra.mrb[0].mxu0 %v190
    %v273 = vpop.f32.mrb[0].mxu0
    %v274 = vadd.f32 0.0, %v273
    %v275 = vpop.f32.mrb[0].mxu0
    %276 = vdwg.mxu0
    %v277 = vld [vmem:[%s4] sm:$0xff]
    %v278 = vld [vmem:[%s4 + $0x8] sm:$0xff]
    %v279 = vld [vmem:[%s4 + $0x10] sm:$0xff]
    %v280 = vld [vmem:[%s4 + $0x18] sm:$0xff]
    %v281 = vld [vmem:[%s4 + $0x20] sm:$0xff]
    %v282 = vld [vmem:[%s4 + $0x28] sm:$0xff]
    %v283 = vld [vmem:[%s4 + $0x30] sm:$0xff]
    %v284 = vld [vmem:[%s4 + $0x38] sm:$0xff]
    %v285 = vld [vmem:[%s4 + $0x40] sm:$0xff]
    %v286 = vld [vmem:[%s4 + $0x48] sm:$0xff]
    %v287 = vld [vmem:[%s4 + $0x50] sm:$0xff]
    %v288 = vld [vmem:[%s4 + $0x58] sm:$0xff]
    %v289 = vld [vmem:[%s4 + $0x60] sm:$0xff]
    %v290 = vld [vmem:[%s4 + $0x68] sm:$0xff]
    %v291 = vld [vmem:[%s4 + $0x70] sm:$0xff]
    %v292 = vld [vmem:[%s4 + $0x78] sm:$0xff]
    %v293 = vld [vmem:[%s5] sm:$0xff]
    %v294 = vld [vmem:[%s5 + $0x8] sm:$0xff]
    %v295 = vld [vmem:[%s5 + $0x10] sm:$0xff]
    %v296 = vld [vmem:[%s5 + $0x18] sm:$0xff]
    %v297 = vld [vmem:[%s5 + $0x20] sm:$0xff]
    %v298 = vld [vmem:[%s5 + $0x28] sm:$0xff]
    %v299 = vld [vmem:[%s5 + $0x30] sm:$0xff]
    %v300 = vld [vmem:[%s5 + $0x38] sm:$0xff]
    %v301 = vld [vmem:[%s5 + $0x40] sm:$0xff]
    %v302 = vld [vmem:[%s5 + $0x48] sm:$0xff]
    %v303 = vld [vmem:[%s5 + $0x50] sm:$0xff]
    %v304 = vld [vmem:[%s5 + $0x58] sm:$0xff]
    %v305 = vld [vmem:[%s5 + $0x60] sm:$0xff]
    %v306 = vld [vmem:[%s5 + $0x68] sm:$0xff]
    %v307 = vld [vmem:[%s5 + $0x70] sm:$0xff]
    %v308 = vld [vmem:[%s5 + $0x78] sm:$0xff]
    %309 = vmatprep.subr.mxu0 0.0
    %310 = vmatpush1.msra.mxu0 %v293
    %311 = vmatprep.subr.mxu0 0.0
    %312 = vmatpush1.msra.mxu0 %v294
    %313 = vmatprep.subr.mxu0 0.0
    %314 = vmatpush1.msra.mxu0 %v295
    %315 = vmatprep.subr.mxu0 0.0
    %316 = vmatpush1.msra.mxu0 %v296
    %317 = vmatprep.subr.mxu0 0.0
    %318 = vmatpush1.msra.mxu0 %v297
    %319 = vmatprep.subr.mxu0 0.0
    %320 = vmatpush1.msra.mxu0 %v298
    %321 = vmatprep.subr.mxu0 0.0
    %322 = vmatpush1.msra.mxu0 %v299
    %323 = vmatprep.subr.mxu0 0.0
    %324 = vmatpush1.msra.mxu0 %v300
    %325 = vmatprep.subr.mxu0 0.0
    %326 = vmatpush1.msra.mxu0 %v301
    %327 = vmatprep.subr.mxu0 0.0
    %328 = vmatpush1.msra.mxu0 %v302
    %329 = vmatprep.subr.mxu0 0.0
    %330 = vmatpush1.msra.mxu0 %v303
    %331 = vmatprep.subr.mxu0 0.0
    %332 = vmatpush1.msra.mxu0 %v304
    %333 = vmatprep.subr.mxu0 0.0
    %334 = vmatpush1.msra.mxu0 %v305
    %335 = vmatprep.subr.mxu0 0.0
    %336 = vmatpush1.msra.mxu0 %v306
    %337 = vmatprep.subr.mxu0 0.0
    %338 = vmatpush1.msra.mxu0 %v307
    %339 = vmatprep.subr.mxu0 0.0
    %340 = vmatpush1.msra.mxu0 %v308
    %341 = vmatprep.subr.mxu0 0.0
    %342 = vmatpush1.msra.mxu0 0.0
    %343 = vmatprep.subr.mxu0 0.0
    %344 = vmatpush1.msra.mxu0 0.0
    %345 = vmatprep.subr.mxu0 0.0
    %346 = vmatpush1.msra.mxu0 0.0
    %347 = vmatprep.subr.mxu0 0.0
    %348 = vmatpush1.msra.mxu0 0.0
    %349 = vmatprep.subr.mxu0 0.0
    %350 = vmatpush1.msra.mxu0 0.0
    %351 = vmatprep.subr.mxu0 0.0
    %352 = vmatpush1.msra.mxu0 0.0
    %353 = vmatprep.subr.mxu0 0.0
    %354 = vmatpush1.msra.mxu0 0.0
    %355 = vmatprep.subr.mxu0 0.0
    %356 = vmatpush1.msra.mxu0 0.0
    %357 = vmatprep.subr.mxu0 0.0
    %358 = vmatpush1.msra.mxu0 0.0
    %359 = vmatprep.subr.mxu0 0.0
    %360 = vmatpush1.msra.mxu0 0.0
    %361 = vmatprep.subr.mxu0 0.0
    %362 = vmatpush1.msra.mxu0 0.0
    %363 = vmatprep.subr.mxu0 0.0
    %364 = vmatpush1.msra.mxu0 0.0
    %365 = vmatprep.subr.mxu0 0.0
    %366 = vmatpush1.msra.mxu0 0.0
    %367 = vmatprep.subr.mxu0 0.0
    %368 = vmatpush1.msra.mxu0 0.0
    %369 = vmatprep.subr.mxu0 0.0
    %370 = vmatpush1.msra.mxu0 0.0
    %371 = vmatprep.subr.mxu0 0.0
    %372 = vmatpush1.msra.mxu0 0.0
    %373 = vmatprep.mubr.f32.mxu0 0.0
    %374 = vmatmul.mubr.f32.gmra.mrb[0].mxu0 %v70
    %v375 = vpop.f32.mrb[0].mxu0
    %v376 = vadd.f32 0.0, %v375
    %v377 = vpop.f32.mrb[0].mxu0
    %378 = vmatprep.mubr.f32.mxu0 0.0
    %379 = vmatmul.mubr.f32.gmra.mrb[0].mxu0 %v71
    %v380 = vpop.f32.mrb[0].mxu0
    %v381 = vadd.f32 0.0, %v380
    %v382 = vpop.f32.mrb[0].mxu0
    %383 = vmatprep.mubr.f32.mxu0 0.0
    %384 = vmatmul.mubr.f32.gmra.mrb[0].mxu0 %v72
    %v385 = vpop.f32.mrb[0].mxu0
    %v386 = vadd.f32 0.0, %v385
    %v387 = vpop.f32.mrb[0].mxu0
    %388 = vmatprep.mubr.f32.mxu0 0.0
    %389 = vmatmul.mubr.f32.gmra.mrb[0].mxu0 %v73
    %v390 = vpop.f32.mrb[0].mxu0
    %v391 = vadd.f32 0.0, %v390
    %v392 = vpop.f32.mrb[0].mxu0
    %393 = vdwg.mxu0
    %394 = vmatprep.subr.mxu0 0.0
    %395 = vmatpush1.msra.mxu0 %v277
    %396 = vmatprep.subr.mxu0 0.0
    %397 = vmatpush1.msra.mxu0 %v278
    %398 = vmatprep.subr.mxu0 0.0
    %399 = vmatpush1.msra.mxu0 %v279
    %400 = vmatprep.subr.mxu0 0.0
    %401 = vmatpush1.msra.mxu0 %v280
    %402 = vmatprep.subr.mxu0 0.0
    %403 = vmatpush1.msra.mxu0 %v281
    %404 = vmatprep.subr.mxu0 0.0
    %405 = vmatpush1.msra.mxu0 %v282
    %406 = vmatprep.subr.mxu0 0.0
    %407 = vmatpush1.msra.mxu0 %v283
    %408 = vmatprep.subr.mxu0 0.0
    %409 = vmatpush1.msra.mxu0 %v284
    %410 = vmatprep.subr.mxu0 0.0
    %411 = vmatpush1.msra.mxu0 %v285
    %412 = vmatprep.subr.mxu0 0.0
    %413 = vmatpush1.msra.mxu0 %v286
    %414 = vmatprep.subr.mxu0 0.0
    %415 = vmatpush1.msra.mxu0 %v287
    %416 = vmatprep.subr.mxu0 0.0
    %417 = vmatpush1.msra.mxu0 %v288
    %418 = vmatprep.subr.mxu0 0.0
    %419 = vmatpush1.msra.mxu0 %v289
    %420 = vmatprep.subr.mxu0 0.0
    %421 = vmatpush1.msra.mxu0 %v290
    %422 = vmatprep.subr.mxu0 0.0
    %423 = vmatpush1.msra.mxu0 %v291
    %424 = vmatprep.subr.mxu0 0.0
    %425 = vmatpush1.msra.mxu0 %v292
    %426 = vmatprep.subr.mxu0 0.0
    %427 = vmatpush1.msra.mxu0 0.0
    %428 = vmatprep.subr.mxu0 0.0
    %429 = vmatpush1.msra.mxu0 0.0
    %430 = vmatprep.subr.mxu0 0.0
    %431 = vmatpush1.msra.mxu0 0.0
    %432 = vmatprep.subr.mxu0 0.0
    %433 = vmatpush1.msra.mxu0 0.0
    %434 = vmatprep.subr.mxu0 0.0
    %435 = vmatpush1.msra.mxu0 0.0
    %436 = vmatprep.subr.mxu0 0.0
    %437 = vmatpush1.msra.mxu0 0.0
    %438 = vmatprep.subr.mxu0 0.0
    %439 = vmatpush1.msra.mxu0 0.0
    %440 = vmatprep.subr.mxu0 0.0
    %441 = vmatpush1.msra.mxu0 0.0
    %442 = vmatprep.subr.mxu0 0.0
    %443 = vmatpush1.msra.mxu0 0.0
    %444 = vmatprep.subr.mxu0 0.0
    %445 = vmatpush1.msra.mxu0 0.0
    %446 = vmatprep.subr.mxu0 0.0
    %447 = vmatpush1.msra.mxu0 0.0
    %448 = vmatprep.subr.mxu0 0.0
    %449 = vmatpush1.msra.mxu0 0.0
    %450 = vmatprep.subr.mxu0 0.0
    %451 = vmatpush1.msra.mxu0 0.0
    %452 = vmatprep.subr.mxu0 0.0
    %453 = vmatpush1.msra.mxu0 0.0
    %454 = vmatprep.subr.mxu0 0.0
    %455 = vmatpush1.msra.mxu0 0.0
    %456 = vmatprep.subr.mxu0 0.0
    %457 = vmatpush1.msra.mxu0 0.0
    %458 = vmatprep.mubr.f32.mxu0 0.0
    %459 = vmatmul.mubr.f32.gmra.mrb[0].mxu0 %v158
    %v460 = vpop.f32.mrb[0].mxu0
    %v461 = vadd.f32 %v376, %v460
    %v462 = vpop.f32.mrb[0].mxu0
    %463 = vmatprep.mubr.f32.mxu0 0.0
    %464 = vmatmul.mubr.f32.gmra.mrb[0].mxu0 %v163
    %v465 = vpop.f32.mrb[0].mxu0
    %v466 = vadd.f32 %v381, %v465
    %v467 = vpop.f32.mrb[0].mxu0
    %468 = vmatprep.mubr.f32.mxu0 0.0
    %469 = vmatmul.mubr.f32.gmra.mrb[0].mxu0 %v168
    %v470 = vpop.f32.mrb[0].mxu0
    %v471 = vadd.f32 %v386, %v470
    %v472 = vpop.f32.mrb[0].mxu0
    %473 = vmatprep.mubr.f32.mxu0 0.0
    %474 = vmatmul.mubr.f32.gmra.mrb[0].mxu0 %v173
    %v475 = vpop.f32.mrb[0].mxu0
    %v476 = vadd.f32 %v391, %v475
    %v477 = vpop.f32.mrb[0].mxu0
    %478 = vdwg.mxu0
    %v479 = vld [vmem:[#allocation6] sm:$0xff]
    %v480 = vld [vmem:[#allocation6 + $0x8] sm:$0xff]
    %v481 = vld [vmem:[#allocation6 + $0x10] sm:$0xff]
    %v482 = vld [vmem:[#allocation6 + $0x18] sm:$0xff]
    %v483 = vld [vmem:[#allocation6 + $0x20] sm:$0xff]
    %v484 = vld [vmem:[#allocation6 + $0x28] sm:$0xff]
    %v485 = vld [vmem:[#allocation6 + $0x30] sm:$0xff]
    %v486 = vld [vmem:[#allocation6 + $0x38] sm:$0xff]
    %v487 = vld [vmem:[#allocation6 + $0x40] sm:$0xff]
    %v488 = vld [vmem:[#allocation6 + $0x48] sm:$0xff]
    %v489 = vld [vmem:[#allocation6 + $0x50] sm:$0xff]
    %v490 = vld [vmem:[#allocation6 + $0x58] sm:$0xff]
    %v491 = vld [vmem:[#allocation6 + $0x60] sm:$0xff]
    %v492 = vld [vmem:[#allocation6 + $0x68] sm:$0xff]
    %v493 = vld [vmem:[#allocation6 + $0x70] sm:$0xff]
    %v494 = vld [vmem:[#allocation6 + $0x78] sm:$0xff]
    %495 = vmatprep.subr.mxu0 0.0
    %496 = vmatpush1.msra.mxu0 %v479
    %497 = vmatprep.subr.mxu0 0.0
    %498 = vmatpush1.msra.mxu0 %v480
    %499 = vmatprep.subr.mxu0 0.0
    %500 = vmatpush1.msra.mxu0 %v481
    %501 = vmatprep.subr.mxu0 0.0
    %502 = vmatpush1.msra.mxu0 %v482
    %503 = vmatprep.subr.mxu0 0.0
    %504 = vmatpush1.msra.mxu0 %v483
    %505 = vmatprep.subr.mxu0 0.0
    %506 = vmatpush1.msra.mxu0 %v484
    %507 = vmatprep.subr.mxu0 0.0
    %508 = vmatpush1.msra.mxu0 %v485
    %509 = vmatprep.subr.mxu0 0.0
    %510 = vmatpush1.msra.mxu0 %v486
    %511 = vmatprep.subr.mxu0 0.0
    %512 = vmatpush1.msra.mxu0 %v487
    %513 = vmatprep.subr.mxu0 0.0
    %514 = vmatpush1.msra.mxu0 %v488
    %515 = vmatprep.subr.mxu0 0.0
    %516 = vmatpush1.msra.mxu0 %v489
    %517 = vmatprep.subr.mxu0 0.0
    %518 = vmatpush1.msra.mxu0 %v490
    %519 = vmatprep.subr.mxu0 0.0
    %520 = vmatpush1.msra.mxu0 %v491
    %521 = vmatprep.subr.mxu0 0.0
    %522 = vmatpush1.msra.mxu0 %v492
    %523 = vmatprep.subr.mxu0 0.0
    %524 = vmatpush1.msra.mxu0 %v493
    %525 = vmatprep.subr.mxu0 0.0
    %526 = vmatpush1.msra.mxu0 %v494
    %527 = vmatprep.subr.mxu0 0.0
    %528 = vmatpush1.msra.mxu0 0.0
    %529 = vmatprep.subr.mxu0 0.0
    %530 = vmatpush1.msra.mxu0 0.0
    %531 = vmatprep.subr.mxu0 0.0
    %532 = vmatpush1.msra.mxu0 0.0
    %533 = vmatprep.subr.mxu0 0.0
    %534 = vmatpush1.msra.mxu0 0.0
    %535 = vmatprep.subr.mxu0 0.0
    %536 = vmatpush1.msra.mxu0 0.0
    %537 = vmatprep.subr.mxu0 0.0
    %538 = vmatpush1.msra.mxu0 0.0
    %539 = vmatprep.subr.mxu0 0.0
    %540 = vmatpush1.msra.mxu0 0.0
    %541 = vmatprep.subr.mxu0 0.0
    %542 = vmatpush1.msra.mxu0 0.0
    %543 = vmatprep.subr.mxu0 0.0
    %544 = vmatpush1.msra.mxu0 0.0
    %545 = vmatprep.subr.mxu0 0.0
    %546 = vmatpush1.msra.mxu0 0.0
    %547 = vmatprep.subr.mxu0 0.0
    %548 = vmatpush1.msra.mxu0 0.0
    %549 = vmatprep.subr.mxu0 0.0
    %550 = vmatpush1.msra.mxu0 0.0
    %551 = vmatprep.subr.mxu0 0.0
    %552 = vmatpush1.msra.mxu0 0.0
    %553 = vmatprep.subr.mxu0 0.0
    %554 = vmatpush1.msra.mxu0 0.0
    %555 = vmatprep.subr.mxu0 0.0
    %556 = vmatpush1.msra.mxu0 0.0
    %557 = vmatprep.subr.mxu0 0.0
    %558 = vmatpush1.msra.mxu0 0.0
    %559 = vmatprep.mubr.f32.mxu0 0.0
    %560 = vmatmul.mubr.f32.gmra.mrb[0].mxu0 %v259
    %v561 = vpop.f32.mrb[0].mxu0
    %v562 = vadd.f32 0.0, %v561
    %v563 = vpop.f32.mrb[0].mxu0
    %564 = vmatprep.mubr.f32.mxu0 0.0
    %565 = vmatmul.mubr.f32.gmra.mrb[0].mxu0 %v264
    %v566 = vpop.f32.mrb[0].mxu0
    %v567 = vadd.f32 0.0, %v566
    %v568 = vpop.f32.mrb[0].mxu0
    %569 = vmatprep.mubr.f32.mxu0 0.0
    %570 = vmatmul.mubr.f32.gmra.mrb[0].mxu0 %v269
    %v571 = vpop.f32.mrb[0].mxu0
    %v572 = vadd.f32 0.0, %v571
    %v573 = vpop.f32.mrb[0].mxu0
    %574 = vmatprep.mubr.f32.mxu0 0.0
    %575 = vmatmul.mubr.f32.gmra.mrb[0].mxu0 %v274
    %v576 = vpop.f32.mrb[0].mxu0
    %v577 = vadd.f32 0.0, %v576
    %v578 = vpop.f32.mrb[0].mxu0
    %579 = vdwg.mxu0
    %v580 = vadd.f32 %v461, %v562
    %v581 = vadd.f32 %v466, %v567
    %v582 = vadd.f32 %v471, %v572
    %v583 = vadd.f32 %v476, %v577
    %v584 = vld [vmem:[%s1] sm:$0xff]
    %v585 = vld [vmem:[%s1 + $0x8] sm:$0xff]
    %v586 = vld [vmem:[%s1 + $0x10] sm:$0xff]
    %v587 = vld [vmem:[%s1 + $0x18] sm:$0xff]
    %v588 = vld [vmem:[%s7] sm:$0xff]
    %v589 = vld [vmem:[%s7 + $0x8] sm:$0xff]
    %v590 = vld [vmem:[%s7 + $0x10] sm:$0xff]
    %v591 = vld [vmem:[%s7 + $0x18] sm:$0xff]
    %v592 = vld [vmem:[%s7 + $0x20] sm:$0xff]
    %v593 = vld [vmem:[%s7 + $0x28] sm:$0xff]
    %v594 = vld [vmem:[%s7 + $0x30] sm:$0xff]
    %v595 = vld [vmem:[%s7 + $0x38] sm:$0xff]
    %v596 = vld [vmem:[%s7 + $0x40] sm:$0xff]
    %v597 = vld [vmem:[%s7 + $0x48] sm:$0xff]
    %v598 = vld [vmem:[%s7 + $0x50] sm:$0xff]
    %v599 = vld [vmem:[%s7 + $0x58] sm:$0xff]
    %v600 = vld [vmem:[%s7 + $0x60] sm:$0xff]
    %v601 = vld [vmem:[%s7 + $0x68] sm:$0xff]
    %v602 = vld [vmem:[%s7 + $0x70] sm:$0xff]
    %v603 = vld [vmem:[%s7 + $0x78] sm:$0xff]
    %604 = vmatprep.subr.mxu0 0.0
    %605 = vmatpush1.msra.mxu0 %v588
    %606 = vmatprep.subr.mxu0 0.0
    %607 = vmatpush1.msra.mxu0 %v589
    %608 = vmatprep.subr.mxu0 0.0
    %609 = vmatpush1.msra.mxu0 %v590
    %610 = vmatprep.subr.mxu0 0.0
    %611 = vmatpush1.msra.mxu0 %v591
    %612 = vmatprep.subr.mxu0 0.0
    %613 = vmatpush1.msra.mxu0 %v592
    %614 = vmatprep.subr.mxu0 0.0
    %615 = vmatpush1.msra.mxu0 %v593
    %616 = vmatprep.subr.mxu0 0.0
    %617 = vmatpush1.msra.mxu0 %v594
    %618 = vmatprep.subr.mxu0 0.0
    %619 = vmatpush1.msra.mxu0 %v595
    %620 = vmatprep.subr.mxu0 0.0
    %621 = vmatpush1.msra.mxu0 %v596
    %622 = vmatprep.subr.mxu0 0.0
    %623 = vmatpush1.msra.mxu0 %v597
    %624 = vmatprep.subr.mxu0 0.0
    %625 = vmatpush1.msra.mxu0 %v598
    %626 = vmatprep.subr.mxu0 0.0
    %627 = vmatpush1.msra.mxu0 %v599
    %628 = vmatprep.subr.mxu0 0.0
    %629 = vmatpush1.msra.mxu0 %v600
    %630 = vmatprep.subr.mxu0 0.0
    %631 = vmatpush1.msra.mxu0 %v601
    %632 = vmatprep.subr.mxu0 0.0
    %633 = vmatpush1.msra.mxu0 %v602
    %634 = vmatprep.subr.mxu0 0.0
    %635 = vmatpush1.msra.mxu0 %v603
    %636 = vmatprep.subr.mxu0 0.0
    %637 = vmatpush1.msra.mxu0 0.0
    %638 = vmatprep.subr.mxu0 0.0
    %639 = vmatpush1.msra.mxu0 0.0
    %640 = vmatprep.subr.mxu0 0.0
    %641 = vmatpush1.msra.mxu0 0.0
    %642 = vmatprep.subr.mxu0 0.0
    %643 = vmatpush1.msra.mxu0 0.0
    %644 = vmatprep.subr.mxu0 0.0
    %645 = vmatpush1.msra.mxu0 0.0
    %646 = vmatprep.subr.mxu0 0.0
    %647 = vmatpush1.msra.mxu0 0.0
    %648 = vmatprep.subr.mxu0 0.0
    %649 = vmatpush1.msra.mxu0 0.0
    %650 = vmatprep.subr.mxu0 0.0
    %651 = vmatpush1.msra.mxu0 0.0
    %652 = vmatprep.subr.mxu0 0.0
    %653 = vmatpush1.msra.mxu0 0.0
    %654 = vmatprep.subr.mxu0 0.0
    %655 = vmatpush1.msra.mxu0 0.0
    %656 = vmatprep.subr.mxu0 0.0
    %657 = vmatpush1.msra.mxu0 0.0
    %658 = vmatprep.subr.mxu0 0.0
    %659 = vmatpush1.msra.mxu0 0.0
    %660 = vmatprep.subr.mxu0 0.0
    %661 = vmatpush1.msra.mxu0 0.0
    %662 = vmatprep.subr.mxu0 0.0
    %663 = vmatpush1.msra.mxu0 0.0
    %664 = vmatprep.subr.mxu0 0.0
    %665 = vmatpush1.msra.mxu0 0.0
    %666 = vmatprep.subr.mxu0 0.0
    %667 = vmatpush1.msra.mxu0 0.0
    %668 = vmatprep.mubr.f32.mxu0 0.0
    %669 = vmatmul.mubr.f32.gmra.mrb[0].mxu0 %v584
    %v670 = vpop.f32.mrb[0].mxu0
    %v671 = vadd.f32 0.0, %v670
    %v672 = vpop.f32.mrb[0].mxu0
    %673 = vmatprep.mubr.f32.mxu0 0.0
    %674 = vmatmul.mubr.f32.gmra.mrb[0].mxu0 %v585
    %v675 = vpop.f32.mrb[0].mxu0
    %v676 = vadd.f32 0.0, %v675
    %v677 = vpop.f32.mrb[0].mxu0
    %678 = vmatprep.mubr.f32.mxu0 0.0
    %679 = vmatmul.mubr.f32.gmra.mrb[0].mxu0 %v586
    %v680 = vpop.f32.mrb[0].mxu0
    %v681 = vadd.f32 0.0, %v680
    %v682 = vpop.f32.mrb[0].mxu0
    %683 = vmatprep.mubr.f32.mxu0 0.0
    %684 = vmatmul.mubr.f32.gmra.mrb[0].mxu0 %v587
    %v685 = vpop.f32.mrb[0].mxu0
    %v686 = vadd.f32 0.0, %v685
    %v687 = vpop.f32.mrb[0].mxu0
    %688 = vdwg.mxu0
    %v689 = vadd.f32 %v580, %v671
    %v690 = vadd.f32 %v581, %v676
    %v691 = vadd.f32 %v582, %v681
    %v692 = vadd.f32 %v583, %v686
    %693 = vst [vmem:[%s8] sm:$0xff] %v689
    %694 = vst [vmem:[%s8 + $0x8] sm:$0xff] %v690
    %695 = vst [vmem:[%s8 + $0x10] sm:$0xff] %v691
    %696 = vst [vmem:[%s8 + $0x18] sm:$0xff] %v692
    // Predicated region
    $region46: #{model_forward.16} parent=1 // pred_check
      _
    $region47: #{model_forward.16} parent=1 // pred_check_branch
      %698 = sbr.rel (0) target = $region49
    $region48: #{model_forward.16} parent=1 // pred_region
      _
    $region49: #{model_forward.16} parent=1 // pred_fallthru
      _
    // Predicated region
    $region50: #{model_forward.16} parent=1 // pred_check
      _
    $region51: #{model_forward.16} parent=1 // pred_check_branch
      %700 = sbr.rel (0) target = $region53
    $region52: #{model_forward.16} parent=1 // pred_region
      _
    $region53: #{model_forward.16} parent=1 // pred_fallthru
      _
    %701 = vsyncpa [#allocation3], 1
    %702 = vsyncpa [#allocation5], 1

// kernel: model_forward.21
$region0: #{model_forward.21}
  #allocation0 [shape = 'u32[]', space=smem, size = 0x4, offset = 0x4, fixed_abs, tag = 'smem constant byte address 0x4 - core index']
  #allocation1 [shape = 'u32[144,128]{1,0:T(1,128)}', space=vmem, size = 0x12000, scoped, tag = 'internal scratch']
  %s0 = inlined_call_operand.vmem [shape: f32[32,128], index: 0, kind: input, shape index: {}]
  %s1 = inlined_call_operand.vmem [shape: f32[1,128], index: 1, kind: input, shape index: {}]
  %s2 = inlined_call_operand.vmem [shape: f32[1,128], index: 2, kind: input, shape index: {}]
  %s3 = inlined_call_operand.vmem [shape: f32[32,32], index: 3, kind: input, shape index: {}]
  %s4 = inlined_call_operand.vmem [shape: f32[32,128], index: 4, kind: output, shape index: {}]
  %s5 = sld [smem:[#allocation0]]
  $region26: #{model_forward.21} parent=0
    _
  %s7 = ssub.s32 1, %s5
  %s8 = scalar_select 0, %s7, %s5
  // Predicated region
  $region2: #{model_forward.21} parent=0 // pred_check
    _
  $region3: #{model_forward.21} parent=0 // pred_check_branch
    %10 = sbr.rel (0) target = $region5
  $region4: #{model_forward.21} parent=0 // pred_region
    _
  $region5: #{model_forward.21} parent=0 // pred_fallthru
    _
  // Predicated region
  $region6: #{model_forward.21} parent=0 // pred_check
    _
  $region7: #{model_forward.21} parent=0 // pred_check_branch
    %12 = sbr.rel (0) target = $region9
  $region8: #{model_forward.21} parent=0 // pred_region
    _
  $region9: #{model_forward.21} parent=0 // pred_fallthru
    _
  // Predicated region
  $region10: #{model_forward.21} parent=0 // pred_check
    _
  $region11: #{model_forward.21} parent=0 // pred_check_branch
    %14 = sbr.rel (0) target = $region13
  $region12: #{model_forward.21} parent=0 // pred_region
    _
  $region13: #{model_forward.21} parent=0 // pred_fallthru
    _
  // Predicated region
  $region14: #{model_forward.21} parent=0 // pred_check
    _
  $region15: #{model_forward.21} parent=0 // pred_check_branch
    %16 = sbr.rel (0) target = $region17
  $region16: #{model_forward.21} parent=0 // pred_region
    _
  $region17: #{model_forward.21} parent=0 // pred_fallthru
    _
  %v17 = vld [vmem:[%s0] sm:$0xff]
  %v18 = vld [vmem:[%s0 + $0x8] sm:$0xff]
  %v19 = vld [vmem:[%s0 + $0x10] sm:$0xff]
  %v20 = vld [vmem:[%s0 + $0x18] sm:$0xff]
  %v21 = vld [vmem:[%s1] sm:$0x1]
  %v22 = vld [vmem:[%s2] sm:$0x1]
  %23 = vadd.xlane.f32.xlu0 %v17
  %v24 = vpop.xlane.xlu0 %23
  %25 = vadd.xlane.f32.xlu0 %v18
  %v26 = vpop.xlane.xlu0 %25
  %27 = vadd.xlane.f32.xlu0 %v19
  %v28 = vpop.xlane.xlu0 %27
  %29 = vadd.xlane.f32.xlu0 %v20
  %v30 = vpop.xlane.xlu0 %29
  %v31 = vrcp.pop 128.0
  %v32 = vmul.f32 %v24, %v31
  %v33 = vmul.f32 %v26, %v31
  %v34 = vmul.f32 %v28, %v31
  %v35 = vmul.f32 %v30, %v31
  %v36 = vmul.f32 %v32, 4.0
  %v37 = vmul.f32 %v33, 4.0
  %v38 = vmul.f32 %v34, 4.0
  %v39 = vmul.f32 %v35, 4.0
  %v40 = vsub.f32 %v17, %v36
  %v41 = vsub.f32 %v18, %v37
  %v42 = vsub.f32 %v19, %v38
  %v43 = vsub.f32 %v20, %v39
  %v44 = vmul.f32 %v40, %v40
  %v45 = vmul.f32 %v41, %v41
  %v46 = vmul.f32 %v42, %v42
  %v47 = vmul.f32 %v43, %v43
  %48 = vadd.xlane.f32.xlu0 %v44
  %v49 = vpop.xlane.xlu0 %48
  %50 = vadd.xlane.f32.xlu0 %v45
  %v51 = vpop.xlane.xlu0 %50
  %52 = vadd.xlane.f32.xlu0 %v46
  %v53 = vpop.xlane.xlu0 %52
  %54 = vadd.xlane.f32.xlu0 %v47
  %v55 = vpop.xlane.xlu0 %54
  %v56 = vmul.f32 %v49, %v31
  %v57 = vmul.f32 %v51, %v31
  %v58 = vmul.f32 %v53, %v31
  %v59 = vmul.f32 %v55, %v31
  %v60 = vmul.f32 %v56, 4.0
  %v61 = vmul.f32 %v57, 4.0
  %v62 = vmul.f32 %v58, 4.0
  %v63 = vmul.f32 %v59, 4.0
  %v64 = vmul.f32 %v36, 3.0
  %v65 = vmul.f32 %v37, 3.0
  %v66 = vmul.f32 %v38, 3.0
  %v67 = vmul.f32 %v39, 3.0
  %v68 = vmul.f32 %v64, %v36
  %v69 = vmul.f32 %v65, %v37
  %v70 = vmul.f32 %v66, %v38
  %v71 = vmul.f32 %v67, %v39
  %v72 = vsub.f32 %v60, %v68
  %v73 = vsub.f32 %v61, %v69
  %v74 = vsub.f32 %v62, %v70
  %v75 = vsub.f32 %v63, %v71
  %v76 = vadd.f32 %v72, 1e-05
  %v77 = vadd.f32 %v73, 1e-05
  %v78 = vadd.f32 %v74, 1e-05
  %v79 = vadd.f32 %v75, 1e-05
  %v80 = vrsqrt.pop %v76
  %v81 = vrsqrt.pop %v77
  %v82 = vrsqrt.pop %v78
  %v83 = vrsqrt.pop %v79
  %v84 = vmul.f32 %v40, %v80
  %v85 = vmul.f32 %v41, %v81
  %v86 = vmul.f32 %v42, %v82
  %v87 = vmul.f32 %v43, %v83
  %v89 = vlaneseq
  %v90 = vshrl.u32 %v89, 7
  %v91 = vsub.s32 0, %v90
  %v92 = vrot.slane %v21, %v91
  %v94 = vmul.f32 %v84, %v92
  %v95 = vmul.f32 %v85, %v92
  %v96 = vmul.f32 %v86, %v92
  %v97 = vmul.f32 %v87, %v92
  %v99 = vlaneseq
  %v100 = vshrl.u32 %v99, 7
  %v101 = vsub.s32 0, %v100
  %v102 = vrot.slane %v22, %v101
  %v104 = vadd.f32 %v94, %v102
  %v105 = vadd.f32 %v95, %v102
  %v106 = vadd.f32 %v96, %v102
  %v107 = vadd.f32 %v97, %v102
  %v108 = vld [vmem:[%s3] sm:$0xff]
  %v109 = vld [vmem:[%s3 + $0x8] sm:$0xff]
  %v110 = vld [vmem:[%s3 + $0x10] sm:$0xff]
  %v111 = vld [vmem:[%s3 + $0x18] sm:$0xff]
  %vm112 = vcmask 261120
  %v114 = vsel %vm112, %v108, 0
  %v117 = vsel %vm112, %v109, 0
  %v120 = vsel %vm112, %v110, 0
  %v123 = vsel %vm112, %v111, 0
  %125 = vmatprep.subr.mxu0 0.0
  %126 = vmatpush1.msra.mxu0 %v104
  %127 = vmatprep.subr.mxu0 0.0
  %128 = vmatpush1.msra.mxu0 %v105
  %129 = vmatprep.subr.mxu0 0.0
  %130 = vmatpush1.msra.mxu0 %v106
  %131 = vmatprep.subr.mxu0 0.0
  %132 = vmatpush1.msra.mxu0 %v107
  %133 = vmatprep.subr.mxu0 0.0
  %134 = vmatpush1.msra.mxu0 0.0
  %135 = vmatprep.subr.mxu0 0.0
  %136 = vmatpush1.msra.mxu0 0.0
  %137 = vmatprep.subr.mxu0 0.0
  %138 = vmatpush1.msra.mxu0 0.0
  %139 = vmatprep.subr.mxu0 0.0
  %140 = vmatpush1.msra.mxu0 0.0
  %141 = vmatprep.subr.mxu0 0.0
  %142 = vmatpush1.msra.mxu0 0.0
  %143 = vmatprep.subr.mxu0 0.0
  %144 = vmatpush1.msra.mxu0 0.0
  %145 = vmatprep.subr.mxu0 0.0
  %146 = vmatpush1.msra.mxu0 0.0
  %147 = vmatprep.subr.mxu0 0.0
  %148 = vmatpush1.msra.mxu0 0.0
  %149 = vmatprep.subr.mxu0 0.0
  %150 = vmatpush1.msra.mxu0 0.0
  %151 = vmatprep.subr.mxu0 0.0
  %152 = vmatpush1.msra.mxu0 0.0
  %153 = vmatprep.subr.mxu0 0.0
  %154 = vmatpush1.msra.mxu0 0.0
  %155 = vmatprep.subr.mxu0 0.0
  %156 = vmatpush1.msra.mxu0 0.0
  %157 = vmatprep.subr.mxu0 0.0
  %158 = vmatpush1.msra.mxu0 0.0
  %159 = vmatprep.subr.mxu0 0.0
  %160 = vmatpush1.msra.mxu0 0.0
  %161 = vmatprep.subr.mxu0 0.0
  %162 = vmatpush1.msra.mxu0 0.0
  %163 = vmatprep.subr.mxu0 0.0
  %164 = vmatpush1.msra.mxu0 0.0
  %165 = vmatprep.subr.mxu0 0.0
  %166 = vmatpush1.msra.mxu0 0.0
  %167 = vmatprep.subr.mxu0 0.0
  %168 = vmatpush1.msra.mxu0 0.0
  %169 = vmatprep.subr.mxu0 0.0
  %170 = vmatpush1.msra.mxu0 0.0
  %171 = vmatprep.subr.mxu0 0.0
  %172 = vmatpush1.msra.mxu0 0.0
  %173 = vmatprep.subr.mxu0 0.0
  %174 = vmatpush1.msra.mxu0 0.0
  %175 = vmatprep.subr.mxu0 0.0
  %176 = vmatpush1.msra.mxu0 0.0
  %177 = vmatprep.subr.mxu0 0.0
  %178 = vmatpush1.msra.mxu0 0.0
  %179 = vmatprep.subr.mxu0 0.0
  %180 = vmatpush1.msra.mxu0 0.0
  %181 = vmatprep.subr.mxu0 0.0
  %182 = vmatpush1.msra.mxu0 0.0
  %183 = vmatprep.subr.mxu0 0.0
  %184 = vmatpush1.msra.mxu0 0.0
  %185 = vmatprep.subr.mxu0 0.0
  %186 = vmatpush1.msra.mxu0 0.0
  %187 = vmatprep.subr.mxu0 0.0
  %188 = vmatpush1.msra.mxu0 0.0
  %189 = vmatprep.mubr.f32.mxu0 0.0
  %190 = vmatmul.mubr.f32.gmra.mrb[0].mxu0 %v114
  %v191 = vpop.f32.mrb[0].mxu0
  %v192 = vadd.f32 0.0, %v191
  %v193 = vpop.f32.mrb[0].mxu0
  %194 = vmatprep.mubr.f32.mxu0 0.0
  %195 = vmatmul.mubr.f32.gmra.mrb[0].mxu0 %v117
  %v196 = vpop.f32.mrb[0].mxu0
  %v197 = vadd.f32 0.0, %v196
  %v198 = vpop.f32.mrb[0].mxu0
  %199 = vmatprep.mubr.f32.mxu0 0.0
  %200 = vmatmul.mubr.f32.gmra.mrb[0].mxu0 %v120
  %v201 = vpop.f32.mrb[0].mxu0
  %v202 = vadd.f32 0.0, %v201
  %v203 = vpop.f32.mrb[0].mxu0
  %204 = vmatprep.mubr.f32.mxu0 0.0
  %205 = vmatmul.mubr.f32.gmra.mrb[0].mxu0 %v123
  %v206 = vpop.f32.mrb[0].mxu0
  %v207 = vadd.f32 0.0, %v206
  %v208 = vpop.f32.mrb[0].mxu0
  %209 = vdwg.mxu0
  %210 = vst [vmem:[%s4] sm:$0xff] %v192
  %211 = vst [vmem:[%s4 + $0x8] sm:$0xff] %v197
  %212 = vst [vmem:[%s4 + $0x10] sm:$0xff] %v202
  %213 = vst [vmem:[%s4 + $0x18] sm:$0xff] %v207
  // Predicated region
  $region18: #{model_forward.21} parent=0 // pred_check
    _
  $region19: #{model_forward.21} parent=0 // pred_check_branch
    %215 = sbr.rel (0) target = $region21
  $region20: #{model_forward.21} parent=0 // pred_region
    _
  $region21: #{model_forward.21} parent=0 // pred_fallthru
    _
  // Predicated region
  $region22: #{model_forward.21} parent=0 // pred_check
    _
  $region23: #{model_forward.21} parent=0 // pred_check_branch
    %217 = sbr.rel (0) target = $region25
  $region24: #{model_forward.21} parent=0 // pred_region
    _
  $region25: #{model_forward.21} parent=0 // pred_fallthru
    _

// kernel: model_forward.18
$region0: #{model_forward.18}
  #allocation0 [shape = 'u32[]', space=smem, size = 0x4, offset = 0x4, fixed_abs, tag = 'smem constant byte address 0x4 - core index']
  #allocation1 [shape = 'u32[144,128]{1,0:T(1,128)}', space=vmem, size = 0x12000, scoped, tag = 'internal scratch']
  %s0 = inlined_call_operand.vmem [shape: f32[32,128], index: 0, kind: input, shape index: {}]
  %s1 = inlined_call_operand.vmem [shape: f32[32,128], index: 1, kind: input, shape index: {}]
  %s2 = inlined_call_operand.vmem [shape: f32[32,32], index: 2, kind: input, shape index: {}]
  %s3 = inlined_call_operand.vmem [shape: f32[32,32], index: 3, kind: input, shape index: {}]
  %s4 = inlined_call_operand.vmem [shape: f32[128,128], index: 4, kind: input, shape index: {}]
  %s5 = inlined_call_operand.vmem [shape: f32[1,128], index: 5, kind: input, shape index: {}]
  %s6 = inlined_call_operand.vmem [shape: f32[128,128], index: 6, kind: input, shape index: {}]
  %s7 = inlined_call_operand.vmem [shape: f32[128,128], index: 7, kind: input, shape index: {}]
  %s8 = inlined_call_operand.vmem [shape: f32[32,128], index: 8, kind: output, shape index: {}]
  %s9 = sld [smem:[#allocation0]]
  $region42: #{model_forward.18} parent=0
    _
  %s11 = ssub.s32 1, %s9
  %s12 = scalar_select 0, %s11, %s9
  // Predicated region
  $region2: #{model_forward.18} parent=0 // pred_check
    _
  $region3: #{model_forward.18} parent=0 // pred_check_branch
    %14 = sbr.rel (0) target = $region5
  $region4: #{model_forward.18} parent=0 // pred_region
    _
  $region5: #{model_forward.18} parent=0 // pred_fallthru
    _
  // Predicated region
  $region6: #{model_forward.18} parent=0 // pred_check
    _
  $region7: #{model_forward.18} parent=0 // pred_check_branch
    %16 = sbr.rel (0) target = $region9
  $region8: #{model_forward.18} parent=0 // pred_region
    _
  $region9: #{model_forward.18} parent=0 // pred_fallthru
    _
  // Predicated region
  $region10: #{model_forward.18} parent=0 // pred_check
    _
  $region11: #{model_forward.18} parent=0 // pred_check_branch
    %18 = sbr.rel (0) target = $region13
  $region12: #{model_forward.18} parent=0 // pred_region
    _
  $region13: #{model_forward.18} parent=0 // pred_fallthru
    _
  // Predicated region
  $region14: #{model_forward.18} parent=0 // pred_check
    _
  $region15: #{model_forward.18} parent=0 // pred_check_branch
    %20 = sbr.rel (0) target = $region17
  $region16: #{model_forward.18} parent=0 // pred_region
    _
  $region17: #{model_forward.18} parent=0 // pred_fallthru
    _
  // Predicated region
  $region18: #{model_forward.18} parent=0 // pred_check
    _
  $region19: #{model_forward.18} parent=0 // pred_check_branch
    %22 = sbr.rel (0) target = $region21
  $region20: #{model_forward.18} parent=0 // pred_region
    _
  $region21: #{model_forward.18} parent=0 // pred_fallthru
    _
  // Predicated region
  $region22: #{model_forward.18} parent=0 // pred_check
    _
  $region23: #{model_forward.18} parent=0 // pred_check_branch
    %24 = sbr.rel (0) target = $region25
  $region24: #{model_forward.18} parent=0 // pred_region
    _
  $region25: #{model_forward.18} parent=0 // pred_fallthru
    _
  // Predicated region
  $region26: #{model_forward.18} parent=0 // pred_check
    _
  $region27: #{model_forward.18} parent=0 // pred_check_branch
    %26 = sbr.rel (0) target = $region29
  $region28: #{model_forward.18} parent=0 // pred_region
    _
  $region29: #{model_forward.18} parent=0 // pred_fallthru
    _
  // Predicated region
  $region30: #{model_forward.18} parent=0 // pred_check
    _
  $region31: #{model_forward.18} parent=0 // pred_check_branch
    %28 = sbr.rel (0) target = $region33
  $region32: #{model_forward.18} parent=0 // pred_region
    _
  $region33: #{model_forward.18} parent=0 // pred_fallthru
    _
  %v29 = vld [vmem:[%s0] sm:$0xff]
  %v30 = vld [vmem:[%s0 + $0x8] sm:$0xff]
  %v31 = vld [vmem:[%s0 + $0x10] sm:$0xff]
  %v32 = vld [vmem:[%s0 + $0x18] sm:$0xff]
  %v33 = vld [vmem:[%s2] sm:$0xff]
  %v34 = vld [vmem:[%s2 + $0x8] sm:$0xff]
  %v35 = vld [vmem:[%s2 + $0x10] sm:$0xff]
  %v36 = vld [vmem:[%s2 + $0x18] sm:$0xff]
  %v37 = vld [vmem:[%s1] sm:$0xff]
  %v38 = vld [vmem:[%s1 + $0x8] sm:$0xff]
  %v39 = vld [vmem:[%s1 + $0x10] sm:$0xff]
  %v40 = vld [vmem:[%s1 + $0x18] sm:$0xff]
  %vm41 = vcmask 261120
  %v43 = vsel %vm41, %v33, 0
  %v46 = vsel %vm41, %v34, 0
  %v49 = vsel %vm41, %v35, 0
  %v52 = vsel %vm41, %v36, 0
  %54 = vmatprep.subr.mxu0 0.0
  %55 = vmatpush1.msra.mxu0 %v37
  %56 = vmatprep.subr.mxu0 0.0
  %57 = vmatpush1.msra.mxu0 %v38
  %58 = vmatprep.subr.mxu0 0.0
  %59 = vmatpush1.msra.mxu0 %v39
  %60 = vmatprep.subr.mxu0 0.0
  %61 = vmatpush1.msra.mxu0 %v40
  %62 = vmatprep.subr.mxu0 0.0
  %63 = vmatpush1.msra.mxu0 0.0
  %64 = vmatprep.subr.mxu0 0.0
  %65 = vmatpush1.msra.mxu0 0.0
  %66 = vmatprep.subr.mxu0 0.0
  %67 = vmatpush1.msra.mxu0 0.0
  %68 = vmatprep.subr.mxu0 0.0
  %69 = vmatpush1.msra.mxu0 0.0
  %70 = vmatprep.subr.mxu0 0.0
  %71 = vmatpush1.msra.mxu0 0.0
  %72 = vmatprep.subr.mxu0 0.0
  %73 = vmatpush1.msra.mxu0 0.0
  %74 = vmatprep.subr.mxu0 0.0
  %75 = vmatpush1.msra.mxu0 0.0
  %76 = vmatprep.subr.mxu0 0.0
  %77 = vmatpush1.msra.mxu0 0.0
  %78 = vmatprep.subr.mxu0 0.0
  %79 = vmatpush1.msra.mxu0 0.0
  %80 = vmatprep.subr.mxu0 0.0
  %81 = vmatpush1.msra.mxu0 0.0
  %82 = vmatprep.subr.mxu0 0.0
  %83 = vmatpush1.msra.mxu0 0.0
  %84 = vmatprep.subr.mxu0 0.0
  %85 = vmatpush1.msra.mxu0 0.0
  %86 = vmatprep.subr.mxu0 0.0
  %87 = vmatpush1.msra.mxu0 0.0
  %88 = vmatprep.subr.mxu0 0.0
  %89 = vmatpush1.msra.mxu0 0.0
  %90 = vmatprep.subr.mxu0 0.0
  %91 = vmatpush1.msra.mxu0 0.0
  %92 = vmatprep.subr.mxu0 0.0
  %93 = vmatpush1.msra.mxu0 0.0
  %94 = vmatprep.subr.mxu0 0.0
  %95 = vmatpush1.msra.mxu0 0.0
  %96 = vmatprep.subr.mxu0 0.0
  %97 = vmatpush1.msra.mxu0 0.0
  %98 = vmatprep.subr.mxu0 0.0
  %99 = vmatpush1.msra.mxu0 0.0
  %100 = vmatprep.subr.mxu0 0.0
  %101 = vmatpush1.msra.mxu0 0.0
  %102 = vmatprep.subr.mxu0 0.0
  %103 = vmatpush1.msra.mxu0 0.0
  %104 = vmatprep.subr.mxu0 0.0
  %105 = vmatpush1.msra.mxu0 0.0
  %106 = vmatprep.subr.mxu0 0.0
  %107 = vmatpush1.msra.mxu0 0.0
  %108 = vmatprep.subr.mxu0 0.0
  %109 = vmatpush1.msra.mxu0 0.0
  %110 = vmatprep.subr.mxu0 0.0
  %111 = vmatpush1.msra.mxu0 0.0
  %112 = vmatprep.subr.mxu0 0.0
  %113 = vmatpush1.msra.mxu0 0.0
  %114 = vmatprep.subr.mxu0 0.0
  %115 = vmatpush1.msra.mxu0 0.0
  %116 = vmatprep.subr.mxu0 0.0
  %117 = vmatpush1.msra.mxu0 0.0
  %118 = vmatprep.mubr.f32.mxu0 0.0
  %119 = vmatmul.mubr.f32.gmra.mrb[0].mxu0 %v43
  %v120 = vpop.f32.mrb[0].mxu0
  %v121 = vadd.f32 0.0, %v120
  %v122 = vpop.f32.mrb[0].mxu0
  %123 = vmatprep.mubr.f32.mxu0 0.0
  %124 = vmatmul.mubr.f32.gmra.mrb[0].mxu0 %v46
  %v125 = vpop.f32.mrb[0].mxu0
  %v126 = vadd.f32 0.0, %v125
  %v127 = vpop.f32.mrb[0].mxu0
  %128 = vmatprep.mubr.f32.mxu0 0.0
  %129 = vmatmul.mubr.f32.gmra.mrb[0].mxu0 %v49
  %v130 = vpop.f32.mrb[0].mxu0
  %v131 = vadd.f32 0.0, %v130
  %v132 = vpop.f32.mrb[0].mxu0
  %133 = vmatprep.mubr.f32.mxu0 0.0
  %134 = vmatmul.mubr.f32.gmra.mrb[0].mxu0 %v52
  %v135 = vpop.f32.mrb[0].mxu0
  %v136 = vadd.f32 0.0, %v135
  %v137 = vpop.f32.mrb[0].mxu0
  %138 = vdwg.mxu0
  %v139 = vld [vmem:[%s4] sm:$0xff]
  %v140 = vld [vmem:[%s4 + $0x8] sm:$0xff]
  %v141 = vld [vmem:[%s4 + $0x10] sm:$0xff]
  %v142 = vld [vmem:[%s4 + $0x18] sm:$0xff]
  %v143 = vld [vmem:[%s4 + $0x20] sm:$0xff]
  %v144 = vld [vmem:[%s4 + $0x28] sm:$0xff]
  %v145 = vld [vmem:[%s4 + $0x30] sm:$0xff]
  %v146 = vld [vmem:[%s4 + $0x38] sm:$0xff]
  %v147 = vld [vmem:[%s4 + $0x40] sm:$0xff]
  %v148 = vld [vmem:[%s4 + $0x48] sm:$0xff]
  %v149 = vld [vmem:[%s4 + $0x50] sm:$0xff]
  %v150 = vld [vmem:[%s4 + $0x58] sm:$0xff]
  %v151 = vld [vmem:[%s4 + $0x60] sm:$0xff]
  %v152 = vld [vmem:[%s4 + $0x68] sm:$0xff]
  %v153 = vld [vmem:[%s4 + $0x70] sm:$0xff]
  %v154 = vld [vmem:[%s4 + $0x78] sm:$0xff]
  %v155 = vld [vmem:[%s5] sm:$0x1]
  %v157 = vlaneseq
  %v158 = vshrl.u32 %v157, 7
  %v159 = vsub.s32 0, %v158
  %v160 = vrot.slane %v155, %v159
  %162 = vmatprep.subr.mxu0 0.0
  %163 = vmatpush1.msra.mxu0 %v139
  %164 = vmatprep.subr.mxu0 0.0
  %165 = vmatpush1.msra.mxu0 %v140
  %166 = vmatprep.subr.mxu0 0.0
  %167 = vmatpush1.msra.mxu0 %v141
  %168 = vmatprep.subr.mxu0 0.0
  %169 = vmatpush1.msra.mxu0 %v142
  %170 = vmatprep.subr.mxu0 0.0
  %171 = vmatpush1.msra.mxu0 %v143
  %172 = vmatprep.subr.mxu0 0.0
  %173 = vmatpush1.msra.mxu0 %v144
  %174 = vmatprep.subr.mxu0 0.0
  %175 = vmatpush1.msra.mxu0 %v145
  %176 = vmatprep.subr.mxu0 0.0
  %177 = vmatpush1.msra.mxu0 %v146
  %178 = vmatprep.subr.mxu0 0.0
  %179 = vmatpush1.msra.mxu0 %v147
  %180 = vmatprep.subr.mxu0 0.0
  %181 = vmatpush1.msra.mxu0 %v148
  %182 = vmatprep.subr.mxu0 0.0
  %183 = vmatpush1.msra.mxu0 %v149
  %184 = vmatprep.subr.mxu0 0.0
  %185 = vmatpush1.msra.mxu0 %v150
  %186 = vmatprep.subr.mxu0 0.0
  %187 = vmatpush1.msra.mxu0 %v151
  %188 = vmatprep.subr.mxu0 0.0
  %189 = vmatpush1.msra.mxu0 %v152
  %190 = vmatprep.subr.mxu0 0.0
  %191 = vmatpush1.msra.mxu0 %v153
  %192 = vmatprep.subr.mxu0 0.0
  %193 = vmatpush1.msra.mxu0 %v154
  %194 = vmatprep.subr.mxu0 0.0
  %195 = vmatpush1.msra.mxu0 0.0
  %196 = vmatprep.subr.mxu0 0.0
  %197 = vmatpush1.msra.mxu0 0.0
  %198 = vmatprep.subr.mxu0 0.0
  %199 = vmatpush1.msra.mxu0 0.0
  %200 = vmatprep.subr.mxu0 0.0
  %201 = vmatpush1.msra.mxu0 0.0
  %202 = vmatprep.subr.mxu0 0.0
  %203 = vmatpush1.msra.mxu0 0.0
  %204 = vmatprep.subr.mxu0 0.0
  %205 = vmatpush1.msra.mxu0 0.0
  %206 = vmatprep.subr.mxu0 0.0
  %207 = vmatpush1.msra.mxu0 0.0
  %208 = vmatprep.subr.mxu0 0.0
  %209 = vmatpush1.msra.mxu0 0.0
  %210 = vmatprep.subr.mxu0 0.0
  %211 = vmatpush1.msra.mxu0 0.0
  %212 = vmatprep.subr.mxu0 0.0
  %213 = vmatpush1.msra.mxu0 0.0
  %214 = vmatprep.subr.mxu0 0.0
  %215 = vmatpush1.msra.mxu0 0.0
  %216 = vmatprep.subr.mxu0 0.0
  %217 = vmatpush1.msra.mxu0 0.0
  %218 = vmatprep.subr.mxu0 0.0
  %219 = vmatpush1.msra.mxu0 0.0
  %220 = vmatprep.subr.mxu0 0.0
  %221 = vmatpush1.msra.mxu0 0.0
  %222 = vmatprep.subr.mxu0 0.0
  %223 = vmatpush1.msra.mxu0 0.0
  %224 = vmatprep.subr.mxu0 0.0
  %225 = vmatpush1.msra.mxu0 0.0
  %226 = vmatprep.mubr.f32.mxu0 0.0
  %227 = vmatmul.mubr.f32.gmra.mrb[0].mxu0 %v121
  %v228 = vpop.f32.mrb[0].mxu0
  %v229 = vadd.f32 %v160, %v228
  %v230 = vpop.f32.mrb[0].mxu0
  %231 = vmatprep.mubr.f32.mxu0 0.0
  %232 = vmatmul.mubr.f32.gmra.mrb[0].mxu0 %v126
  %v233 = vpop.f32.mrb[0].mxu0
  %v234 = vadd.f32 %v160, %v233
  %v235 = vpop.f32.mrb[0].mxu0
  %236 = vmatprep.mubr.f32.mxu0 0.0
  %237 = vmatmul.mubr.f32.gmra.mrb[0].mxu0 %v131
  %v238 = vpop.f32.mrb[0].mxu0
  %v239 = vadd.f32 %v160, %v238
  %v240 = vpop.f32.mrb[0].mxu0
  %241 = vmatprep.mubr.f32.mxu0 0.0
  %242 = vmatmul.mubr.f32.gmra.mrb[0].mxu0 %v136
  %v243 = vpop.f32.mrb[0].mxu0
  %v244 = vadd.f32 %v160, %v243
  %v245 = vpop.f32.mrb[0].mxu0
  %246 = vdwg.mxu0
  %v247 = vadd.f32 %v29, %v229
  %v248 = vadd.f32 %v30, %v234
  %v249 = vadd.f32 %v31, %v239
  %v250 = vadd.f32 %v32, %v244
  %v251 = vld [vmem:[%s3] sm:$0xff]
  %v252 = vld [vmem:[%s3 + $0x8] sm:$0xff]
  %v253 = vld [vmem:[%s3 + $0x10] sm:$0xff]
  %v254 = vld [vmem:[%s3 + $0x18] sm:$0xff]
  %v256 = vsel %vm41, %v251, 0
  %v259 = vsel %vm41, %v252, 0
  %v262 = vsel %vm41, %v253, 0
  %v265 = vsel %vm41, %v254, 0
  %267 = vmatprep.subr.mxu0 0.0
  %268 = vmatpush1.msra.mxu0 %v247
  %269 = vmatprep.subr.mxu0 0.0
  %270 = vmatpush1.msra.mxu0 %v248
  %271 = vmatprep.subr.mxu0 0.0
  %272 = vmatpush1.msra.mxu0 %v249
  %273 = vmatprep.subr.mxu0 0.0
  %274 = vmatpush1.msra.mxu0 %v250
  %275 = vmatprep.subr.mxu0 0.0
  %276 = vmatpush1.msra.mxu0 0.0
  %277 = vmatprep.subr.mxu0 0.0
  %278 = vmatpush1.msra.mxu0 0.0
  %279 = vmatprep.subr.mxu0 0.0
  %280 = vmatpush1.msra.mxu0 0.0
  %281 = vmatprep.subr.mxu0 0.0
  %282 = vmatpush1.msra.mxu0 0.0
  %283 = vmatprep.subr.mxu0 0.0
  %284 = vmatpush1.msra.mxu0 0.0
  %285 = vmatprep.subr.mxu0 0.0
  %286 = vmatpush1.msra.mxu0 0.0
  %287 = vmatprep.subr.mxu0 0.0
  %288 = vmatpush1.msra.mxu0 0.0
  %289 = vmatprep.subr.mxu0 0.0
  %290 = vmatpush1.msra.mxu0 0.0
  %291 = vmatprep.subr.mxu0 0.0
  %292 = vmatpush1.msra.mxu0 0.0
  %293 = vmatprep.subr.mxu0 0.0
  %294 = vmatpush1.msra.mxu0 0.0
  %295 = vmatprep.subr.mxu0 0.0
  %296 = vmatpush1.msra.mxu0 0.0
  %297 = vmatprep.subr.mxu0 0.0
  %298 = vmatpush1.msra.mxu0 0.0
  %299 = vmatprep.subr.mxu0 0.0
  %300 = vmatpush1.msra.mxu0 0.0
  %301 = vmatprep.subr.mxu0 0.0
  %302 = vmatpush1.msra.mxu0 0.0
  %303 = vmatprep.subr.mxu0 0.0
  %304 = vmatpush1.msra.mxu0 0.0
  %305 = vmatprep.subr.mxu0 0.0
  %306 = vmatpush1.msra.mxu0 0.0
  %307 = vmatprep.subr.mxu0 0.0
  %308 = vmatpush1.msra.mxu0 0.0
  %309 = vmatprep.subr.mxu0 0.0
  %310 = vmatpush1.msra.mxu0 0.0
  %311 = vmatprep.subr.mxu0 0.0
  %312 = vmatpush1.msra.mxu0 0.0
  %313 = vmatprep.subr.mxu0 0.0
  %314 = vmatpush1.msra.mxu0 0.0
  %315 = vmatprep.subr.mxu0 0.0
  %316 = vmatpush1.msra.mxu0 0.0
  %317 = vmatprep.subr.mxu0 0.0
  %318 = vmatpush1.msra.mxu0 0.0
  %319 = vmatprep.subr.mxu0 0.0
  %320 = vmatpush1.msra.mxu0 0.0
  %321 = vmatprep.subr.mxu0 0.0
  %322 = vmatpush1.msra.mxu0 0.0
  %323 = vmatprep.subr.mxu0 0.0
  %324 = vmatpush1.msra.mxu0 0.0
  %325 = vmatprep.subr.mxu0 0.0
  %326 = vmatpush1.msra.mxu0 0.0
  %327 = vmatprep.subr.mxu0 0.0
  %328 = vmatpush1.msra.mxu0 0.0
  %329 = vmatprep.subr.mxu0 0.0
  %330 = vmatpush1.msra.mxu0 0.0
  %331 = vmatprep.mubr.f32.mxu0 0.0
  %332 = vmatmul.mubr.f32.gmra.mrb[0].mxu0 %v256
  %v333 = vpop.f32.mrb[0].mxu0
  %v334 = vadd.f32 0.0, %v333
  %v335 = vpop.f32.mrb[0].mxu0
  %336 = vmatprep.mubr.f32.mxu0 0.0
  %337 = vmatmul.mubr.f32.gmra.mrb[0].mxu0 %v259
  %v338 = vpop.f32.mrb[0].mxu0
  %v339 = vadd.f32 0.0, %v338
  %v340 = vpop.f32.mrb[0].mxu0
  %341 = vmatprep.mubr.f32.mxu0 0.0
  %342 = vmatmul.mubr.f32.gmra.mrb[0].mxu0 %v262
  %v343 = vpop.f32.mrb[0].mxu0
  %v344 = vadd.f32 0.0, %v343
  %v345 = vpop.f32.mrb[0].mxu0
  %346 = vmatprep.mubr.f32.mxu0 0.0
  %347 = vmatmul.mubr.f32.gmra.mrb[0].mxu0 %v265
  %v348 = vpop.f32.mrb[0].mxu0
  %v349 = vadd.f32 0.0, %v348
  %v350 = vpop.f32.mrb[0].mxu0
  %351 = vdwg.mxu0
  %v352 = vsub.f32 %v247, %v334
  %v353 = vsub.f32 %v248, %v339
  %v354 = vsub.f32 %v249, %v344
  %v355 = vsub.f32 %v250, %v349
  %v356 = vld [vmem:[%s6] sm:$0xff]
  %v357 = vld [vmem:[%s6 + $0x8] sm:$0xff]
  %v358 = vld [vmem:[%s6 + $0x10] sm:$0xff]
  %v359 = vld [vmem:[%s6 + $0x18] sm:$0xff]
  %v360 = vld [vmem:[%s6 + $0x20] sm:$0xff]
  %v361 = vld [vmem:[%s6 + $0x28] sm:$0xff]
  %v362 = vld [vmem:[%s6 + $0x30] sm:$0xff]
  %v363 = vld [vmem:[%s6 + $0x38] sm:$0xff]
  %v364 = vld [vmem:[%s6 + $0x40] sm:$0xff]
  %v365 = vld [vmem:[%s6 + $0x48] sm:$0xff]
  %v366 = vld [vmem:[%s6 + $0x50] sm:$0xff]
  %v367 = vld [vmem:[%s6 + $0x58] sm:$0xff]
  %v368 = vld [vmem:[%s6 + $0x60] sm:$0xff]
  %v369 = vld [vmem:[%s6 + $0x68] sm:$0xff]
  %v370 = vld [vmem:[%s6 + $0x70] sm:$0xff]
  %v371 = vld [vmem:[%s6 + $0x78] sm:$0xff]
  %372 = vmatprep.subr.mxu0 0.0
  %373 = vmatpush1.msra.mxu0 %v356
  %374 = vmatprep.subr.mxu0 0.0
  %375 = vmatpush1.msra.mxu0 %v357
  %376 = vmatprep.subr.mxu0 0.0
  %377 = vmatpush1.msra.mxu0 %v358
  %378 = vmatprep.subr.mxu0 0.0
  %379 = vmatpush1.msra.mxu0 %v359
  %380 = vmatprep.subr.mxu0 0.0
  %381 = vmatpush1.msra.mxu0 %v360
  %382 = vmatprep.subr.mxu0 0.0
  %383 = vmatpush1.msra.mxu0 %v361
  %384 = vmatprep.subr.mxu0 0.0
  %385 = vmatpush1.msra.mxu0 %v362
  %386 = vmatprep.subr.mxu0 0.0
  %387 = vmatpush1.msra.mxu0 %v363
  %388 = vmatprep.subr.mxu0 0.0
  %389 = vmatpush1.msra.mxu0 %v364
  %390 = vmatprep.subr.mxu0 0.0
  %391 = vmatpush1.msra.mxu0 %v365
  %392 = vmatprep.subr.mxu0 0.0
  %393 = vmatpush1.msra.mxu0 %v366
  %394 = vmatprep.subr.mxu0 0.0
  %395 = vmatpush1.msra.mxu0 %v367
  %396 = vmatprep.subr.mxu0 0.0
  %397 = vmatpush1.msra.mxu0 %v368
  %398 = vmatprep.subr.mxu0 0.0
  %399 = vmatpush1.msra.mxu0 %v369
  %400 = vmatprep.subr.mxu0 0.0
  %401 = vmatpush1.msra.mxu0 %v370
  %402 = vmatprep.subr.mxu0 0.0
  %403 = vmatpush1.msra.mxu0 %v371
  %404 = vmatprep.subr.mxu0 0.0
  %405 = vmatpush1.msra.mxu0 0.0
  %406 = vmatprep.subr.mxu0 0.0
  %407 = vmatpush1.msra.mxu0 0.0
  %408 = vmatprep.subr.mxu0 0.0
  %409 = vmatpush1.msra.mxu0 0.0
  %410 = vmatprep.subr.mxu0 0.0
  %411 = vmatpush1.msra.mxu0 0.0
  %412 = vmatprep.subr.mxu0 0.0
  %413 = vmatpush1.msra.mxu0 0.0
  %414 = vmatprep.subr.mxu0 0.0
  %415 = vmatpush1.msra.mxu0 0.0
  %416 = vmatprep.subr.mxu0 0.0
  %417 = vmatpush1.msra.mxu0 0.0
  %418 = vmatprep.subr.mxu0 0.0
  %419 = vmatpush1.msra.mxu0 0.0
  %420 = vmatprep.subr.mxu0 0.0
  %421 = vmatpush1.msra.mxu0 0.0
  %422 = vmatprep.subr.mxu0 0.0
  %423 = vmatpush1.msra.mxu0 0.0
  %424 = vmatprep.subr.mxu0 0.0
  %425 = vmatpush1.msra.mxu0 0.0
  %426 = vmatprep.subr.mxu0 0.0
  %427 = vmatpush1.msra.mxu0 0.0
  %428 = vmatprep.subr.mxu0 0.0
  %429 = vmatpush1.msra.mxu0 0.0
  %430 = vmatprep.subr.mxu0 0.0
  %431 = vmatpush1.msra.mxu0 0.0
  %432 = vmatprep.subr.mxu0 0.0
  %433 = vmatpush1.msra.mxu0 0.0
  %434 = vmatprep.subr.mxu0 0.0
  %435 = vmatpush1.msra.mxu0 0.0
  %436 = vmatprep.mubr.f32.mxu0 0.0
  %437 = vmatmul.mubr.f32.gmra.mrb[0].mxu0 %v352
  %v438 = vpop.f32.mrb[0].mxu0
  %v439 = vadd.f32 0.0, %v438
  %v440 = vpop.f32.mrb[0].mxu0
  %441 = vmatprep.mubr.f32.mxu0 0.0
  %442 = vmatmul.mubr.f32.gmra.mrb[0].mxu0 %v353
  %v443 = vpop.f32.mrb[0].mxu0
  %v444 = vadd.f32 0.0, %v443
  %v445 = vpop.f32.mrb[0].mxu0
  %446 = vmatprep.mubr.f32.mxu0 0.0
  %447 = vmatmul.mubr.f32.gmra.mrb[0].mxu0 %v354
  %v448 = vpop.f32.mrb[0].mxu0
  %v449 = vadd.f32 0.0, %v448
  %v450 = vpop.f32.mrb[0].mxu0
  %451 = vmatprep.mubr.f32.mxu0 0.0
  %452 = vmatmul.mubr.f32.gmra.mrb[0].mxu0 %v355
  %v453 = vpop.f32.mrb[0].mxu0
  %v454 = vadd.f32 0.0, %v453
  %v455 = vpop.f32.mrb[0].mxu0
  %456 = vdwg.mxu0
  %v457 = vmul.f32 %v439, 0.70710677
  %v458 = vmul.f32 %v444, 0.70710677
  %v459 = vmul.f32 %v449, 0.70710677
  %v460 = vmul.f32 %v454, 0.70710677
  %v461 = vand.u32 2147483647, %v457
  %v462 = vand.u32 2147483647, %v458
  %v463 = vand.u32 2147483647, %v459
  %v464 = vand.u32 2147483647, %v460
  %v465 = vmul.f32 %v461, 0.3275911
  %v466 = vmul.f32 %v462, 0.3275911
  %v467 = vmul.f32 %v463, 0.3275911
  %v468 = vmul.f32 %v464, 0.3275911
  %v469 = vadd.f32 %v465, 1.0
  %v470 = vadd.f32 %v466, 1.0
  %v471 = vadd.f32 %v467, 1.0
  %v472 = vadd.f32 %v468, 1.0
  %v473 = vrcp.pop %v469
  %v474 = vmul.f32 1.0, %v473
  %v475 = vrcp.pop %v470
  %v476 = vmul.f32 1.0, %v475
  %v477 = vrcp.pop %v471
  %v478 = vmul.f32 1.0, %v477
  %v479 = vrcp.pop %v472
  %v480 = vmul.f32 1.0, %v479
  %v481 = vmul.f32 %v474, 1.0614054
  %v482 = vmul.f32 %v476, 1.0614054
  %v483 = vmul.f32 %v478, 1.0614054
  %v484 = vmul.f32 %v480, 1.0614054
  %v485 = vadd.f32 %v481, -1.4531521
  %v486 = vadd.f32 %v482, -1.4531521
  %v487 = vadd.f32 %v483, -1.4531521
  %v488 = vadd.f32 %v484, -1.4531521
  %v489 = vmul.f32 %v485, %v474
  %v490 = vmul.f32 %v486, %v476
  %v491 = vmul.f32 %v487, %v478
  %v492 = vmul.f32 %v488, %v480
  %v493 = vadd.f32 %v489, 1.4214138
  %v494 = vadd.f32 %v490, 1.4214138
  %v495 = vadd.f32 %v491, 1.4214138
  %v496 = vadd.f32 %v492, 1.4214138
  %v497 = vmul.f32 %v493, %v474
  %v498 = vmul.f32 %v494, %v476
  %v499 = vmul.f32 %v495, %v478
  %v500 = vmul.f32 %v496, %v480
  %v501 = vadd.f32 %v497, -0.28449672
  %v502 = vadd.f32 %v498, -0.28449672
  %v503 = vadd.f32 %v499, -0.28449672
  %v504 = vadd.f32 %v500, -0.28449672
  %v505 = vmul.f32 %v501, %v474
  %v506 = vmul.f32 %v502, %v476
  %v507 = vmul.f32 %v503, %v478
  %v508 = vmul.f32 %v504, %v480
  %v509 = vadd.f32 %v505, 0.2548296
  %v510 = vadd.f32 %v506, 0.2548296
  %v511 = vadd.f32 %v507, 0.2548296
  %v512 = vadd.f32 %v508, 0.2548296
  %v513 = vmul.f32 %v509, %v474
  %v514 = vmul.f32 %v510, %v476
  %v515 = vmul.f32 %v511, %v478
  %v516 = vmul.f32 %v512, %v480
  %v517 = vsub.f32 0.0, %v461
  %v518 = vsub.f32 0.0, %v462
  %v519 = vsub.f32 0.0, %v463
  %v520 = vsub.f32 0.0, %v464
  %v521 = vmul.f32 %v517, %v461
  %v522 = vmul.f32 %v518, %v462
  %v523 = vmul.f32 %v519, %v463
  %v524 = vmul.f32 %v520, %v464
  %v525 = vmul.f32 %v521, 1.442695
  %v526 = vpow.pop %v525
  %v527 = vmul.f32 %v522, 1.442695
  %v528 = vpow.pop %v527
  %v529 = vmul.f32 %v523, 1.442695
  %v530 = vpow.pop %v529
  %v531 = vmul.f32 %v524, 1.442695
  %v532 = vpow.pop %v531
  %v533 = vmul.f32 %v513, %v526
  %v534 = vmul.f32 %v514, %v528
  %v535 = vmul.f32 %v515, %v530
  %v536 = vmul.f32 %v516, %v532
  %v537 = vsub.f32 1.0, %v533
  %v538 = vsub.f32 1.0, %v534
  %v539 = vsub.f32 1.0, %v535
  %v540 = vsub.f32 1.0, %v536
  %vm541 = vcmp.ge.f32.partialorder %v457, 0.0
  %vm542 = vcmp.ge.f32.partialorder %v458, 0.0
  %vm543 = vcmp.ge.f32.partialorder %v459, 0.0
  %vm544 = vcmp.ge.f32.partialorder %v460, 0.0
  %v545 = vsub.f32 0.0, %v537
  %v546 = vsub.f32 0.0, %v538
  %v547 = vsub.f32 0.0, %v539
  %v548 = vsub.f32 0.0, %v540
  %v549 = vsel %vm541, %v537, %v545
  %v550 = vsel %vm542, %v538, %v546
  %v551 = vsel %vm543, %v539, %v547
  %v552 = vsel %vm544, %v540, %v548
  %v553 = vmul.f32 %v439, 0.5
  %v554 = vmul.f32 %v444, 0.5
  %v555 = vmul.f32 %v449, 0.5
  %v556 = vmul.f32 %v454, 0.5
  %v557 = vadd.f32 %v549, 1.0
  %v558 = vadd.f32 %v550, 1.0
  %v559 = vadd.f32 %v551, 1.0
  %v560 = vadd.f32 %v552, 1.0
  %v561 = vmul.f32 %v553, %v557
  %v562 = vmul.f32 %v554, %v558
  %v563 = vmul.f32 %v555, %v559
  %v564 = vmul.f32 %v556, %v560
  %v565 = vld [vmem:[%s7] sm:$0xff]
  %v566 = vld [vmem:[%s7 + $0x8] sm:$0xff]
  %v567 = vld [vmem:[%s7 + $0x10] sm:$0xff]
  %v568 = vld [vmem:[%s7 + $0x18] sm:$0xff]
  %v569 = vld [vmem:[%s7 + $0x20] sm:$0xff]
  %v570 = vld [vmem:[%s7 + $0x28] sm:$0xff]
  %v571 = vld [vmem:[%s7 + $0x30] sm:$0xff]
  %v572 = vld [vmem:[%s7 + $0x38] sm:$0xff]
  %v573 = vld [vmem:[%s7 + $0x40] sm:$0xff]
  %v574 = vld [vmem:[%s7 + $0x48] sm:$0xff]
  %v575 = vld [vmem:[%s7 + $0x50] sm:$0xff]
  %v576 = vld [vmem:[%s7 + $0x58] sm:$0xff]
  %v577 = vld [vmem:[%s7 + $0x60] sm:$0xff]
  %v578 = vld [vmem:[%s7 + $0x68] sm:$0xff]
  %v579 = vld [vmem:[%s7 + $0x70] sm:$0xff]
  %v580 = vld [vmem:[%s7 + $0x78] sm:$0xff]
  %581 = vmatprep.subr.mxu0 0.0
  %582 = vmatpush1.msra.mxu0 %v565
  %583 = vmatprep.subr.mxu0 0.0
  %584 = vmatpush1.msra.mxu0 %v566
  %585 = vmatprep.subr.mxu0 0.0
  %586 = vmatpush1.msra.mxu0 %v567
  %587 = vmatprep.subr.mxu0 0.0
  %588 = vmatpush1.msra.mxu0 %v568
  %589 = vmatprep.subr.mxu0 0.0
  %590 = vmatpush1.msra.mxu0 %v569
  %591 = vmatprep.subr.mxu0 0.0
  %592 = vmatpush1.msra.mxu0 %v570
  %593 = vmatprep.subr.mxu0 0.0
  %594 = vmatpush1.msra.mxu0 %v571
  %595 = vmatprep.subr.mxu0 0.0
  %596 = vmatpush1.msra.mxu0 %v572
  %597 = vmatprep.subr.mxu0 0.0
  %598 = vmatpush1.msra.mxu0 %v573
  %599 = vmatprep.subr.mxu0 0.0
  %600 = vmatpush1.msra.mxu0 %v574
  %601 = vmatprep.subr.mxu0 0.0
  %602 = vmatpush1.msra.mxu0 %v575
  %603 = vmatprep.subr.mxu0 0.0
  %604 = vmatpush1.msra.mxu0 %v576
  %605 = vmatprep.subr.mxu0 0.0
  %606 = vmatpush1.msra.mxu0 %v577
  %607 = vmatprep.subr.mxu0 0.0
  %608 = vmatpush1.msra.mxu0 %v578
  %609 = vmatprep.subr.mxu0 0.0
  %610 = vmatpush1.msra.mxu0 %v579
  %611 = vmatprep.subr.mxu0 0.0
  %612 = vmatpush1.msra.mxu0 %v580
  %613 = vmatprep.subr.mxu0 0.0
  %614 = vmatpush1.msra.mxu0 0.0
  %615 = vmatprep.subr.mxu0 0.0
  %616 = vmatpush1.msra.mxu0 0.0
  %617 = vmatprep.subr.mxu0 0.0
  %618 = vmatpush1.msra.mxu0 0.0
  %619 = vmatprep.subr.mxu0 0.0
  %620 = vmatpush1.msra.mxu0 0.0
  %621 = vmatprep.subr.mxu0 0.0
  %622 = vmatpush1.msra.mxu0 0.0
  %623 = vmatprep.subr.mxu0 0.0
  %624 = vmatpush1.msra.mxu0 0.0
  %625 = vmatprep.subr.mxu0 0.0
  %626 = vmatpush1.msra.mxu0 0.0
  %627 = vmatprep.subr.mxu0 0.0
  %628 = vmatpush1.msra.mxu0 0.0
  %629 = vmatprep.subr.mxu0 0.0
  %630 = vmatpush1.msra.mxu0 0.0
  %631 = vmatprep.subr.mxu0 0.0
  %632 = vmatpush1.msra.mxu0 0.0
  %633 = vmatprep.subr.mxu0 0.0
  %634 = vmatpush1.msra.mxu0 0.0
  %635 = vmatprep.subr.mxu0 0.0
  %636 = vmatpush1.msra.mxu0 0.0
  %637 = vmatprep.subr.mxu0 0.0
  %638 = vmatpush1.msra.mxu0 0.0
  %639 = vmatprep.subr.mxu0 0.0
  %640 = vmatpush1.msra.mxu0 0.0
  %641 = vmatprep.subr.mxu0 0.0
  %642 = vmatpush1.msra.mxu0 0.0
  %643 = vmatprep.subr.mxu0 0.0
  %644 = vmatpush1.msra.mxu0 0.0
  %645 = vmatprep.mubr.f32.mxu0 0.0
  %646 = vmatmul.mubr.f32.gmra.mrb[0].mxu0 %v561
  %v647 = vpop.f32.mrb[0].mxu0
  %v648 = vadd.f32 0.0, %v647
  %v649 = vpop.f32.mrb[0].mxu0
  %650 = vmatprep.mubr.f32.mxu0 0.0
  %651 = vmatmul.mubr.f32.gmra.mrb[0].mxu0 %v562
  %v652 = vpop.f32.mrb[0].mxu0
  %v653 = vadd.f32 0.0, %v652
  %v654 = vpop.f32.mrb[0].mxu0
  %655 = vmatprep.mubr.f32.mxu0 0.0
  %656 = vmatmul.mubr.f32.gmra.mrb[0].mxu0 %v563
  %v657 = vpop.f32.mrb[0].mxu0
  %v658 = vadd.f32 0.0, %v657
  %v659 = vpop.f32.mrb[0].mxu0
  %660 = vmatprep.mubr.f32.mxu0 0.0
  %661 = vmatmul.mubr.f32.gmra.mrb[0].mxu0 %v564
  %v662 = vpop.f32.mrb[0].mxu0
  %v663 = vadd.f32 0.0, %v662
  %v664 = vpop.f32.mrb[0].mxu0
  %665 = vdwg.mxu0
  %v666 = vadd.f32 %v352, %v648
  %v667 = vadd.f32 %v353, %v653
  %v668 = vadd.f32 %v354, %v658
  %v669 = vadd.f32 %v355, %v663
  %670 = vmatprep.subr.mxu0 0.0
  %671 = vmatpush1.msra.mxu0 %v666
  %672 = vmatprep.subr.mxu0 0.0
  %673 = vmatpush1.msra.mxu0 %v667
  %674 = vmatprep.subr.mxu0 0.0
  %675 = vmatpush1.msra.mxu0 %v668
  %676 = vmatprep.subr.mxu0 0.0
  %677 = vmatpush1.msra.mxu0 %v669
  %678 = vmatprep.subr.mxu0 0.0
  %679 = vmatpush1.msra.mxu0 0.0
  %680 = vmatprep.subr.mxu0 0.0
  %681 = vmatpush1.msra.mxu0 0.0
  %682 = vmatprep.subr.mxu0 0.0
  %683 = vmatpush1.msra.mxu0 0.0
  %684 = vmatprep.subr.mxu0 0.0
  %685 = vmatpush1.msra.mxu0 0.0
  %686 = vmatprep.subr.mxu0 0.0
  %687 = vmatpush1.msra.mxu0 0.0
  %688 = vmatprep.subr.mxu0 0.0
  %689 = vmatpush1.msra.mxu0 0.0
  %690 = vmatprep.subr.mxu0 0.0
  %691 = vmatpush1.msra.mxu0 0.0
  %692 = vmatprep.subr.mxu0 0.0
  %693 = vmatpush1.msra.mxu0 0.0
  %694 = vmatprep.subr.mxu0 0.0
  %695 = vmatpush1.msra.mxu0 0.0
  %696 = vmatprep.subr.mxu0 0.0
  %697 = vmatpush1.msra.mxu0 0.0
  %698 = vmatprep.subr.mxu0 0.0
  %699 = vmatpush1.msra.mxu0 0.0
  %700 = vmatprep.subr.mxu0 0.0
  %701 = vmatpush1.msra.mxu0 0.0
  %702 = vmatprep.subr.mxu0 0.0
  %703 = vmatpush1.msra.mxu0 0.0
  %704 = vmatprep.subr.mxu0 0.0
  %705 = vmatpush1.msra.mxu0 0.0
  %706 = vmatprep.subr.mxu0 0.0
  %707 = vmatpush1.msra.mxu0 0.0
  %708 = vmatprep.subr.mxu0 0.0
  %709 = vmatpush1.msra.mxu0 0.0
  %710 = vmatprep.subr.mxu0 0.0
  %711 = vmatpush1.msra.mxu0 0.0
  %712 = vmatprep.subr.mxu0 0.0
  %713 = vmatpush1.msra.mxu0 0.0
  %714 = vmatprep.subr.mxu0 0.0
  %715 = vmatpush1.msra.mxu0 0.0
  %716 = vmatprep.subr.mxu0 0.0
  %717 = vmatpush1.msra.mxu0 0.0
  %718 = vmatprep.subr.mxu0 0.0
  %719 = vmatpush1.msra.mxu0 0.0
  %720 = vmatprep.subr.mxu0 0.0
  %721 = vmatpush1.msra.mxu0 0.0
  %722 = vmatprep.subr.mxu0 0.0
  %723 = vmatpush1.msra.mxu0 0.0
  %724 = vmatprep.subr.mxu0 0.0
  %725 = vmatpush1.msra.mxu0 0.0
  %726 = vmatprep.subr.mxu0 0.0
  %727 = vmatpush1.msra.mxu0 0.0
  %728 = vmatprep.subr.mxu0 0.0
  %729 = vmatpush1.msra.mxu0 0.0
  %730 = vmatprep.subr.mxu0 0.0
  %731 = vmatpush1.msra.mxu0 0.0
  %732 = vmatprep.subr.mxu0 0.0
  %733 = vmatpush1.msra.mxu0 0.0
  %734 = vmatprep.mubr.f32.mxu0 0.0
  %735 = vmatmul.mubr.f32.gmra.mrb[0].mxu0 %v256
  %v736 = vpop.f32.mrb[0].mxu0
  %v737 = vadd.f32 0.0, %v736
  %v738 = vpop.f32.mrb[0].mxu0
  %739 = vmatprep.mubr.f32.mxu0 0.0
  %740 = vmatmul.mubr.f32.gmra.mrb[0].mxu0 %v259
  %v741 = vpop.f32.mrb[0].mxu0
  %v742 = vadd.f32 0.0, %v741
  %v743 = vpop.f32.mrb[0].mxu0
  %744 = vmatprep.mubr.f32.mxu0 0.0
  %745 = vmatmul.mubr.f32.gmra.mrb[0].mxu0 %v262
  %v746 = vpop.f32.mrb[0].mxu0
  %v747 = vadd.f32 0.0, %v746
  %v748 = vpop.f32.mrb[0].mxu0
  %749 = vmatprep.mubr.f32.mxu0 0.0
  %750 = vmatmul.mubr.f32.gmra.mrb[0].mxu0 %v265
  %v751 = vpop.f32.mrb[0].mxu0
  %v752 = vadd.f32 0.0, %v751
  %v753 = vpop.f32.mrb[0].mxu0
  %754 = vdwg.mxu0
  %v755 = vsub.f32 %v666, %v737
  %v756 = vsub.f32 %v667, %v742
  %v757 = vsub.f32 %v668, %v747
  %v758 = vsub.f32 %v669, %v752
  %759 = vst [vmem:[%s8] sm:$0xff] %v755
  %760 = vst [vmem:[%s8 + $0x8] sm:$0xff] %v756
  %761 = vst [vmem:[%s8 + $0x10] sm:$0xff] %v757
  %762 = vst [vmem:[%s8 + $0x18] sm:$0xff] %v758
  // Predicated region
  $region34: #{model_forward.18} parent=0 // pred_check
    _
  $region35: #{model_forward.18} parent=0 // pred_check_branch
    %764 = sbr.rel (0) target = $region37
  $region36: #{model_forward.18} parent=0 // pred_region
    _
  $region37: #{model_forward.18} parent=0 // pred_fallthru
    _
  // Predicated region
  $region38: #{model_forward.18} parent=0 // pred_check
    _
  $region39: #{model_forward.18} parent=0 // pred_check_branch
    %766 = sbr.rel (0) target = $region41
  $region40: #{model_forward.18} parent=0 // pred_region
    _
  $region41: #{model_forward.18} parent=0 // pred_fallthru
    _

// kernel: model_forward.12
$region0: #{model_forward.12}
  #allocation0 [shape = 'u32[]', space=smem, size = 0x4, offset = 0x4, fixed_abs, tag = 'smem constant byte address 0x4 - core index']
  #allocation1 [shape = 'u32[144,128]{1,0:T(1,128)}', space=vmem, size = 0x12000, scoped, tag = 'internal scratch']
  %s0 = inlined_call_operand.vmem [shape: f32[32,128], index: 0, kind: input, shape index: {}]
  %s1 = inlined_call_operand.vmem [shape: f32[32,32], index: 1, kind: input, shape index: {}]
  %s2 = inlined_call_operand.vmem [shape: f32[32,128], index: 2, kind: output, shape index: {0}]
  %s3 = inlined_call_operand.vmem [shape: f32[32,128], index: 3, kind: output, shape index: {1}]
  %4 = xla_tuple %s2, %s3
  %s5 = sld [smem:[#allocation0]]
  $region26: #{model_forward.12} parent=0
    _
  %s7 = ssub.s32 1, %s5
  %s8 = scalar_select 0, %s7, %s5
  // Predicated region
  $region2: #{model_forward.12} parent=0 // pred_check
    _
  $region3: #{model_forward.12} parent=0 // pred_check_branch
    %10 = sbr.rel (0) target = $region5
  $region4: #{model_forward.12} parent=0 // pred_region
    _
  $region5: #{model_forward.12} parent=0 // pred_fallthru
    _
  // Predicated region
  $region6: #{model_forward.12} parent=0 // pred_check
    _
  $region7: #{model_forward.12} parent=0 // pred_check_branch
    %12 = sbr.rel (0) target = $region9
  $region8: #{model_forward.12} parent=0 // pred_region
    _
  $region9: #{model_forward.12} parent=0 // pred_fallthru
    _
  %v13 = vld [vmem:[%s0] sm:$0xff]
  %v14 = vld [vmem:[%s0 + $0x8] sm:$0xff]
  %v15 = vld [vmem:[%s0 + $0x10] sm:$0xff]
  %v16 = vld [vmem:[%s0 + $0x18] sm:$0xff]
  %v17 = vld [vmem:[%s1] sm:$0xff]
  %v18 = vld [vmem:[%s1 + $0x8] sm:$0xff]
  %v19 = vld [vmem:[%s1 + $0x10] sm:$0xff]
  %v20 = vld [vmem:[%s1 + $0x18] sm:$0xff]
  %vm21 = vcmask 261120
  %v23 = vsel %vm21, %v17, 0
  %v26 = vsel %vm21, %v18, 0
  %v29 = vsel %vm21, %v19, 0
  %v32 = vsel %vm21, %v20, 0
  %34 = vmatprep.subr.mxu0 0.0
  %35 = vmatpush1.msra.mxu0 %v13
  %36 = vmatprep.subr.mxu0 0.0
  %37 = vmatpush1.msra.mxu0 %v14
  %38 = vmatprep.subr.mxu0 0.0
  %39 = vmatpush1.msra.mxu0 %v15
  %40 = vmatprep.subr.mxu0 0.0
  %41 = vmatpush1.msra.mxu0 %v16
  %42 = vmatprep.subr.mxu0 0.0
  %43 = vmatpush1.msra.mxu0 0.0
  %44 = vmatprep.subr.mxu0 0.0
  %45 = vmatpush1.msra.mxu0 0.0
  %46 = vmatprep.subr.mxu0 0.0
  %47 = vmatpush1.msra.mxu0 0.0
  %48 = vmatprep.subr.mxu0 0.0
  %49 = vmatpush1.msra.mxu0 0.0
  %50 = vmatprep.subr.mxu0 0.0
  %51 = vmatpush1.msra.mxu0 0.0
  %52 = vmatprep.subr.mxu0 0.0
  %53 = vmatpush1.msra.mxu0 0.0
  %54 = vmatprep.subr.mxu0 0.0
  %55 = vmatpush1.msra.mxu0 0.0
  %56 = vmatprep.subr.mxu0 0.0
  %57 = vmatpush1.msra.mxu0 0.0
  %58 = vmatprep.subr.mxu0 0.0
  %59 = vmatpush1.msra.mxu0 0.0
  %60 = vmatprep.subr.mxu0 0.0
  %61 = vmatpush1.msra.mxu0 0.0
  %62 = vmatprep.subr.mxu0 0.0
  %63 = vmatpush1.msra.mxu0 0.0
  %64 = vmatprep.subr.mxu0 0.0
  %65 = vmatpush1.msra.mxu0 0.0
  %66 = vmatprep.subr.mxu0 0.0
  %67 = vmatpush1.msra.mxu0 0.0
  %68 = vmatprep.subr.mxu0 0.0
  %69 = vmatpush1.msra.mxu0 0.0
  %70 = vmatprep.subr.mxu0 0.0
  %71 = vmatpush1.msra.mxu0 0.0
  %72 = vmatprep.subr.mxu0 0.0
  %73 = vmatpush1.msra.mxu0 0.0
  %74 = vmatprep.subr.mxu0 0.0
  %75 = vmatpush1.msra.mxu0 0.0
  %76 = vmatprep.subr.mxu0 0.0
  %77 = vmatpush1.msra.mxu0 0.0
  %78 = vmatprep.subr.mxu0 0.0
  %79 = vmatpush1.msra.mxu0 0.0
  %80 = vmatprep.subr.mxu0 0.0
  %81 = vmatpush1.msra.mxu0 0.0
  %82 = vmatprep.subr.mxu0 0.0
  %83 = vmatpush1.msra.mxu0 0.0
  %84 = vmatprep.subr.mxu0 0.0
  %85 = vmatpush1.msra.mxu0 0.0
  %86 = vmatprep.subr.mxu0 0.0
  %87 = vmatpush1.msra.mxu0 0.0
  %88 = vmatprep.subr.mxu0 0.0
  %89 = vmatpush1.msra.mxu0 0.0
  %90 = vmatprep.subr.mxu0 0.0
  %91 = vmatpush1.msra.mxu0 0.0
  %92 = vmatprep.subr.mxu0 0.0
  %93 = vmatpush1.msra.mxu0 0.0
  %94 = vmatprep.subr.mxu0 0.0
  %95 = vmatpush1.msra.mxu0 0.0
  %96 = vmatprep.subr.mxu0 0.0
  %97 = vmatpush1.msra.mxu0 0.0
  %98 = vmatprep.mubr.f32.mxu0 0.0
  %99 = vmatmul.mubr.f32.gmra.mrb[0].mxu0 %v23
  %v100 = vpop.f32.mrb[0].mxu0
  %v101 = vadd.f32 0.0, %v100
  %v102 = vpop.f32.mrb[0].mxu0
  %103 = vmatprep.mubr.f32.mxu0 0.0
  %104 = vmatmul.mubr.f32.gmra.mrb[0].mxu0 %v26
  %v105 = vpop.f32.mrb[0].mxu0
  %v106 = vadd.f32 0.0, %v105
  %v107 = vpop.f32.mrb[0].mxu0
  %108 = vmatprep.mubr.f32.mxu0 0.0
  %109 = vmatmul.mubr.f32.gmra.mrb[0].mxu0 %v29
  %v110 = vpop.f32.mrb[0].mxu0
  %v111 = vadd.f32 0.0, %v110
  %v112 = vpop.f32.mrb[0].mxu0
  %113 = vmatprep.mubr.f32.mxu0 0.0
  %114 = vmatmul.mubr.f32.gmra.mrb[0].mxu0 %v32
  %v115 = vpop.f32.mrb[0].mxu0
  %v116 = vadd.f32 0.0, %v115
  %v117 = vpop.f32.mrb[0].mxu0
  %118 = vdwg.mxu0
  %v119 = vsub.f32 %v13, %v101
  %v120 = vsub.f32 %v14, %v106
  %v121 = vsub.f32 %v15, %v111
  %v122 = vsub.f32 %v16, %v116
  %123 = vst [vmem:[%s2] sm:$0xff] %v119
  %124 = vst [vmem:[%s2 + $0x8] sm:$0xff] %v120
  %125 = vst [vmem:[%s2 + $0x10] sm:$0xff] %v121
  %126 = vst [vmem:[%s2 + $0x18] sm:$0xff] %v122
  %127 = vst [vmem:[%s3] sm:$0xff] %v101
  %128 = vst [vmem:[%s3 + $0x8] sm:$0xff] %v106
  %129 = vst [vmem:[%s3 + $0x10] sm:$0xff] %v111
  %130 = vst [vmem:[%s3 + $0x18] sm:$0xff] %v116
  // Predicated region
  $region10: #{model_forward.12} parent=0 // pred_check
    _
  $region11: #{model_forward.12} parent=0 // pred_check_branch
    %132 = sbr.rel (0) target = $region13
  $region12: #{model_forward.12} parent=0 // pred_region
    _
  $region13: #{model_forward.12} parent=0 // pred_fallthru
    _
  // Predicated region
  $region14: #{model_forward.12} parent=0 // pred_check
    _
  $region15: #{model_forward.12} parent=0 // pred_check_branch
    %134 = sbr.rel (0) target = $region17
  $region16: #{model_forward.12} parent=0 // pred_region
    _
  $region17: #{model_forward.12} parent=0 // pred_fallthru
    _
  // Predicated region
  $region18: #{model_forward.12} parent=0 // pred_check
    _
  $region19: #{model_forward.12} parent=0 // pred_check_branch
    %136 = sbr.rel (0) target = $region21
  $region20: #{model_forward.12} parent=0 // pred_region
    _
  $region21: #{model_forward.12} parent=0 // pred_fallthru
    _
  // Predicated region
  $region22: #{model_forward.12} parent=0 // pred_check
    _
  $region23: #{model_forward.12} parent=0 // pred_check_branch
    %138 = sbr.rel (0) target = $region25
  $region24: #{model_forward.12} parent=0 // pred_region
    _
  $region25: #{model_forward.12} parent=0 // pred_fallthru
    _

// kernel: reverse.9
$region0: #{reverse.9}
  %s0 = inlined_call_operand.vmem [shape: f32[2,4,8,11], index: 0, kind: input, shape index: {}]
  %s1 = inlined_call_operand.vmem [shape: f32[2,4,8,11], index: 1, kind: output, shape index: {}]
  %v2 = vlaneseq
  %v3 = vsub.s32 10, %v2
  %4 = vset.pattern.permute.xlu0 %v3
  $region1: #{reverse.9} parent=0
    #allocation0 [shape = 'u8[32768]{0}', space=vmem, size = 0x8000, scoped, tag = 'operand span for operand 0']
    #allocation1 [shape = 'u8[32768]{0}', space=vmem, size = 0x8000, scoped, tag = 'operand span for operand 1']
    // Predicated region
    $region2: #{reverse.9} parent=1 // pred_check
      _
    $region3: #{reverse.9} parent=1 // pred_check_branch
      %6 = sbr.rel (0) target = $region5
    $region4: #{reverse.9} parent=1 // pred_region
      // Predicated region
      $region6: #{reverse.9} parent=4 // pred_check
        _
      $region7: #{reverse.9} parent=4 // pred_check_branch
        %8 = sbr.rel (0) target = $region9
      $region8: #{reverse.9} parent=4 // pred_region
        // Predicated region
        $region21: #{reverse.9} parent=8 // pred_check
          _
        $region22: #{reverse.9} parent=8 // pred_check_branch
          %37 = sbr.rel (0) target = $region24
        $region23: #{reverse.9} parent=8 // pred_region
          loop: start=0, step=1, limit=1
          $region25: #{reverse.9} parent=23 // loop_pre_header
            _
          $region26: #{reverse.9} parent=23 // loop_header
            %s39 = sphi 0, %s43
            %p40 = scmp.ge.s32.totalorder %s39, 1
            %s44 = sphi %s0, %s0
            %s45 = sphi [#allocation0], [#allocation0]
          $region27: #{reverse.9} parent=23 // loop_header_branch
            %42 = sbr.rel (%p40) target = $region31
          $region28: #{reverse.9} parent=23 // loop_body
            %v46 = vld [vmem:[%s44] sm:$0xff]
            %47 = vst [vmem:[%s45] sm:$0xff] %v46
            %v48 = vld [vmem:[%s44 + $0x8] sm:$0xff]
            %49 = vst [vmem:[%s45 + $0x8] sm:$0xff] %v48
            %v50 = vld [vmem:[%s44 + $0x10] sm:$0xff]
            %51 = vst [vmem:[%s45 + $0x10] sm:$0xff] %v50
            %v52 = vld [vmem:[%s44 + $0x18] sm:$0xff]
            %53 = vst [vmem:[%s45 + $0x18] sm:$0xff] %v52
            %v54 = vld [vmem:[%s44 + $0x20] sm:$0xff]
            %55 = vst [vmem:[%s45 + $0x20] sm:$0xff] %v54
            %v56 = vld [vmem:[%s44 + $0x28] sm:$0xff]
            %57 = vst [vmem:[%s45 + $0x28] sm:$0xff] %v56
            %v58 = vld [vmem:[%s44 + $0x30] sm:$0xff]
            %59 = vst [vmem:[%s45 + $0x30] sm:$0xff] %v58
            %v60 = vld [vmem:[%s44 + $0x38] sm:$0xff]
            %61 = vst [vmem:[%s45 + $0x38] sm:$0xff] %v60
          $region29: #{reverse.9} parent=23 // loop_footer
            %s43 = sadd.s32 1, %s39
          $region30: #{reverse.9} parent=23 // loop_footer_branch
            %38 = sbr.rel target = $region26
          $region31: #{reverse.9} parent=23 // loop_exit
            _
        $region24: #{reverse.9} parent=8 // pred_fallthru
          _
        // Predicated region
        $region32: #{reverse.9} parent=8 // pred_check
          _
        $region33: #{reverse.9} parent=8 // pred_check_branch
          %63 = sbr.rel target = $region35
        $region34: #{reverse.9} parent=8 // pred_region
          _
        $region35: #{reverse.9} parent=8 // pred_fallthru
          _
      $region9: #{reverse.9} parent=4 // pred_fallthru
        _
      // Predicated region
      $region10: #{reverse.9} parent=4 // pred_check
        _
      $region11: #{reverse.9} parent=4 // pred_check_branch
        %10 = sbr.rel target = $region13
      $region12: #{reverse.9} parent=4 // pred_region
        loop: start=0, step=1, limit=1
        $region14: #{reverse.9} parent=12 // loop_pre_header
          _
        $region15: #{reverse.9} parent=12 // loop_header
          %s13 = sphi 0, %s17
          %p14 = scmp.ge.s32.totalorder %s13, 1
          %s18 = sphi %s0, %s0
          %s19 = sphi [#allocation0], [#allocation0]
        $region16: #{reverse.9} parent=12 // loop_header_branch
          %16 = sbr.rel (%p14) target = $region20
        $region17: #{reverse.9} parent=12 // loop_body
          %v20 = vld [vmem:[%s18] sm:$0xff]
          %21 = vst [vmem:[%s19] sm:$0xff] %v20
          %v22 = vld [vmem:[%s18 + $0x8] sm:$0xff]
          %23 = vst [vmem:[%s19 + $0x8] sm:$0xff] %v22
          %v24 = vld [vmem:[%s18 + $0x10] sm:$0xff]
          %25 = vst [vmem:[%s19 + $0x10] sm:$0xff] %v24
          %v26 = vld [vmem:[%s18 + $0x18] sm:$0xff]
          %27 = vst [vmem:[%s19 + $0x18] sm:$0xff] %v26
          %v28 = vld [vmem:[%s18 + $0x20] sm:$0xff]
          %29 = vst [vmem:[%s19 + $0x20] sm:$0xff] %v28
          %v30 = vld [vmem:[%s18 + $0x28] sm:$0xff]
          %31 = vst [vmem:[%s19 + $0x28] sm:$0xff] %v30
          %v32 = vld [vmem:[%s18 + $0x30] sm:$0xff]
          %33 = vst [vmem:[%s19 + $0x30] sm:$0xff] %v32
          %v34 = vld [vmem:[%s18 + $0x38] sm:$0xff]
          %35 = vst [vmem:[%s19 + $0x38] sm:$0xff] %v34
        $region18: #{reverse.9} parent=12 // loop_footer
          %s17 = sadd.s32 1, %s13
        $region19: #{reverse.9} parent=12 // loop_footer_branch
          %12 = sbr.rel target = $region15
        $region20: #{reverse.9} parent=12 // loop_exit
          _
      $region13: #{reverse.9} parent=4 // pred_fallthru
        _
    $region5: #{reverse.9} parent=1 // pred_fallthru
      _
    %64 = vnop
    %v65 = vld [vmem:[#allocation0] sm:$0xff]
    %66 = vperm.xlu0 %4, %v65
    %v67 = vpop.permute.xlu0 %66
    %68 = vst [vmem:[#allocation1] sm:$0xff] %v67
    %s69 = scalar_lea.vmem [#allocation1], 8
    %s70 = scalar_lea.vmem [#allocation0], 8
    %v71 = vld [vmem:[%s70] sm:$0xff]
    %72 = vperm.xlu0 %4, %v71
    %v73 = vpop.permute.xlu0 %72
    %74 = vst [vmem:[%s69] sm:$0xff] %v73
    %s75 = scalar_lea.vmem [#allocation1], 16
    %s76 = scalar_lea.vmem [#allocation0], 16
    %v77 = vld [vmem:[%s76] sm:$0xff]
    %78 = vperm.xlu0 %4, %v77
    %v79 = vpop.permute.xlu0 %78
    %80 = vst [vmem:[%s75] sm:$0xff] %v79
    %s81 = scalar_lea.vmem [#allocation1], 24
    %s82 = scalar_lea.vmem [#allocation0], 24
    %v83 = vld [vmem:[%s82] sm:$0xff]
    %84 = vperm.xlu0 %4, %v83
    %v85 = vpop.permute.xlu0 %84
    %86 = vst [vmem:[%s81] sm:$0xff] %v85
    %s87 = scalar_lea.vmem [#allocation1], 32
    %s88 = scalar_lea.vmem [#allocation0], 32
    %v89 = vld [vmem:[%s88] sm:$0xff]
    %90 = vperm.xlu0 %4, %v89
    %v91 = vpop.permute.xlu0 %90
    %92 = vst [vmem:[%s87] sm:$0xff] %v91
    %s93 = scalar_lea.vmem [#allocation1], 40
    %s94 = scalar_lea.vmem [#allocation0], 40
    %v95 = vld [vmem:[%s94] sm:$0xff]
    %96 = vperm.xlu0 %4, %v95
    %v97 = vpop.permute.xlu0 %96
    %98 = vst [vmem:[%s93] sm:$0xff] %v97
    %s99 = scalar_lea.vmem [#allocation1], 48
    %s100 = scalar_lea.vmem [#allocation0], 48
    %v101 = vld [vmem:[%s100] sm:$0xff]
    %102 = vperm.xlu0 %4, %v101
    %v103 = vpop.permute.xlu0 %102
    %104 = vst [vmem:[%s99] sm:$0xff] %v103
    %s105 = scalar_lea.vmem [#allocation1], 56
    %s106 = scalar_lea.vmem [#allocation0], 56
    %v107 = vld [vmem:[%s106] sm:$0xff]
    %108 = vperm.xlu0 %4, %v107
    %v109 = vpop.permute.xlu0 %108
    %110 = vst [vmem:[%s105] sm:$0xff] %v109
    // Predicated region
    $region36: #{reverse.9} parent=1 // pred_check
      _
    $region37: #{reverse.9} parent=1 // pred_check_branch
      %112 = sbr.rel (0) target = $region39
    $region38: #{reverse.9} parent=1 // pred_region
      // Predicated region
      $region40: #{reverse.9} parent=38 // pred_check
        _
      $region41: #{reverse.9} parent=38 // pred_check_branch
        %114 = sbr.rel (0) target = $region43
      $region42: #{reverse.9} parent=38 // pred_region
        // Predicated region
        $region55: #{reverse.9} parent=42 // pred_check
          _
        $region56: #{reverse.9} parent=42 // pred_check_branch
          %143 = sbr.rel (0) target = $region58
        $region57: #{reverse.9} parent=42 // pred_region
          loop: start=0, step=1, limit=1
          $region59: #{reverse.9} parent=57 // loop_pre_header
            _
          $region60: #{reverse.9} parent=57 // loop_header
            %s145 = sphi 0, %s149
            %p146 = scmp.ge.s32.totalorder %s145, 1
            %s150 = sphi [#allocation1], [#allocation1]
            %s151 = sphi %s1, %s1
          $region61: #{reverse.9} parent=57 // loop_header_branch
            %148 = sbr.rel (%p146) target = $region65
          $region62: #{reverse.9} parent=57 // loop_body
            %v152 = vld [vmem:[%s150] sm:$0xff]
            %153 = vst [vmem:[%s151] sm:$0xff] %v152
            %v154 = vld [vmem:[%s150 + $0x8] sm:$0xff]
            %155 = vst [vmem:[%s151 + $0x8] sm:$0xff] %v154
            %v156 = vld [vmem:[%s150 + $0x10] sm:$0xff]
            %157 = vst [vmem:[%s151 + $0x10] sm:$0xff] %v156
            %v158 = vld [vmem:[%s150 + $0x18] sm:$0xff]
            %159 = vst [vmem:[%s151 + $0x18] sm:$0xff] %v158
            %v160 = vld [vmem:[%s150 + $0x20] sm:$0xff]
            %161 = vst [vmem:[%s151 + $0x20] sm:$0xff] %v160
            %v162 = vld [vmem:[%s150 + $0x28] sm:$0xff]
            %163 = vst [vmem:[%s151 + $0x28] sm:$0xff] %v162
            %v164 = vld [vmem:[%s150 + $0x30] sm:$0xff]
            %165 = vst [vmem:[%s151 + $0x30] sm:$0xff] %v164
            %v166 = vld [vmem:[%s150 + $0x38] sm:$0xff]
            %167 = vst [vmem:[%s151 + $0x38] sm:$0xff] %v166
          $region63: #{reverse.9} parent=57 // loop_footer
            %s149 = sadd.s32 1, %s145
          $region64: #{reverse.9} parent=57 // loop_footer_branch
            %144 = sbr.rel target = $region60
          $region65: #{reverse.9} parent=57 // loop_exit
            _
        $region58: #{reverse.9} parent=42 // pred_fallthru
          _
        // Predicated region
        $region66: #{reverse.9} parent=42 // pred_check
          _
        $region67: #{reverse.9} parent=42 // pred_check_branch
          %169 = sbr.rel target = $region69
        $region68: #{reverse.9} parent=42 // pred_region
          _
        $region69: #{reverse.9} parent=42 // pred_fallthru
          _
      $region43: #{reverse.9} parent=38 // pred_fallthru
        _
      // Predicated region
      $region44: #{reverse.9} parent=38 // pred_check
        _
      $region45: #{reverse.9} parent=38 // pred_check_branch
        %116 = sbr.rel target = $region47
      $region46: #{reverse.9} parent=38 // pred_region
        loop: start=0, step=1, limit=1
        $region48: #{reverse.9} parent=46 // loop_pre_header
          _
        $region49: #{reverse.9} parent=46 // loop_header
          %s119 = sphi 0, %s123
          %p120 = scmp.ge.s32.totalorder %s119, 1
          %s124 = sphi [#allocation1], [#allocation1]
          %s125 = sphi %s1, %s1
        $region50: #{reverse.9} parent=46 // loop_header_branch
          %122 = sbr.rel (%p120) target = $region54
        $region51: #{reverse.9} parent=46 // loop_body
          %v126 = vld [vmem:[%s124] sm:$0xff]
          %127 = vst [vmem:[%s125] sm:$0xff] %v126
          %v128 = vld [vmem:[%s124 + $0x8] sm:$0xff]
          %129 = vst [vmem:[%s125 + $0x8] sm:$0xff] %v128
          %v130 = vld [vmem:[%s124 + $0x10] sm:$0xff]
          %131 = vst [vmem:[%s125 + $0x10] sm:$0xff] %v130
          %v132 = vld [vmem:[%s124 + $0x18] sm:$0xff]
          %133 = vst [vmem:[%s125 + $0x18] sm:$0xff] %v132
          %v134 = vld [vmem:[%s124 + $0x20] sm:$0xff]
          %135 = vst [vmem:[%s125 + $0x20] sm:$0xff] %v134
          %v136 = vld [vmem:[%s124 + $0x28] sm:$0xff]
          %137 = vst [vmem:[%s125 + $0x28] sm:$0xff] %v136
          %v138 = vld [vmem:[%s124 + $0x30] sm:$0xff]
          %139 = vst [vmem:[%s125 + $0x30] sm:$0xff] %v138
          %v140 = vld [vmem:[%s124 + $0x38] sm:$0xff]
          %141 = vst [vmem:[%s125 + $0x38] sm:$0xff] %v140
        $region52: #{reverse.9} parent=46 // loop_footer
          %s123 = sadd.s32 1, %s119
        $region53: #{reverse.9} parent=46 // loop_footer_branch
          %118 = sbr.rel target = $region49
        $region54: #{reverse.9} parent=46 // loop_exit
          _
      $region47: #{reverse.9} parent=38 // pred_fallthru
        _
    $region39: #{reverse.9} parent=1 // pred_fallthru
      _
    %170 = vnop

// kernel: model_forward.14
$region0: #{model_forward.14}
  #allocation0 [shape = 'u32[]', space=smem, size = 0x4, offset = 0x4, fixed_abs, tag = 'smem constant byte address 0x4 - core index']
  #allocation1 [shape = 'u32[144,128]{1,0:T(1,128)}', space=vmem, size = 0x12000, scoped, tag = 'internal scratch']
  %s0 = inlined_call_operand.vmem [shape: f32[48,128], index: 0, kind: input, shape index: {}]
  %s1 = inlined_call_operand.vmem [shape: f32[128,128], index: 1, kind: input, shape index: {}]
  %s2 = inlined_call_operand.vmem [shape: f32[1,128], index: 2, kind: input, shape index: {}]
  %s3 = inlined_call_operand.vmem [shape: f32[48,128], index: 3, kind: output, shape index: {}]
  %s4 = sld [smem:[#allocation0]]
  $region22: #{model_forward.14} parent=0
    _
  %s6 = ssub.s32 1, %s4
  %s7 = scalar_select 0, %s6, %s4
  // Predicated region
  $region2: #{model_forward.14} parent=0 // pred_check
    _
  $region3: #{model_forward.14} parent=0 // pred_check_branch
    %9 = sbr.rel (0) target = $region5
  $region4: #{model_forward.14} parent=0 // pred_region
    _
  $region5: #{model_forward.14} parent=0 // pred_fallthru
    _
  // Predicated region
  $region6: #{model_forward.14} parent=0 // pred_check
    _
  $region7: #{model_forward.14} parent=0 // pred_check_branch
    %11 = sbr.rel (0) target = $region9
  $region8: #{model_forward.14} parent=0 // pred_region
    _
  $region9: #{model_forward.14} parent=0 // pred_fallthru
    _
  // Predicated region
  $region10: #{model_forward.14} parent=0 // pred_check
    _
  $region11: #{model_forward.14} parent=0 // pred_check_branch
    %13 = sbr.rel (0) target = $region13
  $region12: #{model_forward.14} parent=0 // pred_region
    _
  $region13: #{model_forward.14} parent=0 // pred_fallthru
    _
  %v14 = vld [vmem:[%s0] sm:$0xff]
  %v15 = vld [vmem:[%s0 + $0x8] sm:$0xff]
  %v16 = vld [vmem:[%s0 + $0x10] sm:$0xff]
  %v17 = vld [vmem:[%s0 + $0x18] sm:$0xff]
  %v18 = vld [vmem:[%s0 + $0x20] sm:$0xff]
  %v19 = vld [vmem:[%s0 + $0x28] sm:$0xff]
  %v20 = vld [vmem:[%s1] sm:$0xff]
  %v21 = vld [vmem:[%s1 + $0x8] sm:$0xff]
  %v22 = vld [vmem:[%s1 + $0x10] sm:$0xff]
  %v23 = vld [vmem:[%s1 + $0x18] sm:$0xff]
  %v24 = vld [vmem:[%s1 + $0x20] sm:$0xff]
  %v25 = vld [vmem:[%s1 + $0x28] sm:$0xff]
  %v26 = vld [vmem:[%s1 + $0x30] sm:$0xff]
  %v27 = vld [vmem:[%s1 + $0x38] sm:$0xff]
  %v28 = vld [vmem:[%s1 + $0x40] sm:$0xff]
  %v29 = vld [vmem:[%s1 + $0x48] sm:$0xff]
  %v30 = vld [vmem:[%s1 + $0x50] sm:$0xff]
  %v31 = vld [vmem:[%s1 + $0x58] sm:$0xff]
  %v32 = vld [vmem:[%s1 + $0x60] sm:$0xff]
  %v33 = vld [vmem:[%s1 + $0x68] sm:$0xff]
  %v34 = vld [vmem:[%s1 + $0x70] sm:$0xff]
  %v35 = vld [vmem:[%s1 + $0x78] sm:$0xff]
  %v36 = vld [vmem:[%s2] sm:$0x1]
  %v38 = vlaneseq
  %v39 = vshrl.u32 %v38, 7
  %v40 = vsub.s32 0, %v39
  %v41 = vrot.slane %v36, %v40
  %43 = vmatprep.subr.mxu0 0.0
  %44 = vmatpush1.msra.mxu0 %v20
  %45 = vmatprep.subr.mxu0 0.0
  %46 = vmatpush1.msra.mxu0 %v21
  %47 = vmatprep.subr.mxu0 0.0
  %48 = vmatpush1.msra.mxu0 %v22
  %49 = vmatprep.subr.mxu0 0.0
  %50 = vmatpush1.msra.mxu0 %v23
  %51 = vmatprep.subr.mxu0 0.0
  %52 = vmatpush1.msra.mxu0 %v24
  %53 = vmatprep.subr.mxu0 0.0
  %54 = vmatpush1.msra.mxu0 %v25
  %55 = vmatprep.subr.mxu0 0.0
  %56 = vmatpush1.msra.mxu0 %v26
  %57 = vmatprep.subr.mxu0 0.0
  %58 = vmatpush1.msra.mxu0 %v27
  %59 = vmatprep.subr.mxu0 0.0
  %60 = vmatpush1.msra.mxu0 %v28
  %61 = vmatprep.subr.mxu0 0.0
  %62 = vmatpush1.msra.mxu0 %v29
  %63 = vmatprep.subr.mxu0 0.0
  %64 = vmatpush1.msra.mxu0 %v30
  %65 = vmatprep.subr.mxu0 0.0
  %66 = vmatpush1.msra.mxu0 %v31
  %67 = vmatprep.subr.mxu0 0.0
  %68 = vmatpush1.msra.mxu0 %v32
  %69 = vmatprep.subr.mxu0 0.0
  %70 = vmatpush1.msra.mxu0 %v33
  %71 = vmatprep.subr.mxu0 0.0
  %72 = vmatpush1.msra.mxu0 %v34
  %73 = vmatprep.subr.mxu0 0.0
  %74 = vmatpush1.msra.mxu0 %v35
  %75 = vmatprep.subr.mxu0 0.0
  %76 = vmatpush1.msra.mxu0 0.0
  %77 = vmatprep.subr.mxu0 0.0
  %78 = vmatpush1.msra.mxu0 0.0
  %79 = vmatprep.subr.mxu0 0.0
  %80 = vmatpush1.msra.mxu0 0.0
  %81 = vmatprep.subr.mxu0 0.0
  %82 = vmatpush1.msra.mxu0 0.0
  %83 = vmatprep.subr.mxu0 0.0
  %84 = vmatpush1.msra.mxu0 0.0
  %85 = vmatprep.subr.mxu0 0.0
  %86 = vmatpush1.msra.mxu0 0.0
  %87 = vmatprep.subr.mxu0 0.0
  %88 = vmatpush1.msra.mxu0 0.0
  %89 = vmatprep.subr.mxu0 0.0
  %90 = vmatpush1.msra.mxu0 0.0
  %91 = vmatprep.subr.mxu0 0.0
  %92 = vmatpush1.msra.mxu0 0.0
  %93 = vmatprep.subr.mxu0 0.0
  %94 = vmatpush1.msra.mxu0 0.0
  %95 = vmatprep.subr.mxu0 0.0
  %96 = vmatpush1.msra.mxu0 0.0
  %97 = vmatprep.subr.mxu0 0.0
  %98 = vmatpush1.msra.mxu0 0.0
  %99 = vmatprep.subr.mxu0 0.0
  %100 = vmatpush1.msra.mxu0 0.0
  %101 = vmatprep.subr.mxu0 0.0
  %102 = vmatpush1.msra.mxu0 0.0
  %103 = vmatprep.subr.mxu0 0.0
  %104 = vmatpush1.msra.mxu0 0.0
  %105 = vmatprep.subr.mxu0 0.0
  %106 = vmatpush1.msra.mxu0 0.0
  %107 = vmatprep.mubr.f32.mxu0 0.0
  %108 = vmatmul.mubr.f32.gmra.mrb[0].mxu0 %v14
  %v109 = vpop.f32.mrb[0].mxu0
  %v110 = vadd.f32 %v41, %v109
  %v111 = vpop.f32.mrb[0].mxu0
  %112 = vmatprep.mubr.f32.mxu0 0.0
  %113 = vmatmul.mubr.f32.gmra.mrb[0].mxu0 %v15
  %v114 = vpop.f32.mrb[0].mxu0
  %v115 = vadd.f32 %v41, %v114
  %v116 = vpop.f32.mrb[0].mxu0
  %117 = vmatprep.mubr.f32.mxu0 0.0
  %118 = vmatmul.mubr.f32.gmra.mrb[0].mxu0 %v16
  %v119 = vpop.f32.mrb[0].mxu0
  %v120 = vadd.f32 %v41, %v119
  %v121 = vpop.f32.mrb[0].mxu0
  %122 = vmatprep.mubr.f32.mxu0 0.0
  %123 = vmatmul.mubr.f32.gmra.mrb[0].mxu0 %v17
  %v124 = vpop.f32.mrb[0].mxu0
  %v125 = vadd.f32 %v41, %v124
  %v126 = vpop.f32.mrb[0].mxu0
  %127 = vmatprep.mubr.f32.mxu0 0.0
  %128 = vmatmul.mubr.f32.gmra.mrb[0].mxu0 %v18
  %v129 = vpop.f32.mrb[0].mxu0
  %v130 = vadd.f32 %v41, %v129
  %v131 = vpop.f32.mrb[0].mxu0
  %132 = vmatprep.mubr.f32.mxu0 0.0
  %133 = vmatmul.mubr.f32.gmra.mrb[0].mxu0 %v19
  %v134 = vpop.f32.mrb[0].mxu0
  %v135 = vadd.f32 %v41, %v134
  %v136 = vpop.f32.mrb[0].mxu0
  %137 = vdwg.mxu0
  %138 = vst [vmem:[%s3] sm:$0xff] %v110
  %139 = vst [vmem:[%s3 + $0x8] sm:$0xff] %v115
  %140 = vst [vmem:[%s3 + $0x10] sm:$0xff] %v120
  %141 = vst [vmem:[%s3 + $0x18] sm:$0xff] %v125
  %142 = vst [vmem:[%s3 + $0x20] sm:$0xff] %v130
  %143 = vst [vmem:[%s3 + $0x28] sm:$0xff] %v135
  // Predicated region
  $region14: #{model_forward.14} parent=0 // pred_check
    _
  $region15: #{model_forward.14} parent=0 // pred_check_branch
    %145 = sbr.rel (0) target = $region17
  $region16: #{model_forward.14} parent=0 // pred_region
    _
  $region17: #{model_forward.14} parent=0 // pred_fallthru
    _
  // Predicated region
  $region18: #{model_forward.14} parent=0 // pred_check
    _
  $region19: #{model_forward.14} parent=0 // pred_check_branch
    %147 = sbr.rel (0) target = $region21
  $region20: #{model_forward.14} parent=0 // pred_region
    _
  $region21: #{model_forward.14} parent=0 // pred_fallthru
    _

// kernel: model_forward.13
$region0: #{model_forward.13}
  #allocation0 [shape = 'u32[]', space=smem, size = 0x4, offset = 0x4, fixed_abs, tag = 'smem constant byte address 0x4 - core index']
  #allocation1 [shape = 'u32[144,128]{1,0:T(1,128)}', space=vmem, size = 0x12000, scoped, tag = 'internal scratch']
  %s0 = inlined_call_operand.vmem [shape: f32[48,128], index: 0, kind: input, shape index: {}]
  %s1 = inlined_call_operand.vmem [shape: f32[48,128], index: 1, kind: input, shape index: {}]
  %s2 = inlined_call_operand.vmem [shape: f32[48,48], index: 2, kind: input, shape index: {}]
  %s3 = inlined_call_operand.vmem [shape: f32[48,48], index: 3, kind: input, shape index: {}]
  %s4 = inlined_call_operand.vmem [shape: f32[128,128], index: 4, kind: input, shape index: {}]
  %s5 = inlined_call_operand.vmem [shape: f32[128,128], index: 5, kind: input, shape index: {}]
  %s6 = inlined_call_operand.vmem [shape: f32[128,128], index: 6, kind: input, shape index: {}]
  %s7 = inlined_call_operand.vmem [shape: f32[128,128], index: 7, kind: input, shape index: {}]
  %s8 = inlined_call_operand.vmem [shape: f32[48,128], index: 8, kind: output, shape index: {}]
  %s9 = sld [smem:[#allocation0]]
  $region42: #{model_forward.13} parent=0
    _
  %s11 = ssub.s32 1, %s9
  %s12 = scalar_select 0, %s11, %s9
  // Predicated region
  $region2: #{model_forward.13} parent=0 // pred_check
    _
  $region3: #{model_forward.13} parent=0 // pred_check_branch
    %14 = sbr.rel (0) target = $region5
  $region4: #{model_forward.13} parent=0 // pred_region
    _
  $region5: #{model_forward.13} parent=0 // pred_fallthru
    _
  // Predicated region
  $region6: #{model_forward.13} parent=0 // pred_check
    _
  $region7: #{model_forward.13} parent=0 // pred_check_branch
    %16 = sbr.rel (0) target = $region9
  $region8: #{model_forward.13} parent=0 // pred_region
    _
  $region9: #{model_forward.13} parent=0 // pred_fallthru
    _
  // Predicated region
  $region10: #{model_forward.13} parent=0 // pred_check
    _
  $region11: #{model_forward.13} parent=0 // pred_check_branch
    %18 = sbr.rel (0) target = $region13
  $region12: #{model_forward.13} parent=0 // pred_region
    _
  $region13: #{model_forward.13} parent=0 // pred_fallthru
    _
  // Predicated region
  $region14: #{model_forward.13} parent=0 // pred_check
    _
  $region15: #{model_forward.13} parent=0 // pred_check_branch
    %20 = sbr.rel (0) target = $region17
  $region16: #{model_forward.13} parent=0 // pred_region
    _
  $region17: #{model_forward.13} parent=0 // pred_fallthru
    _
  // Predicated region
  $region18: #{model_forward.13} parent=0 // pred_check
    _
  $region19: #{model_forward.13} parent=0 // pred_check_branch
    %22 = sbr.rel (0) target = $region21
  $region20: #{model_forward.13} parent=0 // pred_region
    _
  $region21: #{model_forward.13} parent=0 // pred_fallthru
    _
  // Predicated region
  $region22: #{model_forward.13} parent=0 // pred_check
    _
  $region23: #{model_forward.13} parent=0 // pred_check_branch
    %24 = sbr.rel (0) target = $region25
  $region24: #{model_forward.13} parent=0 // pred_region
    _
  $region25: #{model_forward.13} parent=0 // pred_fallthru
    _
  // Predicated region
  $region26: #{model_forward.13} parent=0 // pred_check
    _
  $region27: #{model_forward.13} parent=0 // pred_check_branch
    %26 = sbr.rel (0) target = $region29
  $region28: #{model_forward.13} parent=0 // pred_region
    _
  $region29: #{model_forward.13} parent=0 // pred_fallthru
    _
  // Predicated region
  $region30: #{model_forward.13} parent=0 // pred_check
    _
  $region31: #{model_forward.13} parent=0 // pred_check_branch
    %28 = sbr.rel (0) target = $region33
  $region32: #{model_forward.13} parent=0 // pred_region
    _
  $region33: #{model_forward.13} parent=0 // pred_fallthru
    _
  %v29 = vld [vmem:[%s0] sm:$0xff]
  %v30 = vld [vmem:[%s0 + $0x8] sm:$0xff]
  %v31 = vld [vmem:[%s0 + $0x10] sm:$0xff]
  %v32 = vld [vmem:[%s0 + $0x18] sm:$0xff]
  %v33 = vld [vmem:[%s0 + $0x20] sm:$0xff]
  %v34 = vld [vmem:[%s0 + $0x28] sm:$0xff]
  %v35 = vld [vmem:[%s2] sm:$0xff]
  %v36 = vld [vmem:[%s2 + $0x8] sm:$0xff]
  %v37 = vld [vmem:[%s2 + $0x10] sm:$0xff]
  %v38 = vld [vmem:[%s2 + $0x18] sm:$0xff]
  %v39 = vld [vmem:[%s2 + $0x20] sm:$0xff]
  %v40 = vld [vmem:[%s2 + $0x28] sm:$0xff]
  %vm41 = vcmask 392192
  %v43 = vsel %vm41, %v35, 0
  %v46 = vsel %vm41, %v36, 0
  %v49 = vsel %vm41, %v37, 0
  %v52 = vsel %vm41, %v38, 0
  %v55 = vsel %vm41, %v39, 0
  %v58 = vsel %vm41, %v40, 0
  %60 = vmatprep.subr.mxu0 0.0
  %61 = vmatpush1.msra.mxu0 %v29
  %62 = vmatprep.subr.mxu0 0.0
  %63 = vmatpush1.msra.mxu0 %v30
  %64 = vmatprep.subr.mxu0 0.0
  %65 = vmatpush1.msra.mxu0 %v31
  %66 = vmatprep.subr.mxu0 0.0
  %67 = vmatpush1.msra.mxu0 %v32
  %68 = vmatprep.subr.mxu0 0.0
  %69 = vmatpush1.msra.mxu0 %v33
  %70 = vmatprep.subr.mxu0 0.0
  %71 = vmatpush1.msra.mxu0 %v34
  %72 = vmatprep.subr.mxu0 0.0
  %73 = vmatpush1.msra.mxu0 0.0
  %74 = vmatprep.subr.mxu0 0.0
  %75 = vmatpush1.msra.mxu0 0.0
  %76 = vmatprep.subr.mxu0 0.0
  %77 = vmatpush1.msra.mxu0 0.0
  %78 = vmatprep.subr.mxu0 0.0
  %79 = vmatpush1.msra.mxu0 0.0
  %80 = vmatprep.subr.mxu0 0.0
  %81 = vmatpush1.msra.mxu0 0.0
  %82 = vmatprep.subr.mxu0 0.0
  %83 = vmatpush1.msra.mxu0 0.0
  %84 = vmatprep.subr.mxu0 0.0
  %85 = vmatpush1.msra.mxu0 0.0
  %86 = vmatprep.subr.mxu0 0.0
  %87 = vmatpush1.msra.mxu0 0.0
  %88 = vmatprep.subr.mxu0 0.0
  %89 = vmatpush1.msra.mxu0 0.0
  %90 = vmatprep.subr.mxu0 0.0
  %91 = vmatpush1.msra.mxu0 0.0
  %92 = vmatprep.subr.mxu0 0.0
  %93 = vmatpush1.msra.mxu0 0.0
  %94 = vmatprep.subr.mxu0 0.0
  %95 = vmatpush1.msra.mxu0 0.0
  %96 = vmatprep.subr.mxu0 0.0
  %97 = vmatpush1.msra.mxu0 0.0
  %98 = vmatprep.subr.mxu0 0.0
  %99 = vmatpush1.msra.mxu0 0.0
  %100 = vmatprep.subr.mxu0 0.0
  %101 = vmatpush1.msra.mxu0 0.0
  %102 = vmatprep.subr.mxu0 0.0
  %103 = vmatpush1.msra.mxu0 0.0
  %104 = vmatprep.subr.mxu0 0.0
  %105 = vmatpush1.msra.mxu0 0.0
  %106 = vmatprep.subr.mxu0 0.0
  %107 = vmatpush1.msra.mxu0 0.0
  %108 = vmatprep.subr.mxu0 0.0
  %109 = vmatpush1.msra.mxu0 0.0
  %110 = vmatprep.subr.mxu0 0.0
  %111 = vmatpush1.msra.mxu0 0.0
  %112 = vmatprep.subr.mxu0 0.0
  %113 = vmatpush1.msra.mxu0 0.0
  %114 = vmatprep.subr.mxu0 0.0
  %115 = vmatpush1.msra.mxu0 0.0
  %116 = vmatprep.subr.mxu0 0.0
  %117 = vmatpush1.msra.mxu0 0.0
  %118 = vmatprep.subr.mxu0 0.0
  %119 = vmatpush1.msra.mxu0 0.0
  %120 = vmatprep.subr.mxu0 0.0
  %121 = vmatpush1.msra.mxu0 0.0
  %122 = vmatprep.subr.mxu0 0.0
  %123 = vmatpush1.msra.mxu0 0.0
  %124 = vmatprep.mubr.f32.mxu0 0.0
  %125 = vmatmul.mubr.f32.gmra.mrb[0].mxu0 %v43
  %v126 = vpop.f32.mrb[0].mxu0
  %v127 = vadd.f32 0.0, %v126
  %v128 = vpop.f32.mrb[0].mxu0
  %129 = vmatprep.mubr.f32.mxu0 0.0
  %130 = vmatmul.mubr.f32.gmra.mrb[0].mxu0 %v46
  %v131 = vpop.f32.mrb[0].mxu0
  %v132 = vadd.f32 0.0, %v131
  %v133 = vpop.f32.mrb[0].mxu0
  %134 = vmatprep.mubr.f32.mxu0 0.0
  %135 = vmatmul.mubr.f32.gmra.mrb[0].mxu0 %v49
  %v136 = vpop.f32.mrb[0].mxu0
  %v137 = vadd.f32 0.0, %v136
  %v138 = vpop.f32.mrb[0].mxu0
  %139 = vmatprep.mubr.f32.mxu0 0.0
  %140 = vmatmul.mubr.f32.gmra.mrb[0].mxu0 %v52
  %v141 = vpop.f32.mrb[0].mxu0
  %v142 = vadd.f32 0.0, %v141
  %v143 = vpop.f32.mrb[0].mxu0
  %144 = vmatprep.mubr.f32.mxu0 0.0
  %145 = vmatmul.mubr.f32.gmra.mrb[0].mxu0 %v55
  %v146 = vpop.f32.mrb[0].mxu0
  %v147 = vadd.f32 0.0, %v146
  %v148 = vpop.f32.mrb[0].mxu0
  %149 = vmatprep.mubr.f32.mxu0 0.0
  %150 = vmatmul.mubr.f32.gmra.mrb[0].mxu0 %v58
  %v151 = vpop.f32.mrb[0].mxu0
  %v152 = vadd.f32 0.0, %v151
  %v153 = vpop.f32.mrb[0].mxu0
  %154 = vdwg.mxu0
  %v155 = vld [vmem:[%s3] sm:$0xff]
  %v156 = vld [vmem:[%s3 + $0x8] sm:$0xff]
  %v157 = vld [vmem:[%s3 + $0x10] sm:$0xff]
  %v158 = vld [vmem:[%s3 + $0x18] sm:$0xff]
  %v159 = vld [vmem:[%s3 + $0x20] sm:$0xff]
  %v160 = vld [vmem:[%s3 + $0x28] sm:$0xff]
  %v162 = vsel %vm41, %v155, 0
  %v165 = vsel %vm41, %v156, 0
  %v168 = vsel %vm41, %v157, 0
  %v171 = vsel %vm41, %v158, 0
  %v174 = vsel %vm41, %v159, 0
  %v177 = vsel %vm41, %v160, 0
  %179 = vmatprep.subr.mxu0 0.0
  %180 = vmatpush1.msra.mxu0 %v29
  %181 = vmatprep.subr.mxu0 0.0
  %182 = vmatpush1.msra.mxu0 %v30
  %183 = vmatprep.subr.mxu0 0.0
  %184 = vmatpush1.msra.mxu0 %v31
  %185 = vmatprep.subr.mxu0 0.0
  %186 = vmatpush1.msra.mxu0 %v32
  %187 = vmatprep.subr.mxu0 0.0
  %188 = vmatpush1.msra.mxu0 %v33
  %189 = vmatprep.subr.mxu0 0.0
  %190 = vmatpush1.msra.mxu0 %v34
  %191 = vmatprep.subr.mxu0 0.0
  %192 = vmatpush1.msra.mxu0 0.0
  %193 = vmatprep.subr.mxu0 0.0
  %194 = vmatpush1.msra.mxu0 0.0
  %195 = vmatprep.subr.mxu0 0.0
  %196 = vmatpush1.msra.mxu0 0.0
  %197 = vmatprep.subr.mxu0 0.0
  %198 = vmatpush1.msra.mxu0 0.0
  %199 = vmatprep.subr.mxu0 0.0
  %200 = vmatpush1.msra.mxu0 0.0
  %201 = vmatprep.subr.mxu0 0.0
  %202 = vmatpush1.msra.mxu0 0.0
  %203 = vmatprep.subr.mxu0 0.0
  %204 = vmatpush1.msra.mxu0 0.0
  %205 = vmatprep.subr.mxu0 0.0
  %206 = vmatpush1.msra.mxu0 0.0
  %207 = vmatprep.subr.mxu0 0.0
  %208 = vmatpush1.msra.mxu0 0.0
  %209 = vmatprep.subr.mxu0 0.0
  %210 = vmatpush1.msra.mxu0 0.0
  %211 = vmatprep.subr.mxu0 0.0
  %212 = vmatpush1.msra.mxu0 0.0
  %213 = vmatprep.subr.mxu0 0.0
  %214 = vmatpush1.msra.mxu0 0.0
  %215 = vmatprep.subr.mxu0 0.0
  %216 = vmatpush1.msra.mxu0 0.0
  %217 = vmatprep.subr.mxu0 0.0
  %218 = vmatpush1.msra.mxu0 0.0
  %219 = vmatprep.subr.mxu0 0.0
  %220 = vmatpush1.msra.mxu0 0.0
  %221 = vmatprep.subr.mxu0 0.0
  %222 = vmatpush1.msra.mxu0 0.0
  %223 = vmatprep.subr.mxu0 0.0
  %224 = vmatpush1.msra.mxu0 0.0
  %225 = vmatprep.subr.mxu0 0.0
  %226 = vmatpush1.msra.mxu0 0.0
  %227 = vmatprep.subr.mxu0 0.0
  %228 = vmatpush1.msra.mxu0 0.0
  %229 = vmatprep.subr.mxu0 0.0
  %230 = vmatpush1.msra.mxu0 0.0
  %231 = vmatprep.subr.mxu0 0.0
  %232 = vmatpush1.msra.mxu0 0.0
  %233 = vmatprep.subr.mxu0 0.0
  %234 = vmatpush1.msra.mxu0 0.0
  %235 = vmatprep.subr.mxu0 0.0
  %236 = vmatpush1.msra.mxu0 0.0
  %237 = vmatprep.subr.mxu0 0.0
  %238 = vmatpush1.msra.mxu0 0.0
  %239 = vmatprep.subr.mxu0 0.0
  %240 = vmatpush1.msra.mxu0 0.0
  %241 = vmatprep.subr.mxu0 0.0
  %242 = vmatpush1.msra.mxu0 0.0
  %243 = vmatprep.mubr.f32.mxu0 0.0
  %244 = vmatmul.mubr.f32.gmra.mrb[0].mxu0 %v162
  %v245 = vpop.f32.mrb[0].mxu0
  %v246 = vadd.f32 0.0, %v245
  %v247 = vpop.f32.mrb[0].mxu0
  %248 = vmatprep.mubr.f32.mxu0 0.0
  %249 = vmatmul.mubr.f32.gmra.mrb[0].mxu0 %v165
  %v250 = vpop.f32.mrb[0].mxu0
  %v251 = vadd.f32 0.0, %v250
  %v252 = vpop.f32.mrb[0].mxu0
  %253 = vmatprep.mubr.f32.mxu0 0.0
  %254 = vmatmul.mubr.f32.gmra.mrb[0].mxu0 %v168
  %v255 = vpop.f32.mrb[0].mxu0
  %v256 = vadd.f32 0.0, %v255
  %v257 = vpop.f32.mrb[0].mxu0
  %258 = vmatprep.mubr.f32.mxu0 0.0
  %259 = vmatmul.mubr.f32.gmra.mrb[0].mxu0 %v171
  %v260 = vpop.f32.mrb[0].mxu0
  %v261 = vadd.f32 0.0, %v260
  %v262 = vpop.f32.mrb[0].mxu0
  %263 = vmatprep.mubr.f32.mxu0 0.0
  %264 = vmatmul.mubr.f32.gmra.mrb[0].mxu0 %v174
  %v265 = vpop.f32.mrb[0].mxu0
  %v266 = vadd.f32 0.0, %v265
  %v267 = vpop.f32.mrb[0].mxu0
  %268 = vmatprep.mubr.f32.mxu0 0.0
  %269 = vmatmul.mubr.f32.gmra.mrb[0].mxu0 %v177
  %v270 = vpop.f32.mrb[0].mxu0
  %v271 = vadd.f32 0.0, %v270
  %v272 = vpop.f32.mrb[0].mxu0
  %273 = vdwg.mxu0
  %v274 = vld [vmem:[%s4] sm:$0xff]
  %v275 = vld [vmem:[%s4 + $0x8] sm:$0xff]
  %v276 = vld [vmem:[%s4 + $0x10] sm:$0xff]
  %v277 = vld [vmem:[%s4 + $0x18] sm:$0xff]
  %v278 = vld [vmem:[%s4 + $0x20] sm:$0xff]
  %v279 = vld [vmem:[%s4 + $0x28] sm:$0xff]
  %v280 = vld [vmem:[%s4 + $0x30] sm:$0xff]
  %v281 = vld [vmem:[%s4 + $0x38] sm:$0xff]
  %v282 = vld [vmem:[%s4 + $0x40] sm:$0xff]
  %v283 = vld [vmem:[%s4 + $0x48] sm:$0xff]
  %v284 = vld [vmem:[%s4 + $0x50] sm:$0xff]
  %v285 = vld [vmem:[%s4 + $0x58] sm:$0xff]
  %v286 = vld [vmem:[%s4 + $0x60] sm:$0xff]
  %v287 = vld [vmem:[%s4 + $0x68] sm:$0xff]
  %v288 = vld [vmem:[%s4 + $0x70] sm:$0xff]
  %v289 = vld [vmem:[%s4 + $0x78] sm:$0xff]
  %v290 = vld [vmem:[%s5] sm:$0xff]
  %v291 = vld [vmem:[%s5 + $0x8] sm:$0xff]
  %v292 = vld [vmem:[%s5 + $0x10] sm:$0xff]
  %v293 = vld [vmem:[%s5 + $0x18] sm:$0xff]
  %v294 = vld [vmem:[%s5 + $0x20] sm:$0xff]
  %v295 = vld [vmem:[%s5 + $0x28] sm:$0xff]
  %v296 = vld [vmem:[%s5 + $0x30] sm:$0xff]
  %v297 = vld [vmem:[%s5 + $0x38] sm:$0xff]
  %v298 = vld [vmem:[%s5 + $0x40] sm:$0xff]
  %v299 = vld [vmem:[%s5 + $0x48] sm:$0xff]
  %v300 = vld [vmem:[%s5 + $0x50] sm:$0xff]
  %v301 = vld [vmem:[%s5 + $0x58] sm:$0xff]
  %v302 = vld [vmem:[%s5 + $0x60] sm:$0xff]
  %v303 = vld [vmem:[%s5 + $0x68] sm:$0xff]
  %v304 = vld [vmem:[%s5 + $0x70] sm:$0xff]
  %v305 = vld [vmem:[%s5 + $0x78] sm:$0xff]
  %306 = vmatprep.subr.mxu0 0.0
  %307 = vmatpush1.msra.mxu0 %v290
  %308 = vmatprep.subr.mxu0 0.0
  %309 = vmatpush1.msra.mxu0 %v291
  %310 = vmatprep.subr.mxu0 0.0
  %311 = vmatpush1.msra.mxu0 %v292
  %312 = vmatprep.subr.mxu0 0.0
  %313 = vmatpush1.msra.mxu0 %v293
  %314 = vmatprep.subr.mxu0 0.0
  %315 = vmatpush1.msra.mxu0 %v294
  %316 = vmatprep.subr.mxu0 0.0
  %317 = vmatpush1.msra.mxu0 %v295
  %318 = vmatprep.subr.mxu0 0.0
  %319 = vmatpush1.msra.mxu0 %v296
  %320 = vmatprep.subr.mxu0 0.0
  %321 = vmatpush1.msra.mxu0 %v297
  %322 = vmatprep.subr.mxu0 0.0
  %323 = vmatpush1.msra.mxu0 %v298
  %324 = vmatprep.subr.mxu0 0.0
  %325 = vmatpush1.msra.mxu0 %v299
  %326 = vmatprep.subr.mxu0 0.0
  %327 = vmatpush1.msra.mxu0 %v300
  %328 = vmatprep.subr.mxu0 0.0
  %329 = vmatpush1.msra.mxu0 %v301
  %330 = vmatprep.subr.mxu0 0.0
  %331 = vmatpush1.msra.mxu0 %v302
  %332 = vmatprep.subr.mxu0 0.0
  %333 = vmatpush1.msra.mxu0 %v303
  %334 = vmatprep.subr.mxu0 0.0
  %335 = vmatpush1.msra.mxu0 %v304
  %336 = vmatprep.subr.mxu0 0.0
  %337 = vmatpush1.msra.mxu0 %v305
  %338 = vmatprep.subr.mxu0 0.0
  %339 = vmatpush1.msra.mxu0 0.0
  %340 = vmatprep.subr.mxu0 0.0
  %341 = vmatpush1.msra.mxu0 0.0
  %342 = vmatprep.subr.mxu0 0.0
  %343 = vmatpush1.msra.mxu0 0.0
  %344 = vmatprep.subr.mxu0 0.0
  %345 = vmatpush1.msra.mxu0 0.0
  %346 = vmatprep.subr.mxu0 0.0
  %347 = vmatpush1.msra.mxu0 0.0
  %348 = vmatprep.subr.mxu0 0.0
  %349 = vmatpush1.msra.mxu0 0.0
  %350 = vmatprep.subr.mxu0 0.0
  %351 = vmatpush1.msra.mxu0 0.0
  %352 = vmatprep.subr.mxu0 0.0
  %353 = vmatpush1.msra.mxu0 0.0
  %354 = vmatprep.subr.mxu0 0.0
  %355 = vmatpush1.msra.mxu0 0.0
  %356 = vmatprep.subr.mxu0 0.0
  %357 = vmatpush1.msra.mxu0 0.0
  %358 = vmatprep.subr.mxu0 0.0
  %359 = vmatpush1.msra.mxu0 0.0
  %360 = vmatprep.subr.mxu0 0.0
  %361 = vmatpush1.msra.mxu0 0.0
  %362 = vmatprep.subr.mxu0 0.0
  %363 = vmatpush1.msra.mxu0 0.0
  %364 = vmatprep.subr.mxu0 0.0
  %365 = vmatpush1.msra.mxu0 0.0
  %366 = vmatprep.subr.mxu0 0.0
  %367 = vmatpush1.msra.mxu0 0.0
  %368 = vmatprep.subr.mxu0 0.0
  %369 = vmatpush1.msra.mxu0 0.0
  %370 = vmatprep.mubr.f32.mxu0 0.0
  %371 = vmatmul.mubr.f32.gmra.mrb[0].mxu0 %v29
  %v372 = vpop.f32.mrb[0].mxu0
  %v373 = vadd.f32 0.0, %v372
  %v374 = vpop.f32.mrb[0].mxu0
  %375 = vmatprep.mubr.f32.mxu0 0.0
  %376 = vmatmul.mubr.f32.gmra.mrb[0].mxu0 %v30
  %v377 = vpop.f32.mrb[0].mxu0
  %v378 = vadd.f32 0.0, %v377
  %v379 = vpop.f32.mrb[0].mxu0
  %380 = vmatprep.mubr.f32.mxu0 0.0
  %381 = vmatmul.mubr.f32.gmra.mrb[0].mxu0 %v31
  %v382 = vpop.f32.mrb[0].mxu0
  %v383 = vadd.f32 0.0, %v382
  %v384 = vpop.f32.mrb[0].mxu0
  %385 = vmatprep.mubr.f32.mxu0 0.0
  %386 = vmatmul.mubr.f32.gmra.mrb[0].mxu0 %v32
  %v387 = vpop.f32.mrb[0].mxu0
  %v388 = vadd.f32 0.0, %v387
  %v389 = vpop.f32.mrb[0].mxu0
  %390 = vmatprep.mubr.f32.mxu0 0.0
  %391 = vmatmul.mubr.f32.gmra.mrb[0].mxu0 %v33
  %v392 = vpop.f32.mrb[0].mxu0
  %v393 = vadd.f32 0.0, %v392
  %v394 = vpop.f32.mrb[0].mxu0
  %395 = vmatprep.mubr.f32.mxu0 0.0
  %396 = vmatmul.mubr.f32.gmra.mrb[0].mxu0 %v34
  %v397 = vpop.f32.mrb[0].mxu0
  %v398 = vadd.f32 0.0, %v397
  %v399 = vpop.f32.mrb[0].mxu0
  %400 = vdwg.mxu0
  %401 = vmatprep.subr.mxu0 0.0
  %402 = vmatpush1.msra.mxu0 %v274
  %403 = vmatprep.subr.mxu0 0.0
  %404 = vmatpush1.msra.mxu0 %v275
  %405 = vmatprep.subr.mxu0 0.0
  %406 = vmatpush1.msra.mxu0 %v276
  %407 = vmatprep.subr.mxu0 0.0
  %408 = vmatpush1.msra.mxu0 %v277
  %409 = vmatprep.subr.mxu0 0.0
  %410 = vmatpush1.msra.mxu0 %v278
  %411 = vmatprep.subr.mxu0 0.0
  %412 = vmatpush1.msra.mxu0 %v279
  %413 = vmatprep.subr.mxu0 0.0
  %414 = vmatpush1.msra.mxu0 %v280
  %415 = vmatprep.subr.mxu0 0.0
  %416 = vmatpush1.msra.mxu0 %v281
  %417 = vmatprep.subr.mxu0 0.0
  %418 = vmatpush1.msra.mxu0 %v282
  %419 = vmatprep.subr.mxu0 0.0
  %420 = vmatpush1.msra.mxu0 %v283
  %421 = vmatprep.subr.mxu0 0.0
  %422 = vmatpush1.msra.mxu0 %v284
  %423 = vmatprep.subr.mxu0 0.0
  %424 = vmatpush1.msra.mxu0 %v285
  %425 = vmatprep.subr.mxu0 0.0
  %426 = vmatpush1.msra.mxu0 %v286
  %427 = vmatprep.subr.mxu0 0.0
  %428 = vmatpush1.msra.mxu0 %v287
  %429 = vmatprep.subr.mxu0 0.0
  %430 = vmatpush1.msra.mxu0 %v288
  %431 = vmatprep.subr.mxu0 0.0
  %432 = vmatpush1.msra.mxu0 %v289
  %433 = vmatprep.subr.mxu0 0.0
  %434 = vmatpush1.msra.mxu0 0.0
  %435 = vmatprep.subr.mxu0 0.0
  %436 = vmatpush1.msra.mxu0 0.0
  %437 = vmatprep.subr.mxu0 0.0
  %438 = vmatpush1.msra.mxu0 0.0
  %439 = vmatprep.subr.mxu0 0.0
  %440 = vmatpush1.msra.mxu0 0.0
  %441 = vmatprep.subr.mxu0 0.0
  %442 = vmatpush1.msra.mxu0 0.0
  %443 = vmatprep.subr.mxu0 0.0
  %444 = vmatpush1.msra.mxu0 0.0
  %445 = vmatprep.subr.mxu0 0.0
  %446 = vmatpush1.msra.mxu0 0.0
  %447 = vmatprep.subr.mxu0 0.0
  %448 = vmatpush1.msra.mxu0 0.0
  %449 = vmatprep.subr.mxu0 0.0
  %450 = vmatpush1.msra.mxu0 0.0
  %451 = vmatprep.subr.mxu0 0.0
  %452 = vmatpush1.msra.mxu0 0.0
  %453 = vmatprep.subr.mxu0 0.0
  %454 = vmatpush1.msra.mxu0 0.0
  %455 = vmatprep.subr.mxu0 0.0
  %456 = vmatpush1.msra.mxu0 0.0
  %457 = vmatprep.subr.mxu0 0.0
  %458 = vmatpush1.msra.mxu0 0.0
  %459 = vmatprep.subr.mxu0 0.0
  %460 = vmatpush1.msra.mxu0 0.0
  %461 = vmatprep.subr.mxu0 0.0
  %462 = vmatpush1.msra.mxu0 0.0
  %463 = vmatprep.subr.mxu0 0.0
  %464 = vmatpush1.msra.mxu0 0.0
  %465 = vmatprep.mubr.f32.mxu0 0.0
  %466 = vmatmul.mubr.f32.gmra.mrb[0].mxu0 %v127
  %v467 = vpop.f32.mrb[0].mxu0
  %v468 = vadd.f32 %v373, %v467
  %v469 = vpop.f32.mrb[0].mxu0
  %470 = vmatprep.mubr.f32.mxu0 0.0
  %471 = vmatmul.mubr.f32.gmra.mrb[0].mxu0 %v132
  %v472 = vpop.f32.mrb[0].mxu0
  %v473 = vadd.f32 %v378, %v472
  %v474 = vpop.f32.mrb[0].mxu0
  %475 = vmatprep.mubr.f32.mxu0 0.0
  %476 = vmatmul.mubr.f32.gmra.mrb[0].mxu0 %v137
  %v477 = vpop.f32.mrb[0].mxu0
  %v478 = vadd.f32 %v383, %v477
  %v479 = vpop.f32.mrb[0].mxu0
  %480 = vmatprep.mubr.f32.mxu0 0.0
  %481 = vmatmul.mubr.f32.gmra.mrb[0].mxu0 %v142
  %v482 = vpop.f32.mrb[0].mxu0
  %v483 = vadd.f32 %v388, %v482
  %v484 = vpop.f32.mrb[0].mxu0
  %485 = vmatprep.mubr.f32.mxu0 0.0
  %486 = vmatmul.mubr.f32.gmra.mrb[0].mxu0 %v147
  %v487 = vpop.f32.mrb[0].mxu0
  %v488 = vadd.f32 %v393, %v487
  %v489 = vpop.f32.mrb[0].mxu0
  %490 = vmatprep.mubr.f32.mxu0 0.0
  %491 = vmatmul.mubr.f32.gmra.mrb[0].mxu0 %v152
  %v492 = vpop.f32.mrb[0].mxu0
  %v493 = vadd.f32 %v398, %v492
  %v494 = vpop.f32.mrb[0].mxu0
  %495 = vdwg.mxu0
  %v496 = vld [vmem:[%s6] sm:$0xff]
  %v497 = vld [vmem:[%s6 + $0x8] sm:$0xff]
  %v498 = vld [vmem:[%s6 + $0x10] sm:$0xff]
  %v499 = vld [vmem:[%s6 + $0x18] sm:$0xff]
  %v500 = vld [vmem:[%s6 + $0x20] sm:$0xff]
  %v501 = vld [vmem:[%s6 + $0x28] sm:$0xff]
  %v502 = vld [vmem:[%s6 + $0x30] sm:$0xff]
  %v503 = vld [vmem:[%s6 + $0x38] sm:$0xff]
  %v504 = vld [vmem:[%s6 + $0x40] sm:$0xff]
  %v505 = vld [vmem:[%s6 + $0x48] sm:$0xff]
  %v506 = vld [vmem:[%s6 + $0x50] sm:$0xff]
  %v507 = vld [vmem:[%s6 + $0x58] sm:$0xff]
  %v508 = vld [vmem:[%s6 + $0x60] sm:$0xff]
  %v509 = vld [vmem:[%s6 + $0x68] sm:$0xff]
  %v510 = vld [vmem:[%s6 + $0x70] sm:$0xff]
  %v511 = vld [vmem:[%s6 + $0x78] sm:$0xff]
  %512 = vmatprep.subr.mxu0 0.0
  %513 = vmatpush1.msra.mxu0 %v496
  %514 = vmatprep.subr.mxu0 0.0
  %515 = vmatpush1.msra.mxu0 %v497
  %516 = vmatprep.subr.mxu0 0.0
  %517 = vmatpush1.msra.mxu0 %v498
  %518 = vmatprep.subr.mxu0 0.0
  %519 = vmatpush1.msra.mxu0 %v499
  %520 = vmatprep.subr.mxu0 0.0
  %521 = vmatpush1.msra.mxu0 %v500
  %522 = vmatprep.subr.mxu0 0.0
  %523 = vmatpush1.msra.mxu0 %v501
  %524 = vmatprep.subr.mxu0 0.0
  %525 = vmatpush1.msra.mxu0 %v502
  %526 = vmatprep.subr.mxu0 0.0
  %527 = vmatpush1.msra.mxu0 %v503
  %528 = vmatprep.subr.mxu0 0.0
  %529 = vmatpush1.msra.mxu0 %v504
  %530 = vmatprep.subr.mxu0 0.0
  %531 = vmatpush1.msra.mxu0 %v505
  %532 = vmatprep.subr.mxu0 0.0
  %533 = vmatpush1.msra.mxu0 %v506
  %534 = vmatprep.subr.mxu0 0.0
  %535 = vmatpush1.msra.mxu0 %v507
  %536 = vmatprep.subr.mxu0 0.0
  %537 = vmatpush1.msra.mxu0 %v508
  %538 = vmatprep.subr.mxu0 0.0
  %539 = vmatpush1.msra.mxu0 %v509
  %540 = vmatprep.subr.mxu0 0.0
  %541 = vmatpush1.msra.mxu0 %v510
  %542 = vmatprep.subr.mxu0 0.0
  %543 = vmatpush1.msra.mxu0 %v511
  %544 = vmatprep.subr.mxu0 0.0
  %545 = vmatpush1.msra.mxu0 0.0
  %546 = vmatprep.subr.mxu0 0.0
  %547 = vmatpush1.msra.mxu0 0.0
  %548 = vmatprep.subr.mxu0 0.0
  %549 = vmatpush1.msra.mxu0 0.0
  %550 = vmatprep.subr.mxu0 0.0
  %551 = vmatpush1.msra.mxu0 0.0
  %552 = vmatprep.subr.mxu0 0.0
  %553 = vmatpush1.msra.mxu0 0.0
  %554 = vmatprep.subr.mxu0 0.0
  %555 = vmatpush1.msra.mxu0 0.0
  %556 = vmatprep.subr.mxu0 0.0
  %557 = vmatpush1.msra.mxu0 0.0
  %558 = vmatprep.subr.mxu0 0.0
  %559 = vmatpush1.msra.mxu0 0.0
  %560 = vmatprep.subr.mxu0 0.0
  %561 = vmatpush1.msra.mxu0 0.0
  %562 = vmatprep.subr.mxu0 0.0
  %563 = vmatpush1.msra.mxu0 0.0
  %564 = vmatprep.subr.mxu0 0.0
  %565 = vmatpush1.msra.mxu0 0.0
  %566 = vmatprep.subr.mxu0 0.0
  %567 = vmatpush1.msra.mxu0 0.0
  %568 = vmatprep.subr.mxu0 0.0
  %569 = vmatpush1.msra.mxu0 0.0
  %570 = vmatprep.subr.mxu0 0.0
  %571 = vmatpush1.msra.mxu0 0.0
  %572 = vmatprep.subr.mxu0 0.0
  %573 = vmatpush1.msra.mxu0 0.0
  %574 = vmatprep.subr.mxu0 0.0
  %575 = vmatpush1.msra.mxu0 0.0
  %576 = vmatprep.mubr.f32.mxu0 0.0
  %577 = vmatmul.mubr.f32.gmra.mrb[0].mxu0 %v246
  %v578 = vpop.f32.mrb[0].mxu0
  %v579 = vadd.f32 0.0, %v578
  %v580 = vpop.f32.mrb[0].mxu0
  %581 = vmatprep.mubr.f32.mxu0 0.0
  %582 = vmatmul.mubr.f32.gmra.mrb[0].mxu0 %v251
  %v583 = vpop.f32.mrb[0].mxu0
  %v584 = vadd.f32 0.0, %v583
  %v585 = vpop.f32.mrb[0].mxu0
  %586 = vmatprep.mubr.f32.mxu0 0.0
  %587 = vmatmul.mubr.f32.gmra.mrb[0].mxu0 %v256
  %v588 = vpop.f32.mrb[0].mxu0
  %v589 = vadd.f32 0.0, %v588
  %v590 = vpop.f32.mrb[0].mxu0
  %591 = vmatprep.mubr.f32.mxu0 0.0
  %592 = vmatmul.mubr.f32.gmra.mrb[0].mxu0 %v261
  %v593 = vpop.f32.mrb[0].mxu0
  %v594 = vadd.f32 0.0, %v593
  %v595 = vpop.f32.mrb[0].mxu0
  %596 = vmatprep.mubr.f32.mxu0 0.0
  %597 = vmatmul.mubr.f32.gmra.mrb[0].mxu0 %v266
  %v598 = vpop.f32.mrb[0].mxu0
  %v599 = vadd.f32 0.0, %v598
  %v600 = vpop.f32.mrb[0].mxu0
  %601 = vmatprep.mubr.f32.mxu0 0.0
  %602 = vmatmul.mubr.f32.gmra.mrb[0].mxu0 %v271
  %v603 = vpop.f32.mrb[0].mxu0
  %v604 = vadd.f32 0.0, %v603
  %v605 = vpop.f32.mrb[0].mxu0
  %606 = vdwg.mxu0
  %v607 = vadd.f32 %v468, %v579
  %v608 = vadd.f32 %v473, %v584
  %v609 = vadd.f32 %v478, %v589
  %v610 = vadd.f32 %v483, %v594
  %v611 = vadd.f32 %v488, %v599
  %v612 = vadd.f32 %v493, %v604
  %v613 = vld [vmem:[%s1] sm:$0xff]
  %v614 = vld [vmem:[%s1 + $0x8] sm:$0xff]
  %v615 = vld [vmem:[%s1 + $0x10] sm:$0xff]
  %v616 = vld [vmem:[%s1 + $0x18] sm:$0xff]
  %v617 = vld [vmem:[%s1 + $0x20] sm:$0xff]
  %v618 = vld [vmem:[%s1 + $0x28] sm:$0xff]
  %v619 = vld [vmem:[%s7] sm:$0xff]
  %v620 = vld [vmem:[%s7 + $0x8] sm:$0xff]
  %v621 = vld [vmem:[%s7 + $0x10] sm:$0xff]
  %v622 = vld [vmem:[%s7 + $0x18] sm:$0xff]
  %v623 = vld [vmem:[%s7 + $0x20] sm:$0xff]
  %v624 = vld [vmem:[%s7 + $0x28] sm:$0xff]
  %v625 = vld [vmem:[%s7 + $0x30] sm:$0xff]
  %v626 = vld [vmem:[%s7 + $0x38] sm:$0xff]
  %v627 = vld [vmem:[%s7 + $0x40] sm:$0xff]
  %v628 = vld [vmem:[%s7 + $0x48] sm:$0xff]
  %v629 = vld [vmem:[%s7 + $0x50] sm:$0xff]
  %v630 = vld [vmem:[%s7 + $0x58] sm:$0xff]
  %v631 = vld [vmem:[%s7 + $0x60] sm:$0xff]
  %v632 = vld [vmem:[%s7 + $0x68] sm:$0xff]
  %v633 = vld [vmem:[%s7 + $0x70] sm:$0xff]
  %v634 = vld [vmem:[%s7 + $0x78] sm:$0xff]
  %635 = vmatprep.subr.mxu0 0.0
  %636 = vmatpush1.msra.mxu0 %v619
  %637 = vmatprep.subr.mxu0 0.0
  %638 = vmatpush1.msra.mxu0 %v620
  %639 = vmatprep.subr.mxu0 0.0
  %640 = vmatpush1.msra.mxu0 %v621
  %641 = vmatprep.subr.mxu0 0.0
  %642 = vmatpush1.msra.mxu0 %v622
  %643 = vmatprep.subr.mxu0 0.0
  %644 = vmatpush1.msra.mxu0 %v623
  %645 = vmatprep.subr.mxu0 0.0
  %646 = vmatpush1.msra.mxu0 %v624
  %647 = vmatprep.subr.mxu0 0.0
  %648 = vmatpush1.msra.mxu0 %v625
  %649 = vmatprep.subr.mxu0 0.0
  %650 = vmatpush1.msra.mxu0 %v626
  %651 = vmatprep.subr.mxu0 0.0
  %652 = vmatpush1.msra.mxu0 %v627
  %653 = vmatprep.subr.mxu0 0.0
  %654 = vmatpush1.msra.mxu0 %v628
  %655 = vmatprep.subr.mxu0 0.0
  %656 = vmatpush1.msra.mxu0 %v629
  %657 = vmatprep.subr.mxu0 0.0
  %658 = vmatpush1.msra.mxu0 %v630
  %659 = vmatprep.subr.mxu0 0.0
  %660 = vmatpush1.msra.mxu0 %v631
  %661 = vmatprep.subr.mxu0 0.0
  %662 = vmatpush1.msra.mxu0 %v632
  %663 = vmatprep.subr.mxu0 0.0
  %664 = vmatpush1.msra.mxu0 %v633
  %665 = vmatprep.subr.mxu0 0.0
  %666 = vmatpush1.msra.mxu0 %v634
  %667 = vmatprep.subr.mxu0 0.0
  %668 = vmatpush1.msra.mxu0 0.0
  %669 = vmatprep.subr.mxu0 0.0
  %670 = vmatpush1.msra.mxu0 0.0
  %671 = vmatprep.subr.mxu0 0.0
  %672 = vmatpush1.msra.mxu0 0.0
  %673 = vmatprep.subr.mxu0 0.0
  %674 = vmatpush1.msra.mxu0 0.0
  %675 = vmatprep.subr.mxu0 0.0
  %676 = vmatpush1.msra.mxu0 0.0
  %677 = vmatprep.subr.mxu0 0.0
  %678 = vmatpush1.msra.mxu0 0.0
  %679 = vmatprep.subr.mxu0 0.0
  %680 = vmatpush1.msra.mxu0 0.0
  %681 = vmatprep.subr.mxu0 0.0
  %682 = vmatpush1.msra.mxu0 0.0
  %683 = vmatprep.subr.mxu0 0.0
  %684 = vmatpush1.msra.mxu0 0.0
  %685 = vmatprep.subr.mxu0 0.0
  %686 = vmatpush1.msra.mxu0 0.0
  %687 = vmatprep.subr.mxu0 0.0
  %688 = vmatpush1.msra.mxu0 0.0
  %689 = vmatprep.subr.mxu0 0.0
  %690 = vmatpush1.msra.mxu0 0.0
  %691 = vmatprep.subr.mxu0 0.0
  %692 = vmatpush1.msra.mxu0 0.0
  %693 = vmatprep.subr.mxu0 0.0
  %694 = vmatpush1.msra.mxu0 0.0
  %695 = vmatprep.subr.mxu0 0.0
  %696 = vmatpush1.msra.mxu0 0.0
  %697 = vmatprep.subr.mxu0 0.0
  %698 = vmatpush1.msra.mxu0 0.0
  %699 = vmatprep.mubr.f32.mxu0 0.0
  %700 = vmatmul.mubr.f32.gmra.mrb[0].mxu0 %v613
  %v701 = vpop.f32.mrb[0].mxu0
  %v702 = vadd.f32 0.0, %v701
  %v703 = vpop.f32.mrb[0].mxu0
  %704 = vmatprep.mubr.f32.mxu0 0.0
  %705 = vmatmul.mubr.f32.gmra.mrb[0].mxu0 %v614
  %v706 = vpop.f32.mrb[0].mxu0
  %v707 = vadd.f32 0.0, %v706
  %v708 = vpop.f32.mrb[0].mxu0
  %709 = vmatprep.mubr.f32.mxu0 0.0
  %710 = vmatmul.mubr.f32.gmra.mrb[0].mxu0 %v615
  %v711 = vpop.f32.mrb[0].mxu0
  %v712 = vadd.f32 0.0, %v711
  %v713 = vpop.f32.mrb[0].mxu0
  %714 = vmatprep.mubr.f32.mxu0 0.0
  %715 = vmatmul.mubr.f32.gmra.mrb[0].mxu0 %v616
  %v716 = vpop.f32.mrb[0].mxu0
  %v717 = vadd.f32 0.0, %v716
  %v718 = vpop.f32.mrb[0].mxu0
  %719 = vmatprep.mubr.f32.mxu0 0.0
  %720 = vmatmul.mubr.f32.gmra.mrb[0].mxu0 %v617
  %v721 = vpop.f32.mrb[0].mxu0
  %v722 = vadd.f32 0.0, %v721
  %v723 = vpop.f32.mrb[0].mxu0
  %724 = vmatprep.mubr.f32.mxu0 0.0
  %725 = vmatmul.mubr.f32.gmra.mrb[0].mxu0 %v618
  %v726 = vpop.f32.mrb[0].mxu0
  %v727 = vadd.f32 0.0, %v726
  %v728 = vpop.f32.mrb[0].mxu0
  %729 = vdwg.mxu0
  %v730 = vadd.f32 %v607, %v702
  %v731 = vadd.f32 %v608, %v707
  %v732 = vadd.f32 %v609, %v712
  %v733 = vadd.f32 %v610, %v717
  %v734 = vadd.f32 %v611, %v722
  %v735 = vadd.f32 %v612, %v727
  %736 = vst [vmem:[%s8] sm:$0xff] %v730
  %737 = vst [vmem:[%s8 + $0x8] sm:$0xff] %v731
  %738 = vst [vmem:[%s8 + $0x10] sm:$0xff] %v732
  %739 = vst [vmem:[%s8 + $0x18] sm:$0xff] %v733
  %740 = vst [vmem:[%s8 + $0x20] sm:$0xff] %v734
  %741 = vst [vmem:[%s8 + $0x28] sm:$0xff] %v735
  // Predicated region
  $region34: #{model_forward.13} parent=0 // pred_check
    _
  $region35: #{model_forward.13} parent=0 // pred_check_branch
    %743 = sbr.rel (0) target = $region37
  $region36: #{model_forward.13} parent=0 // pred_region
    _
  $region37: #{model_forward.13} parent=0 // pred_fallthru
    _
  // Predicated region
  $region38: #{model_forward.13} parent=0 // pred_check
    _
  $region39: #{model_forward.13} parent=0 // pred_check_branch
    %745 = sbr.rel (0) target = $region41
  $region40: #{model_forward.13} parent=0 // pred_region
    _
  $region41: #{model_forward.13} parent=0 // pred_fallthru
    _

// kernel: model_forward.15
$region0: #{model_forward.15}
  #allocation0 [shape = 'u32[]', space=smem, size = 0x4, offset = 0x4, fixed_abs, tag = 'smem constant byte address 0x4 - core index']
  #allocation1 [shape = 'u32[144,128]{1,0:T(1,128)}', space=vmem, size = 0x12000, scoped, tag = 'internal scratch']
  %s0 = inlined_call_operand.vmem [shape: f32[48,128], index: 0, kind: input, shape index: {}]
  %s1 = inlined_call_operand.vmem [shape: f32[48,128], index: 1, kind: input, shape index: {}]
  %s2 = inlined_call_operand.vmem [shape: f32[48,48], index: 2, kind: input, shape index: {}]
  %s3 = inlined_call_operand.vmem [shape: f32[48,48], index: 3, kind: input, shape index: {}]
  %s4 = inlined_call_operand.vmem [shape: f32[128,128], index: 4, kind: input, shape index: {}]
  %s5 = inlined_call_operand.vmem [shape: f32[1,128], index: 5, kind: input, shape index: {}]
  %s6 = inlined_call_operand.vmem [shape: f32[128,128], index: 6, kind: input, shape index: {}]
  %s7 = inlined_call_operand.vmem [shape: f32[1,128], index: 7, kind: input, shape index: {}]
  %s8 = inlined_call_operand.vmem [shape: f32[48,128], index: 8, kind: output, shape index: {0}]
  %s9 = inlined_call_operand.vmem [shape: f32[48,128], index: 9, kind: output, shape index: {1}]
  %s10 = inlined_call_operand.vmem [shape: f32[48,128], index: 10, kind: output, shape index: {2}]
  %11 = xla_tuple %s8, %s9, %s10
  %s12 = sld [smem:[#allocation0]]
  $region58: #{model_forward.15} parent=0
    _
  %s14 = ssub.s32 1, %s12
  %s15 = scalar_select 0, %s14, %s12
  // Predicated region
  $region2: #{model_forward.15} parent=0 // pred_check
    _
  $region3: #{model_forward.15} parent=0 // pred_check_branch
    %17 = sbr.rel (0) target = $region5
  $region4: #{model_forward.15} parent=0 // pred_region
    _
  $region5: #{model_forward.15} parent=0 // pred_fallthru
    _
  // Predicated region
  $region6: #{model_forward.15} parent=0 // pred_check
    _
  $region7: #{model_forward.15} parent=0 // pred_check_branch
    %19 = sbr.rel (0) target = $region9
  $region8: #{model_forward.15} parent=0 // pred_region
    _
  $region9: #{model_forward.15} parent=0 // pred_fallthru
    _
  // Predicated region
  $region10: #{model_forward.15} parent=0 // pred_check
    _
  $region11: #{model_forward.15} parent=0 // pred_check_branch
    %21 = sbr.rel (0) target = $region13
  $region12: #{model_forward.15} parent=0 // pred_region
    _
  $region13: #{model_forward.15} parent=0 // pred_fallthru
    _
  // Predicated region
  $region14: #{model_forward.15} parent=0 // pred_check
    _
  $region15: #{model_forward.15} parent=0 // pred_check_branch
    %23 = sbr.rel (0) target = $region17
  $region16: #{model_forward.15} parent=0 // pred_region
    _
  $region17: #{model_forward.15} parent=0 // pred_fallthru
    _
  // Predicated region
  $region18: #{model_forward.15} parent=0 // pred_check
    _
  $region19: #{model_forward.15} parent=0 // pred_check_branch
    %25 = sbr.rel (0) target = $region21
  $region20: #{model_forward.15} parent=0 // pred_region
    _
  $region21: #{model_forward.15} parent=0 // pred_fallthru
    _
  // Predicated region
  $region22: #{model_forward.15} parent=0 // pred_check
    _
  $region23: #{model_forward.15} parent=0 // pred_check_branch
    %27 = sbr.rel (0) target = $region25
  $region24: #{model_forward.15} parent=0 // pred_region
    _
  $region25: #{model_forward.15} parent=0 // pred_fallthru
    _
  // Predicated region
  $region26: #{model_forward.15} parent=0 // pred_check
    _
  $region27: #{model_forward.15} parent=0 // pred_check_branch
    %29 = sbr.rel (0) target = $region29
  $region28: #{model_forward.15} parent=0 // pred_region
    _
  $region29: #{model_forward.15} parent=0 // pred_fallthru
    _
  // Predicated region
  $region30: #{model_forward.15} parent=0 // pred_check
    _
  $region31: #{model_forward.15} parent=0 // pred_check_branch
    %31 = sbr.rel (0) target = $region33
  $region32: #{model_forward.15} parent=0 // pred_region
    _
  $region33: #{model_forward.15} parent=0 // pred_fallthru
    _
  %v32 = vld [vmem:[%s0] sm:$0xff]
  %v33 = vld [vmem:[%s0 + $0x8] sm:$0xff]
  %v34 = vld [vmem:[%s0 + $0x10] sm:$0xff]
  %v35 = vld [vmem:[%s0 + $0x18] sm:$0xff]
  %v36 = vld [vmem:[%s0 + $0x20] sm:$0xff]
  %v37 = vld [vmem:[%s0 + $0x28] sm:$0xff]
  %v38 = vld [vmem:[%s2] sm:$0xff]
  %v39 = vld [vmem:[%s2 + $0x8] sm:$0xff]
  %v40 = vld [vmem:[%s2 + $0x10] sm:$0xff]
  %v41 = vld [vmem:[%s2 + $0x18] sm:$0xff]
  %v42 = vld [vmem:[%s2 + $0x20] sm:$0xff]
  %v43 = vld [vmem:[%s2 + $0x28] sm:$0xff]
  %v44 = vld [vmem:[%s1] sm:$0xff]
  %v45 = vld [vmem:[%s1 + $0x8] sm:$0xff]
  %v46 = vld [vmem:[%s1 + $0x10] sm:$0xff]
  %v47 = vld [vmem:[%s1 + $0x18] sm:$0xff]
  %v48 = vld [vmem:[%s1 + $0x20] sm:$0xff]
  %v49 = vld [vmem:[%s1 + $0x28] sm:$0xff]
  %vm50 = vcmask 392192
  %v52 = vsel %vm50, %v38, 0
  %v55 = vsel %vm50, %v39, 0
  %v58 = vsel %vm50, %v40, 0
  %v61 = vsel %vm50, %v41, 0
  %v64 = vsel %vm50, %v42, 0
  %v67 = vsel %vm50, %v43, 0
  %69 = vmatprep.subr.mxu0 0.0
  %70 = vmatpush1.msra.mxu0 %v44
  %71 = vmatprep.subr.mxu0 0.0
  %72 = vmatpush1.msra.mxu0 %v45
  %73 = vmatprep.subr.mxu0 0.0
  %74 = vmatpush1.msra.mxu0 %v46
  %75 = vmatprep.subr.mxu0 0.0
  %76 = vmatpush1.msra.mxu0 %v47
  %77 = vmatprep.subr.mxu0 0.0
  %78 = vmatpush1.msra.mxu0 %v48
  %79 = vmatprep.subr.mxu0 0.0
  %80 = vmatpush1.msra.mxu0 %v49
  %81 = vmatprep.subr.mxu0 0.0
  %82 = vmatpush1.msra.mxu0 0.0
  %83 = vmatprep.subr.mxu0 0.0
  %84 = vmatpush1.msra.mxu0 0.0
  %85 = vmatprep.subr.mxu0 0.0
  %86 = vmatpush1.msra.mxu0 0.0
  %87 = vmatprep.subr.mxu0 0.0
  %88 = vmatpush1.msra.mxu0 0.0
  %89 = vmatprep.subr.mxu0 0.0
  %90 = vmatpush1.msra.mxu0 0.0
  %91 = vmatprep.subr.mxu0 0.0
  %92 = vmatpush1.msra.mxu0 0.0
  %93 = vmatprep.subr.mxu0 0.0
  %94 = vmatpush1.msra.mxu0 0.0
  %95 = vmatprep.subr.mxu0 0.0
  %96 = vmatpush1.msra.mxu0 0.0
  %97 = vmatprep.subr.mxu0 0.0
  %98 = vmatpush1.msra.mxu0 0.0
  %99 = vmatprep.subr.mxu0 0.0
  %100 = vmatpush1.msra.mxu0 0.0
  %101 = vmatprep.subr.mxu0 0.0
  %102 = vmatpush1.msra.mxu0 0.0
  %103 = vmatprep.subr.mxu0 0.0
  %104 = vmatpush1.msra.mxu0 0.0
  %105 = vmatprep.subr.mxu0 0.0
  %106 = vmatpush1.msra.mxu0 0.0
  %107 = vmatprep.subr.mxu0 0.0
  %108 = vmatpush1.msra.mxu0 0.0
  %109 = vmatprep.subr.mxu0 0.0
  %110 = vmatpush1.msra.mxu0 0.0
  %111 = vmatprep.subr.mxu0 0.0
  %112 = vmatpush1.msra.mxu0 0.0
  %113 = vmatprep.subr.mxu0 0.0
  %114 = vmatpush1.msra.mxu0 0.0
  %115 = vmatprep.subr.mxu0 0.0
  %116 = vmatpush1.msra.mxu0 0.0
  %117 = vmatprep.subr.mxu0 0.0
  %118 = vmatpush1.msra.mxu0 0.0
  %119 = vmatprep.subr.mxu0 0.0
  %120 = vmatpush1.msra.mxu0 0.0
  %121 = vmatprep.subr.mxu0 0.0
  %122 = vmatpush1.msra.mxu0 0.0
  %123 = vmatprep.subr.mxu0 0.0
  %124 = vmatpush1.msra.mxu0 0.0
  %125 = vmatprep.subr.mxu0 0.0
  %126 = vmatpush1.msra.mxu0 0.0
  %127 = vmatprep.subr.mxu0 0.0
  %128 = vmatpush1.msra.mxu0 0.0
  %129 = vmatprep.subr.mxu0 0.0
  %130 = vmatpush1.msra.mxu0 0.0
  %131 = vmatprep.subr.mxu0 0.0
  %132 = vmatpush1.msra.mxu0 0.0
  %133 = vmatprep.mubr.f32.mxu0 0.0
  %134 = vmatmul.mubr.f32.gmra.mrb[0].mxu0 %v52
  %v135 = vpop.f32.mrb[0].mxu0
  %v136 = vadd.f32 0.0, %v135
  %v137 = vpop.f32.mrb[0].mxu0
  %138 = vmatprep.mubr.f32.mxu0 0.0
  %139 = vmatmul.mubr.f32.gmra.mrb[0].mxu0 %v55
  %v140 = vpop.f32.mrb[0].mxu0
  %v141 = vadd.f32 0.0, %v140
  %v142 = vpop.f32.mrb[0].mxu0
  %143 = vmatprep.mubr.f32.mxu0 0.0
  %144 = vmatmul.mubr.f32.gmra.mrb[0].mxu0 %v58
  %v145 = vpop.f32.mrb[0].mxu0
  %v146 = vadd.f32 0.0, %v145
  %v147 = vpop.f32.mrb[0].mxu0
  %148 = vmatprep.mubr.f32.mxu0 0.0
  %149 = vmatmul.mubr.f32.gmra.mrb[0].mxu0 %v61
  %v150 = vpop.f32.mrb[0].mxu0
  %v151 = vadd.f32 0.0, %v150
  %v152 = vpop.f32.mrb[0].mxu0
  %153 = vmatprep.mubr.f32.mxu0 0.0
  %154 = vmatmul.mubr.f32.gmra.mrb[0].mxu0 %v64
  %v155 = vpop.f32.mrb[0].mxu0
  %v156 = vadd.f32 0.0, %v155
  %v157 = vpop.f32.mrb[0].mxu0
  %158 = vmatprep.mubr.f32.mxu0 0.0
  %159 = vmatmul.mubr.f32.gmra.mrb[0].mxu0 %v67
  %v160 = vpop.f32.mrb[0].mxu0
  %v161 = vadd.f32 0.0, %v160
  %v162 = vpop.f32.mrb[0].mxu0
  %163 = vdwg.mxu0
  %v164 = vld [vmem:[%s4] sm:$0xff]
  %v165 = vld [vmem:[%s4 + $0x8] sm:$0xff]
  %v166 = vld [vmem:[%s4 + $0x10] sm:$0xff]
  %v167 = vld [vmem:[%s4 + $0x18] sm:$0xff]
  %v168 = vld [vmem:[%s4 + $0x20] sm:$0xff]
  %v169 = vld [vmem:[%s4 + $0x28] sm:$0xff]
  %v170 = vld [vmem:[%s4 + $0x30] sm:$0xff]
  %v171 = vld [vmem:[%s4 + $0x38] sm:$0xff]
  %v172 = vld [vmem:[%s4 + $0x40] sm:$0xff]
  %v173 = vld [vmem:[%s4 + $0x48] sm:$0xff]
  %v174 = vld [vmem:[%s4 + $0x50] sm:$0xff]
  %v175 = vld [vmem:[%s4 + $0x58] sm:$0xff]
  %v176 = vld [vmem:[%s4 + $0x60] sm:$0xff]
  %v177 = vld [vmem:[%s4 + $0x68] sm:$0xff]
  %v178 = vld [vmem:[%s4 + $0x70] sm:$0xff]
  %v179 = vld [vmem:[%s4 + $0x78] sm:$0xff]
  %v180 = vld [vmem:[%s5] sm:$0x1]
  %v182 = vlaneseq
  %v183 = vshrl.u32 %v182, 7
  %v184 = vsub.s32 0, %v183
  %v185 = vrot.slane %v180, %v184
  %187 = vmatprep.subr.mxu0 0.0
  %188 = vmatpush1.msra.mxu0 %v164
  %189 = vmatprep.subr.mxu0 0.0
  %190 = vmatpush1.msra.mxu0 %v165
  %191 = vmatprep.subr.mxu0 0.0
  %192 = vmatpush1.msra.mxu0 %v166
  %193 = vmatprep.subr.mxu0 0.0
  %194 = vmatpush1.msra.mxu0 %v167
  %195 = vmatprep.subr.mxu0 0.0
  %196 = vmatpush1.msra.mxu0 %v168
  %197 = vmatprep.subr.mxu0 0.0
  %198 = vmatpush1.msra.mxu0 %v169
  %199 = vmatprep.subr.mxu0 0.0
  %200 = vmatpush1.msra.mxu0 %v170
  %201 = vmatprep.subr.mxu0 0.0
  %202 = vmatpush1.msra.mxu0 %v171
  %203 = vmatprep.subr.mxu0 0.0
  %204 = vmatpush1.msra.mxu0 %v172
  %205 = vmatprep.subr.mxu0 0.0
  %206 = vmatpush1.msra.mxu0 %v173
  %207 = vmatprep.subr.mxu0 0.0
  %208 = vmatpush1.msra.mxu0 %v174
  %209 = vmatprep.subr.mxu0 0.0
  %210 = vmatpush1.msra.mxu0 %v175
  %211 = vmatprep.subr.mxu0 0.0
  %212 = vmatpush1.msra.mxu0 %v176
  %213 = vmatprep.subr.mxu0 0.0
  %214 = vmatpush1.msra.mxu0 %v177
  %215 = vmatprep.subr.mxu0 0.0
  %216 = vmatpush1.msra.mxu0 %v178
  %217 = vmatprep.subr.mxu0 0.0
  %218 = vmatpush1.msra.mxu0 %v179
  %219 = vmatprep.subr.mxu0 0.0
  %220 = vmatpush1.msra.mxu0 0.0
  %221 = vmatprep.subr.mxu0 0.0
  %222 = vmatpush1.msra.mxu0 0.0
  %223 = vmatprep.subr.mxu0 0.0
  %224 = vmatpush1.msra.mxu0 0.0
  %225 = vmatprep.subr.mxu0 0.0
  %226 = vmatpush1.msra.mxu0 0.0
  %227 = vmatprep.subr.mxu0 0.0
  %228 = vmatpush1.msra.mxu0 0.0
  %229 = vmatprep.subr.mxu0 0.0
  %230 = vmatpush1.msra.mxu0 0.0
  %231 = vmatprep.subr.mxu0 0.0
  %232 = vmatpush1.msra.mxu0 0.0
  %233 = vmatprep.subr.mxu0 0.0
  %234 = vmatpush1.msra.mxu0 0.0
  %235 = vmatprep.subr.mxu0 0.0
  %236 = vmatpush1.msra.mxu0 0.0
  %237 = vmatprep.subr.mxu0 0.0
  %238 = vmatpush1.msra.mxu0 0.0
  %239 = vmatprep.subr.mxu0 0.0
  %240 = vmatpush1.msra.mxu0 0.0
  %241 = vmatprep.subr.mxu0 0.0
  %242 = vmatpush1.msra.mxu0 0.0
  %243 = vmatprep.subr.mxu0 0.0
  %244 = vmatpush1.msra.mxu0 0.0
  %245 = vmatprep.subr.mxu0 0.0
  %246 = vmatpush1.msra.mxu0 0.0
  %247 = vmatprep.subr.mxu0 0.0
  %248 = vmatpush1.msra.mxu0 0.0
  %249 = vmatprep.subr.mxu0 0.0
  %250 = vmatpush1.msra.mxu0 0.0
  %251 = vmatprep.mubr.f32.mxu0 0.0
  %252 = vmatmul.mubr.f32.gmra.mrb[0].mxu0 %v136
  %v253 = vpop.f32.mrb[0].mxu0
  %v254 = vadd.f32 %v185, %v253
  %v255 = vpop.f32.mrb[0].mxu0
  %256 = vmatprep.mubr.f32.mxu0 0.0
  %257 = vmatmul.mubr.f32.gmra.mrb[0].mxu0 %v141
  %v258 = vpop.f32.mrb[0].mxu0
  %v259 = vadd.f32 %v185, %v258
  %v260 = vpop.f32.mrb[0].mxu0
  %261 = vmatprep.mubr.f32.mxu0 0.0
  %262 = vmatmul.mubr.f32.gmra.mrb[0].mxu0 %v146
  %v263 = vpop.f32.mrb[0].mxu0
  %v264 = vadd.f32 %v185, %v263
  %v265 = vpop.f32.mrb[0].mxu0
  %266 = vmatprep.mubr.f32.mxu0 0.0
  %267 = vmatmul.mubr.f32.gmra.mrb[0].mxu0 %v151
  %v268 = vpop.f32.mrb[0].mxu0
  %v269 = vadd.f32 %v185, %v268
  %v270 = vpop.f32.mrb[0].mxu0
  %271 = vmatprep.mubr.f32.mxu0 0.0
  %272 = vmatmul.mubr.f32.gmra.mrb[0].mxu0 %v156
  %v273 = vpop.f32.mrb[0].mxu0
  %v274 = vadd.f32 %v185, %v273
  %v275 = vpop.f32.mrb[0].mxu0
  %276 = vmatprep.mubr.f32.mxu0 0.0
  %277 = vmatmul.mubr.f32.gmra.mrb[0].mxu0 %v161
  %v278 = vpop.f32.mrb[0].mxu0
  %v279 = vadd.f32 %v185, %v278
  %v280 = vpop.f32.mrb[0].mxu0
  %281 = vdwg.mxu0
  %v282 = vadd.f32 %v32, %v254
  %v283 = vadd.f32 %v33, %v259
  %v284 = vadd.f32 %v34, %v264
  %v285 = vadd.f32 %v35, %v269
  %v286 = vadd.f32 %v36, %v274
  %v287 = vadd.f32 %v37, %v279
  %v288 = vld [vmem:[%s3] sm:$0xff]
  %v289 = vld [vmem:[%s3 + $0x8] sm:$0xff]
  %v290 = vld [vmem:[%s3 + $0x10] sm:$0xff]
  %v291 = vld [vmem:[%s3 + $0x18] sm:$0xff]
  %v292 = vld [vmem:[%s3 + $0x20] sm:$0xff]
  %v293 = vld [vmem:[%s3 + $0x28] sm:$0xff]
  %v295 = vsel %vm50, %v288, 0
  %v298 = vsel %vm50, %v289, 0
  %v301 = vsel %vm50, %v290, 0
  %v304 = vsel %vm50, %v291, 0
  %v307 = vsel %vm50, %v292, 0
  %v310 = vsel %vm50, %v293, 0
  %312 = vmatprep.subr.mxu0 0.0
  %313 = vmatpush1.msra.mxu0 %v282
  %314 = vmatprep.subr.mxu0 0.0
  %315 = vmatpush1.msra.mxu0 %v283
  %316 = vmatprep.subr.mxu0 0.0
  %317 = vmatpush1.msra.mxu0 %v284
  %318 = vmatprep.subr.mxu0 0.0
  %319 = vmatpush1.msra.mxu0 %v285
  %320 = vmatprep.subr.mxu0 0.0
  %321 = vmatpush1.msra.mxu0 %v286
  %322 = vmatprep.subr.mxu0 0.0
  %323 = vmatpush1.msra.mxu0 %v287
  %324 = vmatprep.subr.mxu0 0.0
  %325 = vmatpush1.msra.mxu0 0.0
  %326 = vmatprep.subr.mxu0 0.0
  %327 = vmatpush1.msra.mxu0 0.0
  %328 = vmatprep.subr.mxu0 0.0
  %329 = vmatpush1.msra.mxu0 0.0
  %330 = vmatprep.subr.mxu0 0.0
  %331 = vmatpush1.msra.mxu0 0.0
  %332 = vmatprep.subr.mxu0 0.0
  %333 = vmatpush1.msra.mxu0 0.0
  %334 = vmatprep.subr.mxu0 0.0
  %335 = vmatpush1.msra.mxu0 0.0
  %336 = vmatprep.subr.mxu0 0.0
  %337 = vmatpush1.msra.mxu0 0.0
  %338 = vmatprep.subr.mxu0 0.0
  %339 = vmatpush1.msra.mxu0 0.0
  %340 = vmatprep.subr.mxu0 0.0
  %341 = vmatpush1.msra.mxu0 0.0
  %342 = vmatprep.subr.mxu0 0.0
  %343 = vmatpush1.msra.mxu0 0.0
  %344 = vmatprep.subr.mxu0 0.0
  %345 = vmatpush1.msra.mxu0 0.0
  %346 = vmatprep.subr.mxu0 0.0
  %347 = vmatpush1.msra.mxu0 0.0
  %348 = vmatprep.subr.mxu0 0.0
  %349 = vmatpush1.msra.mxu0 0.0
  %350 = vmatprep.subr.mxu0 0.0
  %351 = vmatpush1.msra.mxu0 0.0
  %352 = vmatprep.subr.mxu0 0.0
  %353 = vmatpush1.msra.mxu0 0.0
  %354 = vmatprep.subr.mxu0 0.0
  %355 = vmatpush1.msra.mxu0 0.0
  %356 = vmatprep.subr.mxu0 0.0
  %357 = vmatpush1.msra.mxu0 0.0
  %358 = vmatprep.subr.mxu0 0.0
  %359 = vmatpush1.msra.mxu0 0.0
  %360 = vmatprep.subr.mxu0 0.0
  %361 = vmatpush1.msra.mxu0 0.0
  %362 = vmatprep.subr.mxu0 0.0
  %363 = vmatpush1.msra.mxu0 0.0
  %364 = vmatprep.subr.mxu0 0.0
  %365 = vmatpush1.msra.mxu0 0.0
  %366 = vmatprep.subr.mxu0 0.0
  %367 = vmatpush1.msra.mxu0 0.0
  %368 = vmatprep.subr.mxu0 0.0
  %369 = vmatpush1.msra.mxu0 0.0
  %370 = vmatprep.subr.mxu0 0.0
  %371 = vmatpush1.msra.mxu0 0.0
  %372 = vmatprep.subr.mxu0 0.0
  %373 = vmatpush1.msra.mxu0 0.0
  %374 = vmatprep.subr.mxu0 0.0
  %375 = vmatpush1.msra.mxu0 0.0
  %376 = vmatprep.mubr.f32.mxu0 0.0
  %377 = vmatmul.mubr.f32.gmra.mrb[0].mxu0 %v295
  %v378 = vpop.f32.mrb[0].mxu0
  %v379 = vadd.f32 0.0, %v378
  %v380 = vpop.f32.mrb[0].mxu0
  %381 = vmatprep.mubr.f32.mxu0 0.0
  %382 = vmatmul.mubr.f32.gmra.mrb[0].mxu0 %v298
  %v383 = vpop.f32.mrb[0].mxu0
  %v384 = vadd.f32 0.0, %v383
  %v385 = vpop.f32.mrb[0].mxu0
  %386 = vmatprep.mubr.f32.mxu0 0.0
  %387 = vmatmul.mubr.f32.gmra.mrb[0].mxu0 %v301
  %v388 = vpop.f32.mrb[0].mxu0
  %v389 = vadd.f32 0.0, %v388
  %v390 = vpop.f32.mrb[0].mxu0
  %391 = vmatprep.mubr.f32.mxu0 0.0
  %392 = vmatmul.mubr.f32.gmra.mrb[0].mxu0 %v304
  %v393 = vpop.f32.mrb[0].mxu0
  %v394 = vadd.f32 0.0, %v393
  %v395 = vpop.f32.mrb[0].mxu0
  %396 = vmatprep.mubr.f32.mxu0 0.0
  %397 = vmatmul.mubr.f32.gmra.mrb[0].mxu0 %v307
  %v398 = vpop.f32.mrb[0].mxu0
  %v399 = vadd.f32 0.0, %v398
  %v400 = vpop.f32.mrb[0].mxu0
  %401 = vmatprep.mubr.f32.mxu0 0.0
  %402 = vmatmul.mubr.f32.gmra.mrb[0].mxu0 %v310
  %v403 = vpop.f32.mrb[0].mxu0
  %v404 = vadd.f32 0.0, %v403
  %v405 = vpop.f32.mrb[0].mxu0
  %406 = vdwg.mxu0
  %v407 = vsub.f32 %v282, %v379
  %v408 = vsub.f32 %v283, %v384
  %v409 = vsub.f32 %v284, %v389
  %v410 = vsub.f32 %v285, %v394
  %v411 = vsub.f32 %v286, %v399
  %v412 = vsub.f32 %v287, %v404
  %413 = vst [vmem:[%s8] sm:$0xff] %v407
  %414 = vst [vmem:[%s8 + $0x8] sm:$0xff] %v408
  %415 = vst [vmem:[%s8 + $0x10] sm:$0xff] %v409
  %416 = vst [vmem:[%s8 + $0x18] sm:$0xff] %v410
  %417 = vst [vmem:[%s8 + $0x20] sm:$0xff] %v411
  %418 = vst [vmem:[%s8 + $0x28] sm:$0xff] %v412
  %419 = vst [vmem:[%s9] sm:$0xff] %v379
  %420 = vst [vmem:[%s9 + $0x8] sm:$0xff] %v384
  %421 = vst [vmem:[%s9 + $0x10] sm:$0xff] %v389
  %422 = vst [vmem:[%s9 + $0x18] sm:$0xff] %v394
  %423 = vst [vmem:[%s9 + $0x20] sm:$0xff] %v399
  %424 = vst [vmem:[%s9 + $0x28] sm:$0xff] %v404
  %v425 = vld [vmem:[%s6] sm:$0xff]
  %v426 = vld [vmem:[%s6 + $0x8] sm:$0xff]
  %v427 = vld [vmem:[%s6 + $0x10] sm:$0xff]
  %v428 = vld [vmem:[%s6 + $0x18] sm:$0xff]
  %v429 = vld [vmem:[%s6 + $0x20] sm:$0xff]
  %v430 = vld [vmem:[%s6 + $0x28] sm:$0xff]
  %v431 = vld [vmem:[%s6 + $0x30] sm:$0xff]
  %v432 = vld [vmem:[%s6 + $0x38] sm:$0xff]
  %v433 = vld [vmem:[%s6 + $0x40] sm:$0xff]
  %v434 = vld [vmem:[%s6 + $0x48] sm:$0xff]
  %v435 = vld [vmem:[%s6 + $0x50] sm:$0xff]
  %v436 = vld [vmem:[%s6 + $0x58] sm:$0xff]
  %v437 = vld [vmem:[%s6 + $0x60] sm:$0xff]
  %v438 = vld [vmem:[%s6 + $0x68] sm:$0xff]
  %v439 = vld [vmem:[%s6 + $0x70] sm:$0xff]
  %v440 = vld [vmem:[%s6 + $0x78] sm:$0xff]
  %v441 = vld [vmem:[%s7] sm:$0x1]
  %v443 = vlaneseq
  %v444 = vshrl.u32 %v443, 7
  %v445 = vsub.s32 0, %v444
  %v446 = vrot.slane %v441, %v445
  %448 = vmatprep.subr.mxu0 0.0
  %449 = vmatpush1.msra.mxu0 %v425
  %450 = vmatprep.subr.mxu0 0.0
  %451 = vmatpush1.msra.mxu0 %v426
  %452 = vmatprep.subr.mxu0 0.0
  %453 = vmatpush1.msra.mxu0 %v427
  %454 = vmatprep.subr.mxu0 0.0
  %455 = vmatpush1.msra.mxu0 %v428
  %456 = vmatprep.subr.mxu0 0.0
  %457 = vmatpush1.msra.mxu0 %v429
  %458 = vmatprep.subr.mxu0 0.0
  %459 = vmatpush1.msra.mxu0 %v430
  %460 = vmatprep.subr.mxu0 0.0
  %461 = vmatpush1.msra.mxu0 %v431
  %462 = vmatprep.subr.mxu0 0.0
  %463 = vmatpush1.msra.mxu0 %v432
  %464 = vmatprep.subr.mxu0 0.0
  %465 = vmatpush1.msra.mxu0 %v433
  %466 = vmatprep.subr.mxu0 0.0
  %467 = vmatpush1.msra.mxu0 %v434
  %468 = vmatprep.subr.mxu0 0.0
  %469 = vmatpush1.msra.mxu0 %v435
  %470 = vmatprep.subr.mxu0 0.0
  %471 = vmatpush1.msra.mxu0 %v436
  %472 = vmatprep.subr.mxu0 0.0
  %473 = vmatpush1.msra.mxu0 %v437
  %474 = vmatprep.subr.mxu0 0.0
  %475 = vmatpush1.msra.mxu0 %v438
  %476 = vmatprep.subr.mxu0 0.0
  %477 = vmatpush1.msra.mxu0 %v439
  %478 = vmatprep.subr.mxu0 0.0
  %479 = vmatpush1.msra.mxu0 %v440
  %480 = vmatprep.subr.mxu0 0.0
  %481 = vmatpush1.msra.mxu0 0.0
  %482 = vmatprep.subr.mxu0 0.0
  %483 = vmatpush1.msra.mxu0 0.0
  %484 = vmatprep.subr.mxu0 0.0
  %485 = vmatpush1.msra.mxu0 0.0
  %486 = vmatprep.subr.mxu0 0.0
  %487 = vmatpush1.msra.mxu0 0.0
  %488 = vmatprep.subr.mxu0 0.0
  %489 = vmatpush1.msra.mxu0 0.0
  %490 = vmatprep.subr.mxu0 0.0
  %491 = vmatpush1.msra.mxu0 0.0
  %492 = vmatprep.subr.mxu0 0.0
  %493 = vmatpush1.msra.mxu0 0.0
  %494 = vmatprep.subr.mxu0 0.0
  %495 = vmatpush1.msra.mxu0 0.0
  %496 = vmatprep.subr.mxu0 0.0
  %497 = vmatpush1.msra.mxu0 0.0
  %498 = vmatprep.subr.mxu0 0.0
  %499 = vmatpush1.msra.mxu0 0.0
  %500 = vmatprep.subr.mxu0 0.0
  %501 = vmatpush1.msra.mxu0 0.0
  %502 = vmatprep.subr.mxu0 0.0
  %503 = vmatpush1.msra.mxu0 0.0
  %504 = vmatprep.subr.mxu0 0.0
  %505 = vmatpush1.msra.mxu0 0.0
  %506 = vmatprep.subr.mxu0 0.0
  %507 = vmatpush1.msra.mxu0 0.0
  %508 = vmatprep.subr.mxu0 0.0
  %509 = vmatpush1.msra.mxu0 0.0
  %510 = vmatprep.subr.mxu0 0.0
  %511 = vmatpush1.msra.mxu0 0.0
  %512 = vmatprep.mubr.f32.mxu0 0.0
  %513 = vmatmul.mubr.f32.gmra.mrb[0].mxu0 %v407
  %v514 = vpop.f32.mrb[0].mxu0
  %v515 = vadd.f32 %v446, %v514
  %v516 = vpop.f32.mrb[0].mxu0
  %517 = vmatprep.mubr.f32.mxu0 0.0
  %518 = vmatmul.mubr.f32.gmra.mrb[0].mxu0 %v408
  %v519 = vpop.f32.mrb[0].mxu0
  %v520 = vadd.f32 %v446, %v519
  %v521 = vpop.f32.mrb[0].mxu0
  %522 = vmatprep.mubr.f32.mxu0 0.0
  %523 = vmatmul.mubr.f32.gmra.mrb[0].mxu0 %v409
  %v524 = vpop.f32.mrb[0].mxu0
  %v525 = vadd.f32 %v446, %v524
  %v526 = vpop.f32.mrb[0].mxu0
  %527 = vmatprep.mubr.f32.mxu0 0.0
  %528 = vmatmul.mubr.f32.gmra.mrb[0].mxu0 %v410
  %v529 = vpop.f32.mrb[0].mxu0
  %v530 = vadd.f32 %v446, %v529
  %v531 = vpop.f32.mrb[0].mxu0
  %532 = vmatprep.mubr.f32.mxu0 0.0
  %533 = vmatmul.mubr.f32.gmra.mrb[0].mxu0 %v411
  %v534 = vpop.f32.mrb[0].mxu0
  %v535 = vadd.f32 %v446, %v534
  %v536 = vpop.f32.mrb[0].mxu0
  %537 = vmatprep.mubr.f32.mxu0 0.0
  %538 = vmatmul.mubr.f32.gmra.mrb[0].mxu0 %v412
  %v539 = vpop.f32.mrb[0].mxu0
  %v540 = vadd.f32 %v446, %v539
  %v541 = vpop.f32.mrb[0].mxu0
  %542 = vdwg.mxu0
  %543 = vst [vmem:[%s10] sm:$0xff] %v515
  %544 = vst [vmem:[%s10 + $0x8] sm:$0xff] %v520
  %545 = vst [vmem:[%s10 + $0x10] sm:$0xff] %v525
  %546 = vst [vmem:[%s10 + $0x18] sm:$0xff] %v530
  %547 = vst [vmem:[%s10 + $0x20] sm:$0xff] %v535
  %548 = vst [vmem:[%s10 + $0x28] sm:$0xff] %v540
  // Predicated region
  $region34: #{model_forward.15} parent=0 // pred_check
    _
  $region35: #{model_forward.15} parent=0 // pred_check_branch
    %550 = sbr.rel (0) target = $region37
  $region36: #{model_forward.15} parent=0 // pred_region
    _
  $region37: #{model_forward.15} parent=0 // pred_fallthru
    _
  // Predicated region
  $region38: #{model_forward.15} parent=0 // pred_check
    _
  $region39: #{model_forward.15} parent=0 // pred_check_branch
    %552 = sbr.rel (0) target = $region41
  $region40: #{model_forward.15} parent=0 // pred_region
    _
  $region41: #{model_forward.15} parent=0 // pred_fallthru
    _
  // Predicated region
  $region42: #{model_forward.15} parent=0 // pred_check
    _
  $region43: #{model_forward.15} parent=0 // pred_check_branch
    %554 = sbr.rel (0) target = $region45
  $region44: #{model_forward.15} parent=0 // pred_region
    _
  $region45: #{model_forward.15} parent=0 // pred_fallthru
    _
  // Predicated region
  $region46: #{model_forward.15} parent=0 // pred_check
    _
  $region47: #{model_forward.15} parent=0 // pred_check_branch
    %556 = sbr.rel (0) target = $region49
  $region48: #{model_forward.15} parent=0 // pred_region
    _
  $region49: #{model_forward.15} parent=0 // pred_fallthru
    _
  // Predicated region
  $region50: #{model_forward.15} parent=0 // pred_check
    _
  $region51: #{model_forward.15} parent=0 // pred_check_branch
    %558 = sbr.rel (0) target = $region53
  $region52: #{model_forward.15} parent=0 // pred_region
    _
  $region53: #{model_forward.15} parent=0 // pred_fallthru
    _
  // Predicated region
  $region54: #{model_forward.15} parent=0 // pred_check
    _
  $region55: #{model_forward.15} parent=0 // pred_check_branch
    %560 = sbr.rel (0) target = $region57
  $region56: #{model_forward.15} parent=0 // pred_region
    _
  $region57: #{model_forward.15} parent=0 // pred_fallthru
    _

// kernel: model_forward.23
$region0: #{model_forward.23}
  #allocation0 [shape = 'u32[]', space=smem, size = 0x4, offset = 0x4, fixed_abs, tag = 'smem constant byte address 0x4 - core index']
  #allocation1 [shape = 'u32[144,128]{1,0:T(1,128)}', space=vmem, size = 0x12000, scoped, tag = 'internal scratch']
  %s0 = inlined_call_operand.vmem [shape: f32[48,128], index: 0, kind: input, shape index: {}]
  %s1 = inlined_call_operand.vmem [shape: f32[48,128], index: 1, kind: input, shape index: {}]
  %s2 = inlined_call_operand.vmem [shape: f32[48,128], index: 2, kind: input, shape index: {}]
  %s3 = inlined_call_operand.vmem [shape: f32[48,48], index: 3, kind: input, shape index: {}]
  %s4 = inlined_call_operand.vmem [shape: f32[48,48], index: 4, kind: input, shape index: {}]
  %s5 = inlined_call_operand.vmem [shape: f32[128,128], index: 5, kind: input, shape index: {}]
  %s6 = inlined_call_operand.vmem [shape: f32[1,128], index: 6, kind: input, shape index: {}]
  %s7 = inlined_call_operand.vmem [shape: f32[128,128], index: 7, kind: input, shape index: {}]
  %s8 = inlined_call_operand.vmem [shape: f32[128,128], index: 8, kind: input, shape index: {}]
  %s9 = inlined_call_operand.vmem [shape: f32[48,48], index: 9, kind: input, shape index: {}]
  %s10 = inlined_call_operand.vmem [shape: f32[48,48], index: 10, kind: input, shape index: {}]
  %s11 = inlined_call_operand.vmem [shape: f32[128,128], index: 11, kind: input, shape index: {}]
  %s12 = inlined_call_operand.vmem [shape: f32[128,128], index: 12, kind: input, shape index: {}]
  %s13 = inlined_call_operand.vmem [shape: f32[128,128], index: 13, kind: input, shape index: {}]
  %s14 = inlined_call_operand.vmem [shape: f32[1,128], index: 14, kind: input, shape index: {}]
  %s15 = inlined_call_operand.vmem [shape: f32[1,128], index: 15, kind: input, shape index: {}]
  %s16 = inlined_call_operand.vmem [shape: f32[48,48], index: 16, kind: input, shape index: {}]
  %s17 = inlined_call_operand.vmem [shape: f32[128,128], index: 17, kind: input, shape index: {}]
  %s18 = inlined_call_operand.vmem [shape: f32[1,128], index: 18, kind: input, shape index: {}]
  %s19 = inlined_call_operand.vmem [shape: f32[128,128], index: 19, kind: input, shape index: {}]
  %s20 = inlined_call_operand.vmem [shape: f32[48,128], index: 20, kind: input, shape index: {}]
  %s21 = inlined_call_operand.vmem [shape: f32[48,128], index: 21, kind: output, shape index: {}]
  %s22 = sld [smem:[#allocation0]]
  $region94: #{model_forward.23} parent=0
    _
  %s24 = ssub.s32 1, %s22
  %s25 = scalar_select 0, %s24, %s22
  // Predicated region
  $region2: #{model_forward.23} parent=0 // pred_check
    _
  $region3: #{model_forward.23} parent=0 // pred_check_branch
    %27 = sbr.rel (0) target = $region5
  $region4: #{model_forward.23} parent=0 // pred_region
    _
  $region5: #{model_forward.23} parent=0 // pred_fallthru
    _
  // Predicated region
  $region6: #{model_forward.23} parent=0 // pred_check
    _
  $region7: #{model_forward.23} parent=0 // pred_check_branch
    %29 = sbr.rel (0) target = $region9
  $region8: #{model_forward.23} parent=0 // pred_region
    _
  $region9: #{model_forward.23} parent=0 // pred_fallthru
    _
  // Predicated region
  $region10: #{model_forward.23} parent=0 // pred_check
    _
  $region11: #{model_forward.23} parent=0 // pred_check_branch
    %31 = sbr.rel (0) target = $region13
  $region12: #{model_forward.23} parent=0 // pred_region
    _
  $region13: #{model_forward.23} parent=0 // pred_fallthru
    _
  // Predicated region
  $region14: #{model_forward.23} parent=0 // pred_check
    _
  $region15: #{model_forward.23} parent=0 // pred_check_branch
    %33 = sbr.rel (0) target = $region17
  $region16: #{model_forward.23} parent=0 // pred_region
    _
  $region17: #{model_forward.23} parent=0 // pred_fallthru
    _
  // Predicated region
  $region18: #{model_forward.23} parent=0 // pred_check
    _
  $region19: #{model_forward.23} parent=0 // pred_check_branch
    %35 = sbr.rel (0) target = $region21
  $region20: #{model_forward.23} parent=0 // pred_region
    _
  $region21: #{model_forward.23} parent=0 // pred_fallthru
    _
  // Predicated region
  $region22: #{model_forward.23} parent=0 // pred_check
    _
  $region23: #{model_forward.23} parent=0 // pred_check_branch
    %37 = sbr.rel (0) target = $region25
  $region24: #{model_forward.23} parent=0 // pred_region
    _
  $region25: #{model_forward.23} parent=0 // pred_fallthru
    _
  // Predicated region
  $region26: #{model_forward.23} parent=0 // pred_check
    _
  $region27: #{model_forward.23} parent=0 // pred_check_branch
    %39 = sbr.rel (0) target = $region29
  $region28: #{model_forward.23} parent=0 // pred_region
    _
  $region29: #{model_forward.23} parent=0 // pred_fallthru
    _
  // Predicated region
  $region30: #{model_forward.23} parent=0 // pred_check
    _
  $region31: #{model_forward.23} parent=0 // pred_check_branch
    %41 = sbr.rel (0) target = $region33
  $region32: #{model_forward.23} parent=0 // pred_region
    _
  $region33: #{model_forward.23} parent=0 // pred_fallthru
    _
  // Predicated region
  $region34: #{model_forward.23} parent=0 // pred_check
    _
  $region35: #{model_forward.23} parent=0 // pred_check_branch
    %43 = sbr.rel (0) target = $region37
  $region36: #{model_forward.23} parent=0 // pred_region
    _
  $region37: #{model_forward.23} parent=0 // pred_fallthru
    _
  // Predicated region
  $region38: #{model_forward.23} parent=0 // pred_check
    _
  $region39: #{model_forward.23} parent=0 // pred_check_branch
    %45 = sbr.rel (0) target = $region41
  $region40: #{model_forward.23} parent=0 // pred_region
    _
  $region41: #{model_forward.23} parent=0 // pred_fallthru
    _
  // Predicated region
  $region42: #{model_forward.23} parent=0 // pred_check
    _
  $region43: #{model_forward.23} parent=0 // pred_check_branch
    %47 = sbr.rel (0) target = $region45
  $region44: #{model_forward.23} parent=0 // pred_region
    _
  $region45: #{model_forward.23} parent=0 // pred_fallthru
    _
  // Predicated region
  $region46: #{model_forward.23} parent=0 // pred_check
    _
  $region47: #{model_forward.23} parent=0 // pred_check_branch
    %49 = sbr.rel (0) target = $region49
  $region48: #{model_forward.23} parent=0 // pred_region
    _
  $region49: #{model_forward.23} parent=0 // pred_fallthru
    _
  // Predicated region
  $region50: #{model_forward.23} parent=0 // pred_check
    _
  $region51: #{model_forward.23} parent=0 // pred_check_branch
    %51 = sbr.rel (0) target = $region53
  $region52: #{model_forward.23} parent=0 // pred_region
    _
  $region53: #{model_forward.23} parent=0 // pred_fallthru
    _
  // Predicated region
  $region54: #{model_forward.23} parent=0 // pred_check
    _
  $region55: #{model_forward.23} parent=0 // pred_check_branch
    %53 = sbr.rel (0) target = $region57
  $region56: #{model_forward.23} parent=0 // pred_region
    _
  $region57: #{model_forward.23} parent=0 // pred_fallthru
    _
  // Predicated region
  $region58: #{model_forward.23} parent=0 // pred_check
    _
  $region59: #{model_forward.23} parent=0 // pred_check_branch
    %55 = sbr.rel (0) target = $region61
  $region60: #{model_forward.23} parent=0 // pred_region
    _
  $region61: #{model_forward.23} parent=0 // pred_fallthru
    _
  // Predicated region
  $region62: #{model_forward.23} parent=0 // pred_check
    _
  $region63: #{model_forward.23} parent=0 // pred_check_branch
    %57 = sbr.rel (0) target = $region65
  $region64: #{model_forward.23} parent=0 // pred_region
    _
  $region65: #{model_forward.23} parent=0 // pred_fallthru
    _
  // Predicated region
  $region66: #{model_forward.23} parent=0 // pred_check
    _
  $region67: #{model_forward.23} parent=0 // pred_check_branch
    %59 = sbr.rel (0) target = $region69
  $region68: #{model_forward.23} parent=0 // pred_region
    _
  $region69: #{model_forward.23} parent=0 // pred_fallthru
    _
  // Predicated region
  $region70: #{model_forward.23} parent=0 // pred_check
    _
  $region71: #{model_forward.23} parent=0 // pred_check_branch
    %61 = sbr.rel (0) target = $region73
  $region72: #{model_forward.23} parent=0 // pred_region
    _
  $region73: #{model_forward.23} parent=0 // pred_fallthru
    _
  // Predicated region
  $region74: #{model_forward.23} parent=0 // pred_check
    _
  $region75: #{model_forward.23} parent=0 // pred_check_branch
    %63 = sbr.rel (0) target = $region77
  $region76: #{model_forward.23} parent=0 // pred_region
    _
  $region77: #{model_forward.23} parent=0 // pred_fallthru
    _
  // Predicated region
  $region78: #{model_forward.23} parent=0 // pred_check
    _
  $region79: #{model_forward.23} parent=0 // pred_check_branch
    %65 = sbr.rel (0) target = $region81
  $region80: #{model_forward.23} parent=0 // pred_region
    _
  $region81: #{model_forward.23} parent=0 // pred_fallthru
    _
  // Predicated region
  $region82: #{model_forward.23} parent=0 // pred_check
    _
  $region83: #{model_forward.23} parent=0 // pred_check_branch
    %67 = sbr.rel (0) target = $region85
  $region84: #{model_forward.23} parent=0 // pred_region
    _
  $region85: #{model_forward.23} parent=0 // pred_fallthru
    _
  %v68 = vld [vmem:[%s0] sm:$0xff]
  %v69 = vld [vmem:[%s0 + $0x8] sm:$0xff]
  %v70 = vld [vmem:[%s0 + $0x10] sm:$0xff]
  %v71 = vld [vmem:[%s0 + $0x18] sm:$0xff]
  %v72 = vld [vmem:[%s0 + $0x20] sm:$0xff]
  %v73 = vld [vmem:[%s0 + $0x28] sm:$0xff]
  %v74 = vld [vmem:[%s3] sm:$0xff]
  %v75 = vld [vmem:[%s3 + $0x8] sm:$0xff]
  %v76 = vld [vmem:[%s3 + $0x10] sm:$0xff]
  %v77 = vld [vmem:[%s3 + $0x18] sm:$0xff]
  %v78 = vld [vmem:[%s3 + $0x20] sm:$0xff]
  %v79 = vld [vmem:[%s3 + $0x28] sm:$0xff]
  %v80 = vld [vmem:[%s2] sm:$0xff]
  %v81 = vld [vmem:[%s2 + $0x8] sm:$0xff]
  %v82 = vld [vmem:[%s2 + $0x10] sm:$0xff]
  %v83 = vld [vmem:[%s2 + $0x18] sm:$0xff]
  %v84 = vld [vmem:[%s2 + $0x20] sm:$0xff]
  %v85 = vld [vmem:[%s2 + $0x28] sm:$0xff]
  %vm86 = vcmask 392192
  %v88 = vsel %vm86, %v74, 0
  %v91 = vsel %vm86, %v75, 0
  %v94 = vsel %vm86, %v76, 0
  %v97 = vsel %vm86, %v77, 0
  %v100 = vsel %vm86, %v78, 0
  %v103 = vsel %vm86, %v79, 0
  %105 = vmatprep.subr.mxu0 0.0
  %106 = vmatpush1.msra.mxu0 %v80
  %107 = vmatprep.subr.mxu0 0.0
  %108 = vmatpush1.msra.mxu0 %v81
  %109 = vmatprep.subr.mxu0 0.0
  %110 = vmatpush1.msra.mxu0 %v82
  %111 = vmatprep.subr.mxu0 0.0
  %112 = vmatpush1.msra.mxu0 %v83
  %113 = vmatprep.subr.mxu0 0.0
  %114 = vmatpush1.msra.mxu0 %v84
  %115 = vmatprep.subr.mxu0 0.0
  %116 = vmatpush1.msra.mxu0 %v85
  %117 = vmatprep.subr.mxu0 0.0
  %118 = vmatpush1.msra.mxu0 0.0
  %119 = vmatprep.subr.mxu0 0.0
  %120 = vmatpush1.msra.mxu0 0.0
  %121 = vmatprep.subr.mxu0 0.0
  %122 = vmatpush1.msra.mxu0 0.0
  %123 = vmatprep.subr.mxu0 0.0
  %124 = vmatpush1.msra.mxu0 0.0
  %125 = vmatprep.subr.mxu0 0.0
  %126 = vmatpush1.msra.mxu0 0.0
  %127 = vmatprep.subr.mxu0 0.0
  %128 = vmatpush1.msra.mxu0 0.0
  %129 = vmatprep.subr.mxu0 0.0
  %130 = vmatpush1.msra.mxu0 0.0
  %131 = vmatprep.subr.mxu0 0.0
  %132 = vmatpush1.msra.mxu0 0.0
  %133 = vmatprep.subr.mxu0 0.0
  %134 = vmatpush1.msra.mxu0 0.0
  %135 = vmatprep.subr.mxu0 0.0
  %136 = vmatpush1.msra.mxu0 0.0
  %137 = vmatprep.subr.mxu0 0.0
  %138 = vmatpush1.msra.mxu0 0.0
  %139 = vmatprep.subr.mxu0 0.0
  %140 = vmatpush1.msra.mxu0 0.0
  %141 = vmatprep.subr.mxu0 0.0
  %142 = vmatpush1.msra.mxu0 0.0
  %143 = vmatprep.subr.mxu0 0.0
  %144 = vmatpush1.msra.mxu0 0.0
  %145 = vmatprep.subr.mxu0 0.0
  %146 = vmatpush1.msra.mxu0 0.0
  %147 = vmatprep.subr.mxu0 0.0
  %148 = vmatpush1.msra.mxu0 0.0
  %149 = vmatprep.subr.mxu0 0.0
  %150 = vmatpush1.msra.mxu0 0.0
  %151 = vmatprep.subr.mxu0 0.0
  %152 = vmatpush1.msra.mxu0 0.0
  %153 = vmatprep.subr.mxu0 0.0
  %154 = vmatpush1.msra.mxu0 0.0
  %155 = vmatprep.subr.mxu0 0.0
  %156 = vmatpush1.msra.mxu0 0.0
  %157 = vmatprep.subr.mxu0 0.0
  %158 = vmatpush1.msra.mxu0 0.0
  %159 = vmatprep.subr.mxu0 0.0
  %160 = vmatpush1.msra.mxu0 0.0
  %161 = vmatprep.subr.mxu0 0.0
  %162 = vmatpush1.msra.mxu0 0.0
  %163 = vmatprep.subr.mxu0 0.0
  %164 = vmatpush1.msra.mxu0 0.0
  %165 = vmatprep.subr.mxu0 0.0
  %166 = vmatpush1.msra.mxu0 0.0
  %167 = vmatprep.subr.mxu0 0.0
  %168 = vmatpush1.msra.mxu0 0.0
  %169 = vmatprep.mubr.f32.mxu0 0.0
  %170 = vmatmul.mubr.f32.gmra.mrb[0].mxu0 %v88
  %v171 = vpop.f32.mrb[0].mxu0
  %v172 = vadd.f32 0.0, %v171
  %v173 = vpop.f32.mrb[0].mxu0
  %174 = vmatprep.mubr.f32.mxu0 0.0
  %175 = vmatmul.mubr.f32.gmra.mrb[0].mxu0 %v91
  %v176 = vpop.f32.mrb[0].mxu0
  %v177 = vadd.f32 0.0, %v176
  %v178 = vpop.f32.mrb[0].mxu0
  %179 = vmatprep.mubr.f32.mxu0 0.0
  %180 = vmatmul.mubr.f32.gmra.mrb[0].mxu0 %v94
  %v181 = vpop.f32.mrb[0].mxu0
  %v182 = vadd.f32 0.0, %v181
  %v183 = vpop.f32.mrb[0].mxu0
  %184 = vmatprep.mubr.f32.mxu0 0.0
  %185 = vmatmul.mubr.f32.gmra.mrb[0].mxu0 %v97
  %v186 = vpop.f32.mrb[0].mxu0
  %v187 = vadd.f32 0.0, %v186
  %v188 = vpop.f32.mrb[0].mxu0
  %189 = vmatprep.mubr.f32.mxu0 0.0
  %190 = vmatmul.mubr.f32.gmra.mrb[0].mxu0 %v100
  %v191 = vpop.f32.mrb[0].mxu0
  %v192 = vadd.f32 0.0, %v191
  %v193 = vpop.f32.mrb[0].mxu0
  %194 = vmatprep.mubr.f32.mxu0 0.0
  %195 = vmatmul.mubr.f32.gmra.mrb[0].mxu0 %v103
  %v196 = vpop.f32.mrb[0].mxu0
  %v197 = vadd.f32 0.0, %v196
  %v198 = vpop.f32.mrb[0].mxu0
  %199 = vdwg.mxu0
  %v200 = vld [vmem:[%s5] sm:$0xff]
  %v201 = vld [vmem:[%s5 + $0x8] sm:$0xff]
  %v202 = vld [vmem:[%s5 + $0x10] sm:$0xff]
  %v203 = vld [vmem:[%s5 + $0x18] sm:$0xff]
  %v204 = vld [vmem:[%s5 + $0x20] sm:$0xff]
  %v205 = vld [vmem:[%s5 + $0x28] sm:$0xff]
  %v206 = vld [vmem:[%s5 + $0x30] sm:$0xff]
  %v207 = vld [vmem:[%s5 + $0x38] sm:$0xff]
  %v208 = vld [vmem:[%s5 + $0x40] sm:$0xff]
  %v209 = vld [vmem:[%s5 + $0x48] sm:$0xff]
  %v210 = vld [vmem:[%s5 + $0x50] sm:$0xff]
  %v211 = vld [vmem:[%s5 + $0x58] sm:$0xff]
  %v212 = vld [vmem:[%s5 + $0x60] sm:$0xff]
  %v213 = vld [vmem:[%s5 + $0x68] sm:$0xff]
  %v214 = vld [vmem:[%s5 + $0x70] sm:$0xff]
  %v215 = vld [vmem:[%s5 + $0x78] sm:$0xff]
  %v216 = vld [vmem:[%s6] sm:$0x1]
  %v218 = vlaneseq
  %v219 = vshrl.u32 %v218, 7
  %v220 = vsub.s32 0, %v219
  %v221 = vrot.slane %v216, %v220
  %223 = vmatprep.subr.mxu0 0.0
  %224 = vmatpush1.msra.mxu0 %v200
  %225 = vmatprep.subr.mxu0 0.0
  %226 = vmatpush1.msra.mxu0 %v201
  %227 = vmatprep.subr.mxu0 0.0
  %228 = vmatpush1.msra.mxu0 %v202
  %229 = vmatprep.subr.mxu0 0.0
  %230 = vmatpush1.msra.mxu0 %v203
  %231 = vmatprep.subr.mxu0 0.0
  %232 = vmatpush1.msra.mxu0 %v204
  %233 = vmatprep.subr.mxu0 0.0
  %234 = vmatpush1.msra.mxu0 %v205
  %235 = vmatprep.subr.mxu0 0.0
  %236 = vmatpush1.msra.mxu0 %v206
  %237 = vmatprep.subr.mxu0 0.0
  %238 = vmatpush1.msra.mxu0 %v207
  %239 = vmatprep.subr.mxu0 0.0
  %240 = vmatpush1.msra.mxu0 %v208
  %241 = vmatprep.subr.mxu0 0.0
  %242 = vmatpush1.msra.mxu0 %v209
  %243 = vmatprep.subr.mxu0 0.0
  %244 = vmatpush1.msra.mxu0 %v210
  %245 = vmatprep.subr.mxu0 0.0
  %246 = vmatpush1.msra.mxu0 %v211
  %247 = vmatprep.subr.mxu0 0.0
  %248 = vmatpush1.msra.mxu0 %v212
  %249 = vmatprep.subr.mxu0 0.0
  %250 = vmatpush1.msra.mxu0 %v213
  %251 = vmatprep.subr.mxu0 0.0
  %252 = vmatpush1.msra.mxu0 %v214
  %253 = vmatprep.subr.mxu0 0.0
  %254 = vmatpush1.msra.mxu0 %v215
  %255 = vmatprep.subr.mxu0 0.0
  %256 = vmatpush1.msra.mxu0 0.0
  %257 = vmatprep.subr.mxu0 0.0
  %258 = vmatpush1.msra.mxu0 0.0
  %259 = vmatprep.subr.mxu0 0.0
  %260 = vmatpush1.msra.mxu0 0.0
  %261 = vmatprep.subr.mxu0 0.0
  %262 = vmatpush1.msra.mxu0 0.0
  %263 = vmatprep.subr.mxu0 0.0
  %264 = vmatpush1.msra.mxu0 0.0
  %265 = vmatprep.subr.mxu0 0.0
  %266 = vmatpush1.msra.mxu0 0.0
  %267 = vmatprep.subr.mxu0 0.0
  %268 = vmatpush1.msra.mxu0 0.0
  %269 = vmatprep.subr.mxu0 0.0
  %270 = vmatpush1.msra.mxu0 0.0
  %271 = vmatprep.subr.mxu0 0.0
  %272 = vmatpush1.msra.mxu0 0.0
  %273 = vmatprep.subr.mxu0 0.0
  %274 = vmatpush1.msra.mxu0 0.0
  %275 = vmatprep.subr.mxu0 0.0
  %276 = vmatpush1.msra.mxu0 0.0
  %277 = vmatprep.subr.mxu0 0.0
  %278 = vmatpush1.msra.mxu0 0.0
  %279 = vmatprep.subr.mxu0 0.0
  %280 = vmatpush1.msra.mxu0 0.0
  %281 = vmatprep.subr.mxu0 0.0
  %282 = vmatpush1.msra.mxu0 0.0
  %283 = vmatprep.subr.mxu0 0.0
  %284 = vmatpush1.msra.mxu0 0.0
  %285 = vmatprep.subr.mxu0 0.0
  %286 = vmatpush1.msra.mxu0 0.0
  %287 = vmatprep.mubr.f32.mxu0 0.0
  %288 = vmatmul.mubr.f32.gmra.mrb[0].mxu0 %v172
  %v289 = vpop.f32.mrb[0].mxu0
  %v290 = vadd.f32 %v221, %v289
  %v291 = vpop.f32.mrb[0].mxu0
  %292 = vmatprep.mubr.f32.mxu0 0.0
  %293 = vmatmul.mubr.f32.gmra.mrb[0].mxu0 %v177
  %v294 = vpop.f32.mrb[0].mxu0
  %v295 = vadd.f32 %v221, %v294
  %v296 = vpop.f32.mrb[0].mxu0
  %297 = vmatprep.mubr.f32.mxu0 0.0
  %298 = vmatmul.mubr.f32.gmra.mrb[0].mxu0 %v182
  %v299 = vpop.f32.mrb[0].mxu0
  %v300 = vadd.f32 %v221, %v299
  %v301 = vpop.f32.mrb[0].mxu0
  %302 = vmatprep.mubr.f32.mxu0 0.0
  %303 = vmatmul.mubr.f32.gmra.mrb[0].mxu0 %v187
  %v304 = vpop.f32.mrb[0].mxu0
  %v305 = vadd.f32 %v221, %v304
  %v306 = vpop.f32.mrb[0].mxu0
  %307 = vmatprep.mubr.f32.mxu0 0.0
  %308 = vmatmul.mubr.f32.gmra.mrb[0].mxu0 %v192
  %v309 = vpop.f32.mrb[0].mxu0
  %v310 = vadd.f32 %v221, %v309
  %v311 = vpop.f32.mrb[0].mxu0
  %312 = vmatprep.mubr.f32.mxu0 0.0
  %313 = vmatmul.mubr.f32.gmra.mrb[0].mxu0 %v197
  %v314 = vpop.f32.mrb[0].mxu0
  %v315 = vadd.f32 %v221, %v314
  %v316 = vpop.f32.mrb[0].mxu0
  %317 = vdwg.mxu0
  %v318 = vadd.f32 %v68, %v290
  %v319 = vadd.f32 %v69, %v295
  %v320 = vadd.f32 %v70, %v300
  %v321 = vadd.f32 %v71, %v305
  %v322 = vadd.f32 %v72, %v310
  %v323 = vadd.f32 %v73, %v315
  %v324 = vld [vmem:[%s4] sm:$0xff]
  %v325 = vld [vmem:[%s4 + $0x8] sm:$0xff]
  %v326 = vld [vmem:[%s4 + $0x10] sm:$0xff]
  %v327 = vld [vmem:[%s4 + $0x18] sm:$0xff]
  %v328 = vld [vmem:[%s4 + $0x20] sm:$0xff]
  %v329 = vld [vmem:[%s4 + $0x28] sm:$0xff]
  %v331 = vsel %vm86, %v324, 0
  %v334 = vsel %vm86, %v325, 0
  %v337 = vsel %vm86, %v326, 0
  %v340 = vsel %vm86, %v327, 0
  %v343 = vsel %vm86, %v328, 0
  %v346 = vsel %vm86, %v329, 0
  %348 = vmatprep.subr.mxu0 0.0
  %349 = vmatpush1.msra.mxu0 %v318
  %350 = vmatprep.subr.mxu0 0.0
  %351 = vmatpush1.msra.mxu0 %v319
  %352 = vmatprep.subr.mxu0 0.0
  %353 = vmatpush1.msra.mxu0 %v320
  %354 = vmatprep.subr.mxu0 0.0
  %355 = vmatpush1.msra.mxu0 %v321
  %356 = vmatprep.subr.mxu0 0.0
  %357 = vmatpush1.msra.mxu0 %v322
  %358 = vmatprep.subr.mxu0 0.0
  %359 = vmatpush1.msra.mxu0 %v323
  %360 = vmatprep.subr.mxu0 0.0
  %361 = vmatpush1.msra.mxu0 0.0
  %362 = vmatprep.subr.mxu0 0.0
  %363 = vmatpush1.msra.mxu0 0.0
  %364 = vmatprep.subr.mxu0 0.0
  %365 = vmatpush1.msra.mxu0 0.0
  %366 = vmatprep.subr.mxu0 0.0
  %367 = vmatpush1.msra.mxu0 0.0
  %368 = vmatprep.subr.mxu0 0.0
  %369 = vmatpush1.msra.mxu0 0.0
  %370 = vmatprep.subr.mxu0 0.0
  %371 = vmatpush1.msra.mxu0 0.0
  %372 = vmatprep.subr.mxu0 0.0
  %373 = vmatpush1.msra.mxu0 0.0
  %374 = vmatprep.subr.mxu0 0.0
  %375 = vmatpush1.msra.mxu0 0.0
  %376 = vmatprep.subr.mxu0 0.0
  %377 = vmatpush1.msra.mxu0 0.0
  %378 = vmatprep.subr.mxu0 0.0
  %379 = vmatpush1.msra.mxu0 0.0
  %380 = vmatprep.subr.mxu0 0.0
  %381 = vmatpush1.msra.mxu0 0.0
  %382 = vmatprep.subr.mxu0 0.0
  %383 = vmatpush1.msra.mxu0 0.0
  %384 = vmatprep.subr.mxu0 0.0
  %385 = vmatpush1.msra.mxu0 0.0
  %386 = vmatprep.subr.mxu0 0.0
  %387 = vmatpush1.msra.mxu0 0.0
  %388 = vmatprep.subr.mxu0 0.0
  %389 = vmatpush1.msra.mxu0 0.0
  %390 = vmatprep.subr.mxu0 0.0
  %391 = vmatpush1.msra.mxu0 0.0
  %392 = vmatprep.subr.mxu0 0.0
  %393 = vmatpush1.msra.mxu0 0.0
  %394 = vmatprep.subr.mxu0 0.0
  %395 = vmatpush1.msra.mxu0 0.0
  %396 = vmatprep.subr.mxu0 0.0
  %397 = vmatpush1.msra.mxu0 0.0
  %398 = vmatprep.subr.mxu0 0.0
  %399 = vmatpush1.msra.mxu0 0.0
  %400 = vmatprep.subr.mxu0 0.0
  %401 = vmatpush1.msra.mxu0 0.0
  %402 = vmatprep.subr.mxu0 0.0
  %403 = vmatpush1.msra.mxu0 0.0
  %404 = vmatprep.subr.mxu0 0.0
  %405 = vmatpush1.msra.mxu0 0.0
  %406 = vmatprep.subr.mxu0 0.0
  %407 = vmatpush1.msra.mxu0 0.0
  %408 = vmatprep.subr.mxu0 0.0
  %409 = vmatpush1.msra.mxu0 0.0
  %410 = vmatprep.subr.mxu0 0.0
  %411 = vmatpush1.msra.mxu0 0.0
  %412 = vmatprep.mubr.f32.mxu0 0.0
  %413 = vmatmul.mubr.f32.gmra.mrb[0].mxu0 %v331
  %v414 = vpop.f32.mrb[0].mxu0
  %v415 = vadd.f32 0.0, %v414
  %v416 = vpop.f32.mrb[0].mxu0
  %417 = vmatprep.mubr.f32.mxu0 0.0
  %418 = vmatmul.mubr.f32.gmra.mrb[0].mxu0 %v334
  %v419 = vpop.f32.mrb[0].mxu0
  %v420 = vadd.f32 0.0, %v419
  %v421 = vpop.f32.mrb[0].mxu0
  %422 = vmatprep.mubr.f32.mxu0 0.0
  %423 = vmatmul.mubr.f32.gmra.mrb[0].mxu0 %v337
  %v424 = vpop.f32.mrb[0].mxu0
  %v425 = vadd.f32 0.0, %v424
  %v426 = vpop.f32.mrb[0].mxu0
  %427 = vmatprep.mubr.f32.mxu0 0.0
  %428 = vmatmul.mubr.f32.gmra.mrb[0].mxu0 %v340
  %v429 = vpop.f32.mrb[0].mxu0
  %v430 = vadd.f32 0.0, %v429
  %v431 = vpop.f32.mrb[0].mxu0
  %432 = vmatprep.mubr.f32.mxu0 0.0
  %433 = vmatmul.mubr.f32.gmra.mrb[0].mxu0 %v343
  %v434 = vpop.f32.mrb[0].mxu0
  %v435 = vadd.f32 0.0, %v434
  %v436 = vpop.f32.mrb[0].mxu0
  %437 = vmatprep.mubr.f32.mxu0 0.0
  %438 = vmatmul.mubr.f32.gmra.mrb[0].mxu0 %v346
  %v439 = vpop.f32.mrb[0].mxu0
  %v440 = vadd.f32 0.0, %v439
  %v441 = vpop.f32.mrb[0].mxu0
  %442 = vdwg.mxu0
  %v443 = vsub.f32 %v318, %v415
  %v444 = vsub.f32 %v319, %v420
  %v445 = vsub.f32 %v320, %v425
  %v446 = vsub.f32 %v321, %v430
  %v447 = vsub.f32 %v322, %v435
  %v448 = vsub.f32 %v323, %v440
  %v449 = vld [vmem:[%s7] sm:$0xff]
  %v450 = vld [vmem:[%s7 + $0x8] sm:$0xff]
  %v451 = vld [vmem:[%s7 + $0x10] sm:$0xff]
  %v452 = vld [vmem:[%s7 + $0x18] sm:$0xff]
  %v453 = vld [vmem:[%s7 + $0x20] sm:$0xff]
  %v454 = vld [vmem:[%s7 + $0x28] sm:$0xff]
  %v455 = vld [vmem:[%s7 + $0x30] sm:$0xff]
  %v456 = vld [vmem:[%s7 + $0x38] sm:$0xff]
  %v457 = vld [vmem:[%s7 + $0x40] sm:$0xff]
  %v458 = vld [vmem:[%s7 + $0x48] sm:$0xff]
  %v459 = vld [vmem:[%s7 + $0x50] sm:$0xff]
  %v460 = vld [vmem:[%s7 + $0x58] sm:$0xff]
  %v461 = vld [vmem:[%s7 + $0x60] sm:$0xff]
  %v462 = vld [vmem:[%s7 + $0x68] sm:$0xff]
  %v463 = vld [vmem:[%s7 + $0x70] sm:$0xff]
  %v464 = vld [vmem:[%s7 + $0x78] sm:$0xff]
  %465 = vmatprep.subr.mxu0 0.0
  %466 = vmatpush1.msra.mxu0 %v449
  %467 = vmatprep.subr.mxu0 0.0
  %468 = vmatpush1.msra.mxu0 %v450
  %469 = vmatprep.subr.mxu0 0.0
  %470 = vmatpush1.msra.mxu0 %v451
  %471 = vmatprep.subr.mxu0 0.0
  %472 = vmatpush1.msra.mxu0 %v452
  %473 = vmatprep.subr.mxu0 0.0
  %474 = vmatpush1.msra.mxu0 %v453
  %475 = vmatprep.subr.mxu0 0.0
  %476 = vmatpush1.msra.mxu0 %v454
  %477 = vmatprep.subr.mxu0 0.0
  %478 = vmatpush1.msra.mxu0 %v455
  %479 = vmatprep.subr.mxu0 0.0
  %480 = vmatpush1.msra.mxu0 %v456
  %481 = vmatprep.subr.mxu0 0.0
  %482 = vmatpush1.msra.mxu0 %v457
  %483 = vmatprep.subr.mxu0 0.0
  %484 = vmatpush1.msra.mxu0 %v458
  %485 = vmatprep.subr.mxu0 0.0
  %486 = vmatpush1.msra.mxu0 %v459
  %487 = vmatprep.subr.mxu0 0.0
  %488 = vmatpush1.msra.mxu0 %v460
  %489 = vmatprep.subr.mxu0 0.0
  %490 = vmatpush1.msra.mxu0 %v461
  %491 = vmatprep.subr.mxu0 0.0
  %492 = vmatpush1.msra.mxu0 %v462
  %493 = vmatprep.subr.mxu0 0.0
  %494 = vmatpush1.msra.mxu0 %v463
  %495 = vmatprep.subr.mxu0 0.0
  %496 = vmatpush1.msra.mxu0 %v464
  %497 = vmatprep.subr.mxu0 0.0
  %498 = vmatpush1.msra.mxu0 0.0
  %499 = vmatprep.subr.mxu0 0.0
  %500 = vmatpush1.msra.mxu0 0.0
  %501 = vmatprep.subr.mxu0 0.0
  %502 = vmatpush1.msra.mxu0 0.0
  %503 = vmatprep.subr.mxu0 0.0
  %504 = vmatpush1.msra.mxu0 0.0
  %505 = vmatprep.subr.mxu0 0.0
  %506 = vmatpush1.msra.mxu0 0.0
  %507 = vmatprep.subr.mxu0 0.0
  %508 = vmatpush1.msra.mxu0 0.0
  %509 = vmatprep.subr.mxu0 0.0
  %510 = vmatpush1.msra.mxu0 0.0
  %511 = vmatprep.subr.mxu0 0.0
  %512 = vmatpush1.msra.mxu0 0.0
  %513 = vmatprep.subr.mxu0 0.0
  %514 = vmatpush1.msra.mxu0 0.0
  %515 = vmatprep.subr.mxu0 0.0
  %516 = vmatpush1.msra.mxu0 0.0
  %517 = vmatprep.subr.mxu0 0.0
  %518 = vmatpush1.msra.mxu0 0.0
  %519 = vmatprep.subr.mxu0 0.0
  %520 = vmatpush1.msra.mxu0 0.0
  %521 = vmatprep.subr.mxu0 0.0
  %522 = vmatpush1.msra.mxu0 0.0
  %523 = vmatprep.subr.mxu0 0.0
  %524 = vmatpush1.msra.mxu0 0.0
  %525 = vmatprep.subr.mxu0 0.0
  %526 = vmatpush1.msra.mxu0 0.0
  %527 = vmatprep.subr.mxu0 0.0
  %528 = vmatpush1.msra.mxu0 0.0
  %529 = vmatprep.mubr.f32.mxu0 0.0
  %530 = vmatmul.mubr.f32.gmra.mrb[0].mxu0 %v443
  %v531 = vpop.f32.mrb[0].mxu0
  %v532 = vadd.f32 0.0, %v531
  %v533 = vpop.f32.mrb[0].mxu0
  %534 = vmatprep.mubr.f32.mxu0 0.0
  %535 = vmatmul.mubr.f32.gmra.mrb[0].mxu0 %v444
  %v536 = vpop.f32.mrb[0].mxu0
  %v537 = vadd.f32 0.0, %v536
  %v538 = vpop.f32.mrb[0].mxu0
  %539 = vmatprep.mubr.f32.mxu0 0.0
  %540 = vmatmul.mubr.f32.gmra.mrb[0].mxu0 %v445
  %v541 = vpop.f32.mrb[0].mxu0
  %v542 = vadd.f32 0.0, %v541
  %v543 = vpop.f32.mrb[0].mxu0
  %544 = vmatprep.mubr.f32.mxu0 0.0
  %545 = vmatmul.mubr.f32.gmra.mrb[0].mxu0 %v446
  %v546 = vpop.f32.mrb[0].mxu0
  %v547 = vadd.f32 0.0, %v546
  %v548 = vpop.f32.mrb[0].mxu0
  %549 = vmatprep.mubr.f32.mxu0 0.0
  %550 = vmatmul.mubr.f32.gmra.mrb[0].mxu0 %v447
  %v551 = vpop.f32.mrb[0].mxu0
  %v552 = vadd.f32 0.0, %v551
  %v553 = vpop.f32.mrb[0].mxu0
  %554 = vmatprep.mubr.f32.mxu0 0.0
  %555 = vmatmul.mubr.f32.gmra.mrb[0].mxu0 %v448
  %v556 = vpop.f32.mrb[0].mxu0
  %v557 = vadd.f32 0.0, %v556
  %v558 = vpop.f32.mrb[0].mxu0
  %559 = vdwg.mxu0
  %v560 = vmul.f32 %v532, 0.70710677
  %v561 = vmul.f32 %v537, 0.70710677
  %v562 = vmul.f32 %v542, 0.70710677
  %v563 = vmul.f32 %v547, 0.70710677
  %v564 = vmul.f32 %v552, 0.70710677
  %v565 = vmul.f32 %v557, 0.70710677
  %v566 = vand.u32 2147483647, %v560
  %v567 = vand.u32 2147483647, %v561
  %v568 = vand.u32 2147483647, %v562
  %v569 = vand.u32 2147483647, %v563
  %v570 = vand.u32 2147483647, %v564
  %v571 = vand.u32 2147483647, %v565
  %v572 = vmul.f32 %v566, 0.3275911
  %v573 = vmul.f32 %v567, 0.3275911
  %v574 = vmul.f32 %v568, 0.3275911
  %v575 = vmul.f32 %v569, 0.3275911
  %v576 = vmul.f32 %v570, 0.3275911
  %v577 = vmul.f32 %v571, 0.3275911
  %v578 = vadd.f32 %v572, 1.0
  %v579 = vadd.f32 %v573, 1.0
  %v580 = vadd.f32 %v574, 1.0
  %v581 = vadd.f32 %v575, 1.0
  %v582 = vadd.f32 %v576, 1.0
  %v583 = vadd.f32 %v577, 1.0
  %v584 = vrcp.pop %v578
  %v585 = vmul.f32 1.0, %v584
  %v586 = vrcp.pop %v579
  %v587 = vmul.f32 1.0, %v586
  %v588 = vrcp.pop %v580
  %v589 = vmul.f32 1.0, %v588
  %v590 = vrcp.pop %v581
  %v591 = vmul.f32 1.0, %v590
  %v592 = vrcp.pop %v582
  %v593 = vmul.f32 1.0, %v592
  %v594 = vrcp.pop %v583
  %v595 = vmul.f32 1.0, %v594
  %v596 = vmul.f32 %v585, 1.0614054
  %v597 = vmul.f32 %v587, 1.0614054
  %v598 = vmul.f32 %v589, 1.0614054
  %v599 = vmul.f32 %v591, 1.0614054
  %v600 = vmul.f32 %v593, 1.0614054
  %v601 = vmul.f32 %v595, 1.0614054
  %v602 = vadd.f32 %v596, -1.4531521
  %v603 = vadd.f32 %v597, -1.4531521
  %v604 = vadd.f32 %v598, -1.4531521
  %v605 = vadd.f32 %v599, -1.4531521
  %v606 = vadd.f32 %v600, -1.4531521
  %v607 = vadd.f32 %v601, -1.4531521
  %v608 = vmul.f32 %v602, %v585
  %v609 = vmul.f32 %v603, %v587
  %v610 = vmul.f32 %v604, %v589
  %v611 = vmul.f32 %v605, %v591
  %v612 = vmul.f32 %v606, %v593
  %v613 = vmul.f32 %v607, %v595
  %v614 = vadd.f32 %v608, 1.4214138
  %v615 = vadd.f32 %v609, 1.4214138
  %v616 = vadd.f32 %v610, 1.4214138
  %v617 = vadd.f32 %v611, 1.4214138
  %v618 = vadd.f32 %v612, 1.4214138
  %v619 = vadd.f32 %v613, 1.4214138
  %v620 = vmul.f32 %v614, %v585
  %v621 = vmul.f32 %v615, %v587
  %v622 = vmul.f32 %v616, %v589
  %v623 = vmul.f32 %v617, %v591
  %v624 = vmul.f32 %v618, %v593
  %v625 = vmul.f32 %v619, %v595
  %v626 = vadd.f32 %v620, -0.28449672
  %v627 = vadd.f32 %v621, -0.28449672
  %v628 = vadd.f32 %v622, -0.28449672
  %v629 = vadd.f32 %v623, -0.28449672
  %v630 = vadd.f32 %v624, -0.28449672
  %v631 = vadd.f32 %v625, -0.28449672
  %v632 = vmul.f32 %v626, %v585
  %v633 = vmul.f32 %v627, %v587
  %v634 = vmul.f32 %v628, %v589
  %v635 = vmul.f32 %v629, %v591
  %v636 = vmul.f32 %v630, %v593
  %v637 = vmul.f32 %v631, %v595
  %v638 = vadd.f32 %v632, 0.2548296
  %v639 = vadd.f32 %v633, 0.2548296
  %v640 = vadd.f32 %v634, 0.2548296
  %v641 = vadd.f32 %v635, 0.2548296
  %v642 = vadd.f32 %v636, 0.2548296
  %v643 = vadd.f32 %v637, 0.2548296
  %v644 = vmul.f32 %v638, %v585
  %v645 = vmul.f32 %v639, %v587
  %v646 = vmul.f32 %v640, %v589
  %v647 = vmul.f32 %v641, %v591
  %v648 = vmul.f32 %v642, %v593
  %v649 = vmul.f32 %v643, %v595
  %v650 = vsub.f32 0.0, %v566
  %v651 = vsub.f32 0.0, %v567
  %v652 = vsub.f32 0.0, %v568
  %v653 = vsub.f32 0.0, %v569
  %v654 = vsub.f32 0.0, %v570
  %v655 = vsub.f32 0.0, %v571
  %v656 = vmul.f32 %v650, %v566
  %v657 = vmul.f32 %v651, %v567
  %v658 = vmul.f32 %v652, %v568
  %v659 = vmul.f32 %v653, %v569
  %v660 = vmul.f32 %v654, %v570
  %v661 = vmul.f32 %v655, %v571
  %v662 = vmul.f32 %v656, 1.442695
  %v663 = vpow.pop %v662
  %v664 = vmul.f32 %v657, 1.442695
  %v665 = vpow.pop %v664
  %v666 = vmul.f32 %v658, 1.442695
  %v667 = vpow.pop %v666
  %v668 = vmul.f32 %v659, 1.442695
  %v669 = vpow.pop %v668
  %v670 = vmul.f32 %v660, 1.442695
  %v671 = vpow.pop %v670
  %v672 = vmul.f32 %v661, 1.442695
  %v673 = vpow.pop %v672
  %v674 = vmul.f32 %v644, %v663
  %v675 = vmul.f32 %v645, %v665
  %v676 = vmul.f32 %v646, %v667
  %v677 = vmul.f32 %v647, %v669
  %v678 = vmul.f32 %v648, %v671
  %v679 = vmul.f32 %v649, %v673
  %v680 = vsub.f32 1.0, %v674
  %v681 = vsub.f32 1.0, %v675
  %v682 = vsub.f32 1.0, %v676
  %v683 = vsub.f32 1.0, %v677
  %v684 = vsub.f32 1.0, %v678
  %v685 = vsub.f32 1.0, %v679
  %vm686 = vcmp.ge.f32.partialorder %v560, 0.0
  %vm687 = vcmp.ge.f32.partialorder %v561, 0.0
  %vm688 = vcmp.ge.f32.partialorder %v562, 0.0
  %vm689 = vcmp.ge.f32.partialorder %v563, 0.0
  %vm690 = vcmp.ge.f32.partialorder %v564, 0.0
  %vm691 = vcmp.ge.f32.partialorder %v565, 0.0
  %v692 = vsub.f32 0.0, %v680
  %v693 = vsub.f32 0.0, %v681
  %v694 = vsub.f32 0.0, %v682
  %v695 = vsub.f32 0.0, %v683
  %v696 = vsub.f32 0.0, %v684
  %v697 = vsub.f32 0.0, %v685
  %v698 = vsel %vm686, %v680, %v692
  %v699 = vsel %vm687, %v681, %v693
  %v700 = vsel %vm688, %v682, %v694
  %v701 = vsel %vm689, %v683, %v695
  %v702 = vsel %vm690, %v684, %v696
  %v703 = vsel %vm691, %v685, %v697
  %v704 = vmul.f32 %v532, 0.5
  %v705 = vmul.f32 %v537, 0.5
  %v706 = vmul.f32 %v542, 0.5
  %v707 = vmul.f32 %v547, 0.5
  %v708 = vmul.f32 %v552, 0.5
  %v709 = vmul.f32 %v557, 0.5
  %v710 = vadd.f32 %v698, 1.0
  %v711 = vadd.f32 %v699, 1.0
  %v712 = vadd.f32 %v700, 1.0
  %v713 = vadd.f32 %v701, 1.0
  %v714 = vadd.f32 %v702, 1.0
  %v715 = vadd.f32 %v703, 1.0
  %v716 = vmul.f32 %v704, %v710
  %v717 = vmul.f32 %v705, %v711
  %v718 = vmul.f32 %v706, %v712
  %v719 = vmul.f32 %v707, %v713
  %v720 = vmul.f32 %v708, %v714
  %v721 = vmul.f32 %v709, %v715
  %v722 = vld [vmem:[%s8] sm:$0xff]
  %v723 = vld [vmem:[%s8 + $0x8] sm:$0xff]
  %v724 = vld [vmem:[%s8 + $0x10] sm:$0xff]
  %v725 = vld [vmem:[%s8 + $0x18] sm:$0xff]
  %v726 = vld [vmem:[%s8 + $0x20] sm:$0xff]
  %v727 = vld [vmem:[%s8 + $0x28] sm:$0xff]
  %v728 = vld [vmem:[%s8 + $0x30] sm:$0xff]
  %v729 = vld [vmem:[%s8 + $0x38] sm:$0xff]
  %v730 = vld [vmem:[%s8 + $0x40] sm:$0xff]
  %v731 = vld [vmem:[%s8 + $0x48] sm:$0xff]
  %v732 = vld [vmem:[%s8 + $0x50] sm:$0xff]
  %v733 = vld [vmem:[%s8 + $0x58] sm:$0xff]
  %v734 = vld [vmem:[%s8 + $0x60] sm:$0xff]
  %v735 = vld [vmem:[%s8 + $0x68] sm:$0xff]
  %v736 = vld [vmem:[%s8 + $0x70] sm:$0xff]
  %v737 = vld [vmem:[%s8 + $0x78] sm:$0xff]
  %738 = vmatprep.subr.mxu0 0.0
  %739 = vmatpush1.msra.mxu0 %v722
  %740 = vmatprep.subr.mxu0 0.0
  %741 = vmatpush1.msra.mxu0 %v723
  %742 = vmatprep.subr.mxu0 0.0
  %743 = vmatpush1.msra.mxu0 %v724
  %744 = vmatprep.subr.mxu0 0.0
  %745 = vmatpush1.msra.mxu0 %v725
  %746 = vmatprep.subr.mxu0 0.0
  %747 = vmatpush1.msra.mxu0 %v726
  %748 = vmatprep.subr.mxu0 0.0
  %749 = vmatpush1.msra.mxu0 %v727
  %750 = vmatprep.subr.mxu0 0.0
  %751 = vmatpush1.msra.mxu0 %v728
  %752 = vmatprep.subr.mxu0 0.0
  %753 = vmatpush1.msra.mxu0 %v729
  %754 = vmatprep.subr.mxu0 0.0
  %755 = vmatpush1.msra.mxu0 %v730
  %756 = vmatprep.subr.mxu0 0.0
  %757 = vmatpush1.msra.mxu0 %v731
  %758 = vmatprep.subr.mxu0 0.0
  %759 = vmatpush1.msra.mxu0 %v732
  %760 = vmatprep.subr.mxu0 0.0
  %761 = vmatpush1.msra.mxu0 %v733
  %762 = vmatprep.subr.mxu0 0.0
  %763 = vmatpush1.msra.mxu0 %v734
  %764 = vmatprep.subr.mxu0 0.0
  %765 = vmatpush1.msra.mxu0 %v735
  %766 = vmatprep.subr.mxu0 0.0
  %767 = vmatpush1.msra.mxu0 %v736
  %768 = vmatprep.subr.mxu0 0.0
  %769 = vmatpush1.msra.mxu0 %v737
  %770 = vmatprep.subr.mxu0 0.0
  %771 = vmatpush1.msra.mxu0 0.0
  %772 = vmatprep.subr.mxu0 0.0
  %773 = vmatpush1.msra.mxu0 0.0
  %774 = vmatprep.subr.mxu0 0.0
  %775 = vmatpush1.msra.mxu0 0.0
  %776 = vmatprep.subr.mxu0 0.0
  %777 = vmatpush1.msra.mxu0 0.0
  %778 = vmatprep.subr.mxu0 0.0
  %779 = vmatpush1.msra.mxu0 0.0
  %780 = vmatprep.subr.mxu0 0.0
  %781 = vmatpush1.msra.mxu0 0.0
  %782 = vmatprep.subr.mxu0 0.0
  %783 = vmatpush1.msra.mxu0 0.0
  %784 = vmatprep.subr.mxu0 0.0
  %785 = vmatpush1.msra.mxu0 0.0
  %786 = vmatprep.subr.mxu0 0.0
  %787 = vmatpush1.msra.mxu0 0.0
  %788 = vmatprep.subr.mxu0 0.0
  %789 = vmatpush1.msra.mxu0 0.0
  %790 = vmatprep.subr.mxu0 0.0
  %791 = vmatpush1.msra.mxu0 0.0
  %792 = vmatprep.subr.mxu0 0.0
  %793 = vmatpush1.msra.mxu0 0.0
  %794 = vmatprep.subr.mxu0 0.0
  %795 = vmatpush1.msra.mxu0 0.0
  %796 = vmatprep.subr.mxu0 0.0
  %797 = vmatpush1.msra.mxu0 0.0
  %798 = vmatprep.subr.mxu0 0.0
  %799 = vmatpush1.msra.mxu0 0.0
  %800 = vmatprep.subr.mxu0 0.0
  %801 = vmatpush1.msra.mxu0 0.0
  %802 = vmatprep.mubr.f32.mxu0 0.0
  %803 = vmatmul.mubr.f32.gmra.mrb[0].mxu0 %v716
  %v804 = vpop.f32.mrb[0].mxu0
  %v805 = vadd.f32 0.0, %v804
  %v806 = vpop.f32.mrb[0].mxu0
  %807 = vmatprep.mubr.f32.mxu0 0.0
  %808 = vmatmul.mubr.f32.gmra.mrb[0].mxu0 %v717
  %v809 = vpop.f32.mrb[0].mxu0
  %v810 = vadd.f32 0.0, %v809
  %v811 = vpop.f32.mrb[0].mxu0
  %812 = vmatprep.mubr.f32.mxu0 0.0
  %813 = vmatmul.mubr.f32.gmra.mrb[0].mxu0 %v718
  %v814 = vpop.f32.mrb[0].mxu0
  %v815 = vadd.f32 0.0, %v814
  %v816 = vpop.f32.mrb[0].mxu0
  %817 = vmatprep.mubr.f32.mxu0 0.0
  %818 = vmatmul.mubr.f32.gmra.mrb[0].mxu0 %v719
  %v819 = vpop.f32.mrb[0].mxu0
  %v820 = vadd.f32 0.0, %v819
  %v821 = vpop.f32.mrb[0].mxu0
  %822 = vmatprep.mubr.f32.mxu0 0.0
  %823 = vmatmul.mubr.f32.gmra.mrb[0].mxu0 %v720
  %v824 = vpop.f32.mrb[0].mxu0
  %v825 = vadd.f32 0.0, %v824
  %v826 = vpop.f32.mrb[0].mxu0
  %827 = vmatprep.mubr.f32.mxu0 0.0
  %828 = vmatmul.mubr.f32.gmra.mrb[0].mxu0 %v721
  %v829 = vpop.f32.mrb[0].mxu0
  %v830 = vadd.f32 0.0, %v829
  %v831 = vpop.f32.mrb[0].mxu0
  %832 = vdwg.mxu0
  %v833 = vadd.f32 %v443, %v805
  %v834 = vadd.f32 %v444, %v810
  %v835 = vadd.f32 %v445, %v815
  %v836 = vadd.f32 %v446, %v820
  %v837 = vadd.f32 %v447, %v825
  %v838 = vadd.f32 %v448, %v830
  %839 = vmatprep.subr.mxu0 0.0
  %840 = vmatpush1.msra.mxu0 %v833
  %841 = vmatprep.subr.mxu0 0.0
  %842 = vmatpush1.msra.mxu0 %v834
  %843 = vmatprep.subr.mxu0 0.0
  %844 = vmatpush1.msra.mxu0 %v835
  %845 = vmatprep.subr.mxu0 0.0
  %846 = vmatpush1.msra.mxu0 %v836
  %847 = vmatprep.subr.mxu0 0.0
  %848 = vmatpush1.msra.mxu0 %v837
  %849 = vmatprep.subr.mxu0 0.0
  %850 = vmatpush1.msra.mxu0 %v838
  %851 = vmatprep.subr.mxu0 0.0
  %852 = vmatpush1.msra.mxu0 0.0
  %853 = vmatprep.subr.mxu0 0.0
  %854 = vmatpush1.msra.mxu0 0.0
  %855 = vmatprep.subr.mxu0 0.0
  %856 = vmatpush1.msra.mxu0 0.0
  %857 = vmatprep.subr.mxu0 0.0
  %858 = vmatpush1.msra.mxu0 0.0
  %859 = vmatprep.subr.mxu0 0.0
  %860 = vmatpush1.msra.mxu0 0.0
  %861 = vmatprep.subr.mxu0 0.0
  %862 = vmatpush1.msra.mxu0 0.0
  %863 = vmatprep.subr.mxu0 0.0
  %864 = vmatpush1.msra.mxu0 0.0
  %865 = vmatprep.subr.mxu0 0.0
  %866 = vmatpush1.msra.mxu0 0.0
  %867 = vmatprep.subr.mxu0 0.0
  %868 = vmatpush1.msra.mxu0 0.0
  %869 = vmatprep.subr.mxu0 0.0
  %870 = vmatpush1.msra.mxu0 0.0
  %871 = vmatprep.subr.mxu0 0.0
  %872 = vmatpush1.msra.mxu0 0.0
  %873 = vmatprep.subr.mxu0 0.0
  %874 = vmatpush1.msra.mxu0 0.0
  %875 = vmatprep.subr.mxu0 0.0
  %876 = vmatpush1.msra.mxu0 0.0
  %877 = vmatprep.subr.mxu0 0.0
  %878 = vmatpush1.msra.mxu0 0.0
  %879 = vmatprep.subr.mxu0 0.0
  %880 = vmatpush1.msra.mxu0 0.0
  %881 = vmatprep.subr.mxu0 0.0
  %882 = vmatpush1.msra.mxu0 0.0
  %883 = vmatprep.subr.mxu0 0.0
  %884 = vmatpush1.msra.mxu0 0.0
  %885 = vmatprep.subr.mxu0 0.0
  %886 = vmatpush1.msra.mxu0 0.0
  %887 = vmatprep.subr.mxu0 0.0
  %888 = vmatpush1.msra.mxu0 0.0
  %889 = vmatprep.subr.mxu0 0.0
  %890 = vmatpush1.msra.mxu0 0.0
  %891 = vmatprep.subr.mxu0 0.0
  %892 = vmatpush1.msra.mxu0 0.0
  %893 = vmatprep.subr.mxu0 0.0
  %894 = vmatpush1.msra.mxu0 0.0
  %895 = vmatprep.subr.mxu0 0.0
  %896 = vmatpush1.msra.mxu0 0.0
  %897 = vmatprep.subr.mxu0 0.0
  %898 = vmatpush1.msra.mxu0 0.0
  %899 = vmatprep.subr.mxu0 0.0
  %900 = vmatpush1.msra.mxu0 0.0
  %901 = vmatprep.subr.mxu0 0.0
  %902 = vmatpush1.msra.mxu0 0.0
  %903 = vmatprep.mubr.f32.mxu0 0.0
  %904 = vmatmul.mubr.f32.gmra.mrb[0].mxu0 %v331
  %v905 = vpop.f32.mrb[0].mxu0
  %v906 = vadd.f32 0.0, %v905
  %v907 = vpop.f32.mrb[0].mxu0
  %908 = vmatprep.mubr.f32.mxu0 0.0
  %909 = vmatmul.mubr.f32.gmra.mrb[0].mxu0 %v334
  %v910 = vpop.f32.mrb[0].mxu0
  %v911 = vadd.f32 0.0, %v910
  %v912 = vpop.f32.mrb[0].mxu0
  %913 = vmatprep.mubr.f32.mxu0 0.0
  %914 = vmatmul.mubr.f32.gmra.mrb[0].mxu0 %v337
  %v915 = vpop.f32.mrb[0].mxu0
  %v916 = vadd.f32 0.0, %v915
  %v917 = vpop.f32.mrb[0].mxu0
  %918 = vmatprep.mubr.f32.mxu0 0.0
  %919 = vmatmul.mubr.f32.gmra.mrb[0].mxu0 %v340
  %v920 = vpop.f32.mrb[0].mxu0
  %v921 = vadd.f32 0.0, %v920
  %v922 = vpop.f32.mrb[0].mxu0
  %923 = vmatprep.mubr.f32.mxu0 0.0
  %924 = vmatmul.mubr.f32.gmra.mrb[0].mxu0 %v343
  %v925 = vpop.f32.mrb[0].mxu0
  %v926 = vadd.f32 0.0, %v925
  %v927 = vpop.f32.mrb[0].mxu0
  %928 = vmatprep.mubr.f32.mxu0 0.0
  %929 = vmatmul.mubr.f32.gmra.mrb[0].mxu0 %v346
  %v930 = vpop.f32.mrb[0].mxu0
  %v931 = vadd.f32 0.0, %v930
  %v932 = vpop.f32.mrb[0].mxu0
  %933 = vdwg.mxu0
  %v934 = vsub.f32 %v833, %v906
  %v935 = vsub.f32 %v834, %v911
  %v936 = vsub.f32 %v835, %v916
  %v937 = vsub.f32 %v836, %v921
  %v938 = vsub.f32 %v837, %v926
  %v939 = vsub.f32 %v838, %v931
  %v940 = vld [vmem:[%s1] sm:$0xff]
  %v941 = vld [vmem:[%s1 + $0x8] sm:$0xff]
  %v942 = vld [vmem:[%s1 + $0x10] sm:$0xff]
  %v943 = vld [vmem:[%s1 + $0x18] sm:$0xff]
  %v944 = vld [vmem:[%s1 + $0x20] sm:$0xff]
  %v945 = vld [vmem:[%s1 + $0x28] sm:$0xff]
  %v946 = vadd.f32 %v940, %v415
  %v947 = vadd.f32 %v941, %v420
  %v948 = vadd.f32 %v942, %v425
  %v949 = vadd.f32 %v943, %v430
  %v950 = vadd.f32 %v944, %v435
  %v951 = vadd.f32 %v945, %v440
  %v952 = vadd.f32 %v946, %v906
  %v953 = vadd.f32 %v947, %v911
  %v954 = vadd.f32 %v948, %v916
  %v955 = vadd.f32 %v949, %v921
  %v956 = vadd.f32 %v950, %v926
  %v957 = vadd.f32 %v951, %v931
  %v958 = vld [vmem:[%s9] sm:$0xff]
  %v959 = vld [vmem:[%s9 + $0x8] sm:$0xff]
  %v960 = vld [vmem:[%s9 + $0x10] sm:$0xff]
  %v961 = vld [vmem:[%s9 + $0x18] sm:$0xff]
  %v962 = vld [vmem:[%s9 + $0x20] sm:$0xff]
  %v963 = vld [vmem:[%s9 + $0x28] sm:$0xff]
  %v965 = vsel %vm86, %v958, 0
  %v968 = vsel %vm86, %v959, 0
  %v971 = vsel %vm86, %v960, 0
  %v974 = vsel %vm86, %v961, 0
  %v977 = vsel %vm86, %v962, 0
  %v980 = vsel %vm86, %v963, 0
  %982 = vmatprep.subr.mxu0 0.0
  %983 = vmatpush1.msra.mxu0 %v952
  %984 = vmatprep.subr.mxu0 0.0
  %985 = vmatpush1.msra.mxu0 %v953
  %986 = vmatprep.subr.mxu0 0.0
  %987 = vmatpush1.msra.mxu0 %v954
  %988 = vmatprep.subr.mxu0 0.0
  %989 = vmatpush1.msra.mxu0 %v955
  %990 = vmatprep.subr.mxu0 0.0
  %991 = vmatpush1.msra.mxu0 %v956
  %992 = vmatprep.subr.mxu0 0.0
  %993 = vmatpush1.msra.mxu0 %v957
  %994 = vmatprep.subr.mxu0 0.0
  %995 = vmatpush1.msra.mxu0 0.0
  %996 = vmatprep.subr.mxu0 0.0
  %997 = vmatpush1.msra.mxu0 0.0
  %998 = vmatprep.subr.mxu0 0.0
  %999 = vmatpush1.msra.mxu0 0.0
  %1000 = vmatprep.subr.mxu0 0.0
  %1001 = vmatpush1.msra.mxu0 0.0
  %1002 = vmatprep.subr.mxu0 0.0
  %1003 = vmatpush1.msra.mxu0 0.0
  %1004 = vmatprep.subr.mxu0 0.0
  %1005 = vmatpush1.msra.mxu0 0.0
  %1006 = vmatprep.subr.mxu0 0.0
  %1007 = vmatpush1.msra.mxu0 0.0
  %1008 = vmatprep.subr.mxu0 0.0
  %1009 = vmatpush1.msra.mxu0 0.0
  %1010 = vmatprep.subr.mxu0 0.0
  %1011 = vmatpush1.msra.mxu0 0.0
  %1012 = vmatprep.subr.mxu0 0.0
  %1013 = vmatpush1.msra.mxu0 0.0
  %1014 = vmatprep.subr.mxu0 0.0
  %1015 = vmatpush1.msra.mxu0 0.0
  %1016 = vmatprep.subr.mxu0 0.0
  %1017 = vmatpush1.msra.mxu0 0.0
  %1018 = vmatprep.subr.mxu0 0.0
  %1019 = vmatpush1.msra.mxu0 0.0
  %1020 = vmatprep.subr.mxu0 0.0
  %1021 = vmatpush1.msra.mxu0 0.0
  %1022 = vmatprep.subr.mxu0 0.0
  %1023 = vmatpush1.msra.mxu0 0.0
  %1024 = vmatprep.subr.mxu0 0.0
  %1025 = vmatpush1.msra.mxu0 0.0
  %1026 = vmatprep.subr.mxu0 0.0
  %1027 = vmatpush1.msra.mxu0 0.0
  %1028 = vmatprep.subr.mxu0 0.0
  %1029 = vmatpush1.msra.mxu0 0.0
  %1030 = vmatprep.subr.mxu0 0.0
  %1031 = vmatpush1.msra.mxu0 0.0
  %1032 = vmatprep.subr.mxu0 0.0
  %1033 = vmatpush1.msra.mxu0 0.0
  %1034 = vmatprep.subr.mxu0 0.0
  %1035 = vmatpush1.msra.mxu0 0.0
  %1036 = vmatprep.subr.mxu0 0.0
  %1037 = vmatpush1.msra.mxu0 0.0
  %1038 = vmatprep.subr.mxu0 0.0
  %1039 = vmatpush1.msra.mxu0 0.0
  %1040 = vmatprep.subr.mxu0 0.0
  %1041 = vmatpush1.msra.mxu0 0.0
  %1042 = vmatprep.subr.mxu0 0.0
  %1043 = vmatpush1.msra.mxu0 0.0
  %1044 = vmatprep.subr.mxu0 0.0
  %1045 = vmatpush1.msra.mxu0 0.0
  %1046 = vmatprep.mubr.f32.mxu0 0.0
  %1047 = vmatmul.mubr.f32.gmra.mrb[0].mxu0 %v965
  %v1048 = vpop.f32.mrb[0].mxu0
  %v1049 = vadd.f32 0.0, %v1048
  %v1050 = vpop.f32.mrb[0].mxu0
  %1051 = vmatprep.mubr.f32.mxu0 0.0
  %1052 = vmatmul.mubr.f32.gmra.mrb[0].mxu0 %v968
  %v1053 = vpop.f32.mrb[0].mxu0
  %v1054 = vadd.f32 0.0, %v1053
  %v1055 = vpop.f32.mrb[0].mxu0
  %1056 = vmatprep.mubr.f32.mxu0 0.0
  %1057 = vmatmul.mubr.f32.gmra.mrb[0].mxu0 %v971
  %v1058 = vpop.f32.mrb[0].mxu0
  %v1059 = vadd.f32 0.0, %v1058
  %v1060 = vpop.f32.mrb[0].mxu0
  %1061 = vmatprep.mubr.f32.mxu0 0.0
  %1062 = vmatmul.mubr.f32.gmra.mrb[0].mxu0 %v974
  %v1063 = vpop.f32.mrb[0].mxu0
  %v1064 = vadd.f32 0.0, %v1063
  %v1065 = vpop.f32.mrb[0].mxu0
  %1066 = vmatprep.mubr.f32.mxu0 0.0
  %1067 = vmatmul.mubr.f32.gmra.mrb[0].mxu0 %v977
  %v1068 = vpop.f32.mrb[0].mxu0
  %v1069 = vadd.f32 0.0, %v1068
  %v1070 = vpop.f32.mrb[0].mxu0
  %1071 = vmatprep.mubr.f32.mxu0 0.0
  %1072 = vmatmul.mubr.f32.gmra.mrb[0].mxu0 %v980
  %v1073 = vpop.f32.mrb[0].mxu0
  %v1074 = vadd.f32 0.0, %v1073
  %v1075 = vpop.f32.mrb[0].mxu0
  %1076 = vdwg.mxu0
  %v1077 = vld [vmem:[%s11] sm:$0xff]
  %v1078 = vld [vmem:[%s11 + $0x8] sm:$0xff]
  %v1079 = vld [vmem:[%s11 + $0x10] sm:$0xff]
  %v1080 = vld [vmem:[%s11 + $0x18] sm:$0xff]
  %v1081 = vld [vmem:[%s11 + $0x20] sm:$0xff]
  %v1082 = vld [vmem:[%s11 + $0x28] sm:$0xff]
  %v1083 = vld [vmem:[%s11 + $0x30] sm:$0xff]
  %v1084 = vld [vmem:[%s11 + $0x38] sm:$0xff]
  %v1085 = vld [vmem:[%s11 + $0x40] sm:$0xff]
  %v1086 = vld [vmem:[%s11 + $0x48] sm:$0xff]
  %v1087 = vld [vmem:[%s11 + $0x50] sm:$0xff]
  %v1088 = vld [vmem:[%s11 + $0x58] sm:$0xff]
  %v1089 = vld [vmem:[%s11 + $0x60] sm:$0xff]
  %v1090 = vld [vmem:[%s11 + $0x68] sm:$0xff]
  %v1091 = vld [vmem:[%s11 + $0x70] sm:$0xff]
  %v1092 = vld [vmem:[%s11 + $0x78] sm:$0xff]
  %v1093 = vld [vmem:[%s12] sm:$0xff]
  %v1094 = vld [vmem:[%s12 + $0x8] sm:$0xff]
  %v1095 = vld [vmem:[%s12 + $0x10] sm:$0xff]
  %v1096 = vld [vmem:[%s12 + $0x18] sm:$0xff]
  %v1097 = vld [vmem:[%s12 + $0x20] sm:$0xff]
  %v1098 = vld [vmem:[%s12 + $0x28] sm:$0xff]
  %v1099 = vld [vmem:[%s12 + $0x30] sm:$0xff]
  %v1100 = vld [vmem:[%s12 + $0x38] sm:$0xff]
  %v1101 = vld [vmem:[%s12 + $0x40] sm:$0xff]
  %v1102 = vld [vmem:[%s12 + $0x48] sm:$0xff]
  %v1103 = vld [vmem:[%s12 + $0x50] sm:$0xff]
  %v1104 = vld [vmem:[%s12 + $0x58] sm:$0xff]
  %v1105 = vld [vmem:[%s12 + $0x60] sm:$0xff]
  %v1106 = vld [vmem:[%s12 + $0x68] sm:$0xff]
  %v1107 = vld [vmem:[%s12 + $0x70] sm:$0xff]
  %v1108 = vld [vmem:[%s12 + $0x78] sm:$0xff]
  %1109 = vmatprep.subr.mxu0 0.0
  %1110 = vmatpush1.msra.mxu0 %v1093
  %1111 = vmatprep.subr.mxu0 0.0
  %1112 = vmatpush1.msra.mxu0 %v1094
  %1113 = vmatprep.subr.mxu0 0.0
  %1114 = vmatpush1.msra.mxu0 %v1095
  %1115 = vmatprep.subr.mxu0 0.0
  %1116 = vmatpush1.msra.mxu0 %v1096
  %1117 = vmatprep.subr.mxu0 0.0
  %1118 = vmatpush1.msra.mxu0 %v1097
  %1119 = vmatprep.subr.mxu0 0.0
  %1120 = vmatpush1.msra.mxu0 %v1098
  %1121 = vmatprep.subr.mxu0 0.0
  %1122 = vmatpush1.msra.mxu0 %v1099
  %1123 = vmatprep.subr.mxu0 0.0
  %1124 = vmatpush1.msra.mxu0 %v1100
  %1125 = vmatprep.subr.mxu0 0.0
  %1126 = vmatpush1.msra.mxu0 %v1101
  %1127 = vmatprep.subr.mxu0 0.0
  %1128 = vmatpush1.msra.mxu0 %v1102
  %1129 = vmatprep.subr.mxu0 0.0
  %1130 = vmatpush1.msra.mxu0 %v1103
  %1131 = vmatprep.subr.mxu0 0.0
  %1132 = vmatpush1.msra.mxu0 %v1104
  %1133 = vmatprep.subr.mxu0 0.0
  %1134 = vmatpush1.msra.mxu0 %v1105
  %1135 = vmatprep.subr.mxu0 0.0
  %1136 = vmatpush1.msra.mxu0 %v1106
  %1137 = vmatprep.subr.mxu0 0.0
  %1138 = vmatpush1.msra.mxu0 %v1107
  %1139 = vmatprep.subr.mxu0 0.0
  %1140 = vmatpush1.msra.mxu0 %v1108
  %1141 = vmatprep.subr.mxu0 0.0
  %1142 = vmatpush1.msra.mxu0 0.0
  %1143 = vmatprep.subr.mxu0 0.0
  %1144 = vmatpush1.msra.mxu0 0.0
  %1145 = vmatprep.subr.mxu0 0.0
  %1146 = vmatpush1.msra.mxu0 0.0
  %1147 = vmatprep.subr.mxu0 0.0
  %1148 = vmatpush1.msra.mxu0 0.0
  %1149 = vmatprep.subr.mxu0 0.0
  %1150 = vmatpush1.msra.mxu0 0.0
  %1151 = vmatprep.subr.mxu0 0.0
  %1152 = vmatpush1.msra.mxu0 0.0
  %1153 = vmatprep.subr.mxu0 0.0
  %1154 = vmatpush1.msra.mxu0 0.0
  %1155 = vmatprep.subr.mxu0 0.0
  %1156 = vmatpush1.msra.mxu0 0.0
  %1157 = vmatprep.subr.mxu0 0.0
  %1158 = vmatpush1.msra.mxu0 0.0
  %1159 = vmatprep.subr.mxu0 0.0
  %1160 = vmatpush1.msra.mxu0 0.0
  %1161 = vmatprep.subr.mxu0 0.0
  %1162 = vmatpush1.msra.mxu0 0.0
  %1163 = vmatprep.subr.mxu0 0.0
  %1164 = vmatpush1.msra.mxu0 0.0
  %1165 = vmatprep.subr.mxu0 0.0
  %1166 = vmatpush1.msra.mxu0 0.0
  %1167 = vmatprep.subr.mxu0 0.0
  %1168 = vmatpush1.msra.mxu0 0.0
  %1169 = vmatprep.subr.mxu0 0.0
  %1170 = vmatpush1.msra.mxu0 0.0
  %1171 = vmatprep.subr.mxu0 0.0
  %1172 = vmatpush1.msra.mxu0 0.0
  %1173 = vmatprep.mubr.f32.mxu0 0.0
  %1174 = vmatmul.mubr.f32.gmra.mrb[0].mxu0 %v952
  %v1175 = vpop.f32.mrb[0].mxu0
  %v1176 = vadd.f32 0.0, %v1175
  %v1177 = vpop.f32.mrb[0].mxu0
  %1178 = vmatprep.mubr.f32.mxu0 0.0
  %1179 = vmatmul.mubr.f32.gmra.mrb[0].mxu0 %v953
  %v1180 = vpop.f32.mrb[0].mxu0
  %v1181 = vadd.f32 0.0, %v1180
  %v1182 = vpop.f32.mrb[0].mxu0
  %1183 = vmatprep.mubr.f32.mxu0 0.0
  %1184 = vmatmul.mubr.f32.gmra.mrb[0].mxu0 %v954
  %v1185 = vpop.f32.mrb[0].mxu0
  %v1186 = vadd.f32 0.0, %v1185
  %v1187 = vpop.f32.mrb[0].mxu0
  %1188 = vmatprep.mubr.f32.mxu0 0.0
  %1189 = vmatmul.mubr.f32.gmra.mrb[0].mxu0 %v955
  %v1190 = vpop.f32.mrb[0].mxu0
  %v1191 = vadd.f32 0.0, %v1190
  %v1192 = vpop.f32.mrb[0].mxu0
  %1193 = vmatprep.mubr.f32.mxu0 0.0
  %1194 = vmatmul.mubr.f32.gmra.mrb[0].mxu0 %v956
  %v1195 = vpop.f32.mrb[0].mxu0
  %v1196 = vadd.f32 0.0, %v1195
  %v1197 = vpop.f32.mrb[0].mxu0
  %1198 = vmatprep.mubr.f32.mxu0 0.0
  %1199 = vmatmul.mubr.f32.gmra.mrb[0].mxu0 %v957
  %v1200 = vpop.f32.mrb[0].mxu0
  %v1201 = vadd.f32 0.0, %v1200
  %v1202 = vpop.f32.mrb[0].mxu0
  %1203 = vdwg.mxu0
  %1204 = vmatprep.subr.mxu0 0.0
  %1205 = vmatpush1.msra.mxu0 %v1077
  %1206 = vmatprep.subr.mxu0 0.0
  %1207 = vmatpush1.msra.mxu0 %v1078
  %1208 = vmatprep.subr.mxu0 0.0
  %1209 = vmatpush1.msra.mxu0 %v1079
  %1210 = vmatprep.subr.mxu0 0.0
  %1211 = vmatpush1.msra.mxu0 %v1080
  %1212 = vmatprep.subr.mxu0 0.0
  %1213 = vmatpush1.msra.mxu0 %v1081
  %1214 = vmatprep.subr.mxu0 0.0
  %1215 = vmatpush1.msra.mxu0 %v1082
  %1216 = vmatprep.subr.mxu0 0.0
  %1217 = vmatpush1.msra.mxu0 %v1083
  %1218 = vmatprep.subr.mxu0 0.0
  %1219 = vmatpush1.msra.mxu0 %v1084
  %1220 = vmatprep.subr.mxu0 0.0
  %1221 = vmatpush1.msra.mxu0 %v1085
  %1222 = vmatprep.subr.mxu0 0.0
  %1223 = vmatpush1.msra.mxu0 %v1086
  %1224 = vmatprep.subr.mxu0 0.0
  %1225 = vmatpush1.msra.mxu0 %v1087
  %1226 = vmatprep.subr.mxu0 0.0
  %1227 = vmatpush1.msra.mxu0 %v1088
  %1228 = vmatprep.subr.mxu0 0.0
  %1229 = vmatpush1.msra.mxu0 %v1089
  %1230 = vmatprep.subr.mxu0 0.0
  %1231 = vmatpush1.msra.mxu0 %v1090
  %1232 = vmatprep.subr.mxu0 0.0
  %1233 = vmatpush1.msra.mxu0 %v1091
  %1234 = vmatprep.subr.mxu0 0.0
  %1235 = vmatpush1.msra.mxu0 %v1092
  %1236 = vmatprep.subr.mxu0 0.0
  %1237 = vmatpush1.msra.mxu0 0.0
  %1238 = vmatprep.subr.mxu0 0.0
  %1239 = vmatpush1.msra.mxu0 0.0
  %1240 = vmatprep.subr.mxu0 0.0
  %1241 = vmatpush1.msra.mxu0 0.0
  %1242 = vmatprep.subr.mxu0 0.0
  %1243 = vmatpush1.msra.mxu0 0.0
  %1244 = vmatprep.subr.mxu0 0.0
  %1245 = vmatpush1.msra.mxu0 0.0
  %1246 = vmatprep.subr.mxu0 0.0
  %1247 = vmatpush1.msra.mxu0 0.0
  %1248 = vmatprep.subr.mxu0 0.0
  %1249 = vmatpush1.msra.mxu0 0.0
  %1250 = vmatprep.subr.mxu0 0.0
  %1251 = vmatpush1.msra.mxu0 0.0
  %1252 = vmatprep.subr.mxu0 0.0
  %1253 = vmatpush1.msra.mxu0 0.0
  %1254 = vmatprep.subr.mxu0 0.0
  %1255 = vmatpush1.msra.mxu0 0.0
  %1256 = vmatprep.subr.mxu0 0.0
  %1257 = vmatpush1.msra.mxu0 0.0
  %1258 = vmatprep.subr.mxu0 0.0
  %1259 = vmatpush1.msra.mxu0 0.0
  %1260 = vmatprep.subr.mxu0 0.0
  %1261 = vmatpush1.msra.mxu0 0.0
  %1262 = vmatprep.subr.mxu0 0.0
  %1263 = vmatpush1.msra.mxu0 0.0
  %1264 = vmatprep.subr.mxu0 0.0
  %1265 = vmatpush1.msra.mxu0 0.0
  %1266 = vmatprep.subr.mxu0 0.0
  %1267 = vmatpush1.msra.mxu0 0.0
  %1268 = vmatprep.mubr.f32.mxu0 0.0
  %1269 = vmatmul.mubr.f32.gmra.mrb[0].mxu0 %v1049
  %v1270 = vpop.f32.mrb[0].mxu0
  %v1271 = vadd.f32 %v1176, %v1270
  %v1272 = vpop.f32.mrb[0].mxu0
  %1273 = vmatprep.mubr.f32.mxu0 0.0
  %1274 = vmatmul.mubr.f32.gmra.mrb[0].mxu0 %v1054
  %v1275 = vpop.f32.mrb[0].mxu0
  %v1276 = vadd.f32 %v1181, %v1275
  %v1277 = vpop.f32.mrb[0].mxu0
  %1278 = vmatprep.mubr.f32.mxu0 0.0
  %1279 = vmatmul.mubr.f32.gmra.mrb[0].mxu0 %v1059
  %v1280 = vpop.f32.mrb[0].mxu0
  %v1281 = vadd.f32 %v1186, %v1280
  %v1282 = vpop.f32.mrb[0].mxu0
  %1283 = vmatprep.mubr.f32.mxu0 0.0
  %1284 = vmatmul.mubr.f32.gmra.mrb[0].mxu0 %v1064
  %v1285 = vpop.f32.mrb[0].mxu0
  %v1286 = vadd.f32 %v1191, %v1285
  %v1287 = vpop.f32.mrb[0].mxu0
  %1288 = vmatprep.mubr.f32.mxu0 0.0
  %1289 = vmatmul.mubr.f32.gmra.mrb[0].mxu0 %v1069
  %v1290 = vpop.f32.mrb[0].mxu0
  %v1291 = vadd.f32 %v1196, %v1290
  %v1292 = vpop.f32.mrb[0].mxu0
  %1293 = vmatprep.mubr.f32.mxu0 0.0
  %1294 = vmatmul.mubr.f32.gmra.mrb[0].mxu0 %v1074
  %v1295 = vpop.f32.mrb[0].mxu0
  %v1296 = vadd.f32 %v1201, %v1295
  %v1297 = vpop.f32.mrb[0].mxu0
  %1298 = vdwg.mxu0
  %v1299 = vld [vmem:[%s10] sm:$0xff]
  %v1300 = vld [vmem:[%s10 + $0x8] sm:$0xff]
  %v1301 = vld [vmem:[%s10 + $0x10] sm:$0xff]
  %v1302 = vld [vmem:[%s10 + $0x18] sm:$0xff]
  %v1303 = vld [vmem:[%s10 + $0x20] sm:$0xff]
  %v1304 = vld [vmem:[%s10 + $0x28] sm:$0xff]
  %v1306 = vsel %vm86, %v1299, 0
  %v1309 = vsel %vm86, %v1300, 0
  %v1312 = vsel %vm86, %v1301, 0
  %v1315 = vsel %vm86, %v1302, 0
  %v1318 = vsel %vm86, %v1303, 0
  %v1321 = vsel %vm86, %v1304, 0
  %1323 = vmatprep.subr.mxu0 0.0
  %1324 = vmatpush1.msra.mxu0 %v952
  %1325 = vmatprep.subr.mxu0 0.0
  %1326 = vmatpush1.msra.mxu0 %v953
  %1327 = vmatprep.subr.mxu0 0.0
  %1328 = vmatpush1.msra.mxu0 %v954
  %1329 = vmatprep.subr.mxu0 0.0
  %1330 = vmatpush1.msra.mxu0 %v955
  %1331 = vmatprep.subr.mxu0 0.0
  %1332 = vmatpush1.msra.mxu0 %v956
  %1333 = vmatprep.subr.mxu0 0.0
  %1334 = vmatpush1.msra.mxu0 %v957
  %1335 = vmatprep.subr.mxu0 0.0
  %1336 = vmatpush1.msra.mxu0 0.0
  %1337 = vmatprep.subr.mxu0 0.0
  %1338 = vmatpush1.msra.mxu0 0.0
  %1339 = vmatprep.subr.mxu0 0.0
  %1340 = vmatpush1.msra.mxu0 0.0
  %1341 = vmatprep.subr.mxu0 0.0
  %1342 = vmatpush1.msra.mxu0 0.0
  %1343 = vmatprep.subr.mxu0 0.0
  %1344 = vmatpush1.msra.mxu0 0.0
  %1345 = vmatprep.subr.mxu0 0.0
  %1346 = vmatpush1.msra.mxu0 0.0
  %1347 = vmatprep.subr.mxu0 0.0
  %1348 = vmatpush1.msra.mxu0 0.0
  %1349 = vmatprep.subr.mxu0 0.0
  %1350 = vmatpush1.msra.mxu0 0.0
  %1351 = vmatprep.subr.mxu0 0.0
  %1352 = vmatpush1.msra.mxu0 0.0
  %1353 = vmatprep.subr.mxu0 0.0
  %1354 = vmatpush1.msra.mxu0 0.0
  %1355 = vmatprep.subr.mxu0 0.0
  %1356 = vmatpush1.msra.mxu0 0.0
  %1357 = vmatprep.subr.mxu0 0.0
  %1358 = vmatpush1.msra.mxu0 0.0
  %1359 = vmatprep.subr.mxu0 0.0
  %1360 = vmatpush1.msra.mxu0 0.0
  %1361 = vmatprep.subr.mxu0 0.0
  %1362 = vmatpush1.msra.mxu0 0.0
  %1363 = vmatprep.subr.mxu0 0.0
  %1364 = vmatpush1.msra.mxu0 0.0
  %1365 = vmatprep.subr.mxu0 0.0
  %1366 = vmatpush1.msra.mxu0 0.0
  %1367 = vmatprep.subr.mxu0 0.0
  %1368 = vmatpush1.msra.mxu0 0.0
  %1369 = vmatprep.subr.mxu0 0.0
  %1370 = vmatpush1.msra.mxu0 0.0
  %1371 = vmatprep.subr.mxu0 0.0
  %1372 = vmatpush1.msra.mxu0 0.0
  %1373 = vmatprep.subr.mxu0 0.0
  %1374 = vmatpush1.msra.mxu0 0.0
  %1375 = vmatprep.subr.mxu0 0.0
  %1376 = vmatpush1.msra.mxu0 0.0
  %1377 = vmatprep.subr.mxu0 0.0
  %1378 = vmatpush1.msra.mxu0 0.0
  %1379 = vmatprep.subr.mxu0 0.0
  %1380 = vmatpush1.msra.mxu0 0.0
  %1381 = vmatprep.subr.mxu0 0.0
  %1382 = vmatpush1.msra.mxu0 0.0
  %1383 = vmatprep.subr.mxu0 0.0
  %1384 = vmatpush1.msra.mxu0 0.0
  %1385 = vmatprep.subr.mxu0 0.0
  %1386 = vmatpush1.msra.mxu0 0.0
  %1387 = vmatprep.mubr.f32.mxu0 0.0
  %1388 = vmatmul.mubr.f32.gmra.mrb[0].mxu0 %v1306
  %v1389 = vpop.f32.mrb[0].mxu0
  %v1390 = vadd.f32 0.0, %v1389
  %v1391 = vpop.f32.mrb[0].mxu0
  %1392 = vmatprep.mubr.f32.mxu0 0.0
  %1393 = vmatmul.mubr.f32.gmra.mrb[0].mxu0 %v1309
  %v1394 = vpop.f32.mrb[0].mxu0
  %v1395 = vadd.f32 0.0, %v1394
  %v1396 = vpop.f32.mrb[0].mxu0
  %1397 = vmatprep.mubr.f32.mxu0 0.0
  %1398 = vmatmul.mubr.f32.gmra.mrb[0].mxu0 %v1312
  %v1399 = vpop.f32.mrb[0].mxu0
  %v1400 = vadd.f32 0.0, %v1399
  %v1401 = vpop.f32.mrb[0].mxu0
  %1402 = vmatprep.mubr.f32.mxu0 0.0
  %1403 = vmatmul.mubr.f32.gmra.mrb[0].mxu0 %v1315
  %v1404 = vpop.f32.mrb[0].mxu0
  %v1405 = vadd.f32 0.0, %v1404
  %v1406 = vpop.f32.mrb[0].mxu0
  %1407 = vmatprep.mubr.f32.mxu0 0.0
  %1408 = vmatmul.mubr.f32.gmra.mrb[0].mxu0 %v1318
  %v1409 = vpop.f32.mrb[0].mxu0
  %v1410 = vadd.f32 0.0, %v1409
  %v1411 = vpop.f32.mrb[0].mxu0
  %1412 = vmatprep.mubr.f32.mxu0 0.0
  %1413 = vmatmul.mubr.f32.gmra.mrb[0].mxu0 %v1321
  %v1414 = vpop.f32.mrb[0].mxu0
  %v1415 = vadd.f32 0.0, %v1414
  %v1416 = vpop.f32.mrb[0].mxu0
  %1417 = vdwg.mxu0
  %v1418 = vld [vmem:[%s13] sm:$0xff]
  %v1419 = vld [vmem:[%s13 + $0x8] sm:$0xff]
  %v1420 = vld [vmem:[%s13 + $0x10] sm:$0xff]
  %v1421 = vld [vmem:[%s13 + $0x18] sm:$0xff]
  %v1422 = vld [vmem:[%s13 + $0x20] sm:$0xff]
  %v1423 = vld [vmem:[%s13 + $0x28] sm:$0xff]
  %v1424 = vld [vmem:[%s13 + $0x30] sm:$0xff]
  %v1425 = vld [vmem:[%s13 + $0x38] sm:$0xff]
  %v1426 = vld [vmem:[%s13 + $0x40] sm:$0xff]
  %v1427 = vld [vmem:[%s13 + $0x48] sm:$0xff]
  %v1428 = vld [vmem:[%s13 + $0x50] sm:$0xff]
  %v1429 = vld [vmem:[%s13 + $0x58] sm:$0xff]
  %v1430 = vld [vmem:[%s13 + $0x60] sm:$0xff]
  %v1431 = vld [vmem:[%s13 + $0x68] sm:$0xff]
  %v1432 = vld [vmem:[%s13 + $0x70] sm:$0xff]
  %v1433 = vld [vmem:[%s13 + $0x78] sm:$0xff]
  %1434 = vmatprep.subr.mxu0 0.0
  %1435 = vmatpush1.msra.mxu0 %v1418
  %1436 = vmatprep.subr.mxu0 0.0
  %1437 = vmatpush1.msra.mxu0 %v1419
  %1438 = vmatprep.subr.mxu0 0.0
  %1439 = vmatpush1.msra.mxu0 %v1420
  %1440 = vmatprep.subr.mxu0 0.0
  %1441 = vmatpush1.msra.mxu0 %v1421
  %1442 = vmatprep.subr.mxu0 0.0
  %1443 = vmatpush1.msra.mxu0 %v1422
  %1444 = vmatprep.subr.mxu0 0.0
  %1445 = vmatpush1.msra.mxu0 %v1423
  %1446 = vmatprep.subr.mxu0 0.0
  %1447 = vmatpush1.msra.mxu0 %v1424
  %1448 = vmatprep.subr.mxu0 0.0
  %1449 = vmatpush1.msra.mxu0 %v1425
  %1450 = vmatprep.subr.mxu0 0.0
  %1451 = vmatpush1.msra.mxu0 %v1426
  %1452 = vmatprep.subr.mxu0 0.0
  %1453 = vmatpush1.msra.mxu0 %v1427
  %1454 = vmatprep.subr.mxu0 0.0
  %1455 = vmatpush1.msra.mxu0 %v1428
  %1456 = vmatprep.subr.mxu0 0.0
  %1457 = vmatpush1.msra.mxu0 %v1429
  %1458 = vmatprep.subr.mxu0 0.0
  %1459 = vmatpush1.msra.mxu0 %v1430
  %1460 = vmatprep.subr.mxu0 0.0
  %1461 = vmatpush1.msra.mxu0 %v1431
  %1462 = vmatprep.subr.mxu0 0.0
  %1463 = vmatpush1.msra.mxu0 %v1432
  %1464 = vmatprep.subr.mxu0 0.0
  %1465 = vmatpush1.msra.mxu0 %v1433
  %1466 = vmatprep.subr.mxu0 0.0
  %1467 = vmatpush1.msra.mxu0 0.0
  %1468 = vmatprep.subr.mxu0 0.0
  %1469 = vmatpush1.msra.mxu0 0.0
  %1470 = vmatprep.subr.mxu0 0.0
  %1471 = vmatpush1.msra.mxu0 0.0
  %1472 = vmatprep.subr.mxu0 0.0
  %1473 = vmatpush1.msra.mxu0 0.0
  %1474 = vmatprep.subr.mxu0 0.0
  %1475 = vmatpush1.msra.mxu0 0.0
  %1476 = vmatprep.subr.mxu0 0.0
  %1477 = vmatpush1.msra.mxu0 0.0
  %1478 = vmatprep.subr.mxu0 0.0
  %1479 = vmatpush1.msra.mxu0 0.0
  %1480 = vmatprep.subr.mxu0 0.0
  %1481 = vmatpush1.msra.mxu0 0.0
  %1482 = vmatprep.subr.mxu0 0.0
  %1483 = vmatpush1.msra.mxu0 0.0
  %1484 = vmatprep.subr.mxu0 0.0
  %1485 = vmatpush1.msra.mxu0 0.0
  %1486 = vmatprep.subr.mxu0 0.0
  %1487 = vmatpush1.msra.mxu0 0.0
  %1488 = vmatprep.subr.mxu0 0.0
  %1489 = vmatpush1.msra.mxu0 0.0
  %1490 = vmatprep.subr.mxu0 0.0
  %1491 = vmatpush1.msra.mxu0 0.0
  %1492 = vmatprep.subr.mxu0 0.0
  %1493 = vmatpush1.msra.mxu0 0.0
  %1494 = vmatprep.subr.mxu0 0.0
  %1495 = vmatpush1.msra.mxu0 0.0
  %1496 = vmatprep.subr.mxu0 0.0
  %1497 = vmatpush1.msra.mxu0 0.0
  %1498 = vmatprep.mubr.f32.mxu0 0.0
  %1499 = vmatmul.mubr.f32.gmra.mrb[0].mxu0 %v1390
  %v1500 = vpop.f32.mrb[0].mxu0
  %v1501 = vadd.f32 0.0, %v1500
  %v1502 = vpop.f32.mrb[0].mxu0
  %1503 = vmatprep.mubr.f32.mxu0 0.0
  %1504 = vmatmul.mubr.f32.gmra.mrb[0].mxu0 %v1395
  %v1505 = vpop.f32.mrb[0].mxu0
  %v1506 = vadd.f32 0.0, %v1505
  %v1507 = vpop.f32.mrb[0].mxu0
  %1508 = vmatprep.mubr.f32.mxu0 0.0
  %1509 = vmatmul.mubr.f32.gmra.mrb[0].mxu0 %v1400
  %v1510 = vpop.f32.mrb[0].mxu0
  %v1511 = vadd.f32 0.0, %v1510
  %v1512 = vpop.f32.mrb[0].mxu0
  %1513 = vmatprep.mubr.f32.mxu0 0.0
  %1514 = vmatmul.mubr.f32.gmra.mrb[0].mxu0 %v1405
  %v1515 = vpop.f32.mrb[0].mxu0
  %v1516 = vadd.f32 0.0, %v1515
  %v1517 = vpop.f32.mrb[0].mxu0
  %1518 = vmatprep.mubr.f32.mxu0 0.0
  %1519 = vmatmul.mubr.f32.gmra.mrb[0].mxu0 %v1410
  %v1520 = vpop.f32.mrb[0].mxu0
  %v1521 = vadd.f32 0.0, %v1520
  %v1522 = vpop.f32.mrb[0].mxu0
  %1523 = vmatprep.mubr.f32.mxu0 0.0
  %1524 = vmatmul.mubr.f32.gmra.mrb[0].mxu0 %v1415
  %v1525 = vpop.f32.mrb[0].mxu0
  %v1526 = vadd.f32 0.0, %v1525
  %v1527 = vpop.f32.mrb[0].mxu0
  %1528 = vdwg.mxu0
  %v1529 = vadd.f32 %v1271, %v1501
  %v1530 = vadd.f32 %v1276, %v1506
  %v1531 = vadd.f32 %v1281, %v1511
  %v1532 = vadd.f32 %v1286, %v1516
  %v1533 = vadd.f32 %v1291, %v1521
  %v1534 = vadd.f32 %v1296, %v1526
  %v1535 = vld [vmem:[%s14] sm:$0x1]
  %v1536 = vld [vmem:[%s15] sm:$0x1]
  %1537 = vadd.xlane.f32.xlu0 %v934
  %v1538 = vpop.xlane.xlu0 %1537
  %1539 = vadd.xlane.f32.xlu0 %v935
  %v1540 = vpop.xlane.xlu0 %1539
  %1541 = vadd.xlane.f32.xlu0 %v936
  %v1542 = vpop.xlane.xlu0 %1541
  %1543 = vadd.xlane.f32.xlu0 %v937
  %v1544 = vpop.xlane.xlu0 %1543
  %1545 = vadd.xlane.f32.xlu0 %v938
  %v1546 = vpop.xlane.xlu0 %1545
  %1547 = vadd.xlane.f32.xlu0 %v939
  %v1548 = vpop.xlane.xlu0 %1547
  %v1549 = vrcp.pop 128.0
  %v1550 = vmul.f32 %v1538, %v1549
  %v1551 = vmul.f32 %v1540, %v1549
  %v1552 = vmul.f32 %v1542, %v1549
  %v1553 = vmul.f32 %v1544, %v1549
  %v1554 = vmul.f32 %v1546, %v1549
  %v1555 = vmul.f32 %v1548, %v1549
  %v1556 = vmul.f32 %v1550, 4.0
  %v1557 = vmul.f32 %v1551, 4.0
  %v1558 = vmul.f32 %v1552, 4.0
  %v1559 = vmul.f32 %v1553, 4.0
  %v1560 = vmul.f32 %v1554, 4.0
  %v1561 = vmul.f32 %v1555, 4.0
  %v1562 = vsub.f32 %v934, %v1556
  %v1563 = vsub.f32 %v935, %v1557
  %v1564 = vsub.f32 %v936, %v1558
  %v1565 = vsub.f32 %v937, %v1559
  %v1566 = vsub.f32 %v938, %v1560
  %v1567 = vsub.f32 %v939, %v1561
  %v1568 = vmul.f32 %v1562, %v1562
  %v1569 = vmul.f32 %v1563, %v1563
  %v1570 = vmul.f32 %v1564, %v1564
  %v1571 = vmul.f32 %v1565, %v1565
  %v1572 = vmul.f32 %v1566, %v1566
  %v1573 = vmul.f32 %v1567, %v1567
  %1574 = vadd.xlane.f32.xlu0 %v1568
  %v1575 = vpop.xlane.xlu0 %1574
  %1576 = vadd.xlane.f32.xlu0 %v1569
  %v1577 = vpop.xlane.xlu0 %1576
  %1578 = vadd.xlane.f32.xlu0 %v1570
  %v1579 = vpop.xlane.xlu0 %1578
  %1580 = vadd.xlane.f32.xlu0 %v1571
  %v1581 = vpop.xlane.xlu0 %1580
  %1582 = vadd.xlane.f32.xlu0 %v1572
  %v1583 = vpop.xlane.xlu0 %1582
  %1584 = vadd.xlane.f32.xlu0 %v1573
  %v1585 = vpop.xlane.xlu0 %1584
  %v1586 = vmul.f32 %v1575, %v1549
  %v1587 = vmul.f32 %v1577, %v1549
  %v1588 = vmul.f32 %v1579, %v1549
  %v1589 = vmul.f32 %v1581, %v1549
  %v1590 = vmul.f32 %v1583, %v1549
  %v1591 = vmul.f32 %v1585, %v1549
  %v1592 = vmul.f32 %v1586, 4.0
  %v1593 = vmul.f32 %v1587, 4.0
  %v1594 = vmul.f32 %v1588, 4.0
  %v1595 = vmul.f32 %v1589, 4.0
  %v1596 = vmul.f32 %v1590, 4.0
  %v1597 = vmul.f32 %v1591, 4.0
  %v1598 = vmul.f32 %v1556, 3.0
  %v1599 = vmul.f32 %v1557, 3.0
  %v1600 = vmul.f32 %v1558, 3.0
  %v1601 = vmul.f32 %v1559, 3.0
  %v1602 = vmul.f32 %v1560, 3.0
  %v1603 = vmul.f32 %v1561, 3.0
  %v1604 = vmul.f32 %v1598, %v1556
  %v1605 = vmul.f32 %v1599, %v1557
  %v1606 = vmul.f32 %v1600, %v1558
  %v1607 = vmul.f32 %v1601, %v1559
  %v1608 = vmul.f32 %v1602, %v1560
  %v1609 = vmul.f32 %v1603, %v1561
  %v1610 = vsub.f32 %v1592, %v1604
  %v1611 = vsub.f32 %v1593, %v1605
  %v1612 = vsub.f32 %v1594, %v1606
  %v1613 = vsub.f32 %v1595, %v1607
  %v1614 = vsub.f32 %v1596, %v1608
  %v1615 = vsub.f32 %v1597, %v1609
  %v1616 = vadd.f32 %v1610, 1e-05
  %v1617 = vadd.f32 %v1611, 1e-05
  %v1618 = vadd.f32 %v1612, 1e-05
  %v1619 = vadd.f32 %v1613, 1e-05
  %v1620 = vadd.f32 %v1614, 1e-05
  %v1621 = vadd.f32 %v1615, 1e-05
  %v1622 = vrsqrt.pop %v1616
  %v1623 = vrsqrt.pop %v1617
  %v1624 = vrsqrt.pop %v1618
  %v1625 = vrsqrt.pop %v1619
  %v1626 = vrsqrt.pop %v1620
  %v1627 = vrsqrt.pop %v1621
  %v1628 = vmul.f32 %v1562, %v1622
  %v1629 = vmul.f32 %v1563, %v1623
  %v1630 = vmul.f32 %v1564, %v1624
  %v1631 = vmul.f32 %v1565, %v1625
  %v1632 = vmul.f32 %v1566, %v1626
  %v1633 = vmul.f32 %v1567, %v1627
  %v1635 = vlaneseq
  %v1636 = vshrl.u32 %v1635, 7
  %v1637 = vsub.s32 0, %v1636
  %v1638 = vrot.slane %v1535, %v1637
  %v1640 = vmul.f32 %v1628, %v1638
  %v1641 = vmul.f32 %v1629, %v1638
  %v1642 = vmul.f32 %v1630, %v1638
  %v1643 = vmul.f32 %v1631, %v1638
  %v1644 = vmul.f32 %v1632, %v1638
  %v1645 = vmul.f32 %v1633, %v1638
  %v1647 = vlaneseq
  %v1648 = vshrl.u32 %v1647, 7
  %v1649 = vsub.s32 0, %v1648
  %v1650 = vrot.slane %v1536, %v1649
  %v1652 = vadd.f32 %v1640, %v1650
  %v1653 = vadd.f32 %v1641, %v1650
  %v1654 = vadd.f32 %v1642, %v1650
  %v1655 = vadd.f32 %v1643, %v1650
  %v1656 = vadd.f32 %v1644, %v1650
  %v1657 = vadd.f32 %v1645, %v1650
  %v1658 = vld [vmem:[%s16] sm:$0xff]
  %v1659 = vld [vmem:[%s16 + $0x8] sm:$0xff]
  %v1660 = vld [vmem:[%s16 + $0x10] sm:$0xff]
  %v1661 = vld [vmem:[%s16 + $0x18] sm:$0xff]
  %v1662 = vld [vmem:[%s16 + $0x20] sm:$0xff]
  %v1663 = vld [vmem:[%s16 + $0x28] sm:$0xff]
  %v1665 = vsel %vm86, %v1658, 0
  %v1668 = vsel %vm86, %v1659, 0
  %v1671 = vsel %vm86, %v1660, 0
  %v1674 = vsel %vm86, %v1661, 0
  %v1677 = vsel %vm86, %v1662, 0
  %v1680 = vsel %vm86, %v1663, 0
  %1682 = vmatprep.subr.mxu0 0.0
  %1683 = vmatpush1.msra.mxu0 %v1652
  %1684 = vmatprep.subr.mxu0 0.0
  %1685 = vmatpush1.msra.mxu0 %v1653
  %1686 = vmatprep.subr.mxu0 0.0
  %1687 = vmatpush1.msra.mxu0 %v1654
  %1688 = vmatprep.subr.mxu0 0.0
  %1689 = vmatpush1.msra.mxu0 %v1655
  %1690 = vmatprep.subr.mxu0 0.0
  %1691 = vmatpush1.msra.mxu0 %v1656
  %1692 = vmatprep.subr.mxu0 0.0
  %1693 = vmatpush1.msra.mxu0 %v1657
  %1694 = vmatprep.subr.mxu0 0.0
  %1695 = vmatpush1.msra.mxu0 0.0
  %1696 = vmatprep.subr.mxu0 0.0
  %1697 = vmatpush1.msra.mxu0 0.0
  %1698 = vmatprep.subr.mxu0 0.0
  %1699 = vmatpush1.msra.mxu0 0.0
  %1700 = vmatprep.subr.mxu0 0.0
  %1701 = vmatpush1.msra.mxu0 0.0
  %1702 = vmatprep.subr.mxu0 0.0
  %1703 = vmatpush1.msra.mxu0 0.0
  %1704 = vmatprep.subr.mxu0 0.0
  %1705 = vmatpush1.msra.mxu0 0.0
  %1706 = vmatprep.subr.mxu0 0.0
  %1707 = vmatpush1.msra.mxu0 0.0
  %1708 = vmatprep.subr.mxu0 0.0
  %1709 = vmatpush1.msra.mxu0 0.0
  %1710 = vmatprep.subr.mxu0 0.0
  %1711 = vmatpush1.msra.mxu0 0.0
  %1712 = vmatprep.subr.mxu0 0.0
  %1713 = vmatpush1.msra.mxu0 0.0
  %1714 = vmatprep.subr.mxu0 0.0
  %1715 = vmatpush1.msra.mxu0 0.0
  %1716 = vmatprep.subr.mxu0 0.0
  %1717 = vmatpush1.msra.mxu0 0.0
  %1718 = vmatprep.subr.mxu0 0.0
  %1719 = vmatpush1.msra.mxu0 0.0
  %1720 = vmatprep.subr.mxu0 0.0
  %1721 = vmatpush1.msra.mxu0 0.0
  %1722 = vmatprep.subr.mxu0 0.0
  %1723 = vmatpush1.msra.mxu0 0.0
  %1724 = vmatprep.subr.mxu0 0.0
  %1725 = vmatpush1.msra.mxu0 0.0
  %1726 = vmatprep.subr.mxu0 0.0
  %1727 = vmatpush1.msra.mxu0 0.0
  %1728 = vmatprep.subr.mxu0 0.0
  %1729 = vmatpush1.msra.mxu0 0.0
  %1730 = vmatprep.subr.mxu0 0.0
  %1731 = vmatpush1.msra.mxu0 0.0
  %1732 = vmatprep.subr.mxu0 0.0
  %1733 = vmatpush1.msra.mxu0 0.0
  %1734 = vmatprep.subr.mxu0 0.0
  %1735 = vmatpush1.msra.mxu0 0.0
  %1736 = vmatprep.subr.mxu0 0.0
  %1737 = vmatpush1.msra.mxu0 0.0
  %1738 = vmatprep.subr.mxu0 0.0
  %1739 = vmatpush1.msra.mxu0 0.0
  %1740 = vmatprep.subr.mxu0 0.0
  %1741 = vmatpush1.msra.mxu0 0.0
  %1742 = vmatprep.subr.mxu0 0.0
  %1743 = vmatpush1.msra.mxu0 0.0
  %1744 = vmatprep.subr.mxu0 0.0
  %1745 = vmatpush1.msra.mxu0 0.0
  %1746 = vmatprep.mubr.f32.mxu0 0.0
  %1747 = vmatmul.mubr.f32.gmra.mrb[0].mxu0 %v1665
  %v1748 = vpop.f32.mrb[0].mxu0
  %v1749 = vadd.f32 0.0, %v1748
  %v1750 = vpop.f32.mrb[0].mxu0
  %1751 = vmatprep.mubr.f32.mxu0 0.0
  %1752 = vmatmul.mubr.f32.gmra.mrb[0].mxu0 %v1668
  %v1753 = vpop.f32.mrb[0].mxu0
  %v1754 = vadd.f32 0.0, %v1753
  %v1755 = vpop.f32.mrb[0].mxu0
  %1756 = vmatprep.mubr.f32.mxu0 0.0
  %1757 = vmatmul.mubr.f32.gmra.mrb[0].mxu0 %v1671
  %v1758 = vpop.f32.mrb[0].mxu0
  %v1759 = vadd.f32 0.0, %v1758
  %v1760 = vpop.f32.mrb[0].mxu0
  %1761 = vmatprep.mubr.f32.mxu0 0.0
  %1762 = vmatmul.mubr.f32.gmra.mrb[0].mxu0 %v1674
  %v1763 = vpop.f32.mrb[0].mxu0
  %v1764 = vadd.f32 0.0, %v1763
  %v1765 = vpop.f32.mrb[0].mxu0
  %1766 = vmatprep.mubr.f32.mxu0 0.0
  %1767 = vmatmul.mubr.f32.gmra.mrb[0].mxu0 %v1677
  %v1768 = vpop.f32.mrb[0].mxu0
  %v1769 = vadd.f32 0.0, %v1768
  %v1770 = vpop.f32.mrb[0].mxu0
  %1771 = vmatprep.mubr.f32.mxu0 0.0
  %1772 = vmatmul.mubr.f32.gmra.mrb[0].mxu0 %v1680
  %v1773 = vpop.f32.mrb[0].mxu0
  %v1774 = vadd.f32 0.0, %v1773
  %v1775 = vpop.f32.mrb[0].mxu0
  %1776 = vdwg.mxu0
  %v1777 = vld [vmem:[%s17] sm:$0xff]
  %v1778 = vld [vmem:[%s17 + $0x8] sm:$0xff]
  %v1779 = vld [vmem:[%s17 + $0x10] sm:$0xff]
  %v1780 = vld [vmem:[%s17 + $0x18] sm:$0xff]
  %v1781 = vld [vmem:[%s17 + $0x20] sm:$0xff]
  %v1782 = vld [vmem:[%s17 + $0x28] sm:$0xff]
  %v1783 = vld [vmem:[%s17 + $0x30] sm:$0xff]
  %v1784 = vld [vmem:[%s17 + $0x38] sm:$0xff]
  %v1785 = vld [vmem:[%s17 + $0x40] sm:$0xff]
  %v1786 = vld [vmem:[%s17 + $0x48] sm:$0xff]
  %v1787 = vld [vmem:[%s17 + $0x50] sm:$0xff]
  %v1788 = vld [vmem:[%s17 + $0x58] sm:$0xff]
  %v1789 = vld [vmem:[%s17 + $0x60] sm:$0xff]
  %v1790 = vld [vmem:[%s17 + $0x68] sm:$0xff]
  %v1791 = vld [vmem:[%s17 + $0x70] sm:$0xff]
  %v1792 = vld [vmem:[%s17 + $0x78] sm:$0xff]
  %v1793 = vld [vmem:[%s18] sm:$0x1]
  %v1795 = vlaneseq
  %v1796 = vshrl.u32 %v1795, 7
  %v1797 = vsub.s32 0, %v1796
  %v1798 = vrot.slane %v1793, %v1797
  %1800 = vmatprep.subr.mxu0 0.0
  %1801 = vmatpush1.msra.mxu0 %v1777
  %1802 = vmatprep.subr.mxu0 0.0
  %1803 = vmatpush1.msra.mxu0 %v1778
  %1804 = vmatprep.subr.mxu0 0.0
  %1805 = vmatpush1.msra.mxu0 %v1779
  %1806 = vmatprep.subr.mxu0 0.0
  %1807 = vmatpush1.msra.mxu0 %v1780
  %1808 = vmatprep.subr.mxu0 0.0
  %1809 = vmatpush1.msra.mxu0 %v1781
  %1810 = vmatprep.subr.mxu0 0.0
  %1811 = vmatpush1.msra.mxu0 %v1782
  %1812 = vmatprep.subr.mxu0 0.0
  %1813 = vmatpush1.msra.mxu0 %v1783
  %1814 = vmatprep.subr.mxu0 0.0
  %1815 = vmatpush1.msra.mxu0 %v1784
  %1816 = vmatprep.subr.mxu0 0.0
  %1817 = vmatpush1.msra.mxu0 %v1785
  %1818 = vmatprep.subr.mxu0 0.0
  %1819 = vmatpush1.msra.mxu0 %v1786
  %1820 = vmatprep.subr.mxu0 0.0
  %1821 = vmatpush1.msra.mxu0 %v1787
  %1822 = vmatprep.subr.mxu0 0.0
  %1823 = vmatpush1.msra.mxu0 %v1788
  %1824 = vmatprep.subr.mxu0 0.0
  %1825 = vmatpush1.msra.mxu0 %v1789
  %1826 = vmatprep.subr.mxu0 0.0
  %1827 = vmatpush1.msra.mxu0 %v1790
  %1828 = vmatprep.subr.mxu0 0.0
  %1829 = vmatpush1.msra.mxu0 %v1791
  %1830 = vmatprep.subr.mxu0 0.0
  %1831 = vmatpush1.msra.mxu0 %v1792
  %1832 = vmatprep.subr.mxu0 0.0
  %1833 = vmatpush1.msra.mxu0 0.0
  %1834 = vmatprep.subr.mxu0 0.0
  %1835 = vmatpush1.msra.mxu0 0.0
  %1836 = vmatprep.subr.mxu0 0.0
  %1837 = vmatpush1.msra.mxu0 0.0
  %1838 = vmatprep.subr.mxu0 0.0
  %1839 = vmatpush1.msra.mxu0 0.0
  %1840 = vmatprep.subr.mxu0 0.0
  %1841 = vmatpush1.msra.mxu0 0.0
  %1842 = vmatprep.subr.mxu0 0.0
  %1843 = vmatpush1.msra.mxu0 0.0
  %1844 = vmatprep.subr.mxu0 0.0
  %1845 = vmatpush1.msra.mxu0 0.0
  %1846 = vmatprep.subr.mxu0 0.0
  %1847 = vmatpush1.msra.mxu0 0.0
  %1848 = vmatprep.subr.mxu0 0.0
  %1849 = vmatpush1.msra.mxu0 0.0
  %1850 = vmatprep.subr.mxu0 0.0
  %1851 = vmatpush1.msra.mxu0 0.0
  %1852 = vmatprep.subr.mxu0 0.0
  %1853 = vmatpush1.msra.mxu0 0.0
  %1854 = vmatprep.subr.mxu0 0.0
  %1855 = vmatpush1.msra.mxu0 0.0
  %1856 = vmatprep.subr.mxu0 0.0
  %1857 = vmatpush1.msra.mxu0 0.0
  %1858 = vmatprep.subr.mxu0 0.0
  %1859 = vmatpush1.msra.mxu0 0.0
  %1860 = vmatprep.subr.mxu0 0.0
  %1861 = vmatpush1.msra.mxu0 0.0
  %1862 = vmatprep.subr.mxu0 0.0
  %1863 = vmatpush1.msra.mxu0 0.0
  %1864 = vmatprep.mubr.f32.mxu0 0.0
  %1865 = vmatmul.mubr.f32.gmra.mrb[0].mxu0 %v1749
  %v1866 = vpop.f32.mrb[0].mxu0
  %v1867 = vadd.f32 %v1798, %v1866
  %v1868 = vpop.f32.mrb[0].mxu0
  %1869 = vmatprep.mubr.f32.mxu0 0.0
  %1870 = vmatmul.mubr.f32.gmra.mrb[0].mxu0 %v1754
  %v1871 = vpop.f32.mrb[0].mxu0
  %v1872 = vadd.f32 %v1798, %v1871
  %v1873 = vpop.f32.mrb[0].mxu0
  %1874 = vmatprep.mubr.f32.mxu0 0.0
  %1875 = vmatmul.mubr.f32.gmra.mrb[0].mxu0 %v1759
  %v1876 = vpop.f32.mrb[0].mxu0
  %v1877 = vadd.f32 %v1798, %v1876
  %v1878 = vpop.f32.mrb[0].mxu0
  %1879 = vmatprep.mubr.f32.mxu0 0.0
  %1880 = vmatmul.mubr.f32.gmra.mrb[0].mxu0 %v1764
  %v1881 = vpop.f32.mrb[0].mxu0
  %v1882 = vadd.f32 %v1798, %v1881
  %v1883 = vpop.f32.mrb[0].mxu0
  %1884 = vmatprep.mubr.f32.mxu0 0.0
  %1885 = vmatmul.mubr.f32.gmra.mrb[0].mxu0 %v1769
  %v1886 = vpop.f32.mrb[0].mxu0
  %v1887 = vadd.f32 %v1798, %v1886
  %v1888 = vpop.f32.mrb[0].mxu0
  %1889 = vmatprep.mubr.f32.mxu0 0.0
  %1890 = vmatmul.mubr.f32.gmra.mrb[0].mxu0 %v1774
  %v1891 = vpop.f32.mrb[0].mxu0
  %v1892 = vadd.f32 %v1798, %v1891
  %v1893 = vpop.f32.mrb[0].mxu0
  %1894 = vdwg.mxu0
  %v1895 = vld [vmem:[%s20] sm:$0xff]
  %v1896 = vld [vmem:[%s20 + $0x8] sm:$0xff]
  %v1897 = vld [vmem:[%s20 + $0x10] sm:$0xff]
  %v1898 = vld [vmem:[%s20 + $0x18] sm:$0xff]
  %v1899 = vld [vmem:[%s20 + $0x20] sm:$0xff]
  %v1900 = vld [vmem:[%s20 + $0x28] sm:$0xff]
  %v1901 = vadd.f32 %v1529, %v1867
  %v1902 = vadd.f32 %v1530, %v1872
  %v1903 = vadd.f32 %v1531, %v1877
  %v1904 = vadd.f32 %v1532, %v1882
  %v1905 = vadd.f32 %v1533, %v1887
  %v1906 = vadd.f32 %v1534, %v1892
  %v1907 = vld [vmem:[%s19] sm:$0xff]
  %v1908 = vld [vmem:[%s19 + $0x8] sm:$0xff]
  %v1909 = vld [vmem:[%s19 + $0x10] sm:$0xff]
  %v1910 = vld [vmem:[%s19 + $0x18] sm:$0xff]
  %v1911 = vld [vmem:[%s19 + $0x20] sm:$0xff]
  %v1912 = vld [vmem:[%s19 + $0x28] sm:$0xff]
  %v1913 = vld [vmem:[%s19 + $0x30] sm:$0xff]
  %v1914 = vld [vmem:[%s19 + $0x38] sm:$0xff]
  %v1915 = vld [vmem:[%s19 + $0x40] sm:$0xff]
  %v1916 = vld [vmem:[%s19 + $0x48] sm:$0xff]
  %v1917 = vld [vmem:[%s19 + $0x50] sm:$0xff]
  %v1918 = vld [vmem:[%s19 + $0x58] sm:$0xff]
  %v1919 = vld [vmem:[%s19 + $0x60] sm:$0xff]
  %v1920 = vld [vmem:[%s19 + $0x68] sm:$0xff]
  %v1921 = vld [vmem:[%s19 + $0x70] sm:$0xff]
  %v1922 = vld [vmem:[%s19 + $0x78] sm:$0xff]
  %1923 = vmatprep.subr.mxu0 0.0
  %1924 = vmatpush1.msra.mxu0 %v1907
  %1925 = vmatprep.subr.mxu0 0.0
  %1926 = vmatpush1.msra.mxu0 %v1908
  %1927 = vmatprep.subr.mxu0 0.0
  %1928 = vmatpush1.msra.mxu0 %v1909
  %1929 = vmatprep.subr.mxu0 0.0
  %1930 = vmatpush1.msra.mxu0 %v1910
  %1931 = vmatprep.subr.mxu0 0.0
  %1932 = vmatpush1.msra.mxu0 %v1911
  %1933 = vmatprep.subr.mxu0 0.0
  %1934 = vmatpush1.msra.mxu0 %v1912
  %1935 = vmatprep.subr.mxu0 0.0
  %1936 = vmatpush1.msra.mxu0 %v1913
  %1937 = vmatprep.subr.mxu0 0.0
  %1938 = vmatpush1.msra.mxu0 %v1914
  %1939 = vmatprep.subr.mxu0 0.0
  %1940 = vmatpush1.msra.mxu0 %v1915
  %1941 = vmatprep.subr.mxu0 0.0
  %1942 = vmatpush1.msra.mxu0 %v1916
  %1943 = vmatprep.subr.mxu0 0.0
  %1944 = vmatpush1.msra.mxu0 %v1917
  %1945 = vmatprep.subr.mxu0 0.0
  %1946 = vmatpush1.msra.mxu0 %v1918
  %1947 = vmatprep.subr.mxu0 0.0
  %1948 = vmatpush1.msra.mxu0 %v1919
  %1949 = vmatprep.subr.mxu0 0.0
  %1950 = vmatpush1.msra.mxu0 %v1920
  %1951 = vmatprep.subr.mxu0 0.0
  %1952 = vmatpush1.msra.mxu0 %v1921
  %1953 = vmatprep.subr.mxu0 0.0
  %1954 = vmatpush1.msra.mxu0 %v1922
  %1955 = vmatprep.subr.mxu0 0.0
  %1956 = vmatpush1.msra.mxu0 0.0
  %1957 = vmatprep.subr.mxu0 0.0
  %1958 = vmatpush1.msra.mxu0 0.0
  %1959 = vmatprep.subr.mxu0 0.0
  %1960 = vmatpush1.msra.mxu0 0.0
  %1961 = vmatprep.subr.mxu0 0.0
  %1962 = vmatpush1.msra.mxu0 0.0
  %1963 = vmatprep.subr.mxu0 0.0
  %1964 = vmatpush1.msra.mxu0 0.0
  %1965 = vmatprep.subr.mxu0 0.0
  %1966 = vmatpush1.msra.mxu0 0.0
  %1967 = vmatprep.subr.mxu0 0.0
  %1968 = vmatpush1.msra.mxu0 0.0
  %1969 = vmatprep.subr.mxu0 0.0
  %1970 = vmatpush1.msra.mxu0 0.0
  %1971 = vmatprep.subr.mxu0 0.0
  %1972 = vmatpush1.msra.mxu0 0.0
  %1973 = vmatprep.subr.mxu0 0.0
  %1974 = vmatpush1.msra.mxu0 0.0
  %1975 = vmatprep.subr.mxu0 0.0
  %1976 = vmatpush1.msra.mxu0 0.0
  %1977 = vmatprep.subr.mxu0 0.0
  %1978 = vmatpush1.msra.mxu0 0.0
  %1979 = vmatprep.subr.mxu0 0.0
  %1980 = vmatpush1.msra.mxu0 0.0
  %1981 = vmatprep.subr.mxu0 0.0
  %1982 = vmatpush1.msra.mxu0 0.0
  %1983 = vmatprep.subr.mxu0 0.0
  %1984 = vmatpush1.msra.mxu0 0.0
  %1985 = vmatprep.subr.mxu0 0.0
  %1986 = vmatpush1.msra.mxu0 0.0
  %1987 = vmatprep.mubr.f32.mxu0 0.0
  %1988 = vmatmul.mubr.f32.gmra.mrb[0].mxu0 %v1901
  %v1989 = vpop.f32.mrb[0].mxu0
  %v1990 = vadd.f32 0.0, %v1989
  %v1991 = vpop.f32.mrb[0].mxu0
  %1992 = vmatprep.mubr.f32.mxu0 0.0
  %1993 = vmatmul.mubr.f32.gmra.mrb[0].mxu0 %v1902
  %v1994 = vpop.f32.mrb[0].mxu0
  %v1995 = vadd.f32 0.0, %v1994
  %v1996 = vpop.f32.mrb[0].mxu0
  %1997 = vmatprep.mubr.f32.mxu0 0.0
  %1998 = vmatmul.mubr.f32.gmra.mrb[0].mxu0 %v1903
  %v1999 = vpop.f32.mrb[0].mxu0
  %v2000 = vadd.f32 0.0, %v1999
  %v2001 = vpop.f32.mrb[0].mxu0
  %2002 = vmatprep.mubr.f32.mxu0 0.0
  %2003 = vmatmul.mubr.f32.gmra.mrb[0].mxu0 %v1904
  %v2004 = vpop.f32.mrb[0].mxu0
  %v2005 = vadd.f32 0.0, %v2004
  %v2006 = vpop.f32.mrb[0].mxu0
  %2007 = vmatprep.mubr.f32.mxu0 0.0
  %2008 = vmatmul.mubr.f32.gmra.mrb[0].mxu0 %v1905
  %v2009 = vpop.f32.mrb[0].mxu0
  %v2010 = vadd.f32 0.0, %v2009
  %v2011 = vpop.f32.mrb[0].mxu0
  %2012 = vmatprep.mubr.f32.mxu0 0.0
  %2013 = vmatmul.mubr.f32.gmra.mrb[0].mxu0 %v1906
  %v2014 = vpop.f32.mrb[0].mxu0
  %v2015 = vadd.f32 0.0, %v2014
  %v2016 = vpop.f32.mrb[0].mxu0
  %2017 = vdwg.mxu0
  %v2018 = vadd.f32 %v1895, %v1990
  %v2019 = vadd.f32 %v1896, %v1995
  %v2020 = vadd.f32 %v1897, %v2000
  %v2021 = vadd.f32 %v1898, %v2005
  %v2022 = vadd.f32 %v1899, %v2010
  %v2023 = vadd.f32 %v1900, %v2015
  %2024 = vst [vmem:[%s21] sm:$0xff] %v2018
  %2025 = vst [vmem:[%s21 + $0x8] sm:$0xff] %v2019
  %2026 = vst [vmem:[%s21 + $0x10] sm:$0xff] %v2020
  %2027 = vst [vmem:[%s21 + $0x18] sm:$0xff] %v2021
  %2028 = vst [vmem:[%s21 + $0x20] sm:$0xff] %v2022
  %2029 = vst [vmem:[%s21 + $0x28] sm:$0xff] %v2023
  // Predicated region
  $region86: #{model_forward.23} parent=0 // pred_check
    _
  $region87: #{model_forward.23} parent=0 // pred_check_branch
    %2031 = sbr.rel (0) target = $region89
  $region88: #{model_forward.23} parent=0 // pred_region
    _
  $region89: #{model_forward.23} parent=0 // pred_fallthru
    _
  // Predicated region
  $region90: #{model_forward.23} parent=0 // pred_check
    _
  $region91: #{model_forward.23} parent=0 // pred_check_branch
    %2033 = sbr.rel (0) target = $region93
  $region92: #{model_forward.23} parent=0 // pred_region
    _
  $region93: #{model_forward.23} parent=0 // pred_fallthru
    _

</llo_original>
